<compile_context>
chip_gen: v5e
topology: v5e:2x2
jax: 0.10.0
libtpu: 0.0.40
codegen_flags: <defaults>
</compile_context>

<pallas_src>
import functools
import math

import jax
import jax.numpy as jnp
from jax import lax
from jax.experimental import pallas as pl
from jax.experimental.pallas import tpu as pltpu


# ----------------------------------------------------------------------------
# Per-generation VMEM budget + tile helpers
# ----------------------------------------------------------------------------
def _vmem_budget_bytes():
    cap = None
    try:
        cap = getattr(pltpu.get_tpu_info(), "vmem_capacity_bytes", None)
    except Exception:
        cap = None
    if cap is None:
        try:
            kind = jax.devices()[0].device_kind.lower()
            cap = 64 * 2**20 if "7" in kind else 128 * 2**20
        except Exception:
            cap = 128 * 2**20
    if cap <= 64 * 2**20:           # v7x-class: 64 MiB physical, no headroom
        return 32 * 2**20
    return 100 * 2**20              # v5e / v6e: 128 MiB physical -> bigger tiles


_VMEM_LIMIT = _vmem_budget_bytes()
_BIG_VMEM = _VMEM_LIMIT > 48 * 2**20


def _round_up(n, m):
    return ((n + m - 1) // m) * m


def _pick_tile(n, max_tile):
    """Largest multiple of 128 <= max_tile that divides n (n is padded to 128)."""
    t = (min(max_tile, n) // 128) * 128
    while t > 128 and n % t != 0:
        t -= 128
    if t <= 0 or n % t != 0:
        return n
    return t


def _acc_row_tile(n):
    """Row tile for kernels carrying a (tm, n) f32 accumulator in VMEM."""
    for t in (512, 384, 256, 128):
        if t <= n and n % t == 0 and t * n * 4 <= _VMEM_LIMIT // 3:
            return t
    return _pick_tile(n, 128)


def _attn_row_tile(n):
    t = _pick_tile(n, 128)
    # v7x: ~5 live (tm, n) f32 planes per step must fit the 32 MiB budget
    if not _BIG_VMEM and n >= 4096 and n % 64 == 0:
        t = 64
    return t


def _bf16(x):
    return x.astype(jnp.bfloat16)


# ----------------------------------------------------------------------------
# Kernel 1: GraphConv(aggr='mean') + ReLU, fused with global_mean_pool partials
#   h_i  = relu( [mean_{j->i}(w_ji x_j) | x_i] @ [W_rel; W_root] + b_rel )
#   pool = memb @ h   (per row tile; summed outside, then * 1/count)
# ----------------------------------------------------------------------------
def _graphconv_pool_kernel(adj_ref, x_ref, w_ref, b_ref, memb_ref, h_ref, pool_ref):
    i = pl.program_id(0)
    tm = h_ref.shape[0]

    adj = adj_ref[...]                                          # (tm, N) bf16
    deg = jnp.sum((adj != 0).astype(jnp.float32), axis=1, keepdims=True)
    inv = pl.reciprocal(jnp.maximum(deg, 1.0), approx=True)     # EUP slot (benign approx)
    agg = jnp.dot(adj, x_ref[...],
                  preferred_element_type=jnp.float32) * inv     # mean aggregation (f32)

    xi = x_ref[pl.ds(pl.multiple_of(i * tm, tm), tm), :]        # (tm, fin) bf16 root term
    # two narrow projections fused into one MXU pass against prepacked [W_rel; W_root]
    hin = jnp.concatenate([agg.astype(jnp.bfloat16), xi], axis=1)
    h = jnp.dot(hin, w_ref[...], preferred_element_type=jnp.float32) + b_ref[...]
    h = jnp.maximum(h, 0.0)
    hb = h.astype(jnp.bfloat16)
    h_ref[...] = hb
    # fused global_mean_pool: per-tile partial sums (active nodes selected by memb)
    pool_ref[0] = jnp.dot(memb_ref[...], hb, preferred_element_type=jnp.float32)


def graphconv_relu_pool(adj, x, w_cat, b_rel, memb):
    N, fin = x.shape
    H = w_cat.shape[1]
    G = memb.shape[0]
    tm = _pick_tile(N, 256 if _BIG_VMEM else 128)
    nt = N // tm
    h, pooled = pl.pallas_call(
        _graphconv_pool_kernel,
        out_shape=(jax.ShapeDtypeStruct((N, H), jnp.bfloat16),
                   jax.ShapeDtypeStruct((nt, G, H), jnp.float32)),
        grid_spec=pltpu.PrefetchScalarGridSpec(
            num_scalar_prefetch=0,
            grid=(nt,),
            in_specs=[
                pl.BlockSpec((tm, N), lambda i: (i, 0)),        # adj row tile (bf16)
                pl.BlockSpec((N, fin), lambda i: (0, 0)),       # x (bf16, resident)
                pl.BlockSpec((2 * fin, H), lambda i: (0, 0)),   # [W_rel; W_root] bf16
                pl.BlockSpec((1, H), lambda i: (0, 0)),         # b_rel f32
                pl.BlockSpec((G, tm), lambda i: (0, i)),        # membership columns bf16
            ],
            out_specs=[
                pl.BlockSpec((tm, H), lambda i: (i, 0)),
                pl.BlockSpec((1, G, H), lambda i: (i, 0, 0)),
            ]),
        compiler_params=pltpu.CompilerParams(
            dimension_semantics=("parallel",),
            vmem_limit_bytes=_VMEM_LIMIT),
    )(adj, x, w_cat, b_rel, memb)
    return h, jnp.sum(pooled, axis=0)


# ----------------------------------------------------------------------------
# Kernel 2: ASAPooling attention (row-tiled)
#   in-kernel self-loop mask via iota; 2-D scatter-max (row broadcast + XLU lane
#   reduce, no 3-D temp); masked softmax; one MXU pass S @ [x | x@Wabc]
# ----------------------------------------------------------------------------
def _asap_attn_kernel(adj_ref, act_ref, xext_ref, xT_ref, uwT_ref, ub_ref,
                      vT_ref, bslab_ref, s_ref, slab_ref, *, H):
    NEG = -1e30
    i = pl.program_id(0)
    tm, N = s_ref.shape

    adj = adj_ref[...]                                          # (tm, N) bf16
    act = act_ref[...]                                          # (tm, 1) f32
    colg = lax.broadcasted_iota(jnp.int32, (tm, N), 1)
    rowg = i * tm + lax.broadcasted_iota(jnp.int32, (tm, N), 0)
    # structural mask incl. add_remaining_self_loops for still-active nodes
    Mf = jnp.where((adj != 0) | ((colg == rowg) & (act > 0.0)), 1.0, 0.0)
    deg = jnp.sum(Mf, axis=1, keepdims=True)
    has_in = deg > 0.0

    # scatter-max of neighbour features, one feature (lane column) at a time:
    # full-lane (tm, N) base + broadcast add + XLU lane reduce  (no 3-D temp / spills)
    neg_base = jnp.where(Mf > 0.0, 0.0, NEG)                    # (tm, N), built once
    lane_h = lax.broadcasted_iota(jnp.int32, (tm, H), 1)

    def max_body(h, xq):
        xrow = xT_ref[pl.ds(h, 1), :].astype(jnp.float32)       # (1, N) row broadcast
        mx = jnp.max(neg_base + xrow, axis=1, keepdims=True)    # (tm, 1) XLU reduce
        return jnp.where(lane_h == h, mx, xq)

    xq0 = jnp.full((tm, H), NEG, jnp.float32)
    try:
        xq = lax.fori_loop(0, H, max_body, xq0, unroll=True)
    except TypeError:                                           # older jax w/o unroll=
        xq = lax.fori_loop(0, H, max_body, xq0)
    xq = jnp.where(has_in, xq, 0.0)

    # u_i = att([lin(x_q_i) || .]) with lin folded into uw/ub; VPU dot, no 1-wide matvec
    u = jnp.sum(xq * uwT_ref[...], axis=1, keepdims=True) + ub_ref[...]   # (tm, 1)
    sc = u + vT_ref[...]                                        # sc[i, j] = u_i + v_j
    sc = jnp.where(sc > 0.0, sc, 0.2 * sc)                      # leaky_relu(0.2)
    sc = jnp.where(Mf > 0.0, sc, NEG)
    smax = jnp.max(sc, axis=-1, keepdims=True)
    smax = jnp.where(has_in, smax, 0.0)
    e = jnp.exp(sc - smax) * Mf
    denom = jnp.sum(e, axis=-1, keepdims=True)
    S = e * pl.reciprocal(jnp.maximum(denom, 1e-20), approx=True)

    Sb = S.astype(jnp.bfloat16)
    s_ref[...] = Sb                                             # bf16 matmul operand
    # [S@x | S@(x@Wabc)] in one MXU pass; LEConv projections folded outside.
    slab_ref[...] = (jnp.dot(Sb, xext_ref[...], preferred_element_type=jnp.float32)
                     + bslab_ref[...])


def asap_attention(adj, act_col, x_ext, xT, uwT, ub, vT, bslab):
    N = adj.shape[0]
    He = x_ext.shape[1]
    H = xT.shape[0]
    tm = _attn_row_tile(N)
    nt = N // tm
    cost = pl.CostEstimate(
        flops=2 * N * N * He + 4 * N * N + 2 * N * N * H,
        transcendentals=N * N,
        bytes_accessed=2 * N * N * 2 + 2 * N * N + 4 * N * He)
    kernel = functools.partial(_asap_attn_kernel, H=H)
    return pl.pallas_call(
        kernel,
        out_shape=(jax.ShapeDtypeStruct((N, N), jnp.bfloat16),
                   jax.ShapeDtypeStruct((N, He), jnp.float32)),
        grid_spec=pltpu.PrefetchScalarGridSpec(
            num_scalar_prefetch=0,
            grid=(nt,),
            in_specs=[
                pl.BlockSpec((tm, N), lambda i: (i, 0)),        # adj bf16
                pl.BlockSpec((tm, 1), lambda i: (i, 0)),        # active mask column
                pl.BlockSpec((N, He), lambda i: (0, 0)),        # [x | x@Wabc] bf16
                pl.BlockSpec((H, N), lambda i: (0, 0)),         # x^T bf16 (scatter-max)
                pl.BlockSpec((1, H), lambda i: (0, 0)),         # uw^T f32
                pl.BlockSpec((1, 1), lambda i: (0, 0)),         # ub f32
                pl.BlockSpec((1, N), lambda i: (0, 0)),         # v^T f32 (precomputed)
                pl.BlockSpec((1, He), lambda i: (0, 0)),        # [0 | b_abc] f32
            ],
            out_specs=[
                pl.BlockSpec((tm, N), lambda i: (i, 0)),
                pl.BlockSpec((tm, He), lambda i: (i, 0)),
            ]),
        compiler_params=pltpu.CompilerParams(
            dimension_semantics=("parallel",),
            vmem_limit_bytes=_VMEM_LIMIT),
        cost_estimate=cost,
    )(adj, act_col, x_ext, xT, uwT, ub, vT, bslab)


# ----------------------------------------------------------------------------
# Kernel 3: LEConv fitness   fit_i = sigmoid( sum_j M_ij a_j - deg_i b_i + c_i )
#   mask derived from S != 0 (bf16); VPU multiply + XLU lane reduce (no 1-wide
#   matvec); EXACT sigmoid (fitness orders the top-k selection).
# ----------------------------------------------------------------------------
def _fitness_kernel(s_ref, aT_ref, bc_ref, fit_ref):
    S = s_ref[...]                                              # (tm, N) bf16
    nz = S != 0
    deg = jnp.sum(jnp.where(nz, 1.0, 0.0), axis=1, keepdims=True)
    agg_a = jnp.sum(jnp.where(nz, aT_ref[...], 0.0), axis=1, keepdims=True)
    fit_lin = agg_a - deg * bc_ref[:, 0:1] + bc_ref[:, 1:2]
    fit_ref[...] = 1.0 / (1.0 + jnp.exp(-fit_lin))              # exact sigmoid


def asap_fitness(S, aT, bc):
    N = S.shape[0]
    tm = _pick_tile(N, 256 if _BIG_VMEM else 128)
    nt = N // tm
    return pl.pallas_call(
        _fitness_kernel,
        out_shape=jax.ShapeDtypeStruct((N, 1), jnp.float32),
        grid_spec=pltpu.PrefetchScalarGridSpec(
            num_scalar_prefetch=0,
            grid=(nt,),
            in_specs=[
                pl.BlockSpec((tm, N), lambda i: (i, 0)),        # S (bf16)
                pl.BlockSpec((1, N), lambda i: (0, 0)),         # a^T (all clusters) f32
                pl.BlockSpec((tm, 2), lambda i: (i, 0)),        # [b | c] row tile
            ],
            out_specs=pl.BlockSpec((tm, 1), lambda i: (i, 0))),
        compiler_params=pltpu.CompilerParams(
            dimension_semantics=("parallel",),
            vmem_limit_bytes=_VMEM_LIMIT),
    )(S, aT, bc)


# ----------------------------------------------------------------------------
# Kernel 4: T = (S * keep) @ A_sl   (tiled accumulator matmul, all-bf16 operands)
# ----------------------------------------------------------------------------
def _coarsen_sa_kernel(s_ref, keep_ref, adj_ref, act_ref, t_ref, acc_ref):
    k = pl.program_id(1)
    tk, N = adj_ref.shape

    @pl.when(k == 0)
    def _():
        acc_ref[...] = jnp.zeros_like(acc_ref)

    adj = adj_ref[...]                                          # (tk, N) bf16
    actk = act_ref[...]                                         # (tk, 1) f32
    colg = lax.broadcasted_iota(jnp.int32, (tk, N), 1)
    rowg = k * tk + lax.broadcasted_iota(jnp.int32, (tk, N), 0)
    adj_sl = jnp.where((colg == rowg) & (actk > 0.0) & (adj == 0),
                       jnp.ones_like(adj), adj)                 # self-loops, fill=1.0

    sk = s_ref[...] * keep_ref[...]                             # dropped clusters -> 0 rows
    acc_ref[...] += jnp.dot(sk, adj_sl, preferred_element_type=jnp.float32)

    @pl.when(k == pl.num_programs(1) - 1)
    def _():
        t_ref[...] = acc_ref[...].astype(t_ref.dtype)


def coarsen_sa(S, keep_col, adj, act_col):
    N = adj.shape[0]
    tm = _acc_row_tile(N)                                       # big row tile: less adj re-stream
    tk = _pick_tile(N, 256)
    gi, gk = N // tm, N // tk
    return pl.pallas_call(
        _coarsen_sa_kernel,
        out_shape=jax.ShapeDtypeStruct((N, N), jnp.bfloat16),
        grid_spec=pltpu.PrefetchScalarGridSpec(
            num_scalar_prefetch=0,
            grid=(gi, gk),
            in_specs=[
                pl.BlockSpec((tm, tk), lambda i, k: (i, k)),    # S (bf16)
                pl.BlockSpec((tm, 1), lambda i, k: (i, 0)),     # keep (bf16)
                pl.BlockSpec((tk, N), lambda i, k: (k, 0)),     # adj (bf16)
                pl.BlockSpec((tk, 1), lambda i, k: (k, 0)),     # active (f32)
            ],
            out_specs=pl.BlockSpec((tm, N), lambda i, k: (i, 0)),
            scratch_shapes=[pltpu.VMEM((tm, N), jnp.float32)]),
        compiler_params=pltpu.CompilerParams(
            dimension_semantics=("parallel", "arbitrary"),
            vmem_limit_bytes=_VMEM_LIMIT),
    )(S, keep_col, adj, act_col)


# ----------------------------------------------------------------------------
# Kernel 5: A' = T @ (S*keep)^T with the diagonal removed; bf16 output; 256 blocks
# ----------------------------------------------------------------------------
def _coarsen_sast_kernel(t_ref, s_ref, keep_ref, o_ref, acc_ref):
    i, j, k = pl.program_id(0), pl.program_id(1), pl.program_id(2)
    tm, tn = o_ref.shape

    @pl.when(k == 0)
    def _():
        acc_ref[...] = jnp.zeros_like(acc_ref)

    skj = s_ref[...] * keep_ref[...]                            # (tn, tk) bf16
    acc_ref[...] += lax.dot_general(
        t_ref[...], skj,
        dimension_numbers=(((1,), (1,)), ((), ())),             # Sk^T via dot_general
        preferred_element_type=jnp.float32)

    @pl.when(k == pl.num_programs(2) - 1)
    def _():
        rowg = i * tm + lax.broadcasted_iota(jnp.int32, (tm, tn), 0)
        colg = j * tn + lax.broadcasted_iota(jnp.int32, (tm, tn), 1)
        o_ref[...] = jnp.where(rowg == colg, 0.0, acc_ref[...]).astype(o_ref.dtype)


def coarsen_sast(T, S, keep_col):
    N = T.shape[0]
    tm = _pick_tile(N, 256)
    tn = _pick_tile(N, 256)
    tk = _pick_tile(N, 256)
    gi, gj, gk = N // tm, N // tn, N // tk
    cost = pl.CostEstimate(flops=2 * N * N * N, transcendentals=0,
                           bytes_accessed=2 * N * N * (gi + gj) + 2 * N * N)
    return pl.pallas_call(
        _coarsen_sast_kernel,
        out_shape=jax.ShapeDtypeStruct((N, N), jnp.bfloat16),   # A' stays bf16 in HBM
        grid_spec=pltpu.PrefetchScalarGridSpec(
            num_scalar_prefetch=0,
            grid=(gi, gj, gk),
            in_specs=[
                pl.BlockSpec((tm, tk), lambda i, j, k: (i, k)),   # T = (S*keep) @ A
                pl.BlockSpec((tn, tk), lambda i, j, k: (j, k)),   # S
                pl.BlockSpec((tn, 1), lambda i, j, k: (j, 0)),    # keep
            ],
            out_specs=pl.BlockSpec((tm, tn), lambda i, j, k: (i, j)),
            scratch_shapes=[pltpu.VMEM((tm, tn), jnp.float32)]),
        compiler_params=pltpu.CompilerParams(
            dimension_semantics=("parallel", "parallel", "arbitrary"),
            vmem_limit_bytes=_VMEM_LIMIT),
        cost_estimate=cost,
    )(T, S, keep_col)


# ----------------------------------------------------------------------------
# Kernel 6: lin1 -> ReLU -> (dropout=identity) -> lin2 -> log_softmax  (tiny)
# ----------------------------------------------------------------------------
def _mlp_head_kernel(x_ref, w1_ref, b1_ref, w2_ref, b2_ref, o_ref):
    h = jnp.maximum(
        jnp.dot(_bf16(x_ref[...]), _bf16(w1_ref[...]),
                preferred_element_type=jnp.float32) + b1_ref[...], 0.0)
    logits = jnp.dot(_bf16(h), _bf16(w2_ref[...]),
                     preferred_element_type=jnp.float32) + b2_ref[...]
    m = jnp.max(logits, axis=-1, keepdims=True)
    z = logits - m
    lse = jnp.log(jnp.sum(jnp.exp(z), axis=-1, keepdims=True))
    o_ref[...] = z - lse


def mlp_head(x, w1, b1, w2, b2):
    G = x.shape[0]
    C = w2.shape[1]
    vmem = pl.BlockSpec(memory_space=pltpu.MemorySpace.VMEM)
    return pl.pallas_call(
        _mlp_head_kernel,
        out_shape=jax.ShapeDtypeStruct((G, C), jnp.float32),
        in_specs=[vmem] * 5,
        out_specs=vmem,
    )(x, w1, b1, w2, b2)


# ----------------------------------------------------------------------------
# Parameters (deterministic, synthetic init; shapes follow the PyTorch module)
# ----------------------------------------------------------------------------
def init_params(key, C, H, L, CLS):
    keys = iter(jax.random.split(key, 64))

    def lin(fin, fout, bias=True):
        w = jax.random.normal(next(keys), (fin, fout), jnp.float32) / math.sqrt(fin)
        b = (jax.random.normal(next(keys), (1, fout), jnp.float32) * 0.1) if bias else None
        return w, b

    def graphconv(fin, fout):
        wr, br = lin(fin, fout, True)       # lin_rel (bias)
        wo, _ = lin(fin, fout, False)       # lin_root (no bias)
        return (wr, br, wo)

    params = {"conv1": graphconv(C, H),
              "convs": [graphconv(H, H) for _ in range(L - 1)]}
    pools = []
    for _ in range(L // 2):
        lw, lb = lin(H, H, True)            # ASAPooling.lin
        aw1, ab = lin(H, 1, True)           # att weight (x_q half) + bias
        aw2, _ = lin(H, 1, False)           # att weight (x_pool_j half)
        w1, b1 = lin(H, 1, True)            # LEConv lin1
        w2, _ = lin(H, 1, False)            # LEConv lin2 (no bias)
        w3, b3 = lin(H, 1, True)            # LEConv lin3
        pools.append(dict(lin_w=lw, lin_b=lb, att_w1=aw1, att_w2=aw2, att_b=ab,
                          le_w1=w1, le_b1=b1, le_w2=w2, le_w3=w3, le_b3=b3))
    params["pools"] = pools
    params["lin1_w"], params["lin1_b"] = lin(L * H, H, True)
    params["lin2_w"], params["lin2_b"] = lin(H, CLS, True)
    return params


# ----------------------------------------------------------------------------
# Full ASAP forward (Pallas kernels for hot paths; top-k selection in JAX glue)
# ----------------------------------------------------------------------------
def build_forward(params, counts0, num_layers, G, ratio):
    hidden = params["lin2_w"].shape[0]

    # One-time parameter prep: prepacked / bf16-cast matmul operands.
    def gc_pack(w_rel, b_rel, w_root):
        return (jnp.concatenate([w_rel, w_root], axis=0).astype(jnp.bfloat16), b_rel)

    conv1_p = gc_pack(*params["conv1"])
    convs_p = [gc_pack(*p) for p in params["convs"]]

    pools_p = []
    for pp in params["pools"]:
        H = pp["lin_w"].shape[0]
        uw = pp["lin_w"] @ pp["att_w1"]                                 # (H, 1)
        ub = pp["lin_b"] @ pp["att_w1"] + pp["att_b"]                   # (1, 1)
        wabc = jnp.concatenate([pp["le_w1"], pp["le_w2"], pp["le_w3"]], axis=1)
        babc = jnp.concatenate([pp["le_b1"], jnp.zeros((1, 1), jnp.float32),
                                pp["le_b3"]], axis=1)
        pools_p.append(dict(
            uwT=uw.T,                                                   # (1, H) f32
            ub=ub,
            vw=pp["att_w2"],                                            # (H, 1) f32
            wabc=wabc.astype(jnp.bfloat16),                             # (H, 3) bf16
            bslab=jnp.concatenate([jnp.zeros((1, H), jnp.float32), babc], axis=1)))

    @jax.jit
    def forward(x0, adj0, batch):
        N0 = x0.shape[0]
        N = max(128, _round_up(N0, 128))            # pad so tiled grids always fire
        pad = N - N0
        xb = jnp.pad(x0, ((0, pad), (0, 0))).astype(jnp.bfloat16)
        adj = jnp.pad(adj0, ((0, pad), (0, pad))).astype(jnp.bfloat16)  # bf16 N^2 in HBM
        batch_p = jnp.concatenate([batch, jnp.full((pad,), G, batch.dtype)])
        active = jnp.concatenate(
            [jnp.ones((N0,), jnp.float32), jnp.zeros((pad,), jnp.float32)])
        counts = list(counts0)                      # static per-graph node counts

        def memb_of(act):
            m = (batch_p[None, :] == jnp.arange(G, dtype=batch_p.dtype)[:, None]) \
                & (act[None, :] > 0.0)
            return m.astype(jnp.bfloat16)

        def cnt_inv(cnts):
            return jnp.array([[1.0 / c] for c in cnts], jnp.float32)

        memb = memb_of(active)
        xs = []
        x, pooled = graphconv_relu_pool(adj, xb, *conv1_p, memb)
        xs.append(pooled * cnt_inv(counts))

        for i in range(num_layers - 1):
            x, pooled = graphconv_relu_pool(adj, x, *convs_p[i], memb)
            xs.append(pooled * cnt_inv(counts))
            if i % 2 == 0 and i < num_layers - 2:
                pp = pools_p[i // 2]
                act_col = active.reshape(N, 1)

                # LEConv projections folded into the aggregation: S @ [x | x@Wabc]
                xw = jnp.dot(x, pp["wabc"], preferred_element_type=jnp.float32)
                x_ext = jnp.concatenate([x, xw.astype(jnp.bfloat16)], axis=1)
                xT = x.T                                                  # (H, N) bf16
                vT = (x.astype(jnp.float32) @ pp["vw"]).reshape(1, N)     # att "x_j" half

                S, slab = asap_attention(adj, act_col, x_ext, xT,
                                         pp["uwT"], pp["ub"], vT, pp["bslab"])
                xagg = slab[:, :hidden]
                aT = slab[:, hidden].reshape(1, N)
                bc = slab[:, hidden + 1:]
                fit = asap_fitness(S, aT, bc)

                # TODO(synk): per-graph top-k cluster selection (data-dependent
                # sort/scatter) stays in JAX (lax.top_k), not a Pallas kernel.
                fitv = fit[:, 0]
                keep = jnp.zeros((N,), jnp.float32)
                new_counts = []
                for g in range(G):
                    member = (batch_p == g) & (active > 0.0)
                    fg = jnp.where(member, fitv, -jnp.inf)
                    k = int(math.ceil(ratio * counts[g]))
                    _, idx = lax.top_k(fg, k)
                    keep = keep.at[idx].set(1.0)
                    new_counts.append(k)
                counts = new_counts

                keep_col = keep.reshape(N, 1)
                keep_b = keep_col.astype(jnp.bfloat16)
                T = coarsen_sa(S, keep_b, adj, act_col)        # (S*keep) @ A_sl
                adj = coarsen_sast(T, S, keep_b)               # ... @ (S*keep)^T, no diag
                x = (xagg * fit * keep_col).astype(jnp.bfloat16)
                active = keep
                memb = memb_of(active)

        xcat = jnp.concatenate(xs, axis=-1)                    # JumpingKnowledge('cat')
        return mlp_head(xcat, params["lin1_w"], params["lin1_b"],
                        params["lin2_w"], params["lin2_b"])

    return forward


# ----------------------------------------------------------------------------
if __name__ == "__main__":
    NUM_CLASSES, C, L, H, RATIO = 5, 8, 4, 32, 0.9
    G, PER = 2, 16
    N = G * PER

    key = jax.random.PRNGKey(0)
    kp, kx, ka = jax.random.split(key, 3)

    params = init_params(kp, C, H, L, NUM_CLASSES)

    # synthetic 2-graph batch: node features + block-diagonal symmetric adjacency
    x0 = jax.random.normal(kx, (N, C), jnp.float32)
    batch = jnp.repeat(jnp.arange(G, dtype=jnp.int32), PER)
    rnd = jax.random.uniform(ka, (N, N))
    same_graph = batch[:, None] == batch[None, :]
    a = (rnd < 0.35) & same_graph
    a = (a | a.T) & (~jnp.eye(N, dtype=bool))
    adj0 = a.astype(jnp.float32)          # edge_weight=None  ->  weight 1.0 per edge
    counts0 = (PER, PER)

    fwd = build_forward(params, counts0, L, G, RATIO)
    out = jax.block_until_ready(fwd(x0, adj0, batch))

    assert out.shape == (G, NUM_CLASSES)
    assert bool(jnp.all(jnp.isfinite(out)))
    print("KERNEL_OK")
</pallas_src>

<mosaic_0001>
module attributes {stable_mosaic.version = 11 : i64} {
  func.func @_graphconv_pool_kernel(%arg0: i32, %arg1: memref<128x128xbf16, #tpu.memory_space<vmem>>, %arg2: memref<128x32xbf16, #tpu.memory_space<vmem>>, %arg3: memref<64x32xbf16, #tpu.memory_space<vmem>>, %arg4: memref<1x32xf32, #tpu.memory_space<vmem>>, %arg5: memref<2x128xbf16, #tpu.memory_space<vmem>>, %arg6: memref<128x32xbf16, #tpu.memory_space<vmem>>, %arg7: memref<1x2x32xf32, #tpu.memory_space<vmem>>) attributes {dimension_semantics = [#tpu.dimension_semantics<parallel>], iteration_bounds = array<i64: 1>, scalar_prefetch = 0 : i64, scratch_operands = 0 : i64, tpu.core_type = #tpu.core_type<tc>, window_params = [{transform_indices = @transform_0, window_bounds = array<i64: 128, 128>}, {pipeline_mode = #tpu.pipeline_mode<synchronous>, transform_indices = @transform_1, window_bounds = array<i64: 128, 32>}, {pipeline_mode = #tpu.pipeline_mode<synchronous>, transform_indices = @transform_2, window_bounds = array<i64: 64, 32>}, {pipeline_mode = #tpu.pipeline_mode<synchronous>, transform_indices = @transform_3, window_bounds = array<i64: 1, 32>}, {transform_indices = @transform_4, window_bounds = array<i64: 2, 128>}, {transform_indices = @transform_5, window_bounds = array<i64: 128, 32>}, {transform_indices = @transform_6, window_bounds = array<i64: 1, 2, 32>}]} {
    %c0 = arith.constant 0 : index
    %c0_0 = arith.constant 0 : index
    %0 = vector.load %arg1[%c0, %c0_0] : memref<128x128xbf16, #tpu.memory_space<vmem>>, vector<128x128xbf16>
    %cst = arith.constant 0.000000e+00 : bf16
    %1 = vector.broadcast %cst : bf16 to vector<128x128xbf16>
    %2 = arith.cmpf one, %0, %1 : vector<128x128xbf16>
    %3 = arith.extui %2 : vector<128x128xi1> to vector<128x128xi32>
    %4 = arith.sitofp %3 : vector<128x128xi32> to vector<128x128xf32>
    %cst_1 = arith.constant dense<0.000000e+00> : vector<128xf32>
    %5 = vector.multi_reduction <add>, %4, %cst_1 [1] : vector<128x128xf32> to vector<128xf32>
    %6 = vector.shape_cast %5 : vector<128xf32> to vector<128x1xf32>
    %cst_2 = arith.constant 1.000000e+00 : f32
    %7 = vector.broadcast %cst_2 : f32 to vector<128x1xf32>
    %8 = arith.maximumf %6, %7 : vector<128x1xf32>
    %9 = tpu.reciprocal %8 {approx = true} : vector<128x1xf32> -> vector<128x1xf32>
    %c0_3 = arith.constant 0 : index
    %c0_4 = arith.constant 0 : index
    %10 = vector.load %arg2[%c0_3, %c0_4] : memref<128x32xbf16, #tpu.memory_space<vmem>>, vector<128x32xbf16>
    %cst_5 = arith.constant dense<0.000000e+00> : vector<128x32xf32>
    %11 = tpu.matmul %0, %10, %cst_5 {dimension_numbers = #tpu.dot_dimension_numbers<[1], [0], [0], [1], [0, 0, 1, 1], [], []>} : vector<128x128xbf16>, vector<128x32xbf16>, vector<128x32xf32> -> vector<128x32xf32>
    %12 = vector.broadcast %9 : vector<128x1xf32> to vector<128x32xf32>
    %13 = arith.mulf %11, %12 : vector<128x32xf32>
    %c128_i32 = arith.constant 128 : i32
    %14 = arith.muli %arg0, %c128_i32 : i32
    %15 = tpu.assume_multiple %14, 128 : i32
    %16 = arith.index_cast %15 : i32 to index
    %c0_6 = arith.constant 0 : index
    %17 = vector.load %arg2[%16, %c0_6] : memref<128x32xbf16, #tpu.memory_space<vmem>>, vector<128x32xbf16>
    %18 = arith.truncf %13 : vector<128x32xf32> to vector<128x32xbf16>
    %19 = tpu.concatenate %18, %17 in 1 : vector<128x32xbf16>, vector<128x32xbf16> -> vector<128x64xbf16>
    %c0_7 = arith.constant 0 : index
    %c0_8 = arith.constant 0 : index
    %20 = vector.load %arg3[%c0_7, %c0_8] : memref<64x32xbf16, #tpu.memory_space<vmem>>, vector<64x32xbf16>
    %cst_9 = arith.constant dense<0.000000e+00> : vector<128x32xf32>
    %21 = tpu.matmul %19, %20, %cst_9 {dimension_numbers = #tpu.dot_dimension_numbers<[1], [0], [0], [1], [0, 0, 1, 1], [], []>} : vector<128x64xbf16>, vector<64x32xbf16>, vector<128x32xf32> -> vector<128x32xf32>
    %c0_10 = arith.constant 0 : index
    %c0_11 = arith.constant 0 : index
    %22 = vector.load %arg4[%c0_10, %c0_11] : memref<1x32xf32, #tpu.memory_space<vmem>>, vector<1x32xf32>
    %23 = vector.broadcast %22 : vector<1x32xf32> to vector<128x32xf32>
    %24 = arith.addf %21, %23 : vector<128x32xf32>
    %cst_12 = arith.constant 0.000000e+00 : f32
    %25 = vector.broadcast %cst_12 : f32 to vector<128x32xf32>
    %26 = arith.maximumf %24, %25 : vector<128x32xf32>
    %27 = arith.truncf %26 : vector<128x32xf32> to vector<128x32xbf16>
    %c0_13 = arith.constant 0 : index
    %c0_14 = arith.constant 0 : index
    %28 = vector.load %arg6[%c0_13, %c0_14] : memref<128x32xbf16, #tpu.memory_space<vmem>>, vector<128x32xbf16>
    tpu.vector_store %arg6[%c0_13, %c0_14], %27 {strides = array<i32>} : memref<128x32xbf16, #tpu.memory_space<vmem>>, vector<128x32xbf16>,
    %c0_15 = arith.constant 0 : index
    %c0_16 = arith.constant 0 : index
    %29 = vector.load %arg5[%c0_15, %c0_16] : memref<2x128xbf16, #tpu.memory_space<vmem>>, vector<2x128xbf16>
    %cst_17 = arith.constant dense<0.000000e+00> : vector<2x32xf32>
    %30 = tpu.matmul %29, %27, %cst_17 {dimension_numbers = #tpu.dot_dimension_numbers<[1], [0], [0], [1], [0, 0, 1, 1], [], []>} : vector<2x128xbf16>, vector<128x32xbf16>, vector<2x32xf32> -> vector<2x32xf32>
    %c0_18 = arith.constant 0 : index
    %c0_19 = arith.constant 0 : index
    %c0_20 = arith.constant 0 : index
    %31 = vector.load %arg7[%c0_18, %c0_19, %c0_20] : memref<1x2x32xf32, #tpu.memory_space<vmem>>, vector<1x2x32xf32>
    %32 = vector.shape_cast %31 : vector<1x2x32xf32> to vector<2x32xf32>
    %33 = vector.shape_cast %30 : vector<2x32xf32> to vector<1x2x32xf32>
    tpu.vector_store %arg7[%c0_18, %c0_19, %c0_20], %33 {strides = array<i32>} : memref<1x2x32xf32, #tpu.memory_space<vmem>>, vector<1x2x32xf32>,
    return
  }
  func.func @transform_0(%arg0: i32) -> (i32, i32) {
    %c0_i32 = arith.constant 0 : i32
    %c0_i32_0 = arith.constant 0 : i32
    return %arg0, %c0_i32 : i32, i32
  }
  func.func @transform_1(%arg0: i32) -> (i32, i32) {
    %c0_i32 = arith.constant 0 : i32
    %c0_i32_0 = arith.constant 0 : i32
    %c0_i32_1 = arith.constant 0 : i32
    return %c0_i32, %c0_i32_0 : i32, i32
  }
  func.func @transform_2(%arg0: i32) -> (i32, i32) {
    %c0_i32 = arith.constant 0 : i32
    %c0_i32_0 = arith.constant 0 : i32
    %c0_i32_1 = arith.constant 0 : i32
    return %c0_i32, %c0_i32_0 : i32, i32
  }
  func.func @transform_3(%arg0: i32) -> (i32, i32) {
    %c0_i32 = arith.constant 0 : i32
    %c0_i32_0 = arith.constant 0 : i32
    %c0_i32_1 = arith.constant 0 : i32
    return %c0_i32, %c0_i32_0 : i32, i32
  }
  func.func @transform_4(%arg0: i32) -> (i32, i32) {
    %c0_i32 = arith.constant 0 : i32
    %c0_i32_0 = arith.constant 0 : i32
    return %c0_i32, %arg0 : i32, i32
  }
  func.func @transform_5(%arg0: i32) -> (i32, i32) {
    %c0_i32 = arith.constant 0 : i32
    %c0_i32_0 = arith.constant 0 : i32
    return %arg0, %c0_i32 : i32, i32
  }
  func.func @transform_6(%arg0: i32) -> (i32, i32, i32) {
    %c0_i32 = arith.constant 0 : i32
    %c0_i32_0 = arith.constant 0 : i32
    %c0_i32_1 = arith.constant 0 : i32
    return %arg0, %c0_i32, %c0_i32_0 : i32, i32, i32
  }
}

module attributes {stable_mosaic.version = 11 : i64} {
  func.func @_graphconv_pool_kernel(%arg0: i32, %arg1: memref<128x128xbf16, #tpu.memory_space<vmem>>, %arg2: memref<128x8xbf16, #tpu.memory_space<vmem>>, %arg3: memref<16x32xbf16, #tpu.memory_space<vmem>>, %arg4: memref<1x32xf32, #tpu.memory_space<vmem>>, %arg5: memref<2x128xbf16, #tpu.memory_space<vmem>>, %arg6: memref<128x32xbf16, #tpu.memory_space<vmem>>, %arg7: memref<1x2x32xf32, #tpu.memory_space<vmem>>) attributes {dimension_semantics = [#tpu.dimension_semantics<parallel>], iteration_bounds = array<i64: 1>, scalar_prefetch = 0 : i64, scratch_operands = 0 : i64, tpu.core_type = #tpu.core_type<tc>, window_params = [{transform_indices = @transform_0, window_bounds = array<i64: 128, 128>}, {pipeline_mode = #tpu.pipeline_mode<synchronous>, transform_indices = @transform_1, window_bounds = array<i64: 128, 8>}, {pipeline_mode = #tpu.pipeline_mode<synchronous>, transform_indices = @transform_2, window_bounds = array<i64: 16, 32>}, {pipeline_mode = #tpu.pipeline_mode<synchronous>, transform_indices = @transform_3, window_bounds = array<i64: 1, 32>}, {transform_indices = @transform_4, window_bounds = array<i64: 2, 128>}, {transform_indices = @transform_5, window_bounds = array<i64: 128, 32>}, {transform_indices = @transform_6, window_bounds = array<i64: 1, 2, 32>}]} {
    %c0 = arith.constant 0 : index
    %c0_0 = arith.constant 0 : index
    %0 = vector.load %arg1[%c0, %c0_0] : memref<128x128xbf16, #tpu.memory_space<vmem>>, vector<128x128xbf16>
    %cst = arith.constant 0.000000e+00 : bf16
    %1 = vector.broadcast %cst : bf16 to vector<128x128xbf16>
    %2 = arith.cmpf one, %0, %1 : vector<128x128xbf16>
    %3 = arith.extui %2 : vector<128x128xi1> to vector<128x128xi32>
    %4 = arith.sitofp %3 : vector<128x128xi32> to vector<128x128xf32>
    %cst_1 = arith.constant dense<0.000000e+00> : vector<128xf32>
    %5 = vector.multi_reduction <add>, %4, %cst_1 [1] : vector<128x128xf32> to vector<128xf32>
    %6 = vector.shape_cast %5 : vector<128xf32> to vector<128x1xf32>
    %cst_2 = arith.constant 1.000000e+00 : f32
    %7 = vector.broadcast %cst_2 : f32 to vector<128x1xf32>
    %8 = arith.maximumf %6, %7 : vector<128x1xf32>
    %9 = tpu.reciprocal %8 {approx = true} : vector<128x1xf32> -> vector<128x1xf32>
    %c0_3 = arith.constant 0 : index
    %c0_4 = arith.constant 0 : index
    %10 = vector.load %arg2[%c0_3, %c0_4] : memref<128x8xbf16, #tpu.memory_space<vmem>>, vector<128x8xbf16>
    %cst_5 = arith.constant dense<0.000000e+00> : vector<128x8xf32>
    %11 = tpu.matmul %0, %10, %cst_5 {dimension_numbers = #tpu.dot_dimension_numbers<[1], [0], [0], [1], [0, 0, 1, 1], [], []>} : vector<128x128xbf16>, vector<128x8xbf16>, vector<128x8xf32> -> vector<128x8xf32>
    %12 = vector.broadcast %9 : vector<128x1xf32> to vector<128x8xf32>
    %13 = arith.mulf %11, %12 : vector<128x8xf32>
    %c128_i32 = arith.constant 128 : i32
    %14 = arith.muli %arg0, %c128_i32 : i32
    %15 = tpu.assume_multiple %14, 128 : i32
    %16 = arith.index_cast %15 : i32 to index
    %c0_6 = arith.constant 0 : index
    %17 = vector.load %arg2[%16, %c0_6] : memref<128x8xbf16, #tpu.memory_space<vmem>>, vector<128x8xbf16>
    %18 = arith.truncf %13 : vector<128x8xf32> to vector<128x8xbf16>
    %19 = tpu.concatenate %18, %17 in 1 : vector<128x8xbf16>, vector<128x8xbf16> -> vector<128x16xbf16>
    %c0_7 = arith.constant 0 : index
    %c0_8 = arith.constant 0 : index
    %20 = vector.load %arg3[%c0_7, %c0_8] : memref<16x32xbf16, #tpu.memory_space<vmem>>, vector<16x32xbf16>
    %cst_9 = arith.constant dense<0.000000e+00> : vector<128x32xf32>
    %21 = tpu.matmul %19, %20, %cst_9 {dimension_numbers = #tpu.dot_dimension_numbers<[1], [0], [0], [1], [0, 0, 1, 1], [], []>} : vector<128x16xbf16>, vector<16x32xbf16>, vector<128x32xf32> -> vector<128x32xf32>
    %c0_10 = arith.constant 0 : index
    %c0_11 = arith.constant 0 : index
    %22 = vector.load %arg4[%c0_10, %c0_11] : memref<1x32xf32, #tpu.memory_space<vmem>>, vector<1x32xf32>
    %23 = vector.broadcast %22 : vector<1x32xf32> to vector<128x32xf32>
    %24 = arith.addf %21, %23 : vector<128x32xf32>
    %cst_12 = arith.constant 0.000000e+00 : f32
    %25 = vector.broadcast %cst_12 : f32 to vector<128x32xf32>
    %26 = arith.maximumf %24, %25 : vector<128x32xf32>
    %27 = arith.truncf %26 : vector<128x32xf32> to vector<128x32xbf16>
    %c0_13 = arith.constant 0 : index
    %c0_14 = arith.constant 0 : index
    %28 = vector.load %arg6[%c0_13, %c0_14] : memref<128x32xbf16, #tpu.memory_space<vmem>>, vector<128x32xbf16>
    tpu.vector_store %arg6[%c0_13, %c0_14], %27 {strides = array<i32>} : memref<128x32xbf16, #tpu.memory_space<vmem>>, vector<128x32xbf16>,
    %c0_15 = arith.constant 0 : index
    %c0_16 = arith.constant 0 : index
    %29 = vector.load %arg5[%c0_15, %c0_16] : memref<2x128xbf16, #tpu.memory_space<vmem>>, vector<2x128xbf16>
    %cst_17 = arith.constant dense<0.000000e+00> : vector<2x32xf32>
    %30 = tpu.matmul %29, %27, %cst_17 {dimension_numbers = #tpu.dot_dimension_numbers<[1], [0], [0], [1], [0, 0, 1, 1], [], []>} : vector<2x128xbf16>, vector<128x32xbf16>, vector<2x32xf32> -> vector<2x32xf32>
    %c0_18 = arith.constant 0 : index
    %c0_19 = arith.constant 0 : index
    %c0_20 = arith.constant 0 : index
    %31 = vector.load %arg7[%c0_18, %c0_19, %c0_20] : memref<1x2x32xf32, #tpu.memory_space<vmem>>, vector<1x2x32xf32>
    %32 = vector.shape_cast %31 : vector<1x2x32xf32> to vector<2x32xf32>
    %33 = vector.shape_cast %30 : vector<2x32xf32> to vector<1x2x32xf32>
    tpu.vector_store %arg7[%c0_18, %c0_19, %c0_20], %33 {strides = array<i32>} : memref<1x2x32xf32, #tpu.memory_space<vmem>>, vector<1x2x32xf32>,
    return
  }
  func.func @transform_0(%arg0: i32) -> (i32, i32) {
    %c0_i32 = arith.constant 0 : i32
    %c0_i32_0 = arith.constant 0 : i32
    return %arg0, %c0_i32 : i32, i32
  }
  func.func @transform_1(%arg0: i32) -> (i32, i32) {
    %c0_i32 = arith.constant 0 : i32
    %c0_i32_0 = arith.constant 0 : i32
    %c0_i32_1 = arith.constant 0 : i32
    return %c0_i32, %c0_i32_0 : i32, i32
  }
  func.func @transform_2(%arg0: i32) -> (i32, i32) {
    %c0_i32 = arith.constant 0 : i32
    %c0_i32_0 = arith.constant 0 : i32
    %c0_i32_1 = arith.constant 0 : i32
    return %c0_i32, %c0_i32_0 : i32, i32
  }
  func.func @transform_3(%arg0: i32) -> (i32, i32) {
    %c0_i32 = arith.constant 0 : i32
    %c0_i32_0 = arith.constant 0 : i32
    %c0_i32_1 = arith.constant 0 : i32
    return %c0_i32, %c0_i32_0 : i32, i32
  }
  func.func @transform_4(%arg0: i32) -> (i32, i32) {
    %c0_i32 = arith.constant 0 : i32
    %c0_i32_0 = arith.constant 0 : i32
    return %c0_i32, %arg0 : i32, i32
  }
  func.func @transform_5(%arg0: i32) -> (i32, i32) {
    %c0_i32 = arith.constant 0 : i32
    %c0_i32_0 = arith.constant 0 : i32
    return %arg0, %c0_i32 : i32, i32
  }
  func.func @transform_6(%arg0: i32) -> (i32, i32, i32) {
    %c0_i32 = arith.constant 0 : i32
    %c0_i32_0 = arith.constant 0 : i32
    %c0_i32_1 = arith.constant 0 : i32
    return %arg0, %c0_i32, %c0_i32_0 : i32, i32, i32
  }
}

module attributes {stable_mosaic.version = 11 : i64} {
  func.func @_asap_attn_kernel(%arg0: i32, %arg1: memref<128x128xbf16, #tpu.memory_space<vmem>>, %arg2: memref<128x1xf32, #tpu.memory_space<vmem>>, %arg3: memref<128x35xbf16, #tpu.memory_space<vmem>>, %arg4: memref<32x128xbf16, #tpu.memory_space<vmem>>, %arg5: memref<1x32xf32, #tpu.memory_space<vmem>>, %arg6: memref<1x1xf32, #tpu.memory_space<vmem>>, %arg7: memref<1x128xf32, #tpu.memory_space<vmem>>, %arg8: memref<1x35xf32, #tpu.memory_space<vmem>>, %arg9: memref<128x128xbf16, #tpu.memory_space<vmem>>, %arg10: memref<128x35xf32, #tpu.memory_space<vmem>>) attributes {dimension_semantics = [#tpu.dimension_semantics<parallel>], iteration_bounds = array<i64: 1>, scalar_prefetch = 0 : i64, scratch_operands = 0 : i64, tpu.core_type = #tpu.core_type<tc>, window_params = [{transform_indices = @transform_0, window_bounds = array<i64: 128, 128>}, {transform_indices = @transform_1, window_bounds = array<i64: 128, 1>}, {pipeline_mode = #tpu.pipeline_mode<synchronous>, transform_indices = @transform_2, window_bounds = array<i64: 128, 35>}, {pipeline_mode = #tpu.pipeline_mode<synchronous>, transform_indices = @transform_3, window_bounds = array<i64: 32, 128>}, {pipeline_mode = #tpu.pipeline_mode<synchronous>, transform_indices = @transform_4, window_bounds = array<i64: 1, 32>}, {pipeline_mode = #tpu.pipeline_mode<synchronous>, transform_indices = @transform_5, window_bounds = array<i64: 1, 1>}, {pipeline_mode = #tpu.pipeline_mode<synchronous>, transform_indices = @transform_6, window_bounds = array<i64: 1, 128>}, {pipeline_mode = #tpu.pipeline_mode<synchronous>, transform_indices = @transform_7, window_bounds = array<i64: 1, 35>}, {transform_indices = @transform_8, window_bounds = array<i64: 128, 128>}, {transform_indices = @transform_9, window_bounds = array<i64: 128, 35>}]} {
    %c0 = arith.constant 0 : index
    %c0_0 = arith.constant 0 : index
    %0 = vector.load %arg1[%c0, %c0_0] : memref<128x128xbf16, #tpu.memory_space<vmem>>, vector<128x128xbf16>
    %c0_1 = arith.constant 0 : index
    %c0_2 = arith.constant 0 : index
    %1 = vector.load %arg2[%c0_1, %c0_2] : memref<128x1xf32, #tpu.memory_space<vmem>>, vector<128x1xf32>
    %2 = tpu.iota {dimensions = array<i32: 1>} : vector<128x128xi32>
    %c128_i32 = arith.constant 128 : i32
    %3 = arith.muli %arg0, %c128_i32 : i32
    %4 = tpu.iota {dimensions = array<i32: 0>} : vector<128x128xi32>
    %5 = vector.broadcast %3 : i32 to vector<128x128xi32>
    %6 = arith.addi %5, %4 : vector<128x128xi32>
    %cst = arith.constant 0.000000e+00 : bf16
    %7 = vector.broadcast %cst : bf16 to vector<128x128xbf16>
    %8 = arith.cmpf one, %0, %7 : vector<128x128xbf16>
    %9 = arith.cmpi eq, %2, %6 : vector<128x128xi32>
    %cst_3 = arith.constant 0.000000e+00 : f32
    %10 = vector.broadcast %cst_3 : f32 to vector<128x1xf32>
    %11 = arith.cmpf ogt, %1, %10 : vector<128x1xf32>
    %12 = vector.broadcast %11 : vector<128x1xi1> to vector<128x128xi1>
    %13 = arith.andi %9, %12 : vector<128x128xi1>
    %14 = arith.ori %8, %13 : vector<128x128xi1>
    %cst_4 = arith.constant 1.000000e+00 : f32
    %cst_5 = arith.constant 0.000000e+00 : f32
    %15 = vector.broadcast %cst_4 : f32 to vector<128x128xf32>
    %16 = vector.broadcast %cst_5 : f32 to vector<128x128xf32>
    %17 = arith.select %14, %15, %16 : vector<128x128xi1>, vector<128x128xf32>
    %cst_6 = arith.constant dense<0.000000e+00> : vector<128xf32>
    %18 = vector.multi_reduction <add>, %17, %cst_6 [1] : vector<128x128xf32> to vector<128xf32>
    %19 = vector.shape_cast %18 : vector<128xf32> to vector<128x1xf32>
    %cst_7 = arith.constant 0.000000e+00 : f32
    %20 = vector.broadcast %cst_7 : f32 to vector<128x1xf32>
    %21 = arith.cmpf ogt, %19, %20 : vector<128x1xf32>
    %cst_8 = arith.constant 0.000000e+00 : f32
    %22 = vector.broadcast %cst_8 : f32 to vector<128x128xf32>
    %23 = arith.cmpf ogt, %17, %22 : vector<128x128xf32>
    %cst_9 = arith.constant 0.000000e+00 : f32
    %cst_10 = arith.constant -1.000000e+30 : f32
    %24 = vector.broadcast %cst_9 : f32 to vector<128x128xf32>
    %25 = vector.broadcast %cst_10 : f32 to vector<128x128xf32>
    %26 = arith.select %23, %24, %25 : vector<128x128xi1>, vector<128x128xf32>
    %27 = tpu.iota {dimensions = array<i32: 1>} : vector<128x32xi32>
    %cst_11 = arith.constant -1.000000e+30 : f32
    %28 = vector.broadcast %cst_11 : f32 to vector<128x32xf32>
    %c0_i32 = arith.constant 0 : i32
    %29 = arith.index_cast %c0_i32 : i32 to index
    %c0_12 = arith.constant 0 : index
    %30 = vector.load %arg4[%29, %c0_12] : memref<32x128xbf16, #tpu.memory_space<vmem>>, vector<1x128xbf16>
    %31 = arith.extf %30 : vector<1x128xbf16> to vector<1x128xf32>
    %32 = vector.broadcast %31 : vector<1x128xf32> to vector<128x128xf32>
    %33 = arith.addf %26, %32 : vector<128x128xf32>
    %cst_13 = arith.constant dense<0xFF800000> : vector<128xf32>
    %34 = vector.multi_reduction <maximumf>, %33, %cst_13 [1] : vector<128x128xf32> to vector<128xf32>
    %35 = vector.shape_cast %34 : vector<128xf32> to vector<128x1xf32>
    %36 = vector.broadcast %c0_i32 : i32 to vector<128x32xi32>
    %37 = arith.cmpi eq, %27, %36 : vector<128x32xi32>
    %38 = vector.shape_cast %35 : vector<128x1xf32> to vector<128x1xf32>
    %39 = vector.broadcast %38 : vector<128x1xf32> to vector<128x32xf32>
    %40 = arith.select %37, %39, %28 : vector<128x32xi1>, vector<128x32xf32>
    %c1_i32 = arith.constant 1 : i32
    %41 = arith.index_cast %c1_i32 : i32 to index
    %c0_14 = arith.constant 0 : index
    %42 = vector.load %arg4[%41, %c0_14] : memref<32x128xbf16, #tpu.memory_space<vmem>>, vector<1x128xbf16>
    %43 = arith.extf %42 : vector<1x128xbf16> to vector<1x128xf32>
    %44 = vector.broadcast %43 : vector<1x128xf32> to vector<128x128xf32>
    %45 = arith.addf %26, %44 : vector<128x128xf32>
    %cst_15 = arith.constant dense<0xFF800000> : vector<128xf32>
    %46 = vector.multi_reduction <maximumf>, %45, %cst_15 [1] : vector<128x128xf32> to vector<128xf32>
    %47 = vector.shape_cast %46 : vector<128xf32> to vector<128x1xf32>
    %48 = vector.broadcast %c1_i32 : i32 to vector<128x32xi32>
    %49 = arith.cmpi eq, %27, %48 : vector<128x32xi32>
    %50 = vector.shape_cast %47 : vector<128x1xf32> to vector<128x1xf32>
    %51 = vector.broadcast %50 : vector<128x1xf32> to vector<128x32xf32>
    %52 = arith.select %49, %51, %40 : vector<128x32xi1>, vector<128x32xf32>
    %c2_i32 = arith.constant 2 : i32
    %53 = arith.index_cast %c2_i32 : i32 to index
    %c0_16 = arith.constant 0 : index
    %54 = vector.load %arg4[%53, %c0_16] : memref<32x128xbf16, #tpu.memory_space<vmem>>, vector<1x128xbf16>
    %55 = arith.extf %54 : vector<1x128xbf16> to vector<1x128xf32>
    %56 = vector.broadcast %55 : vector<1x128xf32> to vector<128x128xf32>
    %57 = arith.addf %26, %56 : vector<128x128xf32>
    %cst_17 = arith.constant dense<0xFF800000> : vector<128xf32>
    %58 = vector.multi_reduction <maximumf>, %57, %cst_17 [1] : vector<128x128xf32> to vector<128xf32>
    %59 = vector.shape_cast %58 : vector<128xf32> to vector<128x1xf32>
    %60 = vector.broadcast %c2_i32 : i32 to vector<128x32xi32>
    %61 = arith.cmpi eq, %27, %60 : vector<128x32xi32>
    %62 = vector.shape_cast %59 : vector<128x1xf32> to vector<128x1xf32>
    %63 = vector.broadcast %62 : vector<128x1xf32> to vector<128x32xf32>
    %64 = arith.select %61, %63, %52 : vector<128x32xi1>, vector<128x32xf32>
    %c3_i32 = arith.constant 3 : i32
    %65 = arith.index_cast %c3_i32 : i32 to index
    %c0_18 = arith.constant 0 : index
    %66 = vector.load %arg4[%65, %c0_18] : memref<32x128xbf16, #tpu.memory_space<vmem>>, vector<1x128xbf16>
    %67 = arith.extf %66 : vector<1x128xbf16> to vector<1x128xf32>
    %68 = vector.broadcast %67 : vector<1x128xf32> to vector<128x128xf32>
    %69 = arith.addf %26, %68 : vector<128x128xf32>
    %cst_19 = arith.constant dense<0xFF800000> : vector<128xf32>
    %70 = vector.multi_reduction <maximumf>, %69, %cst_19 [1] : vector<128x128xf32> to vector<128xf32>
    %71 = vector.shape_cast %70 : vector<128xf32> to vector<128x1xf32>
    %72 = vector.broadcast %c3_i32 : i32 to vector<128x32xi32>
    %73 = arith.cmpi eq, %27, %72 : vector<128x32xi32>
    %74 = vector.shape_cast %71 : vector<128x1xf32> to vector<128x1xf32>
    %75 = vector.broadcast %74 : vector<128x1xf32> to vector<128x32xf32>
    %76 = arith.select %73, %75, %64 : vector<128x32xi1>, vector<128x32xf32>
    %c4_i32 = arith.constant 4 : i32
    %77 = arith.index_cast %c4_i32 : i32 to index
    %c0_20 = arith.constant 0 : index
    %78 = vector.load %arg4[%77, %c0_20] : memref<32x128xbf16, #tpu.memory_space<vmem>>, vector<1x128xbf16>
    %79 = arith.extf %78 : vector<1x128xbf16> to vector<1x128xf32>
    %80 = vector.broadcast %79 : vector<1x128xf32> to vector<128x128xf32>
    %81 = arith.addf %26, %80 : vector<128x128xf32>
    %cst_21 = arith.constant dense<0xFF800000> : vector<128xf32>
    %82 = vector.multi_reduction <maximumf>, %81, %cst_21 [1] : vector<128x128xf32> to vector<128xf32>
    %83 = vector.shape_cast %82 : vector<128xf32> to vector<128x1xf32>
    %84 = vector.broadcast %c4_i32 : i32 to vector<128x32xi32>
    %85 = arith.cmpi eq, %27, %84 : vector<128x32xi32>
    %86 = vector.shape_cast %83 : vector<128x1xf32> to vector<128x1xf32>
    %87 = vector.broadcast %86 : vector<128x1xf32> to vector<128x32xf32>
    %88 = arith.select %85, %87, %76 : vector<128x32xi1>, vector<128x32xf32>
    %c5_i32 = arith.constant 5 : i32
    %89 = arith.index_cast %c5_i32 : i32 to index
    %c0_22 = arith.constant 0 : index
    %90 = vector.load %arg4[%89, %c0_22] : memref<32x128xbf16, #tpu.memory_space<vmem>>, vector<1x128xbf16>
    %91 = arith.extf %90 : vector<1x128xbf16> to vector<1x128xf32>
    %92 = vector.broadcast %91 : vector<1x128xf32> to vector<128x128xf32>
    %93 = arith.addf %26, %92 : vector<128x128xf32>
    %cst_23 = arith.constant dense<0xFF800000> : vector<128xf32>
    %94 = vector.multi_reduction <maximumf>, %93, %cst_23 [1] : vector<128x128xf32> to vector<128xf32>
    %95 = vector.shape_cast %94 : vector<128xf32> to vector<128x1xf32>
    %96 = vector.broadcast %c5_i32 : i32 to vector<128x32xi32>
    %97 = arith.cmpi eq, %27, %96 : vector<128x32xi32>
    %98 = vector.shape_cast %95 : vector<128x1xf32> to vector<128x1xf32>
    %99 = vector.broadcast %98 : vector<128x1xf32> to vector<128x32xf32>
    %100 = arith.select %97, %99, %88 : vector<128x32xi1>, vector<128x32xf32>
    %c6_i32 = arith.constant 6 : i32
    %101 = arith.index_cast %c6_i32 : i32 to index
    %c0_24 = arith.constant 0 : index
    %102 = vector.load %arg4[%101, %c0_24] : memref<32x128xbf16, #tpu.memory_space<vmem>>, vector<1x128xbf16>
    %103 = arith.extf %102 : vector<1x128xbf16> to vector<1x128xf32>
    %104 = vector.broadcast %103 : vector<1x128xf32> to vector<128x128xf32>
    %105 = arith.addf %26, %104 : vector<128x128xf32>
    %cst_25 = arith.constant dense<0xFF800000> : vector<128xf32>
    %106 = vector.multi_reduction <maximumf>, %105, %cst_25 [1] : vector<128x128xf32> to vector<128xf32>
    %107 = vector.shape_cast %106 : vector<128xf32> to vector<128x1xf32>
    %108 = vector.broadcast %c6_i32 : i32 to vector<128x32xi32>
    %109 = arith.cmpi eq, %27, %108 : vector<128x32xi32>
    %110 = vector.shape_cast %107 : vector<128x1xf32> to vector<128x1xf32>
    %111 = vector.broadcast %110 : vector<128x1xf32> to vector<128x32xf32>
    %112 = arith.select %109, %111, %100 : vector<128x32xi1>, vector<128x32xf32>
    %c7_i32 = arith.constant 7 : i32
    %113 = arith.index_cast %c7_i32 : i32 to index
    %c0_26 = arith.constant 0 : index
    %114 = vector.load %arg4[%113, %c0_26] : memref<32x128xbf16, #tpu.memory_space<vmem>>, vector<1x128xbf16>
    %115 = arith.extf %114 : vector<1x128xbf16> to vector<1x128xf32>
    %116 = vector.broadcast %115 : vector<1x128xf32> to vector<128x128xf32>
    %117 = arith.addf %26, %116 : vector<128x128xf32>
    %cst_27 = arith.constant dense<0xFF800000> : vector<128xf32>
    %118 = vector.multi_reduction <maximumf>, %117, %cst_27 [1] : vector<128x128xf32> to vector<128xf32>
    %119 = vector.shape_cast %118 : vector<128xf32> to vector<128x1xf32>
    %120 = vector.broadcast %c7_i32 : i32 to vector<128x32xi32>
    %121 = arith.cmpi eq, %27, %120 : vector<128x32xi32>
    %122 = vector.shape_cast %119 : vector<128x1xf32> to vector<128x1xf32>
    %123 = vector.broadcast %122 : vector<128x1xf32> to vector<128x32xf32>
    %124 = arith.select %121, %123, %112 : vector<128x32xi1>, vector<128x32xf32>
    %c8_i32 = arith.constant 8 : i32
    %125 = arith.index_cast %c8_i32 : i32 to index
    %c0_28 = arith.constant 0 : index
    %126 = vector.load %arg4[%125, %c0_28] : memref<32x128xbf16, #tpu.memory_space<vmem>>, vector<1x128xbf16>
    %127 = arith.extf %126 : vector<1x128xbf16> to vector<1x128xf32>
    %128 = vector.broadcast %127 : vector<1x128xf32> to vector<128x128xf32>
    %129 = arith.addf %26, %128 : vector<128x128xf32>
    %cst_29 = arith.constant dense<0xFF800000> : vector<128xf32>
    %130 = vector.multi_reduction <maximumf>, %129, %cst_29 [1] : vector<128x128xf32> to vector<128xf32>
    %131 = vector.shape_cast %130 : vector<128xf32> to vector<128x1xf32>
    %132 = vector.broadcast %c8_i32 : i32 to vector<128x32xi32>
    %133 = arith.cmpi eq, %27, %132 : vector<128x32xi32>
    %134 = vector.shape_cast %131 : vector<128x1xf32> to vector<128x1xf32>
    %135 = vector.broadcast %134 : vector<128x1xf32> to vector<128x32xf32>
    %136 = arith.select %133, %135, %124 : vector<128x32xi1>, vector<128x32xf32>
    %c9_i32 = arith.constant 9 : i32
    %137 = arith.index_cast %c9_i32 : i32 to index
    %c0_30 = arith.constant 0 : index
    %138 = vector.load %arg4[%137, %c0_30] : memref<32x128xbf16, #tpu.memory_space<vmem>>, vector<1x128xbf16>
    %139 = arith.extf %138 : vector<1x128xbf16> to vector<1x128xf32>
    %140 = vector.broadcast %139 : vector<1x128xf32> to vector<128x128xf32>
    %141 = arith.addf %26, %140 : vector<128x128xf32>
    %cst_31 = arith.constant dense<0xFF800000> : vector<128xf32>
    %142 = vector.multi_reduction <maximumf>, %141, %cst_31 [1] : vector<128x128xf32> to vector<128xf32>
    %143 = vector.shape_cast %142 : vector<128xf32> to vector<128x1xf32>
    %144 = vector.broadcast %c9_i32 : i32 to vector<128x32xi32>
    %145 = arith.cmpi eq, %27, %144 : vector<128x32xi32>
    %146 = vector.shape_cast %143 : vector<128x1xf32> to vector<128x1xf32>
    %147 = vector.broadcast %146 : vector<128x1xf32> to vector<128x32xf32>
    %148 = arith.select %145, %147, %136 : vector<128x32xi1>, vector<128x32xf32>
    %c10_i32 = arith.constant 10 : i32
    %149 = arith.index_cast %c10_i32 : i32 to index
    %c0_32 = arith.constant 0 : index
    %150 = vector.load %arg4[%149, %c0_32] : memref<32x128xbf16, #tpu.memory_space<vmem>>, vector<1x128xbf16>
    %151 = arith.extf %150 : vector<1x128xbf16> to vector<1x128xf32>
    %152 = vector.broadcast %151 : vector<1x128xf32> to vector<128x128xf32>
    %153 = arith.addf %26, %152 : vector<128x128xf32>
    %cst_33 = arith.constant dense<0xFF800000> : vector<128xf32>
    %154 = vector.multi_reduction <maximumf>, %153, %cst_33 [1] : vector<128x128xf32> to vector<128xf32>
    %155 = vector.shape_cast %154 : vector<128xf32> to vector<128x1xf32>
    %156 = vector.broadcast %c10_i32 : i32 to vector<128x32xi32>
    %157 = arith.cmpi eq, %27, %156 : vector<128x32xi32>
    %158 = vector.shape_cast %155 : vector<128x1xf32> to vector<128x1xf32>
    %159 = vector.broadcast %158 : vector<128x1xf32> to vector<128x32xf32>
    %160 = arith.select %157, %159, %148 : vector<128x32xi1>, vector<128x32xf32>
    %c11_i32 = arith.constant 11 : i32
    %161 = arith.index_cast %c11_i32 : i32 to index
    %c0_34 = arith.constant 0 : index
    %162 = vector.load %arg4[%161, %c0_34] : memref<32x128xbf16, #tpu.memory_space<vmem>>, vector<1x128xbf16>
    %163 = arith.extf %162 : vector<1x128xbf16> to vector<1x128xf32>
    %164 = vector.broadcast %163 : vector<1x128xf32> to vector<128x128xf32>
    %165 = arith.addf %26, %164 : vector<128x128xf32>
    %cst_35 = arith.constant dense<0xFF800000> : vector<128xf32>
    %166 = vector.multi_reduction <maximumf>, %165, %cst_35 [1] : vector<128x128xf32> to vector<128xf32>
    %167 = vector.shape_cast %166 : vector<128xf32> to vector<128x1xf32>
    %168 = vector.broadcast %c11_i32 : i32 to vector<128x32xi32>
    %169 = arith.cmpi eq, %27, %168 : vector<128x32xi32>
    %170 = vector.shape_cast %167 : vector<128x1xf32> to vector<128x1xf32>
    %171 = vector.broadcast %170 : vector<128x1xf32> to vector<128x32xf32>
    %172 = arith.select %169, %171, %160 : vector<128x32xi1>, vector<128x32xf32>
    %c12_i32 = arith.constant 12 : i32
    %173 = arith.index_cast %c12_i32 : i32 to index
    %c0_36 = arith.constant 0 : index
    %174 = vector.load %arg4[%173, %c0_36] : memref<32x128xbf16, #tpu.memory_space<vmem>>, vector<1x128xbf16>
    %175 = arith.extf %174 : vector<1x128xbf16> to vector<1x128xf32>
    %176 = vector.broadcast %175 : vector<1x128xf32> to vector<128x128xf32>
    %177 = arith.addf %26, %176 : vector<128x128xf32>
    %cst_37 = arith.constant dense<0xFF800000> : vector<128xf32>
    %178 = vector.multi_reduction <maximumf>, %177, %cst_37 [1] : vector<128x128xf32> to vector<128xf32>
    %179 = vector.shape_cast %178 : vector<128xf32> to vector<128x1xf32>
    %180 = vector.broadcast %c12_i32 : i32 to vector<128x32xi32>
    %181 = arith.cmpi eq, %27, %180 : vector<128x32xi32>
    %182 = vector.shape_cast %179 : vector<128x1xf32> to vector<128x1xf32>
    %183 = vector.broadcast %182 : vector<128x1xf32> to vector<128x32xf32>
    %184 = arith.select %181, %183, %172 : vector<128x32xi1>, vector<128x32xf32>
    %c13_i32 = arith.constant 13 : i32
    %185 = arith.index_cast %c13_i32 : i32 to index
    %c0_38 = arith.constant 0 : index
    %186 = vector.load %arg4[%185, %c0_38] : memref<32x128xbf16, #tpu.memory_space<vmem>>, vector<1x128xbf16>
    %187 = arith.extf %186 : vector<1x128xbf16> to vector<1x128xf32>
    %188 = vector.broadcast %187 : vector<1x128xf32> to vector<128x128xf32>
    %189 = arith.addf %26, %188 : vector<128x128xf32>
    %cst_39 = arith.constant dense<0xFF800000> : vector<128xf32>
    %190 = vector.multi_reduction <maximumf>, %189, %cst_39 [1] : vector<128x128xf32> to vector<128xf32>
    %191 = vector.shape_cast %190 : vector<128xf32> to vector<128x1xf32>
    %192 = vector.broadcast %c13_i32 : i32 to vector<128x32xi32>
    %193 = arith.cmpi eq, %27, %192 : vector<128x32xi32>
    %194 = vector.shape_cast %191 : vector<128x1xf32> to vector<128x1xf32>
    %195 = vector.broadcast %194 : vector<128x1xf32> to vector<128x32xf32>
    %196 = arith.select %193, %195, %184 : vector<128x32xi1>, vector<128x32xf32>
    %c14_i32 = arith.constant 14 : i32
    %197 = arith.index_cast %c14_i32 : i32 to index
    %c0_40 = arith.constant 0 : index
    %198 = vector.load %arg4[%197, %c0_40] : memref<32x128xbf16, #tpu.memory_space<vmem>>, vector<1x128xbf16>
    %199 = arith.extf %198 : vector<1x128xbf16> to vector<1x128xf32>
    %200 = vector.broadcast %199 : vector<1x128xf32> to vector<128x128xf32>
    %201 = arith.addf %26, %200 : vector<128x128xf32>
    %cst_41 = arith.constant dense<0xFF800000> : vector<128xf32>
    %202 = vector.multi_reduction <maximumf>, %201, %cst_41 [1] : vector<128x128xf32> to vector<128xf32>
    %203 = vector.shape_cast %202 : vector<128xf32> to vector<128x1xf32>
    %204 = vector.broadcast %c14_i32 : i32 to vector<128x32xi32>
    %205 = arith.cmpi eq, %27, %204 : vector<128x32xi32>
    %206 = vector.shape_cast %203 : vector<128x1xf32> to vector<128x1xf32>
    %207 = vector.broadcast %206 : vector<128x1xf32> to vector<128x32xf32>
    %208 = arith.select %205, %207, %196 : vector<128x32xi1>, vector<128x32xf32>
    %c15_i32 = arith.constant 15 : i32
    %209 = arith.index_cast %c15_i32 : i32 to index
    %c0_42 = arith.constant 0 : index
    %210 = vector.load %arg4[%209, %c0_42] : memref<32x128xbf16, #tpu.memory_space<vmem>>, vector<1x128xbf16>
    %211 = arith.extf %210 : vector<1x128xbf16> to vector<1x128xf32>
    %212 = vector.broadcast %211 : vector<1x128xf32> to vector<128x128xf32>
    %213 = arith.addf %26, %212 : vector<128x128xf32>
    %cst_43 = arith.constant dense<0xFF800000> : vector<128xf32>
    %214 = vector.multi_reduction <maximumf>, %213, %cst_43 [1] : vector<128x128xf32> to vector<128xf32>
    %215 = vector.shape_cast %214 : vector<128xf32> to vector<128x1xf32>
    %216 = vector.broadcast %c15_i32 : i32 to vector<128x32xi32>
    %217 = arith.cmpi eq, %27, %216 : vector<128x32xi32>
    %218 = vector.shape_cast %215 : vector<128x1xf32> to vector<128x1xf32>
    %219 = vector.broadcast %218 : vector<128x1xf32> to vector<128x32xf32>
    %220 = arith.select %217, %219, %208 : vector<128x32xi1>, vector<128x32xf32>
    %c16_i32 = arith.constant 16 : i32
    %221 = arith.index_cast %c16_i32 : i32 to index
    %c0_44 = arith.constant 0 : index
    %222 = vector.load %arg4[%221, %c0_44] : memref<32x128xbf16, #tpu.memory_space<vmem>>, vector<1x128xbf16>
    %223 = arith.extf %222 : vector<1x128xbf16> to vector<1x128xf32>
    %224 = vector.broadcast %223 : vector<1x128xf32> to vector<128x128xf32>
    %225 = arith.addf %26, %224 : vector<128x128xf32>
    %cst_45 = arith.constant dense<0xFF800000> : vector<128xf32>
    %226 = vector.multi_reduction <maximumf>, %225, %cst_45 [1] : vector<128x128xf32> to vector<128xf32>
    %227 = vector.shape_cast %226 : vector<128xf32> to vector<128x1xf32>
    %228 = vector.broadcast %c16_i32 : i32 to vector<128x32xi32>
    %229 = arith.cmpi eq, %27, %228 : vector<128x32xi32>
    %230 = vector.shape_cast %227 : vector<128x1xf32> to vector<128x1xf32>
    %231 = vector.broadcast %230 : vector<128x1xf32> to vector<128x32xf32>
    %232 = arith.select %229, %231, %220 : vector<128x32xi1>, vector<128x32xf32>
    %c17_i32 = arith.constant 17 : i32
    %233 = arith.index_cast %c17_i32 : i32 to index
    %c0_46 = arith.constant 0 : index
    %234 = vector.load %arg4[%233, %c0_46] : memref<32x128xbf16, #tpu.memory_space<vmem>>, vector<1x128xbf16>
    %235 = arith.extf %234 : vector<1x128xbf16> to vector<1x128xf32>
    %236 = vector.broadcast %235 : vector<1x128xf32> to vector<128x128xf32>
    %237 = arith.addf %26, %236 : vector<128x128xf32>
    %cst_47 = arith.constant dense<0xFF800000> : vector<128xf32>
    %238 = vector.multi_reduction <maximumf>, %237, %cst_47 [1] : vector<128x128xf32> to vector<128xf32>
    %239 = vector.shape_cast %238 : vector<128xf32> to vector<128x1xf32>
    %240 = vector.broadcast %c17_i32 : i32 to vector<128x32xi32>
    %241 = arith.cmpi eq, %27, %240 : vector<128x32xi32>
    %242 = vector.shape_cast %239 : vector<128x1xf32> to vector<128x1xf32>
    %243 = vector.broadcast %242 : vector<128x1xf32> to vector<128x32xf32>
    %244 = arith.select %241, %243, %232 : vector<128x32xi1>, vector<128x32xf32>
    %c18_i32 = arith.constant 18 : i32
    %245 = arith.index_cast %c18_i32 : i32 to index
    %c0_48 = arith.constant 0 : index
    %246 = vector.load %arg4[%245, %c0_48] : memref<32x128xbf16, #tpu.memory_space<vmem>>, vector<1x128xbf16>
    %247 = arith.extf %246 : vector<1x128xbf16> to vector<1x128xf32>
    %248 = vector.broadcast %247 : vector<1x128xf32> to vector<128x128xf32>
    %249 = arith.addf %26, %248 : vector<128x128xf32>
    %cst_49 = arith.constant dense<0xFF800000> : vector<128xf32>
    %250 = vector.multi_reduction <maximumf>, %249, %cst_49 [1] : vector<128x128xf32> to vector<128xf32>
    %251 = vector.shape_cast %250 : vector<128xf32> to vector<128x1xf32>
    %252 = vector.broadcast %c18_i32 : i32 to vector<128x32xi32>
    %253 = arith.cmpi eq, %27, %252 : vector<128x32xi32>
    %254 = vector.shape_cast %251 : vector<128x1xf32> to vector<128x1xf32>
    %255 = vector.broadcast %254 : vector<128x1xf32> to vector<128x32xf32>
    %256 = arith.select %253, %255, %244 : vector<128x32xi1>, vector<128x32xf32>
    %c19_i32 = arith.constant 19 : i32
    %257 = arith.index_cast %c19_i32 : i32 to index
    %c0_50 = arith.constant 0 : index
    %258 = vector.load %arg4[%257, %c0_50] : memref<32x128xbf16, #tpu.memory_space<vmem>>, vector<1x128xbf16>
    %259 = arith.extf %258 : vector<1x128xbf16> to vector<1x128xf32>
    %260 = vector.broadcast %259 : vector<1x128xf32> to vector<128x128xf32>
    %261 = arith.addf %26, %260 : vector<128x128xf32>
    %cst_51 = arith.constant dense<0xFF800000> : vector<128xf32>
    %262 = vector.multi_reduction <maximumf>, %261, %cst_51 [1] : vector<128x128xf32> to vector<128xf32>
    %263 = vector.shape_cast %262 : vector<128xf32> to vector<128x1xf32>
    %264 = vector.broadcast %c19_i32 : i32 to vector<128x32xi32>
    %265 = arith.cmpi eq, %27, %264 : vector<128x32xi32>
    %266 = vector.shape_cast %263 : vector<128x1xf32> to vector<128x1xf32>
    %267 = vector.broadcast %266 : vector<128x1xf32> to vector<128x32xf32>
    %268 = arith.select %265, %267, %256 : vector<128x32xi1>, vector<128x32xf32>
    %c20_i32 = arith.constant 20 : i32
    %269 = arith.index_cast %c20_i32 : i32 to index
    %c0_52 = arith.constant 0 : index
    %270 = vector.load %arg4[%269, %c0_52] : memref<32x128xbf16, #tpu.memory_space<vmem>>, vector<1x128xbf16>
    %271 = arith.extf %270 : vector<1x128xbf16> to vector<1x128xf32>
    %272 = vector.broadcast %271 : vector<1x128xf32> to vector<128x128xf32>
    %273 = arith.addf %26, %272 : vector<128x128xf32>
    %cst_53 = arith.constant dense<0xFF800000> : vector<128xf32>
    %274 = vector.multi_reduction <maximumf>, %273, %cst_53 [1] : vector<128x128xf32> to vector<128xf32>
    %275 = vector.shape_cast %274 : vector<128xf32> to vector<128x1xf32>
    %276 = vector.broadcast %c20_i32 : i32 to vector<128x32xi32>
    %277 = arith.cmpi eq, %27, %276 : vector<128x32xi32>
    %278 = vector.shape_cast %275 : vector<128x1xf32> to vector<128x1xf32>
    %279 = vector.broadcast %278 : vector<128x1xf32> to vector<128x32xf32>
    %280 = arith.select %277, %279, %268 : vector<128x32xi1>, vector<128x32xf32>
    %c21_i32 = arith.constant 21 : i32
    %281 = arith.index_cast %c21_i32 : i32 to index
    %c0_54 = arith.constant 0 : index
    %282 = vector.load %arg4[%281, %c0_54] : memref<32x128xbf16, #tpu.memory_space<vmem>>, vector<1x128xbf16>
    %283 = arith.extf %282 : vector<1x128xbf16> to vector<1x128xf32>
    %284 = vector.broadcast %283 : vector<1x128xf32> to vector<128x128xf32>
    %285 = arith.addf %26, %284 : vector<128x128xf32>
    %cst_55 = arith.constant dense<0xFF800000> : vector<128xf32>
    %286 = vector.multi_reduction <maximumf>, %285, %cst_55 [1] : vector<128x128xf32> to vector<128xf32>
    %287 = vector.shape_cast %286 : vector<128xf32> to vector<128x1xf32>
    %288 = vector.broadcast %c21_i32 : i32 to vector<128x32xi32>
    %289 = arith.cmpi eq, %27, %288 : vector<128x32xi32>
    %290 = vector.shape_cast %287 : vector<128x1xf32> to vector<128x1xf32>
    %291 = vector.broadcast %290 : vector<128x1xf32> to vector<128x32xf32>
    %292 = arith.select %289, %291, %280 : vector<128x32xi1>, vector<128x32xf32>
    %c22_i32 = arith.constant 22 : i32
    %293 = arith.index_cast %c22_i32 : i32 to index
    %c0_56 = arith.constant 0 : index
    %294 = vector.load %arg4[%293, %c0_56] : memref<32x128xbf16, #tpu.memory_space<vmem>>, vector<1x128xbf16>
    %295 = arith.extf %294 : vector<1x128xbf16> to vector<1x128xf32>
    %296 = vector.broadcast %295 : vector<1x128xf32> to vector<128x128xf32>
    %297 = arith.addf %26, %296 : vector<128x128xf32>
    %cst_57 = arith.constant dense<0xFF800000> : vector<128xf32>
    %298 = vector.multi_reduction <maximumf>, %297, %cst_57 [1] : vector<128x128xf32> to vector<128xf32>
    %299 = vector.shape_cast %298 : vector<128xf32> to vector<128x1xf32>
    %300 = vector.broadcast %c22_i32 : i32 to vector<128x32xi32>
    %301 = arith.cmpi eq, %27, %300 : vector<128x32xi32>
    %302 = vector.shape_cast %299 : vector<128x1xf32> to vector<128x1xf32>
    %303 = vector.broadcast %302 : vector<128x1xf32> to vector<128x32xf32>
    %304 = arith.select %301, %303, %292 : vector<128x32xi1>, vector<128x32xf32>
    %c23_i32 = arith.constant 23 : i32
    %305 = arith.index_cast %c23_i32 : i32 to index
    %c0_58 = arith.constant 0 : index
    %306 = vector.load %arg4[%305, %c0_58] : memref<32x128xbf16, #tpu.memory_space<vmem>>, vector<1x128xbf16>
    %307 = arith.extf %306 : vector<1x128xbf16> to vector<1x128xf32>
    %308 = vector.broadcast %307 : vector<1x128xf32> to vector<128x128xf32>
    %309 = arith.addf %26, %308 : vector<128x128xf32>
    %cst_59 = arith.constant dense<0xFF800000> : vector<128xf32>
    %310 = vector.multi_reduction <maximumf>, %309, %cst_59 [1] : vector<128x128xf32> to vector<128xf32>
    %311 = vector.shape_cast %310 : vector<128xf32> to vector<128x1xf32>
    %312 = vector.broadcast %c23_i32 : i32 to vector<128x32xi32>
    %313 = arith.cmpi eq, %27, %312 : vector<128x32xi32>
    %314 = vector.shape_cast %311 : vector<128x1xf32> to vector<128x1xf32>
    %315 = vector.broadcast %314 : vector<128x1xf32> to vector<128x32xf32>
    %316 = arith.select %313, %315, %304 : vector<128x32xi1>, vector<128x32xf32>
    %c24_i32 = arith.constant 24 : i32
    %317 = arith.index_cast %c24_i32 : i32 to index
    %c0_60 = arith.constant 0 : index
    %318 = vector.load %arg4[%317, %c0_60] : memref<32x128xbf16, #tpu.memory_space<vmem>>, vector<1x128xbf16>
    %319 = arith.extf %318 : vector<1x128xbf16> to vector<1x128xf32>
    %320 = vector.broadcast %319 : vector<1x128xf32> to vector<128x128xf32>
    %321 = arith.addf %26, %320 : vector<128x128xf32>
    %cst_61 = arith.constant dense<0xFF800000> : vector<128xf32>
    %322 = vector.multi_reduction <maximumf>, %321, %cst_61 [1] : vector<128x128xf32> to vector<128xf32>
    %323 = vector.shape_cast %322 : vector<128xf32> to vector<128x1xf32>
    %324 = vector.broadcast %c24_i32 : i32 to vector<128x32xi32>
    %325 = arith.cmpi eq, %27, %324 : vector<128x32xi32>
    %326 = vector.shape_cast %323 : vector<128x1xf32> to vector<128x1xf32>
    %327 = vector.broadcast %326 : vector<128x1xf32> to vector<128x32xf32>
    %328 = arith.select %325, %327, %316 : vector<128x32xi1>, vector<128x32xf32>
    %c25_i32 = arith.constant 25 : i32
    %329 = arith.index_cast %c25_i32 : i32 to index
    %c0_62 = arith.constant 0 : index
    %330 = vector.load %arg4[%329, %c0_62] : memref<32x128xbf16, #tpu.memory_space<vmem>>, vector<1x128xbf16>
    %331 = arith.extf %330 : vector<1x128xbf16> to vector<1x128xf32>
    %332 = vector.broadcast %331 : vector<1x128xf32> to vector<128x128xf32>
    %333 = arith.addf %26, %332 : vector<128x128xf32>
    %cst_63 = arith.constant dense<0xFF800000> : vector<128xf32>
    %334 = vector.multi_reduction <maximumf>, %333, %cst_63 [1] : vector<128x128xf32> to vector<128xf32>
    %335 = vector.shape_cast %334 : vector<128xf32> to vector<128x1xf32>
    %336 = vector.broadcast %c25_i32 : i32 to vector<128x32xi32>
    %337 = arith.cmpi eq, %27, %336 : vector<128x32xi32>
    %338 = vector.shape_cast %335 : vector<128x1xf32> to vector<128x1xf32>
    %339 = vector.broadcast %338 : vector<128x1xf32> to vector<128x32xf32>
    %340 = arith.select %337, %339, %328 : vector<128x32xi1>, vector<128x32xf32>
    %c26_i32 = arith.constant 26 : i32
    %341 = arith.index_cast %c26_i32 : i32 to index
    %c0_64 = arith.constant 0 : index
    %342 = vector.load %arg4[%341, %c0_64] : memref<32x128xbf16, #tpu.memory_space<vmem>>, vector<1x128xbf16>
    %343 = arith.extf %342 : vector<1x128xbf16> to vector<1x128xf32>
    %344 = vector.broadcast %343 : vector<1x128xf32> to vector<128x128xf32>
    %345 = arith.addf %26, %344 : vector<128x128xf32>
    %cst_65 = arith.constant dense<0xFF800000> : vector<128xf32>
    %346 = vector.multi_reduction <maximumf>, %345, %cst_65 [1] : vector<128x128xf32> to vector<128xf32>
    %347 = vector.shape_cast %346 : vector<128xf32> to vector<128x1xf32>
    %348 = vector.broadcast %c26_i32 : i32 to vector<128x32xi32>
    %349 = arith.cmpi eq, %27, %348 : vector<128x32xi32>
    %350 = vector.shape_cast %347 : vector<128x1xf32> to vector<128x1xf32>
    %351 = vector.broadcast %350 : vector<128x1xf32> to vector<128x32xf32>
    %352 = arith.select %349, %351, %340 : vector<128x32xi1>, vector<128x32xf32>
    %c27_i32 = arith.constant 27 : i32
    %353 = arith.index_cast %c27_i32 : i32 to index
    %c0_66 = arith.constant 0 : index
    %354 = vector.load %arg4[%353, %c0_66] : memref<32x128xbf16, #tpu.memory_space<vmem>>, vector<1x128xbf16>
    %355 = arith.extf %354 : vector<1x128xbf16> to vector<1x128xf32>
    %356 = vector.broadcast %355 : vector<1x128xf32> to vector<128x128xf32>
    %357 = arith.addf %26, %356 : vector<128x128xf32>
    %cst_67 = arith.constant dense<0xFF800000> : vector<128xf32>
    %358 = vector.multi_reduction <maximumf>, %357, %cst_67 [1] : vector<128x128xf32> to vector<128xf32>
    %359 = vector.shape_cast %358 : vector<128xf32> to vector<128x1xf32>
    %360 = vector.broadcast %c27_i32 : i32 to vector<128x32xi32>
    %361 = arith.cmpi eq, %27, %360 : vector<128x32xi32>
    %362 = vector.shape_cast %359 : vector<128x1xf32> to vector<128x1xf32>
    %363 = vector.broadcast %362 : vector<128x1xf32> to vector<128x32xf32>
    %364 = arith.select %361, %363, %352 : vector<128x32xi1>, vector<128x32xf32>
    %c28_i32 = arith.constant 28 : i32
    %365 = arith.index_cast %c28_i32 : i32 to index
    %c0_68 = arith.constant 0 : index
    %366 = vector.load %arg4[%365, %c0_68] : memref<32x128xbf16, #tpu.memory_space<vmem>>, vector<1x128xbf16>
    %367 = arith.extf %366 : vector<1x128xbf16> to vector<1x128xf32>
    %368 = vector.broadcast %367 : vector<1x128xf32> to vector<128x128xf32>
    %369 = arith.addf %26, %368 : vector<128x128xf32>
    %cst_69 = arith.constant dense<0xFF800000> : vector<128xf32>
    %370 = vector.multi_reduction <maximumf>, %369, %cst_69 [1] : vector<128x128xf32> to vector<128xf32>
    %371 = vector.shape_cast %370 : vector<128xf32> to vector<128x1xf32>
    %372 = vector.broadcast %c28_i32 : i32 to vector<128x32xi32>
    %373 = arith.cmpi eq, %27, %372 : vector<128x32xi32>
    %374 = vector.shape_cast %371 : vector<128x1xf32> to vector<128x1xf32>
    %375 = vector.broadcast %374 : vector<128x1xf32> to vector<128x32xf32>
    %376 = arith.select %373, %375, %364 : vector<128x32xi1>, vector<128x32xf32>
    %c29_i32 = arith.constant 29 : i32
    %377 = arith.index_cast %c29_i32 : i32 to index
    %c0_70 = arith.constant 0 : index
    %378 = vector.load %arg4[%377, %c0_70] : memref<32x128xbf16, #tpu.memory_space<vmem>>, vector<1x128xbf16>
    %379 = arith.extf %378 : vector<1x128xbf16> to vector<1x128xf32>
    %380 = vector.broadcast %379 : vector<1x128xf32> to vector<128x128xf32>
    %381 = arith.addf %26, %380 : vector<128x128xf32>
    %cst_71 = arith.constant dense<0xFF800000> : vector<128xf32>
    %382 = vector.multi_reduction <maximumf>, %381, %cst_71 [1] : vector<128x128xf32> to vector<128xf32>
    %383 = vector.shape_cast %382 : vector<128xf32> to vector<128x1xf32>
    %384 = vector.broadcast %c29_i32 : i32 to vector<128x32xi32>
    %385 = arith.cmpi eq, %27, %384 : vector<128x32xi32>
    %386 = vector.shape_cast %383 : vector<128x1xf32> to vector<128x1xf32>
    %387 = vector.broadcast %386 : vector<128x1xf32> to vector<128x32xf32>
    %388 = arith.select %385, %387, %376 : vector<128x32xi1>, vector<128x32xf32>
    %c30_i32 = arith.constant 30 : i32
    %389 = arith.index_cast %c30_i32 : i32 to index
    %c0_72 = arith.constant 0 : index
    %390 = vector.load %arg4[%389, %c0_72] : memref<32x128xbf16, #tpu.memory_space<vmem>>, vector<1x128xbf16>
    %391 = arith.extf %390 : vector<1x128xbf16> to vector<1x128xf32>
    %392 = vector.broadcast %391 : vector<1x128xf32> to vector<128x128xf32>
    %393 = arith.addf %26, %392 : vector<128x128xf32>
    %cst_73 = arith.constant dense<0xFF800000> : vector<128xf32>
    %394 = vector.multi_reduction <maximumf>, %393, %cst_73 [1] : vector<128x128xf32> to vector<128xf32>
    %395 = vector.shape_cast %394 : vector<128xf32> to vector<128x1xf32>
    %396 = vector.broadcast %c30_i32 : i32 to vector<128x32xi32>
    %397 = arith.cmpi eq, %27, %396 : vector<128x32xi32>
    %398 = vector.shape_cast %395 : vector<128x1xf32> to vector<128x1xf32>
    %399 = vector.broadcast %398 : vector<128x1xf32> to vector<128x32xf32>
    %400 = arith.select %397, %399, %388 : vector<128x32xi1>, vector<128x32xf32>
    %c31_i32 = arith.constant 31 : i32
    %401 = arith.index_cast %c31_i32 : i32 to index
    %c0_74 = arith.constant 0 : index
    %402 = vector.load %arg4[%401, %c0_74] : memref<32x128xbf16, #tpu.memory_space<vmem>>, vector<1x128xbf16>
    %403 = arith.extf %402 : vector<1x128xbf16> to vector<1x128xf32>
    %404 = vector.broadcast %403 : vector<1x128xf32> to vector<128x128xf32>
    %405 = arith.addf %26, %404 : vector<128x128xf32>
    %cst_75 = arith.constant dense<0xFF800000> : vector<128xf32>
    %406 = vector.multi_reduction <maximumf>, %405, %cst_75 [1] : vector<128x128xf32> to vector<128xf32>
    %407 = vector.shape_cast %406 : vector<128xf32> to vector<128x1xf32>
    %408 = vector.broadcast %c31_i32 : i32 to vector<128x32xi32>
    %409 = arith.cmpi eq, %27, %408 : vector<128x32xi32>
    %410 = vector.shape_cast %407 : vector<128x1xf32> to vector<128x1xf32>
    %411 = vector.broadcast %410 : vector<128x1xf32> to vector<128x32xf32>
    %412 = arith.select %409, %411, %400 : vector<128x32xi1>, vector<128x32xf32>
    %c32_i32 = arith.constant 32 : i32
    %cst_76 = arith.constant 0.000000e+00 : f32
    %413 = vector.shape_cast %21 : vector<128x1xi1> to vector<128x1xi1>
    %414 = vector.broadcast %413 : vector<128x1xi1> to vector<128x32xi1>
    %415 = vector.broadcast %cst_76 : f32 to vector<128x32xf32>
    %416 = arith.select %414, %412, %415 : vector<128x32xi1>, vector<128x32xf32>
    %c0_77 = arith.constant 0 : index
    %c0_78 = arith.constant 0 : index
    %417 = vector.load %arg5[%c0_77, %c0_78] : memref<1x32xf32, #tpu.memory_space<vmem>>, vector<1x32xf32>
    %418 = vector.broadcast %417 : vector<1x32xf32> to vector<128x32xf32>
    %419 = arith.mulf %416, %418 : vector<128x32xf32>
    %cst_79 = arith.constant dense<0.000000e+00> : vector<128xf32>
    %420 = vector.multi_reduction <add>, %419, %cst_79 [1] : vector<128x32xf32> to vector<128xf32>
    %421 = vector.shape_cast %420 : vector<128xf32> to vector<128x1xf32>
    %c0_80 = arith.constant 0 : index
    %c0_81 = arith.constant 0 : index
    %422 = vector.load %arg6[%c0_80, %c0_81] : memref<1x1xf32, #tpu.memory_space<vmem>>, vector<1x1xf32>
    %423 = vector.broadcast %422 : vector<1x1xf32> to vector<128x1xf32>
    %424 = arith.addf %421, %423 : vector<128x1xf32>
    %c0_82 = arith.constant 0 : index
    %c0_83 = arith.constant 0 : index
    %425 = vector.load %arg7[%c0_82, %c0_83] : memref<1x128xf32, #tpu.memory_space<vmem>>, vector<1x128xf32>
    %426 = vector.broadcast %424 : vector<128x1xf32> to vector<128x128xf32>
    %427 = vector.broadcast %425 : vector<1x128xf32> to vector<128x128xf32>
    %428 = arith.addf %426, %427 : vector<128x128xf32>
    %cst_84 = arith.constant 0.000000e+00 : f32
    %429 = vector.broadcast %cst_84 : f32 to vector<128x128xf32>
    %430 = arith.cmpf ogt, %428, %429 : vector<128x128xf32>
    %cst_85 = arith.constant 2.000000e-01 : f32
    %431 = vector.broadcast %cst_85 : f32 to vector<128x128xf32>
    %432 = arith.mulf %431, %428 : vector<128x128xf32>
    %433 = arith.select %430, %428, %432 : vector<128x128xi1>, vector<128x128xf32>
    %cst_86 = arith.constant 0.000000e+00 : f32
    %434 = vector.broadcast %cst_86 : f32 to vector<128x128xf32>
    %435 = arith.cmpf ogt, %17, %434 : vector<128x128xf32>
    %cst_87 = arith.constant -1.000000e+30 : f32
    %436 = vector.broadcast %cst_87 : f32 to vector<128x128xf32>
    %437 = arith.select %435, %433, %436 : vector<128x128xi1>, vector<128x128xf32>
    %cst_88 = arith.constant dense<0xFF800000> : vector<128xf32>
    %438 = vector.multi_reduction <maximumf>, %437, %cst_88 [1] : vector<128x128xf32> to vector<128xf32>
    %439 = vector.shape_cast %438 : vector<128xf32> to vector<128x1xf32>
    %cst_89 = arith.constant 0.000000e+00 : f32
    %440 = vector.broadcast %cst_89 : f32 to vector<128x1xf32>
    %441 = arith.select %21, %439, %440 : vector<128x1xi1>, vector<128x1xf32>
    %442 = vector.broadcast %441 : vector<128x1xf32> to vector<128x128xf32>
    %443 = arith.subf %437, %442 : vector<128x128xf32>
    %444 = math.exp %443 : vector<128x128xf32>
    %445 = arith.mulf %444, %17 : vector<128x128xf32>
    %cst_90 = arith.constant dense<0.000000e+00> : vector<128xf32>
    %446 = vector.multi_reduction <add>, %445, %cst_90 [1] : vector<128x128xf32> to vector<128xf32>
    %447 = vector.shape_cast %446 : vector<128xf32> to vector<128x1xf32>
    %cst_91 = arith.constant 9.99999968E-21 : f32
    %448 = vector.broadcast %cst_91 : f32 to vector<128x1xf32>
    %449 = arith.maximumf %447, %448 : vector<128x1xf32>
    %450 = tpu.reciprocal %449 {approx = true} : vector<128x1xf32> -> vector<128x1xf32>
    %451 = vector.broadcast %450 : vector<128x1xf32> to vector<128x128xf32>
    %452 = arith.mulf %445, %451 : vector<128x128xf32>
    %453 = arith.truncf %452 : vector<128x128xf32> to vector<128x128xbf16>
    %c0_92 = arith.constant 0 : index
    %c0_93 = arith.constant 0 : index
    %454 = vector.load %arg9[%c0_92, %c0_93] : memref<128x128xbf16, #tpu.memory_space<vmem>>, vector<128x128xbf16>
    tpu.vector_store %arg9[%c0_92, %c0_93], %453 {strides = array<i32>} : memref<128x128xbf16, #tpu.memory_space<vmem>>, vector<128x128xbf16>,
    %c0_94 = arith.constant 0 : index
    %c0_95 = arith.constant 0 : index
    %455 = vector.load %arg3[%c0_94, %c0_95] : memref<128x35xbf16, #tpu.memory_space<vmem>>, vector<128x35xbf16>
    %cst_96 = arith.constant dense<0.000000e+00> : vector<128x35xf32>
    %456 = tpu.matmul %453, %455, %cst_96 {dimension_numbers = #tpu.dot_dimension_numbers<[1], [0], [0], [1], [0, 0, 1, 1], [], []>} : vector<128x128xbf16>, vector<128x35xbf16>, vector<128x35xf32> -> vector<128x35xf32>
    %c0_97 = arith.constant 0 : index
    %c0_98 = arith.constant 0 : index
    %457 = vector.load %arg8[%c0_97, %c0_98] : memref<1x35xf32, #tpu.memory_space<vmem>>, vector<1x35xf32>
    %458 = vector.broadcast %457 : vector<1x35xf32> to vector<128x35xf32>
    %459 = arith.addf %456, %458 : vector<128x35xf32>
    %c0_99 = arith.constant 0 : index
    %c0_100 = arith.constant 0 : index
    %460 = vector.load %arg10[%c0_99, %c0_100] : memref<128x35xf32, #tpu.memory_space<vmem>>, vector<128x35xf32>
    tpu.vector_store %arg10[%c0_99, %c0_100], %459 {strides = array<i32>} : memref<128x35xf32, #tpu.memory_space<vmem>>, vector<128x35xf32>,
    return
  }
  func.func @transform_0(%arg0: i32) -> (i32, i32) {
    %c0_i32 = arith.constant 0 : i32
    %c0_i32_0 = arith.constant 0 : i32
    return %arg0, %c0_i32 : i32, i32
  }
  func.func @transform_1(%arg0: i32) -> (i32, i32) {
    %c0_i32 = arith.constant 0 : i32
    %c0_i32_0 = arith.constant 0 : i32
    return %arg0, %c0_i32 : i32, i32
  }
  func.func @transform_2(%arg0: i32) -> (i32, i32) {
    %c0_i32 = arith.constant 0 : i32
    %c0_i32_0 = arith.constant 0 : i32
    %c0_i32_1 = arith.constant 0 : i32
    return %c0_i32, %c0_i32_0 : i32, i32
  }
  func.func @transform_3(%arg0: i32) -> (i32, i32) {
    %c0_i32 = arith.constant 0 : i32
    %c0_i32_0 = arith.constant 0 : i32
    %c0_i32_1 = arith.constant 0 : i32
    return %c0_i32, %c0_i32_0 : i32, i32
  }
  func.func @transform_4(%arg0: i32) -> (i32, i32) {
    %c0_i32 = arith.constant 0 : i32
    %c0_i32_0 = arith.constant 0 : i32
    %c0_i32_1 = arith.constant 0 : i32
    return %c0_i32, %c0_i32_0 : i32, i32
  }
  func.func @transform_5(%arg0: i32) -> (i32, i32) {
    %c0_i32 = arith.constant 0 : i32
    %c0_i32_0 = arith.constant 0 : i32
    %c0_i32_1 = arith.constant 0 : i32
    return %c0_i32, %c0_i32_0 : i32, i32
  }
  func.func @transform_6(%arg0: i32) -> (i32, i32) {
    %c0_i32 = arith.constant 0 : i32
    %c0_i32_0 = arith.constant 0 : i32
    %c0_i32_1 = arith.constant 0 : i32
    return %c0_i32, %c0_i32_0 : i32, i32
  }
  func.func @transform_7(%arg0: i32) -> (i32, i32) {
    %c0_i32 = arith.constant 0 : i32
    %c0_i32_0 = arith.constant 0 : i32
    %c0_i32_1 = arith.constant 0 : i32
    return %c0_i32, %c0_i32_0 : i32, i32
  }
  func.func @transform_8(%arg0: i32) -> (i32, i32) {
    %c0_i32 = arith.constant 0 : i32
    %c0_i32_0 = arith.constant 0 : i32
    return %arg0, %c0_i32 : i32, i32
  }
  func.func @transform_9(%arg0: i32) -> (i32, i32) {
    %c0_i32 = arith.constant 0 : i32
    %c0_i32_0 = arith.constant 0 : i32
    return %arg0, %c0_i32 : i32, i32
  }
}

module attributes {stable_mosaic.version = 11 : i64} {
  func.func @_fitness_kernel(%arg0: i32, %arg1: memref<128x128xbf16, #tpu.memory_space<vmem>>, %arg2: memref<1x128xf32, #tpu.memory_space<vmem>>, %arg3: memref<128x2xf32, #tpu.memory_space<vmem>>, %arg4: memref<128x1xf32, #tpu.memory_space<vmem>>) attributes {dimension_semantics = [#tpu.dimension_semantics<parallel>], iteration_bounds = array<i64: 1>, scalar_prefetch = 0 : i64, scratch_operands = 0 : i64, tpu.core_type = #tpu.core_type<tc>, window_params = [{transform_indices = @transform_0, window_bounds = array<i64: 128, 128>}, {pipeline_mode = #tpu.pipeline_mode<synchronous>, transform_indices = @transform_1, window_bounds = array<i64: 1, 128>}, {transform_indices = @transform_2, window_bounds = array<i64: 128, 2>}, {transform_indices = @transform_3, window_bounds = array<i64: 128, 1>}]} {
    %c0 = arith.constant 0 : index
    %c0_0 = arith.constant 0 : index
    %0 = vector.load %arg1[%c0, %c0_0] : memref<128x128xbf16, #tpu.memory_space<vmem>>, vector<128x128xbf16>
    %cst = arith.constant 0.000000e+00 : bf16
    %1 = vector.broadcast %cst : bf16 to vector<128x128xbf16>
    %2 = arith.cmpf one, %0, %1 : vector<128x128xbf16>
    %cst_1 = arith.constant 1.000000e+00 : f32
    %cst_2 = arith.constant 0.000000e+00 : f32
    %3 = vector.broadcast %cst_1 : f32 to vector<128x128xf32>
    %4 = vector.broadcast %cst_2 : f32 to vector<128x128xf32>
    %5 = arith.select %2, %3, %4 : vector<128x128xi1>, vector<128x128xf32>
    %cst_3 = arith.constant dense<0.000000e+00> : vector<128xf32>
    %6 = vector.multi_reduction <add>, %5, %cst_3 [1] : vector<128x128xf32> to vector<128xf32>
    %7 = vector.shape_cast %6 : vector<128xf32> to vector<128x1xf32>
    %c0_4 = arith.constant 0 : index
    %c0_5 = arith.constant 0 : index
    %8 = vector.load %arg2[%c0_4, %c0_5] : memref<1x128xf32, #tpu.memory_space<vmem>>, vector<1x128xf32>
    %cst_6 = arith.constant 0.000000e+00 : f32
    %9 = vector.shape_cast %8 : vector<1x128xf32> to vector<1x128xf32>
    %10 = vector.broadcast %9 : vector<1x128xf32> to vector<128x128xf32>
    %11 = vector.broadcast %cst_6 : f32 to vector<128x128xf32>
    %12 = arith.select %2, %10, %11 : vector<128x128xi1>, vector<128x128xf32>
    %cst_7 = arith.constant dense<0.000000e+00> : vector<128xf32>
    %13 = vector.multi_reduction <add>, %12, %cst_7 [1] : vector<128x128xf32> to vector<128xf32>
    %14 = vector.shape_cast %13 : vector<128xf32> to vector<128x1xf32>
    %c0_8 = arith.constant 0 : index
    %c0_9 = arith.constant 0 : index
    %15 = vector.load %arg3[%c0_8, %c0_9] : memref<128x2xf32, #tpu.memory_space<vmem>>, vector<128x1xf32>
    %16 = arith.mulf %7, %15 : vector<128x1xf32>
    %17 = arith.subf %14, %16 : vector<128x1xf32>
    %c0_10 = arith.constant 0 : index
    %c1 = arith.constant 1 : index
    %18 = vector.load %arg3[%c0_10, %c1] : memref<128x2xf32, #tpu.memory_space<vmem>>, vector<128x1xf32>
    %19 = arith.addf %17, %18 : vector<128x1xf32>
    %cst_11 = arith.constant 0.000000e+00 : f32
    %20 = vector.broadcast %cst_11 : f32 to vector<128x1xf32>
    %21 = arith.subf %20, %19 : vector<128x1xf32>
    %22 = math.exp %21 : vector<128x1xf32>
    %cst_12 = arith.constant 1.000000e+00 : f32
    %23 = vector.broadcast %cst_12 : f32 to vector<128x1xf32>
    %24 = arith.addf %23, %22 : vector<128x1xf32>
    %cst_13 = arith.constant 1.000000e+00 : f32
    %25 = vector.broadcast %cst_13 : f32 to vector<128x1xf32>
    %26 = arith.divf %25, %24 : vector<128x1xf32>
    %c0_14 = arith.constant 0 : index
    %c0_15 = arith.constant 0 : index
    %27 = vector.load %arg4[%c0_14, %c0_15] : memref<128x1xf32, #tpu.memory_space<vmem>>, vector<128x1xf32>
    tpu.vector_store %arg4[%c0_14, %c0_15], %26 {strides = array<i32>} : memref<128x1xf32, #tpu.memory_space<vmem>>, vector<128x1xf32>,
    return
  }
  func.func @transform_0(%arg0: i32) -> (i32, i32) {
    %c0_i32 = arith.constant 0 : i32
    %c0_i32_0 = arith.constant 0 : i32
    return %arg0, %c0_i32 : i32, i32
  }
  func.func @transform_1(%arg0: i32) -> (i32, i32) {
    %c0_i32 = arith.constant 0 : i32
    %c0_i32_0 = arith.constant 0 : i32
    %c0_i32_1 = arith.constant 0 : i32
    return %c0_i32, %c0_i32_0 : i32, i32
  }
  func.func @transform_2(%arg0: i32) -> (i32, i32) {
    %c0_i32 = arith.constant 0 : i32
    %c0_i32_0 = arith.constant 0 : i32
    return %arg0, %c0_i32 : i32, i32
  }
  func.func @transform_3(%arg0: i32) -> (i32, i32) {
    %c0_i32 = arith.constant 0 : i32
    %c0_i32_0 = arith.constant 0 : i32
    return %arg0, %c0_i32 : i32, i32
  }
}

module attributes {stable_mosaic.version = 11 : i64} {
  func.func @_coarsen_sast_kernel(%arg0: i32, %arg1: i32, %arg2: i32, %arg3: memref<128x128xbf16, #tpu.memory_space<vmem>>, %arg4: memref<128x128xbf16, #tpu.memory_space<vmem>>, %arg5: memref<128x1xbf16, #tpu.memory_space<vmem>>, %arg6: memref<128x128xbf16, #tpu.memory_space<vmem>>, %arg7: memref<128x128xf32, #tpu.memory_space<vmem>>) attributes {dimension_semantics = [#tpu.dimension_semantics<parallel>, #tpu.dimension_semantics<parallel>, #tpu.dimension_semantics<arbitrary>], iteration_bounds = array<i64: 1, 1, 1>, scalar_prefetch = 0 : i64, scratch_operands = 1 : i64, tpu.core_type = #tpu.core_type<tc>, window_params = [{transform_indices = @transform_0, window_bounds = array<i64: 128, 128>}, {transform_indices = @transform_1, window_bounds = array<i64: 128, 128>}, {transform_indices = @transform_2, window_bounds = array<i64: 128, 1>}, {transform_indices = @transform_3, window_bounds = array<i64: 128, 128>}]} {
    %c0_i32 = arith.constant 0 : i32
    %0 = arith.cmpi eq, %arg2, %c0_i32 : i32
    %1 = arith.extui %0 : i1 to i32
    %c0_i32_0 = arith.constant 0 : i32
    %2 = arith.cmpi ne, %1, %c0_i32_0 : i32
    scf.if %2 {
      %cst_12 = arith.constant 0.000000e+00 : f32
      %15 = vector.broadcast %cst_12 : f32 to vector<128x128xf32>
      %c0_13 = arith.constant 0 : index
      %c0_14 = arith.constant 0 : index
      %16 = vector.load %arg7[%c0_13, %c0_14] : memref<128x128xf32, #tpu.memory_space<vmem>>, vector<128x128xf32>
      tpu.vector_store %arg7[%c0_13, %c0_14], %15 {strides = array<i32>} : memref<128x128xf32, #tpu.memory_space<vmem>>, vector<128x128xf32>,
    } else {
    }
    %c0 = arith.constant 0 : index
    %c0_1 = arith.constant 0 : index
    %3 = vector.load %arg4[%c0, %c0_1] : memref<128x128xbf16, #tpu.memory_space<vmem>>, vector<128x128xbf16>
    %c0_2 = arith.constant 0 : index
    %c0_3 = arith.constant 0 : index
    %4 = vector.load %arg5[%c0_2, %c0_3] : memref<128x1xbf16, #tpu.memory_space<vmem>>, vector<128x1xbf16>
    %5 = vector.broadcast %4 : vector<128x1xbf16> to vector<128x128xbf16>
    %6 = arith.mulf %3, %5 : vector<128x128xbf16>
    %c0_4 = arith.constant 0 : index
    %c0_5 = arith.constant 0 : index
    %7 = vector.load %arg7[%c0_4, %c0_5] : memref<128x128xf32, #tpu.memory_space<vmem>>, vector<128x128xf32>
    %c0_6 = arith.constant 0 : index
    %c0_7 = arith.constant 0 : index
    %8 = vector.load %arg3[%c0_6, %c0_7] : memref<128x128xbf16, #tpu.memory_space<vmem>>, vector<128x128xbf16>
    %cst = arith.constant dense<0.000000e+00> : vector<128x128xf32>
    %9 = tpu.matmul %8, %6, %cst {dimension_numbers = #tpu.dot_dimension_numbers<[1], [1], [0], [0], [0, 0, 1, 0], [], []>} : vector<128x128xbf16>, vector<128x128xbf16>, vector<128x128xf32> -> vector<128x128xf32>
    %10 = arith.addf %7, %9 : vector<128x128xf32>
    %c0_8 = arith.constant 0 : index
    %c0_9 = arith.constant 0 : index
    %11 = vector.load %arg7[%c0_8, %c0_9] : memref<128x128xf32, #tpu.memory_space<vmem>>, vector<128x128xf32>
    tpu.vector_store %arg7[%c0_8, %c0_9], %10 {strides = array<i32>} : memref<128x128xf32, #tpu.memory_space<vmem>>, vector<128x128xf32>,
    %c0_i32_10 = arith.constant 0 : i32
    %12 = arith.cmpi eq, %arg2, %c0_i32_10 : i32
    %13 = arith.extui %12 : i1 to i32
    %c0_i32_11 = arith.constant 0 : i32
    %14 = arith.cmpi ne, %13, %c0_i32_11 : i32
    scf.if %14 {
      %c128_i32 = arith.constant 128 : i32
      %15 = arith.muli %arg0, %c128_i32 : i32
      %16 = tpu.iota {dimensions = array<i32: 0>} : vector<128x128xi32>
      %17 = vector.broadcast %15 : i32 to vector<128x128xi32>
      %18 = arith.addi %17, %16 : vector<128x128xi32>
      %c128_i32_12 = arith.constant 128 : i32
      %19 = arith.muli %arg1, %c128_i32_12 : i32
      %20 = tpu.iota {dimensions = array<i32: 1>} : vector<128x128xi32>
      %21 = vector.broadcast %19 : i32 to vector<128x128xi32>
      %22 = arith.addi %21, %20 : vector<128x128xi32>
      %23 = arith.cmpi eq, %18, %22 : vector<128x128xi32>
      %c0_13 = arith.constant 0 : index
      %c0_14 = arith.constant 0 : index
      %24 = vector.load %arg7[%c0_13, %c0_14] : memref<128x128xf32, #tpu.memory_space<vmem>>, vector<128x128xf32>
      %cst_15 = arith.constant 0.000000e+00 : f32
      %25 = vector.broadcast %cst_15 : f32 to vector<128x128xf32>
      %26 = arith.select %23, %25, %24 : vector<128x128xi1>, vector<128x128xf32>
      %27 = arith.truncf %26 : vector<128x128xf32> to vector<128x128xbf16>
      %c0_16 = arith.constant 0 : index
      %c0_17 = arith.constant 0 : index
      %28 = vector.load %arg6[%c0_16, %c0_17] : memref<128x128xbf16, #tpu.memory_space<vmem>>, vector<128x128xbf16>
      tpu.vector_store %arg6[%c0_16, %c0_17], %27 {strides = array<i32>} : memref<128x128xbf16, #tpu.memory_space<vmem>>, vector<128x128xbf16>,
    } else {
    }
    return
  }
  func.func @transform_0(%arg0: i32, %arg1: i32, %arg2: i32) -> (i32, i32) {
    %c0_i32 = arith.constant 0 : i32
    return %arg0, %arg2 : i32, i32
  }
  func.func @transform_1(%arg0: i32, %arg1: i32, %arg2: i32) -> (i32, i32) {
    %c0_i32 = arith.constant 0 : i32
    return %arg1, %arg2 : i32, i32
  }
  func.func @transform_2(%arg0: i32, %arg1: i32, %arg2: i32) -> (i32, i32) {
    %c0_i32 = arith.constant 0 : i32
    %c0_i32_0 = arith.constant 0 : i32
    return %arg1, %c0_i32 : i32, i32
  }
  func.func @transform_3(%arg0: i32, %arg1: i32, %arg2: i32) -> (i32, i32) {
    %c0_i32 = arith.constant 0 : i32
    return %arg0, %arg1 : i32, i32
  }
}

module attributes {stable_mosaic.version = 11 : i64} {
  func.func @_coarsen_sa_kernel(%arg0: i32, %arg1: i32, %arg2: memref<128x128xbf16, #tpu.memory_space<vmem>>, %arg3: memref<128x1xbf16, #tpu.memory_space<vmem>>, %arg4: memref<128x128xbf16, #tpu.memory_space<vmem>>, %arg5: memref<128x1xf32, #tpu.memory_space<vmem>>, %arg6: memref<128x128xbf16, #tpu.memory_space<vmem>>, %arg7: memref<128x128xf32, #tpu.memory_space<vmem>>) attributes {dimension_semantics = [#tpu.dimension_semantics<parallel>, #tpu.dimension_semantics<arbitrary>], iteration_bounds = array<i64: 1, 1>, scalar_prefetch = 0 : i64, scratch_operands = 1 : i64, tpu.core_type = #tpu.core_type<tc>, window_params = [{transform_indices = @transform_0, window_bounds = array<i64: 128, 128>}, {transform_indices = @transform_1, window_bounds = array<i64: 128, 1>}, {transform_indices = @transform_2, window_bounds = array<i64: 128, 128>}, {transform_indices = @transform_3, window_bounds = array<i64: 128, 1>}, {transform_indices = @transform_4, window_bounds = array<i64: 128, 128>}]} {
    %c0_i32 = arith.constant 0 : i32
    %0 = arith.cmpi eq, %arg1, %c0_i32 : i32
    %1 = arith.extui %0 : i1 to i32
    %c0_i32_0 = arith.constant 0 : i32
    %2 = arith.cmpi ne, %1, %c0_i32_0 : i32
    scf.if %2 {
      %cst_17 = arith.constant 0.000000e+00 : f32
      %31 = vector.broadcast %cst_17 : f32 to vector<128x128xf32>
      %c0_18 = arith.constant 0 : index
      %c0_19 = arith.constant 0 : index
      %32 = vector.load %arg7[%c0_18, %c0_19] : memref<128x128xf32, #tpu.memory_space<vmem>>, vector<128x128xf32>
      tpu.vector_store %arg7[%c0_18, %c0_19], %31 {strides = array<i32>} : memref<128x128xf32, #tpu.memory_space<vmem>>, vector<128x128xf32>,
    } else {
    }
    %c0 = arith.constant 0 : index
    %c0_1 = arith.constant 0 : index
    %3 = vector.load %arg4[%c0, %c0_1] : memref<128x128xbf16, #tpu.memory_space<vmem>>, vector<128x128xbf16>
    %c0_2 = arith.constant 0 : index
    %c0_3 = arith.constant 0 : index
    %4 = vector.load %arg5[%c0_2, %c0_3] : memref<128x1xf32, #tpu.memory_space<vmem>>, vector<128x1xf32>
    %5 = tpu.iota {dimensions = array<i32: 1>} : vector<128x128xi32>
    %c128_i32 = arith.constant 128 : i32
    %6 = arith.muli %arg1, %c128_i32 : i32
    %7 = tpu.iota {dimensions = array<i32: 0>} : vector<128x128xi32>
    %8 = vector.broadcast %6 : i32 to vector<128x128xi32>
    %9 = arith.addi %8, %7 : vector<128x128xi32>
    %10 = arith.cmpi eq, %5, %9 : vector<128x128xi32>
    %cst = arith.constant 0.000000e+00 : f32
    %11 = vector.broadcast %cst : f32 to vector<128x1xf32>
    %12 = arith.cmpf ogt, %4, %11 : vector<128x1xf32>
    %13 = vector.broadcast %12 : vector<128x1xi1> to vector<128x128xi1>
    %14 = arith.andi %10, %13 : vector<128x128xi1>
    %cst_4 = arith.constant 0.000000e+00 : bf16
    %15 = vector.broadcast %cst_4 : bf16 to vector<128x128xbf16>
    %16 = arith.cmpf oeq, %3, %15 : vector<128x128xbf16>
    %17 = arith.andi %14, %16 : vector<128x128xi1>
    %cst_5 = arith.constant 1.000000e+00 : bf16
    %18 = vector.broadcast %cst_5 : bf16 to vector<128x128xbf16>
    %19 = arith.select %17, %18, %3 : vector<128x128xi1>, vector<128x128xbf16>
    %c0_6 = arith.constant 0 : index
    %c0_7 = arith.constant 0 : index
    %20 = vector.load %arg2[%c0_6, %c0_7] : memref<128x128xbf16, #tpu.memory_space<vmem>>, vector<128x128xbf16>
    %c0_8 = arith.constant 0 : index
    %c0_9 = arith.constant 0 : index
    %21 = vector.load %arg3[%c0_8, %c0_9] : memref<128x1xbf16, #tpu.memory_space<vmem>>, vector<128x1xbf16>
    %22 = vector.broadcast %21 : vector<128x1xbf16> to vector<128x128xbf16>
    %23 = arith.mulf %20, %22 : vector<128x128xbf16>
    %c0_10 = arith.constant 0 : index
    %c0_11 = arith.constant 0 : index
    %24 = vector.load %arg7[%c0_10, %c0_11] : memref<128x128xf32, #tpu.memory_space<vmem>>, vector<128x128xf32>
    %cst_12 = arith.constant dense<0.000000e+00> : vector<128x128xf32>
    %25 = tpu.matmul %23, %19, %cst_12 {dimension_numbers = #tpu.dot_dimension_numbers<[1], [0], [0], [1], [0, 0, 1, 1], [], []>} : vector<128x128xbf16>, vector<128x128xbf16>, vector<128x128xf32> -> vector<128x128xf32>
    %26 = arith.addf %24, %25 : vector<128x128xf32>
    %c0_13 = arith.constant 0 : index
    %c0_14 = arith.constant 0 : index
    %27 = vector.load %arg7[%c0_13, %c0_14] : memref<128x128xf32, #tpu.memory_space<vmem>>, vector<128x128xf32>
    tpu.vector_store %arg7[%c0_13, %c0_14], %26 {strides = array<i32>} : memref<128x128xf32, #tpu.memory_space<vmem>>, vector<128x128xf32>,
    %c0_i32_15 = arith.constant 0 : i32
    %28 = arith.cmpi eq, %arg1, %c0_i32_15 : i32
    %29 = arith.extui %28 : i1 to i32
    %c0_i32_16 = arith.constant 0 : i32
    %30 = arith.cmpi ne, %29, %c0_i32_16 : i32
    scf.if %30 {
      %c0_17 = arith.constant 0 : index
      %c0_18 = arith.constant 0 : index
      %31 = vector.load %arg7[%c0_17, %c0_18] : memref<128x128xf32, #tpu.memory_space<vmem>>, vector<128x128xf32>
      %32 = arith.truncf %31 : vector<128x128xf32> to vector<128x128xbf16>
      %c0_19 = arith.constant 0 : index
      %c0_20 = arith.constant 0 : index
      %33 = vector.load %arg6[%c0_19, %c0_20] : memref<128x128xbf16, #tpu.memory_space<vmem>>, vector<128x128xbf16>
      tpu.vector_store %arg6[%c0_19, %c0_20], %32 {strides = array<i32>} : memref<128x128xbf16, #tpu.memory_space<vmem>>, vector<128x128xbf16>,
    } else {
    }
    return
  }
  func.func @transform_0(%arg0: i32, %arg1: i32) -> (i32, i32) {
    %c0_i32 = arith.constant 0 : i32
    return %arg0, %arg1 : i32, i32
  }
  func.func @transform_1(%arg0: i32, %arg1: i32) -> (i32, i32) {
    %c0_i32 = arith.constant 0 : i32
    %c0_i32_0 = arith.constant 0 : i32
    return %arg0, %c0_i32 : i32, i32
  }
  func.func @transform_2(%arg0: i32, %arg1: i32) -> (i32, i32) {
    %c0_i32 = arith.constant 0 : i32
    %c0_i32_0 = arith.constant 0 : i32
    return %arg1, %c0_i32 : i32, i32
  }
  func.func @transform_3(%arg0: i32, %arg1: i32) -> (i32, i32) {
    %c0_i32 = arith.constant 0 : i32
    %c0_i32_0 = arith.constant 0 : i32
    return %arg1, %c0_i32 : i32, i32
  }
  func.func @transform_4(%arg0: i32, %arg1: i32) -> (i32, i32) {
    %c0_i32 = arith.constant 0 : i32
    %c0_i32_0 = arith.constant 0 : i32
    return %arg0, %c0_i32 : i32, i32
  }
}

module attributes {stable_mosaic.version = 11 : i64} {
  func.func @_graphconv_pool_kernel(%arg0: i32, %arg1: memref<128x128xbf16, #tpu.memory_space<vmem>>, %arg2: memref<128x32xbf16, #tpu.memory_space<vmem>>, %arg3: memref<64x32xbf16, #tpu.memory_space<vmem>>, %arg4: memref<1x32xf32, #tpu.memory_space<vmem>>, %arg5: memref<2x128xbf16, #tpu.memory_space<vmem>>, %arg6: memref<128x32xbf16, #tpu.memory_space<vmem>>, %arg7: memref<1x2x32xf32, #tpu.memory_space<vmem>>) attributes {dimension_semantics = [#tpu.dimension_semantics<parallel>], iteration_bounds = array<i64: 1>, scalar_prefetch = 0 : i64, scratch_operands = 0 : i64, tpu.core_type = #tpu.core_type<tc>, window_params = [{transform_indices = @transform_0, window_bounds = array<i64: 128, 128>}, {pipeline_mode = #tpu.pipeline_mode<synchronous>, transform_indices = @transform_1, window_bounds = array<i64: 128, 32>}, {pipeline_mode = #tpu.pipeline_mode<synchronous>, transform_indices = @transform_2, window_bounds = array<i64: 64, 32>}, {pipeline_mode = #tpu.pipeline_mode<synchronous>, transform_indices = @transform_3, window_bounds = array<i64: 1, 32>}, {transform_indices = @transform_4, window_bounds = array<i64: 2, 128>}, {transform_indices = @transform_5, window_bounds = array<i64: 128, 32>}, {transform_indices = @transform_6, window_bounds = array<i64: 1, 2, 32>}]} {
    %c0 = arith.constant 0 : index
    %c0_0 = arith.constant 0 : index
    %0 = vector.load %arg1[%c0, %c0_0] : memref<128x128xbf16, #tpu.memory_space<vmem>>, vector<128x128xbf16>
    %cst = arith.constant 0.000000e+00 : bf16
    %1 = vector.broadcast %cst : bf16 to vector<128x128xbf16>
    %2 = arith.cmpf one, %0, %1 : vector<128x128xbf16>
    %3 = arith.extui %2 : vector<128x128xi1> to vector<128x128xi32>
    %4 = arith.sitofp %3 : vector<128x128xi32> to vector<128x128xf32>
    %cst_1 = arith.constant dense<0.000000e+00> : vector<128xf32>
    %5 = vector.multi_reduction <add>, %4, %cst_1 [1] : vector<128x128xf32> to vector<128xf32>
    %6 = vector.shape_cast %5 : vector<128xf32> to vector<128x1xf32>
    %cst_2 = arith.constant 1.000000e+00 : f32
    %7 = vector.broadcast %cst_2 : f32 to vector<128x1xf32>
    %8 = arith.maximumf %6, %7 : vector<128x1xf32>
    %9 = tpu.reciprocal %8 {approx = true} : vector<128x1xf32> -> vector<128x1xf32>
    %c0_3 = arith.constant 0 : index
    %c0_4 = arith.constant 0 : index
    %10 = vector.load %arg2[%c0_3, %c0_4] : memref<128x32xbf16, #tpu.memory_space<vmem>>, vector<128x32xbf16>
    %cst_5 = arith.constant dense<0.000000e+00> : vector<128x32xf32>
    %11 = tpu.matmul %0, %10, %cst_5 {dimension_numbers = #tpu.dot_dimension_numbers<[1], [0], [0], [1], [0, 0, 1, 1], [], []>} : vector<128x128xbf16>, vector<128x32xbf16>, vector<128x32xf32> -> vector<128x32xf32>
    %12 = vector.broadcast %9 : vector<128x1xf32> to vector<128x32xf32>
    %13 = arith.mulf %11, %12 : vector<128x32xf32>
    %c128_i32 = arith.constant 128 : i32
    %14 = arith.muli %arg0, %c128_i32 : i32
    %15 = tpu.assume_multiple %14, 128 : i32
    %16 = arith.index_cast %15 : i32 to index
    %c0_6 = arith.constant 0 : index
    %17 = vector.load %arg2[%16, %c0_6] : memref<128x32xbf16, #tpu.memory_space<vmem>>, vector<128x32xbf16>
    %18 = arith.truncf %13 : vector<128x32xf32> to vector<128x32xbf16>
    %19 = tpu.concatenate %18, %17 in 1 : vector<128x32xbf16>, vector<128x32xbf16> -> vector<128x64xbf16>
    %c0_7 = arith.constant 0 : index
    %c0_8 = arith.constant 0 : index
    %20 = vector.load %arg3[%c0_7, %c0_8] : memref<64x32xbf16, #tpu.memory_space<vmem>>, vector<64x32xbf16>
    %cst_9 = arith.constant dense<0.000000e+00> : vector<128x32xf32>
    %21 = tpu.matmul %19, %20, %cst_9 {dimension_numbers = #tpu.dot_dimension_numbers<[1], [0], [0], [1], [0, 0, 1, 1], [], []>} : vector<128x64xbf16>, vector<64x32xbf16>, vector<128x32xf32> -> vector<128x32xf32>
    %c0_10 = arith.constant 0 : index
    %c0_11 = arith.constant 0 : index
    %22 = vector.load %arg4[%c0_10, %c0_11] : memref<1x32xf32, #tpu.memory_space<vmem>>, vector<1x32xf32>
    %23 = vector.broadcast %22 : vector<1x32xf32> to vector<128x32xf32>
    %24 = arith.addf %21, %23 : vector<128x32xf32>
    %cst_12 = arith.constant 0.000000e+00 : f32
    %25 = vector.broadcast %cst_12 : f32 to vector<128x32xf32>
    %26 = arith.maximumf %24, %25 : vector<128x32xf32>
    %27 = arith.truncf %26 : vector<128x32xf32> to vector<128x32xbf16>
    %c0_13 = arith.constant 0 : index
    %c0_14 = arith.constant 0 : index
    %28 = vector.load %arg6[%c0_13, %c0_14] : memref<128x32xbf16, #tpu.memory_space<vmem>>, vector<128x32xbf16>
    tpu.vector_store %arg6[%c0_13, %c0_14], %27 {strides = array<i32>} : memref<128x32xbf16, #tpu.memory_space<vmem>>, vector<128x32xbf16>,
    %c0_15 = arith.constant 0 : index
    %c0_16 = arith.constant 0 : index
    %29 = vector.load %arg5[%c0_15, %c0_16] : memref<2x128xbf16, #tpu.memory_space<vmem>>, vector<2x128xbf16>
    %cst_17 = arith.constant dense<0.000000e+00> : vector<2x32xf32>
    %30 = tpu.matmul %29, %27, %cst_17 {dimension_numbers = #tpu.dot_dimension_numbers<[1], [0], [0], [1], [0, 0, 1, 1], [], []>} : vector<2x128xbf16>, vector<128x32xbf16>, vector<2x32xf32> -> vector<2x32xf32>
    %c0_18 = arith.constant 0 : index
    %c0_19 = arith.constant 0 : index
    %c0_20 = arith.constant 0 : index
    %31 = vector.load %arg7[%c0_18, %c0_19, %c0_20] : memref<1x2x32xf32, #tpu.memory_space<vmem>>, vector<1x2x32xf32>
    %32 = vector.shape_cast %31 : vector<1x2x32xf32> to vector<2x32xf32>
    %33 = vector.shape_cast %30 : vector<2x32xf32> to vector<1x2x32xf32>
    tpu.vector_store %arg7[%c0_18, %c0_19, %c0_20], %33 {strides = array<i32>} : memref<1x2x32xf32, #tpu.memory_space<vmem>>, vector<1x2x32xf32>,
    return
  }
  func.func @transform_0(%arg0: i32) -> (i32, i32) {
    %c0_i32 = arith.constant 0 : i32
    %c0_i32_0 = arith.constant 0 : i32
    return %arg0, %c0_i32 : i32, i32
  }
  func.func @transform_1(%arg0: i32) -> (i32, i32) {
    %c0_i32 = arith.constant 0 : i32
    %c0_i32_0 = arith.constant 0 : i32
    %c0_i32_1 = arith.constant 0 : i32
    return %c0_i32, %c0_i32_0 : i32, i32
  }
  func.func @transform_2(%arg0: i32) -> (i32, i32) {
    %c0_i32 = arith.constant 0 : i32
    %c0_i32_0 = arith.constant 0 : i32
    %c0_i32_1 = arith.constant 0 : i32
    return %c0_i32, %c0_i32_0 : i32, i32
  }
  func.func @transform_3(%arg0: i32) -> (i32, i32) {
    %c0_i32 = arith.constant 0 : i32
    %c0_i32_0 = arith.constant 0 : i32
    %c0_i32_1 = arith.constant 0 : i32
    return %c0_i32, %c0_i32_0 : i32, i32
  }
  func.func @transform_4(%arg0: i32) -> (i32, i32) {
    %c0_i32 = arith.constant 0 : i32
    %c0_i32_0 = arith.constant 0 : i32
    return %c0_i32, %arg0 : i32, i32
  }
  func.func @transform_5(%arg0: i32) -> (i32, i32) {
    %c0_i32 = arith.constant 0 : i32
    %c0_i32_0 = arith.constant 0 : i32
    return %arg0, %c0_i32 : i32, i32
  }
  func.func @transform_6(%arg0: i32) -> (i32, i32, i32) {
    %c0_i32 = arith.constant 0 : i32
    %c0_i32_0 = arith.constant 0 : i32
    %c0_i32_1 = arith.constant 0 : i32
    return %arg0, %c0_i32, %c0_i32_0 : i32, i32, i32
  }
}

module attributes {stable_mosaic.version = 11 : i64} {
  func.func @_mlp_head_kernel(%arg0: memref<2x128xf32, #tpu.memory_space<vmem>>, %arg1: memref<128x32xf32, #tpu.memory_space<vmem>>, %arg2: memref<1x32xf32, #tpu.memory_space<vmem>>, %arg3: memref<32x5xf32, #tpu.memory_space<vmem>>, %arg4: memref<1x5xf32, #tpu.memory_space<vmem>>, %arg5: memref<2x5xf32, #tpu.memory_space<vmem>>) attributes {dimension_semantics = [], scalar_prefetch = 0 : i64, scratch_operands = 0 : i64, tpu.core_type = #tpu.core_type<tc>} {
    %c0 = arith.constant 0 : index
    %c0_0 = arith.constant 0 : index
    %0 = vector.load %arg0[%c0, %c0_0] : memref<2x128xf32, #tpu.memory_space<vmem>>, vector<2x128xf32>
    %1 = arith.truncf %0 : vector<2x128xf32> to vector<2x128xbf16>
    %c0_1 = arith.constant 0 : index
    %c0_2 = arith.constant 0 : index
    %2 = vector.load %arg1[%c0_1, %c0_2] : memref<128x32xf32, #tpu.memory_space<vmem>>, vector<128x32xf32>
    %3 = arith.truncf %2 : vector<128x32xf32> to vector<128x32xbf16>
    %cst = arith.constant dense<0.000000e+00> : vector<2x32xf32>
    %4 = tpu.matmul %1, %3, %cst {dimension_numbers = #tpu.dot_dimension_numbers<[1], [0], [0], [1], [0, 0, 1, 1], [], []>} : vector<2x128xbf16>, vector<128x32xbf16>, vector<2x32xf32> -> vector<2x32xf32>
    %c0_3 = arith.constant 0 : index
    %c0_4 = arith.constant 0 : index
    %5 = vector.load %arg2[%c0_3, %c0_4] : memref<1x32xf32, #tpu.memory_space<vmem>>, vector<1x32xf32>
    %6 = vector.broadcast %5 : vector<1x32xf32> to vector<2x32xf32>
    %7 = arith.addf %4, %6 : vector<2x32xf32>
    %cst_5 = arith.constant 0.000000e+00 : f32
    %8 = vector.broadcast %cst_5 : f32 to vector<2x32xf32>
    %9 = arith.maximumf %7, %8 : vector<2x32xf32>
    %10 = arith.truncf %9 : vector<2x32xf32> to vector<2x32xbf16>
    %c0_6 = arith.constant 0 : index
    %c0_7 = arith.constant 0 : index
    %11 = vector.load %arg3[%c0_6, %c0_7] : memref<32x5xf32, #tpu.memory_space<vmem>>, vector<32x5xf32>
    %12 = arith.truncf %11 : vector<32x5xf32> to vector<32x5xbf16>
    %cst_8 = arith.constant dense<0.000000e+00> : vector<2x5xf32>
    %13 = tpu.matmul %10, %12, %cst_8 {dimension_numbers = #tpu.dot_dimension_numbers<[1], [0], [0], [1], [0, 0, 1, 1], [], []>} : vector<2x32xbf16>, vector<32x5xbf16>, vector<2x5xf32> -> vector<2x5xf32>
    %c0_9 = arith.constant 0 : index
    %c0_10 = arith.constant 0 : index
    %14 = vector.load %arg4[%c0_9, %c0_10] : memref<1x5xf32, #tpu.memory_space<vmem>>, vector<1x5xf32>
    %15 = vector.broadcast %14 : vector<1x5xf32> to vector<2x5xf32>
    %16 = arith.addf %13, %15 : vector<2x5xf32>
    %cst_11 = arith.constant dense<0xFF800000> : vector<2xf32>
    %17 = vector.multi_reduction <maximumf>, %16, %cst_11 [1] : vector<2x5xf32> to vector<2xf32>
    %18 = vector.shape_cast %17 : vector<2xf32> to vector<2x1xf32>
    %19 = vector.broadcast %18 : vector<2x1xf32> to vector<2x5xf32>
    %20 = arith.subf %16, %19 : vector<2x5xf32>
    %21 = math.exp %20 : vector<2x5xf32>
    %cst_12 = arith.constant dense<0.000000e+00> : vector<2xf32>
    %22 = vector.multi_reduction <add>, %21, %cst_12 [1] : vector<2x5xf32> to vector<2xf32>
    %23 = vector.shape_cast %22 : vector<2xf32> to vector<2x1xf32>
    %24 = math.log %23 : vector<2x1xf32>
    %25 = vector.broadcast %24 : vector<2x1xf32> to vector<2x5xf32>
    %26 = arith.subf %20, %25 : vector<2x5xf32>
    %c0_13 = arith.constant 0 : index
    %c0_14 = arith.constant 0 : index
    %27 = vector.load %arg5[%c0_13, %c0_14] : memref<2x5xf32, #tpu.memory_space<vmem>>, vector<2x5xf32>
    tpu.vector_store %arg5[%c0_13, %c0_14], %26 {strides = array<i32>} : memref<2x5xf32, #tpu.memory_space<vmem>>, vector<2x5xf32>,
    return
  }
}

</mosaic_0001>

<llo_original>
// kernel: forward.10
$region0: #{forward.10}
  #allocation0 [shape = 'u32[]', space=smem, size = 0x4, offset = 0x4, fixed_abs, tag = 'smem constant byte address 0x4 - core index']
  #allocation1 [shape = 'u32[72,128]{1,0:T(1,128)}', space=vmem, size = 0x9000, scoped, tag = 'internal scratch']
  %s0 = inlined_call_operand.vmem [shape: bf16[128,128], index: 0, kind: input, shape index: {}]
  %s1 = inlined_call_operand.vmem [shape: bf16[128,32], index: 1, kind: input, shape index: {}]
  %s2 = inlined_call_operand.vmem [shape: bf16[64,32], index: 2, kind: input, shape index: {}]
  %s3 = inlined_call_operand.vmem [shape: f32[1,32], index: 3, kind: input, shape index: {}]
  %s4 = inlined_call_operand.vmem [shape: bf16[2,128], index: 4, kind: input, shape index: {}]
  %s5 = inlined_call_operand.vmem [shape: bf16[128,32], index: 5, kind: output, shape index: {0}]
  %s6 = inlined_call_operand.vmem [shape: f32[1,2,32], index: 6, kind: output, shape index: {1}]
  %7 = xla_tuple %s5, %s6
  %s8 = sld [smem:[#allocation0]]
  $region38: #{forward.10} parent=0
    _
  %s10 = ssub.s32 1, %s8
  %s11 = scalar_select 0, %s10, %s8
  // Predicated region
  $region2: #{forward.10} parent=0 // pred_check
    _
  $region3: #{forward.10} parent=0 // pred_check_branch
    %13 = sbr.rel (0) target = $region5
  $region4: #{forward.10} parent=0 // pred_region
    _
  $region5: #{forward.10} parent=0 // pred_fallthru
    _
  // Predicated region
  $region6: #{forward.10} parent=0 // pred_check
    _
  $region7: #{forward.10} parent=0 // pred_check_branch
    %15 = sbr.rel (0) target = $region9
  $region8: #{forward.10} parent=0 // pred_region
    _
  $region9: #{forward.10} parent=0 // pred_fallthru
    _
  // Predicated region
  $region10: #{forward.10} parent=0 // pred_check
    _
  $region11: #{forward.10} parent=0 // pred_check_branch
    %17 = sbr.rel (0) target = $region13
  $region12: #{forward.10} parent=0 // pred_region
    _
  $region13: #{forward.10} parent=0 // pred_fallthru
    _
  // Predicated region
  $region14: #{forward.10} parent=0 // pred_check
    _
  $region15: #{forward.10} parent=0 // pred_check_branch
    %19 = sbr.rel (0) target = $region17
  $region16: #{forward.10} parent=0 // pred_region
    _
  $region17: #{forward.10} parent=0 // pred_fallthru
    _
  // Predicated region
  $region18: #{forward.10} parent=0 // pred_check
    _
  $region19: #{forward.10} parent=0 // pred_check_branch
    %21 = sbr.rel (0) target = $region21
  $region20: #{forward.10} parent=0 // pred_region
    _
  $region21: #{forward.10} parent=0 // pred_fallthru
    _
  %v23 = vld [vmem:[%s0] sm:$0xf]
  %v24 = vld [vmem:[%s0 + $0x4] sm:$0xf]
  %v25 = vld [vmem:[%s0 + $0x8] sm:$0xf]
  %v26 = vld [vmem:[%s0 + $0xc] sm:$0xf]
  %v27 = vld [vmem:[%s0 + $0x10] sm:$0xf]
  %v28 = vld [vmem:[%s0 + $0x14] sm:$0xf]
  %v29 = vld [vmem:[%s0 + $0x18] sm:$0xf]
  %v30 = vld [vmem:[%s0 + $0x1c] sm:$0xf]
  %v31 = vld [vmem:[%s0 + $0x20] sm:$0xf]
  %v32 = vld [vmem:[%s0 + $0x24] sm:$0xf]
  %v33 = vld [vmem:[%s0 + $0x28] sm:$0xf]
  %v34 = vld [vmem:[%s0 + $0x2c] sm:$0xf]
  %v35 = vld [vmem:[%s0 + $0x30] sm:$0xf]
  %v36 = vld [vmem:[%s0 + $0x34] sm:$0xf]
  %v37 = vld [vmem:[%s0 + $0x38] sm:$0xf]
  %v38 = vld [vmem:[%s0 + $0x3c] sm:$0xf]
  %v39 = vunpack.c.l.bf16 %v23
  %v40 = vunpack.c.l.bf16 %v24
  %v41 = vunpack.c.l.bf16 %v25
  %v42 = vunpack.c.l.bf16 %v26
  %v43 = vunpack.c.l.bf16 %v27
  %v44 = vunpack.c.l.bf16 %v28
  %v45 = vunpack.c.l.bf16 %v29
  %v46 = vunpack.c.l.bf16 %v30
  %v47 = vunpack.c.l.bf16 %v31
  %v48 = vunpack.c.l.bf16 %v32
  %v49 = vunpack.c.l.bf16 %v33
  %v50 = vunpack.c.l.bf16 %v34
  %v51 = vunpack.c.l.bf16 %v35
  %v52 = vunpack.c.l.bf16 %v36
  %v53 = vunpack.c.l.bf16 %v37
  %v54 = vunpack.c.l.bf16 %v38
  %vm55 = vcmp.ne.f32.partialorder %v39, 0.0
  %vm56 = vcmp.ne.f32.partialorder %v40, 0.0
  %vm57 = vcmp.ne.f32.partialorder %v41, 0.0
  %vm58 = vcmp.ne.f32.partialorder %v42, 0.0
  %vm59 = vcmp.ne.f32.partialorder %v43, 0.0
  %vm60 = vcmp.ne.f32.partialorder %v44, 0.0
  %vm61 = vcmp.ne.f32.partialorder %v45, 0.0
  %vm62 = vcmp.ne.f32.partialorder %v46, 0.0
  %vm63 = vcmp.ne.f32.partialorder %v47, 0.0
  %vm64 = vcmp.ne.f32.partialorder %v48, 0.0
  %vm65 = vcmp.ne.f32.partialorder %v49, 0.0
  %vm66 = vcmp.ne.f32.partialorder %v50, 0.0
  %vm67 = vcmp.ne.f32.partialorder %v51, 0.0
  %vm68 = vcmp.ne.f32.partialorder %v52, 0.0
  %vm69 = vcmp.ne.f32.partialorder %v53, 0.0
  %vm70 = vcmp.ne.f32.partialorder %v54, 0.0
  %v71 = vsel %vm55, 1, 0
  %v72 = vsel %vm56, 1, 0
  %v73 = vsel %vm57, 1, 0
  %v74 = vsel %vm58, 1, 0
  %v75 = vsel %vm59, 1, 0
  %v76 = vsel %vm60, 1, 0
  %v77 = vsel %vm61, 1, 0
  %v78 = vsel %vm62, 1, 0
  %v79 = vsel %vm63, 1, 0
  %v80 = vsel %vm64, 1, 0
  %v81 = vsel %vm65, 1, 0
  %v82 = vsel %vm66, 1, 0
  %v83 = vsel %vm67, 1, 0
  %v84 = vsel %vm68, 1, 0
  %v85 = vsel %vm69, 1, 0
  %v86 = vsel %vm70, 1, 0
  %v87 = vcvt.s32.f32 %v71
  %v88 = vcvt.s32.f32 %v72
  %v89 = vcvt.s32.f32 %v73
  %v90 = vcvt.s32.f32 %v74
  %v91 = vcvt.s32.f32 %v75
  %v92 = vcvt.s32.f32 %v76
  %v93 = vcvt.s32.f32 %v77
  %v94 = vcvt.s32.f32 %v78
  %v95 = vcvt.s32.f32 %v79
  %v96 = vcvt.s32.f32 %v80
  %v97 = vcvt.s32.f32 %v81
  %v98 = vcvt.s32.f32 %v82
  %v99 = vcvt.s32.f32 %v83
  %v100 = vcvt.s32.f32 %v84
  %v101 = vcvt.s32.f32 %v85
  %v102 = vcvt.s32.f32 %v86
  %103 = vadd.xlane.f32.xlu0 %v87
  %v104 = vpop.xlane.xlu0 %103
  %105 = vadd.xlane.f32.xlu0 %v88
  %v106 = vpop.xlane.xlu0 %105
  %107 = vadd.xlane.f32.xlu0 %v89
  %v108 = vpop.xlane.xlu0 %107
  %109 = vadd.xlane.f32.xlu0 %v90
  %v110 = vpop.xlane.xlu0 %109
  %111 = vadd.xlane.f32.xlu0 %v91
  %v112 = vpop.xlane.xlu0 %111
  %113 = vadd.xlane.f32.xlu0 %v92
  %v114 = vpop.xlane.xlu0 %113
  %115 = vadd.xlane.f32.xlu0 %v93
  %v116 = vpop.xlane.xlu0 %115
  %117 = vadd.xlane.f32.xlu0 %v94
  %v118 = vpop.xlane.xlu0 %117
  %119 = vadd.xlane.f32.xlu0 %v95
  %v120 = vpop.xlane.xlu0 %119
  %121 = vadd.xlane.f32.xlu0 %v96
  %v122 = vpop.xlane.xlu0 %121
  %123 = vadd.xlane.f32.xlu0 %v97
  %v124 = vpop.xlane.xlu0 %123
  %125 = vadd.xlane.f32.xlu0 %v98
  %v126 = vpop.xlane.xlu0 %125
  %127 = vadd.xlane.f32.xlu0 %v99
  %v128 = vpop.xlane.xlu0 %127
  %129 = vadd.xlane.f32.xlu0 %v100
  %v130 = vpop.xlane.xlu0 %129
  %131 = vadd.xlane.f32.xlu0 %v101
  %v132 = vpop.xlane.xlu0 %131
  %133 = vadd.xlane.f32.xlu0 %v102
  %v134 = vpop.xlane.xlu0 %133
  %v135 = vmax.f32 %v104, 1.0
  %v136 = vmax.f32 %v106, 1.0
  %v137 = vmax.f32 %v108, 1.0
  %v138 = vmax.f32 %v110, 1.0
  %v139 = vmax.f32 %v112, 1.0
  %v140 = vmax.f32 %v114, 1.0
  %v141 = vmax.f32 %v116, 1.0
  %v142 = vmax.f32 %v118, 1.0
  %v143 = vmax.f32 %v120, 1.0
  %v144 = vmax.f32 %v122, 1.0
  %v145 = vmax.f32 %v124, 1.0
  %v146 = vmax.f32 %v126, 1.0
  %v147 = vmax.f32 %v128, 1.0
  %v148 = vmax.f32 %v130, 1.0
  %v149 = vmax.f32 %v132, 1.0
  %v150 = vmax.f32 %v134, 1.0
  %v151 = vrcp.pop %v135
  %v152 = vrcp.pop %v136
  %v153 = vrcp.pop %v137
  %v154 = vrcp.pop %v138
  %v155 = vrcp.pop %v139
  %v156 = vrcp.pop %v140
  %v157 = vrcp.pop %v141
  %v158 = vrcp.pop %v142
  %v159 = vrcp.pop %v143
  %v160 = vrcp.pop %v144
  %v161 = vrcp.pop %v145
  %v162 = vrcp.pop %v146
  %v163 = vrcp.pop %v147
  %v164 = vrcp.pop %v148
  %v165 = vrcp.pop %v149
  %v166 = vrcp.pop %v150
  %v167 = vld [vmem:[%s1] sm:$0xf]
  %v168 = vld [vmem:[%s1 + $0x4] sm:$0xf]
  %v169 = vld [vmem:[%s1 + $0x8] sm:$0xf]
  %v170 = vld [vmem:[%s1 + $0xc] sm:$0xf]
  %v171 = vld [vmem:[%s1 + $0x10] sm:$0xf]
  %v172 = vld [vmem:[%s1 + $0x14] sm:$0xf]
  %v173 = vld [vmem:[%s1 + $0x18] sm:$0xf]
  %v174 = vld [vmem:[%s1 + $0x1c] sm:$0xf]
  %v175 = vld [vmem:[%s1 + $0x20] sm:$0xf]
  %v176 = vld [vmem:[%s1 + $0x24] sm:$0xf]
  %v177 = vld [vmem:[%s1 + $0x28] sm:$0xf]
  %v178 = vld [vmem:[%s1 + $0x2c] sm:$0xf]
  %v179 = vld [vmem:[%s1 + $0x30] sm:$0xf]
  %v180 = vld [vmem:[%s1 + $0x34] sm:$0xf]
  %v181 = vld [vmem:[%s1 + $0x38] sm:$0xf]
  %v182 = vld [vmem:[%s1 + $0x3c] sm:$0xf]
  %v199 = vunpack.c.l.b16 %v23
  %v200 = vunpack.c.l.b16 %v24
  %v201 = vunpack.c.l.b16 %v25
  %v202 = vunpack.c.l.b16 %v26
  %v203 = vunpack.c.l.b16 %v27
  %v204 = vunpack.c.l.b16 %v28
  %v205 = vunpack.c.l.b16 %v29
  %v206 = vunpack.c.l.b16 %v30
  %v207 = vunpack.c.l.b16 %v31
  %v208 = vunpack.c.l.b16 %v32
  %v209 = vunpack.c.l.b16 %v33
  %v210 = vunpack.c.l.b16 %v34
  %v211 = vunpack.c.l.b16 %v35
  %v212 = vunpack.c.l.b16 %v36
  %v213 = vunpack.c.l.b16 %v37
  %v214 = vunpack.c.l.b16 %v38
  %v215 = vpack.c.b16 %v200, %v199
  %v216 = vpack.c.b16 %v202, %v201
  %v217 = vpack.c.b16 %v204, %v203
  %v218 = vpack.c.b16 %v206, %v205
  %v219 = vpack.c.b16 %v208, %v207
  %v220 = vpack.c.b16 %v210, %v209
  %v221 = vpack.c.b16 %v212, %v211
  %v222 = vpack.c.b16 %v214, %v213
  %v247 = vunpack.c.l.b16 %v167
  %v248 = vunpack.c.l.b16 %v168
  %v249 = vunpack.c.l.b16 %v169
  %v250 = vunpack.c.l.b16 %v170
  %v251 = vunpack.c.l.b16 %v171
  %v252 = vunpack.c.l.b16 %v172
  %v253 = vunpack.c.l.b16 %v173
  %v254 = vunpack.c.l.b16 %v174
  %v255 = vunpack.c.l.b16 %v175
  %v256 = vunpack.c.l.b16 %v176
  %v257 = vunpack.c.l.b16 %v177
  %v258 = vunpack.c.l.b16 %v178
  %v259 = vunpack.c.l.b16 %v179
  %v260 = vunpack.c.l.b16 %v180
  %v261 = vunpack.c.l.b16 %v181
  %v262 = vunpack.c.l.b16 %v182
  %v263 = vpack.c.b16 %v248, %v247
  %v264 = vpack.c.b16 %v250, %v249
  %v265 = vpack.c.b16 %v252, %v251
  %v266 = vpack.c.b16 %v254, %v253
  %v267 = vpack.c.b16 %v256, %v255
  %v268 = vpack.c.b16 %v258, %v257
  %v269 = vpack.c.b16 %v260, %v259
  %v270 = vpack.c.b16 %v262, %v261
  %279 = vmatpush.bf16.msra.mxu0 %v270
  %280 = vmatpush.bf16.msra.mxu0 %v269
  %281 = vmatpush.bf16.msra.mxu0 %v268
  %282 = vmatpush.bf16.msra.mxu0 %v267
  %283 = vmatpush.bf16.msra.mxu0 %v266
  %284 = vmatpush.bf16.msra.mxu0 %v265
  %285 = vmatpush.bf16.msra.mxu0 %v264
  %286 = vmatpush.bf16.msra.mxu0 %v263
  %287 = vmatmul.bf16.gmra.mxu0 %v215
  %v288 = vpop.f32.mrf.mxu0
  %v289 = vadd.f32 0.0, %v288
  %v290 = vpop.f32.mrf.mxu0
  %v291 = vadd.f32 0.0, %v290
  %292 = vmatmul.bf16.gmra.mxu0 %v216
  %v293 = vpop.f32.mrf.mxu0
  %v294 = vadd.f32 0.0, %v293
  %v295 = vpop.f32.mrf.mxu0
  %v296 = vadd.f32 0.0, %v295
  %297 = vmatmul.bf16.gmra.mxu0 %v217
  %v298 = vpop.f32.mrf.mxu0
  %v299 = vadd.f32 0.0, %v298
  %v300 = vpop.f32.mrf.mxu0
  %v301 = vadd.f32 0.0, %v300
  %302 = vmatmul.bf16.gmra.mxu0 %v218
  %v303 = vpop.f32.mrf.mxu0
  %v304 = vadd.f32 0.0, %v303
  %v305 = vpop.f32.mrf.mxu0
  %v306 = vadd.f32 0.0, %v305
  %307 = vmatmul.bf16.gmra.mxu0 %v219
  %v308 = vpop.f32.mrf.mxu0
  %v309 = vadd.f32 0.0, %v308
  %v310 = vpop.f32.mrf.mxu0
  %v311 = vadd.f32 0.0, %v310
  %312 = vmatmul.bf16.gmra.mxu0 %v220
  %v313 = vpop.f32.mrf.mxu0
  %v314 = vadd.f32 0.0, %v313
  %v315 = vpop.f32.mrf.mxu0
  %v316 = vadd.f32 0.0, %v315
  %317 = vmatmul.bf16.gmra.mxu0 %v221
  %v318 = vpop.f32.mrf.mxu0
  %v319 = vadd.f32 0.0, %v318
  %v320 = vpop.f32.mrf.mxu0
  %v321 = vadd.f32 0.0, %v320
  %322 = vmatmul.bf16.gmra.mxu0 %v222
  %v323 = vpop.f32.mrf.mxu0
  %v324 = vadd.f32 0.0, %v323
  %v325 = vpop.f32.mrf.mxu0
  %v326 = vadd.f32 0.0, %v325
  %327 = vdwg.mxu0
  %v328 = vmul.f32 %v289, %v151
  %v329 = vmul.f32 %v291, %v152
  %v330 = vmul.f32 %v294, %v153
  %v331 = vmul.f32 %v296, %v154
  %v332 = vmul.f32 %v299, %v155
  %v333 = vmul.f32 %v301, %v156
  %v334 = vmul.f32 %v304, %v157
  %v335 = vmul.f32 %v306, %v158
  %v336 = vmul.f32 %v309, %v159
  %v337 = vmul.f32 %v311, %v160
  %v338 = vmul.f32 %v314, %v161
  %v339 = vmul.f32 %v316, %v162
  %v340 = vmul.f32 %v319, %v163
  %v341 = vmul.f32 %v321, %v164
  %v342 = vmul.f32 %v324, %v165
  %v343 = vmul.f32 %v326, %v166
  %s344 = smul.u32 0, 128
  %s345 = sshra.s32 %s344, 3
  %s346 = sand.u32 %s344, 7
  %s347 = smul.addr %s345, 4
  %s348 = scalar_lea.vmem %s1, %s347
  %v349 = vld [vmem:[%s348] sm:$0xf]
  %v350 = vld [vmem:[%s348 + $0x4] sm:$0xf]
  %v351 = vld [vmem:[%s348 + $0x8] sm:$0xf]
  %v352 = vld [vmem:[%s348 + $0xc] sm:$0xf]
  %v353 = vld [vmem:[%s348 + $0x10] sm:$0xf]
  %v354 = vld [vmem:[%s348 + $0x14] sm:$0xf]
  %v355 = vld [vmem:[%s348 + $0x18] sm:$0xf]
  %v356 = vld [vmem:[%s348 + $0x1c] sm:$0xf]
  %v357 = vld [vmem:[%s348 + $0x20] sm:$0xf]
  %v358 = vld [vmem:[%s348 + $0x24] sm:$0xf]
  %v359 = vld [vmem:[%s348 + $0x28] sm:$0xf]
  %v360 = vld [vmem:[%s348 + $0x2c] sm:$0xf]
  %v361 = vld [vmem:[%s348 + $0x30] sm:$0xf]
  %v362 = vld [vmem:[%s348 + $0x34] sm:$0xf]
  %v363 = vld [vmem:[%s348 + $0x38] sm:$0xf]
  %v364 = vld [vmem:[%s348 + $0x3c] sm:$0xf]
  %v365 = vpack.c.bf16 %v328, %v328
  %v366 = vpack.c.bf16 %v329, %v329
  %v367 = vpack.c.bf16 %v330, %v330
  %v368 = vpack.c.bf16 %v331, %v331
  %v369 = vpack.c.bf16 %v332, %v332
  %v370 = vpack.c.bf16 %v333, %v333
  %v371 = vpack.c.bf16 %v334, %v334
  %v372 = vpack.c.bf16 %v335, %v335
  %v373 = vpack.c.bf16 %v336, %v336
  %v374 = vpack.c.bf16 %v337, %v337
  %v375 = vpack.c.bf16 %v338, %v338
  %v376 = vpack.c.bf16 %v339, %v339
  %v377 = vpack.c.bf16 %v340, %v340
  %v378 = vpack.c.bf16 %v341, %v341
  %v379 = vpack.c.bf16 %v342, %v342
  %v380 = vpack.c.bf16 %v343, %v343
  %v397 = vunpack.c.l.b16 %v365
  %v398 = vunpack.c.l.b16 %v366
  %v399 = vunpack.c.l.b16 %v367
  %v400 = vunpack.c.l.b16 %v368
  %v401 = vunpack.c.l.b16 %v369
  %v402 = vunpack.c.l.b16 %v370
  %v403 = vunpack.c.l.b16 %v371
  %v404 = vunpack.c.l.b16 %v372
  %v405 = vunpack.c.l.b16 %v373
  %v406 = vunpack.c.l.b16 %v374
  %v407 = vunpack.c.l.b16 %v375
  %v408 = vunpack.c.l.b16 %v376
  %v409 = vunpack.c.l.b16 %v377
  %v410 = vunpack.c.l.b16 %v378
  %v411 = vunpack.c.l.b16 %v379
  %v412 = vunpack.c.l.b16 %v380
  %v413 = vpack.c.b16 %v398, %v397
  %v414 = vpack.c.b16 %v400, %v399
  %v415 = vpack.c.b16 %v402, %v401
  %v416 = vpack.c.b16 %v404, %v403
  %v417 = vpack.c.b16 %v406, %v405
  %v418 = vpack.c.b16 %v408, %v407
  %v419 = vpack.c.b16 %v410, %v409
  %v420 = vpack.c.b16 %v412, %v411
  %v437 = vunpack.c.l.b16 %v349
  %v438 = vunpack.c.l.b16 %v350
  %v439 = vunpack.c.l.b16 %v351
  %v440 = vunpack.c.l.b16 %v352
  %v441 = vunpack.c.l.b16 %v353
  %v442 = vunpack.c.l.b16 %v354
  %v443 = vunpack.c.l.b16 %v355
  %v444 = vunpack.c.l.b16 %v356
  %v445 = vunpack.c.l.b16 %v357
  %v446 = vunpack.c.l.b16 %v358
  %v447 = vunpack.c.l.b16 %v359
  %v448 = vunpack.c.l.b16 %v360
  %v449 = vunpack.c.l.b16 %v361
  %v450 = vunpack.c.l.b16 %v362
  %v451 = vunpack.c.l.b16 %v363
  %v452 = vunpack.c.l.b16 %v364
  %v453 = vpack.c.b16 %v438, %v437
  %v454 = vpack.c.b16 %v440, %v439
  %v455 = vpack.c.b16 %v442, %v441
  %v456 = vpack.c.b16 %v444, %v443
  %v457 = vpack.c.b16 %v446, %v445
  %v458 = vpack.c.b16 %v448, %v447
  %v459 = vpack.c.b16 %v450, %v449
  %v460 = vpack.c.b16 %v452, %v451
  %461 = vrot.lane.b32.xlu0 %v453, 32
  %v462 = vpop.permute.xlu0 %461
  %463 = vrot.lane.b32.xlu0 %v454, 32
  %v464 = vpop.permute.xlu0 %463
  %465 = vrot.lane.b32.xlu0 %v455, 32
  %v466 = vpop.permute.xlu0 %465
  %467 = vrot.lane.b32.xlu0 %v456, 32
  %v468 = vpop.permute.xlu0 %467
  %469 = vrot.lane.b32.xlu0 %v457, 32
  %v470 = vpop.permute.xlu0 %469
  %471 = vrot.lane.b32.xlu0 %v458, 32
  %v472 = vpop.permute.xlu0 %471
  %473 = vrot.lane.b32.xlu0 %v459, 32
  %v474 = vpop.permute.xlu0 %473
  %475 = vrot.lane.b32.xlu0 %v460, 32
  %v476 = vpop.permute.xlu0 %475
  %vm477 = vcmask 261120
  %v480 = vsel %vm477, %v413, %v462
  %v483 = vsel %vm477, %v414, %v464
  %v486 = vsel %vm477, %v415, %v466
  %v489 = vsel %vm477, %v416, %v468
  %v492 = vsel %vm477, %v417, %v470
  %v495 = vsel %vm477, %v418, %v472
  %v498 = vsel %vm477, %v419, %v474
  %v501 = vsel %vm477, %v420, %v476
  %v502 = vld [vmem:[%s2] sm:$0xf]
  %v503 = vld [vmem:[%s2 + $0x4] sm:$0xf]
  %v504 = vld [vmem:[%s2 + $0x8] sm:$0xf]
  %v505 = vld [vmem:[%s2 + $0xc] sm:$0xf]
  %v506 = vld [vmem:[%s2 + $0x10] sm:$0xf]
  %v507 = vld [vmem:[%s2 + $0x14] sm:$0xf]
  %v508 = vld [vmem:[%s2 + $0x18] sm:$0xf]
  %v509 = vld [vmem:[%s2 + $0x1c] sm:$0xf]
  %v510 = vld [vmem:[%s3] sm:$0x1]
  %v512 = vperm.slane %v510, 0
  %v522 = vunpack.c.l.b16 %v502
  %v523 = vunpack.c.l.b16 %v503
  %v524 = vunpack.c.l.b16 %v504
  %v525 = vunpack.c.l.b16 %v505
  %v526 = vunpack.c.l.b16 %v506
  %v527 = vunpack.c.l.b16 %v507
  %v528 = vunpack.c.l.b16 %v508
  %v529 = vunpack.c.l.b16 %v509
  %v530 = vpack.c.b16 %v523, %v522
  %v531 = vpack.c.b16 %v525, %v524
  %v532 = vpack.c.b16 %v527, %v526
  %v533 = vpack.c.b16 %v529, %v528
  %vm538 = vcmask 523264
  %v539 = vsel %vm538, %v480, 0
  %v541 = vsel %vm538, %v483, 0
  %v543 = vsel %vm538, %v486, 0
  %v545 = vsel %vm538, %v489, 0
  %v547 = vsel %vm538, %v492, 0
  %v549 = vsel %vm538, %v495, 0
  %v551 = vsel %vm538, %v498, 0
  %v553 = vsel %vm538, %v501, 0
  %555 = vmatpush.bf16.msra.mxu0 0
  %556 = vmatpush.bf16.msra.mxu0 0
  %557 = vmatpush.bf16.msra.mxu0 0
  %558 = vmatpush.bf16.msra.mxu0 0
  %559 = vmatpush.bf16.msra.mxu0 %v533
  %560 = vmatpush.bf16.msra.mxu0 %v532
  %561 = vmatpush.bf16.msra.mxu0 %v531
  %562 = vmatpush.bf16.msra.mxu0 %v530
  %563 = vmatmul.bf16.gmra.mxu0 %v539
  %v564 = vpop.f32.mrf.mxu0
  %v565 = vadd.f32 %v512, %v564
  %v566 = vpop.f32.mrf.mxu0
  %v567 = vadd.f32 %v512, %v566
  %568 = vmatmul.bf16.gmra.mxu0 %v541
  %v569 = vpop.f32.mrf.mxu0
  %v570 = vadd.f32 %v512, %v569
  %v571 = vpop.f32.mrf.mxu0
  %v572 = vadd.f32 %v512, %v571
  %573 = vmatmul.bf16.gmra.mxu0 %v543
  %v574 = vpop.f32.mrf.mxu0
  %v575 = vadd.f32 %v512, %v574
  %v576 = vpop.f32.mrf.mxu0
  %v577 = vadd.f32 %v512, %v576
  %578 = vmatmul.bf16.gmra.mxu0 %v545
  %v579 = vpop.f32.mrf.mxu0
  %v580 = vadd.f32 %v512, %v579
  %v581 = vpop.f32.mrf.mxu0
  %v582 = vadd.f32 %v512, %v581
  %583 = vmatmul.bf16.gmra.mxu0 %v547
  %v584 = vpop.f32.mrf.mxu0
  %v585 = vadd.f32 %v512, %v584
  %v586 = vpop.f32.mrf.mxu0
  %v587 = vadd.f32 %v512, %v586
  %588 = vmatmul.bf16.gmra.mxu0 %v549
  %v589 = vpop.f32.mrf.mxu0
  %v590 = vadd.f32 %v512, %v589
  %v591 = vpop.f32.mrf.mxu0
  %v592 = vadd.f32 %v512, %v591
  %593 = vmatmul.bf16.gmra.mxu0 %v551
  %v594 = vpop.f32.mrf.mxu0
  %v595 = vadd.f32 %v512, %v594
  %v596 = vpop.f32.mrf.mxu0
  %v597 = vadd.f32 %v512, %v596
  %598 = vmatmul.bf16.gmra.mxu0 %v553
  %v599 = vpop.f32.mrf.mxu0
  %v600 = vadd.f32 %v512, %v599
  %v601 = vpop.f32.mrf.mxu0
  %v602 = vadd.f32 %v512, %v601
  %603 = vdwg.mxu0
  %v604 = vmax.f32 %v565, 0.0
  %v605 = vmax.f32 %v567, 0.0
  %v606 = vmax.f32 %v570, 0.0
  %v607 = vmax.f32 %v572, 0.0
  %v608 = vmax.f32 %v575, 0.0
  %v609 = vmax.f32 %v577, 0.0
  %v610 = vmax.f32 %v580, 0.0
  %v611 = vmax.f32 %v582, 0.0
  %v612 = vmax.f32 %v585, 0.0
  %v613 = vmax.f32 %v587, 0.0
  %v614 = vmax.f32 %v590, 0.0
  %v615 = vmax.f32 %v592, 0.0
  %v616 = vmax.f32 %v595, 0.0
  %v617 = vmax.f32 %v597, 0.0
  %v618 = vmax.f32 %v600, 0.0
  %v619 = vmax.f32 %v602, 0.0
  %v620 = vpack.c.bf16 %v604, %v604
  %v621 = vpack.c.bf16 %v605, %v605
  %v622 = vpack.c.bf16 %v606, %v606
  %v623 = vpack.c.bf16 %v607, %v607
  %v624 = vpack.c.bf16 %v608, %v608
  %v625 = vpack.c.bf16 %v609, %v609
  %v626 = vpack.c.bf16 %v610, %v610
  %v627 = vpack.c.bf16 %v611, %v611
  %v628 = vpack.c.bf16 %v612, %v612
  %v629 = vpack.c.bf16 %v613, %v613
  %v630 = vpack.c.bf16 %v614, %v614
  %v631 = vpack.c.bf16 %v615, %v615
  %v632 = vpack.c.bf16 %v616, %v616
  %v633 = vpack.c.bf16 %v617, %v617
  %v634 = vpack.c.bf16 %v618, %v618
  %v635 = vpack.c.bf16 %v619, %v619
  %vm636 = vcmask 257024
  %637 = vst.msk [vmem:[%s5] sm:$0xf] %vm636, %v620
  %638 = vst.msk [vmem:[%s5 + $0x4] sm:$0xf] %vm636, %v621
  %639 = vst.msk [vmem:[%s5 + $0x8] sm:$0xf] %vm636, %v622
  %640 = vst.msk [vmem:[%s5 + $0xc] sm:$0xf] %vm636, %v623
  %641 = vst.msk [vmem:[%s5 + $0x10] sm:$0xf] %vm636, %v624
  %642 = vst.msk [vmem:[%s5 + $0x14] sm:$0xf] %vm636, %v625
  %643 = vst.msk [vmem:[%s5 + $0x18] sm:$0xf] %vm636, %v626
  %644 = vst.msk [vmem:[%s5 + $0x1c] sm:$0xf] %vm636, %v627
  %645 = vst.msk [vmem:[%s5 + $0x20] sm:$0xf] %vm636, %v628
  %646 = vst.msk [vmem:[%s5 + $0x24] sm:$0xf] %vm636, %v629
  %647 = vst.msk [vmem:[%s5 + $0x28] sm:$0xf] %vm636, %v630
  %648 = vst.msk [vmem:[%s5 + $0x2c] sm:$0xf] %vm636, %v631
  %649 = vst.msk [vmem:[%s5 + $0x30] sm:$0xf] %vm636, %v632
  %650 = vst.msk [vmem:[%s5 + $0x34] sm:$0xf] %vm636, %v633
  %651 = vst.msk [vmem:[%s5 + $0x38] sm:$0xf] %vm636, %v634
  %652 = vst.msk [vmem:[%s5 + $0x3c] sm:$0xf] %vm636, %v635
  %v653 = vld [vmem:[%s4] sm:$0x1]
  %v670 = vunpack.c.l.b16 %v620
  %v671 = vunpack.c.l.b16 %v621
  %v672 = vunpack.c.l.b16 %v622
  %v673 = vunpack.c.l.b16 %v623
  %v674 = vunpack.c.l.b16 %v624
  %v675 = vunpack.c.l.b16 %v625
  %v676 = vunpack.c.l.b16 %v626
  %v677 = vunpack.c.l.b16 %v627
  %v678 = vunpack.c.l.b16 %v628
  %v679 = vunpack.c.l.b16 %v629
  %v680 = vunpack.c.l.b16 %v630
  %v681 = vunpack.c.l.b16 %v631
  %v682 = vunpack.c.l.b16 %v632
  %v683 = vunpack.c.l.b16 %v633
  %v684 = vunpack.c.l.b16 %v634
  %v685 = vunpack.c.l.b16 %v635
  %v686 = vpack.c.b16 %v671, %v670
  %v687 = vpack.c.b16 %v673, %v672
  %v688 = vpack.c.b16 %v675, %v674
  %v689 = vpack.c.b16 %v677, %v676
  %v690 = vpack.c.b16 %v679, %v678
  %v691 = vpack.c.b16 %v681, %v680
  %v692 = vpack.c.b16 %v683, %v682
  %v693 = vpack.c.b16 %v685, %v684
  %702 = vmatpush.bf16.msra.mxu0 %v693
  %703 = vmatpush.bf16.msra.mxu0 %v692
  %704 = vmatpush.bf16.msra.mxu0 %v691
  %705 = vmatpush.bf16.msra.mxu0 %v690
  %706 = vmatpush.bf16.msra.mxu0 %v689
  %707 = vmatpush.bf16.msra.mxu0 %v688
  %708 = vmatpush.bf16.msra.mxu0 %v687
  %709 = vmatpush.bf16.msra.mxu0 %v686
  %710 = vmatmul.bf16.gmra.mxu0 %v653
  %v711 = vpop.f32.mrf.mxu0
  %v712 = vadd.f32 0.0, %v711
  %v713 = vpop.f32.mrf.mxu0
  %714 = vdwg.mxu0
  %vm715 = vcmask 254976
  %716 = vst.msk [vmem:[%s6] sm:$0x3] %vm715, %v712
  // Predicated region
  $region22: #{forward.10} parent=0 // pred_check
    _
  $region23: #{forward.10} parent=0 // pred_check_branch
    %718 = sbr.rel (0) target = $region25
  $region24: #{forward.10} parent=0 // pred_region
    _
  $region25: #{forward.10} parent=0 // pred_fallthru
    _
  // Predicated region
  $region26: #{forward.10} parent=0 // pred_check
    _
  $region27: #{forward.10} parent=0 // pred_check_branch
    %720 = sbr.rel (0) target = $region29
  $region28: #{forward.10} parent=0 // pred_region
    _
  $region29: #{forward.10} parent=0 // pred_fallthru
    _
  // Predicated region
  $region30: #{forward.10} parent=0 // pred_check
    _
  $region31: #{forward.10} parent=0 // pred_check_branch
    %722 = sbr.rel (0) target = $region33
  $region32: #{forward.10} parent=0 // pred_region
    _
  $region33: #{forward.10} parent=0 // pred_fallthru
    _
  // Predicated region
  $region34: #{forward.10} parent=0 // pred_check
    _
  $region35: #{forward.10} parent=0 // pred_check_branch
    %724 = sbr.rel (0) target = $region37
  $region36: #{forward.10} parent=0 // pred_region
    _
  $region37: #{forward.10} parent=0 // pred_fallthru
    _

// kernel: forward.9
$region0: #{forward.9}
  #allocation0 [shape = 'u32[]', space=smem, size = 0x4, offset = 0x4, fixed_abs, tag = 'smem constant byte address 0x4 - core index']
  #allocation1 [shape = 'u32[72,128]{1,0:T(1,128)}', space=vmem, size = 0x9000, scoped, tag = 'internal scratch']
  %s0 = inlined_call_operand.vmem [shape: bf16[128,128], index: 0, kind: input, shape index: {}]
  %s1 = inlined_call_operand.vmem [shape: bf16[128,8], index: 1, kind: input, shape index: {}]
  %s2 = inlined_call_operand.vmem [shape: bf16[16,32], index: 2, kind: input, shape index: {}]
  %s3 = inlined_call_operand.vmem [shape: f32[1,32], index: 3, kind: input, shape index: {}]
  %s4 = inlined_call_operand.vmem [shape: bf16[2,128], index: 4, kind: input, shape index: {}]
  %s5 = inlined_call_operand.vmem [shape: bf16[128,32], index: 5, kind: output, shape index: {0}]
  %s6 = inlined_call_operand.vmem [shape: f32[1,2,32], index: 6, kind: output, shape index: {1}]
  %7 = xla_tuple %s5, %s6
  %s8 = sld [smem:[#allocation0]]
  $region38: #{forward.9} parent=0
    _
  %s10 = ssub.s32 1, %s8
  %s11 = scalar_select 0, %s10, %s8
  // Predicated region
  $region2: #{forward.9} parent=0 // pred_check
    _
  $region3: #{forward.9} parent=0 // pred_check_branch
    %13 = sbr.rel (0) target = $region5
  $region4: #{forward.9} parent=0 // pred_region
    _
  $region5: #{forward.9} parent=0 // pred_fallthru
    _
  // Predicated region
  $region6: #{forward.9} parent=0 // pred_check
    _
  $region7: #{forward.9} parent=0 // pred_check_branch
    %15 = sbr.rel (0) target = $region9
  $region8: #{forward.9} parent=0 // pred_region
    _
  $region9: #{forward.9} parent=0 // pred_fallthru
    _
  // Predicated region
  $region10: #{forward.9} parent=0 // pred_check
    _
  $region11: #{forward.9} parent=0 // pred_check_branch
    %17 = sbr.rel (0) target = $region13
  $region12: #{forward.9} parent=0 // pred_region
    _
  $region13: #{forward.9} parent=0 // pred_fallthru
    _
  // Predicated region
  $region14: #{forward.9} parent=0 // pred_check
    _
  $region15: #{forward.9} parent=0 // pred_check_branch
    %19 = sbr.rel (0) target = $region17
  $region16: #{forward.9} parent=0 // pred_region
    _
  $region17: #{forward.9} parent=0 // pred_fallthru
    _
  // Predicated region
  $region18: #{forward.9} parent=0 // pred_check
    _
  $region19: #{forward.9} parent=0 // pred_check_branch
    %21 = sbr.rel (0) target = $region21
  $region20: #{forward.9} parent=0 // pred_region
    _
  $region21: #{forward.9} parent=0 // pred_fallthru
    _
  %v23 = vld [vmem:[%s0] sm:$0xf]
  %v24 = vld [vmem:[%s0 + $0x4] sm:$0xf]
  %v25 = vld [vmem:[%s0 + $0x8] sm:$0xf]
  %v26 = vld [vmem:[%s0 + $0xc] sm:$0xf]
  %v27 = vld [vmem:[%s0 + $0x10] sm:$0xf]
  %v28 = vld [vmem:[%s0 + $0x14] sm:$0xf]
  %v29 = vld [vmem:[%s0 + $0x18] sm:$0xf]
  %v30 = vld [vmem:[%s0 + $0x1c] sm:$0xf]
  %v31 = vld [vmem:[%s0 + $0x20] sm:$0xf]
  %v32 = vld [vmem:[%s0 + $0x24] sm:$0xf]
  %v33 = vld [vmem:[%s0 + $0x28] sm:$0xf]
  %v34 = vld [vmem:[%s0 + $0x2c] sm:$0xf]
  %v35 = vld [vmem:[%s0 + $0x30] sm:$0xf]
  %v36 = vld [vmem:[%s0 + $0x34] sm:$0xf]
  %v37 = vld [vmem:[%s0 + $0x38] sm:$0xf]
  %v38 = vld [vmem:[%s0 + $0x3c] sm:$0xf]
  %v39 = vunpack.c.l.bf16 %v23
  %v40 = vunpack.c.l.bf16 %v24
  %v41 = vunpack.c.l.bf16 %v25
  %v42 = vunpack.c.l.bf16 %v26
  %v43 = vunpack.c.l.bf16 %v27
  %v44 = vunpack.c.l.bf16 %v28
  %v45 = vunpack.c.l.bf16 %v29
  %v46 = vunpack.c.l.bf16 %v30
  %v47 = vunpack.c.l.bf16 %v31
  %v48 = vunpack.c.l.bf16 %v32
  %v49 = vunpack.c.l.bf16 %v33
  %v50 = vunpack.c.l.bf16 %v34
  %v51 = vunpack.c.l.bf16 %v35
  %v52 = vunpack.c.l.bf16 %v36
  %v53 = vunpack.c.l.bf16 %v37
  %v54 = vunpack.c.l.bf16 %v38
  %vm55 = vcmp.ne.f32.partialorder %v39, 0.0
  %vm56 = vcmp.ne.f32.partialorder %v40, 0.0
  %vm57 = vcmp.ne.f32.partialorder %v41, 0.0
  %vm58 = vcmp.ne.f32.partialorder %v42, 0.0
  %vm59 = vcmp.ne.f32.partialorder %v43, 0.0
  %vm60 = vcmp.ne.f32.partialorder %v44, 0.0
  %vm61 = vcmp.ne.f32.partialorder %v45, 0.0
  %vm62 = vcmp.ne.f32.partialorder %v46, 0.0
  %vm63 = vcmp.ne.f32.partialorder %v47, 0.0
  %vm64 = vcmp.ne.f32.partialorder %v48, 0.0
  %vm65 = vcmp.ne.f32.partialorder %v49, 0.0
  %vm66 = vcmp.ne.f32.partialorder %v50, 0.0
  %vm67 = vcmp.ne.f32.partialorder %v51, 0.0
  %vm68 = vcmp.ne.f32.partialorder %v52, 0.0
  %vm69 = vcmp.ne.f32.partialorder %v53, 0.0
  %vm70 = vcmp.ne.f32.partialorder %v54, 0.0
  %v71 = vsel %vm55, 1, 0
  %v72 = vsel %vm56, 1, 0
  %v73 = vsel %vm57, 1, 0
  %v74 = vsel %vm58, 1, 0
  %v75 = vsel %vm59, 1, 0
  %v76 = vsel %vm60, 1, 0
  %v77 = vsel %vm61, 1, 0
  %v78 = vsel %vm62, 1, 0
  %v79 = vsel %vm63, 1, 0
  %v80 = vsel %vm64, 1, 0
  %v81 = vsel %vm65, 1, 0
  %v82 = vsel %vm66, 1, 0
  %v83 = vsel %vm67, 1, 0
  %v84 = vsel %vm68, 1, 0
  %v85 = vsel %vm69, 1, 0
  %v86 = vsel %vm70, 1, 0
  %v87 = vcvt.s32.f32 %v71
  %v88 = vcvt.s32.f32 %v72
  %v89 = vcvt.s32.f32 %v73
  %v90 = vcvt.s32.f32 %v74
  %v91 = vcvt.s32.f32 %v75
  %v92 = vcvt.s32.f32 %v76
  %v93 = vcvt.s32.f32 %v77
  %v94 = vcvt.s32.f32 %v78
  %v95 = vcvt.s32.f32 %v79
  %v96 = vcvt.s32.f32 %v80
  %v97 = vcvt.s32.f32 %v81
  %v98 = vcvt.s32.f32 %v82
  %v99 = vcvt.s32.f32 %v83
  %v100 = vcvt.s32.f32 %v84
  %v101 = vcvt.s32.f32 %v85
  %v102 = vcvt.s32.f32 %v86
  %103 = vadd.xlane.f32.xlu0 %v87
  %v104 = vpop.xlane.xlu0 %103
  %105 = vadd.xlane.f32.xlu0 %v88
  %v106 = vpop.xlane.xlu0 %105
  %107 = vadd.xlane.f32.xlu0 %v89
  %v108 = vpop.xlane.xlu0 %107
  %109 = vadd.xlane.f32.xlu0 %v90
  %v110 = vpop.xlane.xlu0 %109
  %111 = vadd.xlane.f32.xlu0 %v91
  %v112 = vpop.xlane.xlu0 %111
  %113 = vadd.xlane.f32.xlu0 %v92
  %v114 = vpop.xlane.xlu0 %113
  %115 = vadd.xlane.f32.xlu0 %v93
  %v116 = vpop.xlane.xlu0 %115
  %117 = vadd.xlane.f32.xlu0 %v94
  %v118 = vpop.xlane.xlu0 %117
  %119 = vadd.xlane.f32.xlu0 %v95
  %v120 = vpop.xlane.xlu0 %119
  %121 = vadd.xlane.f32.xlu0 %v96
  %v122 = vpop.xlane.xlu0 %121
  %123 = vadd.xlane.f32.xlu0 %v97
  %v124 = vpop.xlane.xlu0 %123
  %125 = vadd.xlane.f32.xlu0 %v98
  %v126 = vpop.xlane.xlu0 %125
  %127 = vadd.xlane.f32.xlu0 %v99
  %v128 = vpop.xlane.xlu0 %127
  %129 = vadd.xlane.f32.xlu0 %v100
  %v130 = vpop.xlane.xlu0 %129
  %131 = vadd.xlane.f32.xlu0 %v101
  %v132 = vpop.xlane.xlu0 %131
  %133 = vadd.xlane.f32.xlu0 %v102
  %v134 = vpop.xlane.xlu0 %133
  %v135 = vmax.f32 %v104, 1.0
  %v136 = vmax.f32 %v106, 1.0
  %v137 = vmax.f32 %v108, 1.0
  %v138 = vmax.f32 %v110, 1.0
  %v139 = vmax.f32 %v112, 1.0
  %v140 = vmax.f32 %v114, 1.0
  %v141 = vmax.f32 %v116, 1.0
  %v142 = vmax.f32 %v118, 1.0
  %v143 = vmax.f32 %v120, 1.0
  %v144 = vmax.f32 %v122, 1.0
  %v145 = vmax.f32 %v124, 1.0
  %v146 = vmax.f32 %v126, 1.0
  %v147 = vmax.f32 %v128, 1.0
  %v148 = vmax.f32 %v130, 1.0
  %v149 = vmax.f32 %v132, 1.0
  %v150 = vmax.f32 %v134, 1.0
  %v151 = vrcp.pop %v135
  %v152 = vrcp.pop %v136
  %v153 = vrcp.pop %v137
  %v154 = vrcp.pop %v138
  %v155 = vrcp.pop %v139
  %v156 = vrcp.pop %v140
  %v157 = vrcp.pop %v141
  %v158 = vrcp.pop %v142
  %v159 = vrcp.pop %v143
  %v160 = vrcp.pop %v144
  %v161 = vrcp.pop %v145
  %v162 = vrcp.pop %v146
  %v163 = vrcp.pop %v147
  %v164 = vrcp.pop %v148
  %v165 = vrcp.pop %v149
  %v166 = vrcp.pop %v150
  %v167 = vld [vmem:[%s1] sm:$0xf]
  %v168 = vld [vmem:[%s1 + $0x4] sm:$0xf]
  %v169 = vld [vmem:[%s1 + $0x8] sm:$0xf]
  %v170 = vld [vmem:[%s1 + $0xc] sm:$0xf]
  %v171 = vld [vmem:[%s1 + $0x10] sm:$0xf]
  %v172 = vld [vmem:[%s1 + $0x14] sm:$0xf]
  %v173 = vld [vmem:[%s1 + $0x18] sm:$0xf]
  %v174 = vld [vmem:[%s1 + $0x1c] sm:$0xf]
  %v175 = vld [vmem:[%s1 + $0x20] sm:$0xf]
  %v176 = vld [vmem:[%s1 + $0x24] sm:$0xf]
  %v177 = vld [vmem:[%s1 + $0x28] sm:$0xf]
  %v178 = vld [vmem:[%s1 + $0x2c] sm:$0xf]
  %v179 = vld [vmem:[%s1 + $0x30] sm:$0xf]
  %v180 = vld [vmem:[%s1 + $0x34] sm:$0xf]
  %v181 = vld [vmem:[%s1 + $0x38] sm:$0xf]
  %v182 = vld [vmem:[%s1 + $0x3c] sm:$0xf]
  %v199 = vunpack.c.l.b16 %v23
  %v200 = vunpack.c.l.b16 %v24
  %v201 = vunpack.c.l.b16 %v25
  %v202 = vunpack.c.l.b16 %v26
  %v203 = vunpack.c.l.b16 %v27
  %v204 = vunpack.c.l.b16 %v28
  %v205 = vunpack.c.l.b16 %v29
  %v206 = vunpack.c.l.b16 %v30
  %v207 = vunpack.c.l.b16 %v31
  %v208 = vunpack.c.l.b16 %v32
  %v209 = vunpack.c.l.b16 %v33
  %v210 = vunpack.c.l.b16 %v34
  %v211 = vunpack.c.l.b16 %v35
  %v212 = vunpack.c.l.b16 %v36
  %v213 = vunpack.c.l.b16 %v37
  %v214 = vunpack.c.l.b16 %v38
  %v215 = vpack.c.b16 %v200, %v199
  %v216 = vpack.c.b16 %v202, %v201
  %v217 = vpack.c.b16 %v204, %v203
  %v218 = vpack.c.b16 %v206, %v205
  %v219 = vpack.c.b16 %v208, %v207
  %v220 = vpack.c.b16 %v210, %v209
  %v221 = vpack.c.b16 %v212, %v211
  %v222 = vpack.c.b16 %v214, %v213
  %v247 = vunpack.c.l.b16 %v167
  %v248 = vunpack.c.l.b16 %v168
  %v249 = vunpack.c.l.b16 %v169
  %v250 = vunpack.c.l.b16 %v170
  %v251 = vunpack.c.l.b16 %v171
  %v252 = vunpack.c.l.b16 %v172
  %v253 = vunpack.c.l.b16 %v173
  %v254 = vunpack.c.l.b16 %v174
  %v255 = vunpack.c.l.b16 %v175
  %v256 = vunpack.c.l.b16 %v176
  %v257 = vunpack.c.l.b16 %v177
  %v258 = vunpack.c.l.b16 %v178
  %v259 = vunpack.c.l.b16 %v179
  %v260 = vunpack.c.l.b16 %v180
  %v261 = vunpack.c.l.b16 %v181
  %v262 = vunpack.c.l.b16 %v182
  %v263 = vpack.c.b16 %v248, %v247
  %v264 = vpack.c.b16 %v250, %v249
  %v265 = vpack.c.b16 %v252, %v251
  %v266 = vpack.c.b16 %v254, %v253
  %v267 = vpack.c.b16 %v256, %v255
  %v268 = vpack.c.b16 %v258, %v257
  %v269 = vpack.c.b16 %v260, %v259
  %v270 = vpack.c.b16 %v262, %v261
  %279 = vmatpush.bf16.msra.mxu0 %v270
  %280 = vmatpush.bf16.msra.mxu0 %v269
  %281 = vmatpush.bf16.msra.mxu0 %v268
  %282 = vmatpush.bf16.msra.mxu0 %v267
  %283 = vmatpush.bf16.msra.mxu0 %v266
  %284 = vmatpush.bf16.msra.mxu0 %v265
  %285 = vmatpush.bf16.msra.mxu0 %v264
  %286 = vmatpush.bf16.msra.mxu0 %v263
  %287 = vmatmul.bf16.gmra.mxu0 %v215
  %v288 = vpop.f32.mrf.mxu0
  %v289 = vadd.f32 0.0, %v288
  %v290 = vpop.f32.mrf.mxu0
  %v291 = vadd.f32 0.0, %v290
  %292 = vmatmul.bf16.gmra.mxu0 %v216
  %v293 = vpop.f32.mrf.mxu0
  %v294 = vadd.f32 0.0, %v293
  %v295 = vpop.f32.mrf.mxu0
  %v296 = vadd.f32 0.0, %v295
  %297 = vmatmul.bf16.gmra.mxu0 %v217
  %v298 = vpop.f32.mrf.mxu0
  %v299 = vadd.f32 0.0, %v298
  %v300 = vpop.f32.mrf.mxu0
  %v301 = vadd.f32 0.0, %v300
  %302 = vmatmul.bf16.gmra.mxu0 %v218
  %v303 = vpop.f32.mrf.mxu0
  %v304 = vadd.f32 0.0, %v303
  %v305 = vpop.f32.mrf.mxu0
  %v306 = vadd.f32 0.0, %v305
  %307 = vmatmul.bf16.gmra.mxu0 %v219
  %v308 = vpop.f32.mrf.mxu0
  %v309 = vadd.f32 0.0, %v308
  %v310 = vpop.f32.mrf.mxu0
  %v311 = vadd.f32 0.0, %v310
  %312 = vmatmul.bf16.gmra.mxu0 %v220
  %v313 = vpop.f32.mrf.mxu0
  %v314 = vadd.f32 0.0, %v313
  %v315 = vpop.f32.mrf.mxu0
  %v316 = vadd.f32 0.0, %v315
  %317 = vmatmul.bf16.gmra.mxu0 %v221
  %v318 = vpop.f32.mrf.mxu0
  %v319 = vadd.f32 0.0, %v318
  %v320 = vpop.f32.mrf.mxu0
  %v321 = vadd.f32 0.0, %v320
  %322 = vmatmul.bf16.gmra.mxu0 %v222
  %v323 = vpop.f32.mrf.mxu0
  %v324 = vadd.f32 0.0, %v323
  %v325 = vpop.f32.mrf.mxu0
  %v326 = vadd.f32 0.0, %v325
  %327 = vdwg.mxu0
  %v328 = vmul.f32 %v289, %v151
  %v329 = vmul.f32 %v291, %v152
  %v330 = vmul.f32 %v294, %v153
  %v331 = vmul.f32 %v296, %v154
  %v332 = vmul.f32 %v299, %v155
  %v333 = vmul.f32 %v301, %v156
  %v334 = vmul.f32 %v304, %v157
  %v335 = vmul.f32 %v306, %v158
  %v336 = vmul.f32 %v309, %v159
  %v337 = vmul.f32 %v311, %v160
  %v338 = vmul.f32 %v314, %v161
  %v339 = vmul.f32 %v316, %v162
  %v340 = vmul.f32 %v319, %v163
  %v341 = vmul.f32 %v321, %v164
  %v342 = vmul.f32 %v324, %v165
  %v343 = vmul.f32 %v326, %v166
  %s344 = smul.u32 0, 128
  %s345 = sshra.s32 %s344, 3
  %s346 = sand.u32 %s344, 7
  %s347 = smul.addr %s345, 4
  %s348 = scalar_lea.vmem %s1, %s347
  %v349 = vld [vmem:[%s348] sm:$0xf]
  %v350 = vld [vmem:[%s348 + $0x4] sm:$0xf]
  %v351 = vld [vmem:[%s348 + $0x8] sm:$0xf]
  %v352 = vld [vmem:[%s348 + $0xc] sm:$0xf]
  %v353 = vld [vmem:[%s348 + $0x10] sm:$0xf]
  %v354 = vld [vmem:[%s348 + $0x14] sm:$0xf]
  %v355 = vld [vmem:[%s348 + $0x18] sm:$0xf]
  %v356 = vld [vmem:[%s348 + $0x1c] sm:$0xf]
  %v357 = vld [vmem:[%s348 + $0x20] sm:$0xf]
  %v358 = vld [vmem:[%s348 + $0x24] sm:$0xf]
  %v359 = vld [vmem:[%s348 + $0x28] sm:$0xf]
  %v360 = vld [vmem:[%s348 + $0x2c] sm:$0xf]
  %v361 = vld [vmem:[%s348 + $0x30] sm:$0xf]
  %v362 = vld [vmem:[%s348 + $0x34] sm:$0xf]
  %v363 = vld [vmem:[%s348 + $0x38] sm:$0xf]
  %v364 = vld [vmem:[%s348 + $0x3c] sm:$0xf]
  %v365 = vpack.c.bf16 %v328, %v328
  %v366 = vpack.c.bf16 %v329, %v329
  %v367 = vpack.c.bf16 %v330, %v330
  %v368 = vpack.c.bf16 %v331, %v331
  %v369 = vpack.c.bf16 %v332, %v332
  %v370 = vpack.c.bf16 %v333, %v333
  %v371 = vpack.c.bf16 %v334, %v334
  %v372 = vpack.c.bf16 %v335, %v335
  %v373 = vpack.c.bf16 %v336, %v336
  %v374 = vpack.c.bf16 %v337, %v337
  %v375 = vpack.c.bf16 %v338, %v338
  %v376 = vpack.c.bf16 %v339, %v339
  %v377 = vpack.c.bf16 %v340, %v340
  %v378 = vpack.c.bf16 %v341, %v341
  %v379 = vpack.c.bf16 %v342, %v342
  %v380 = vpack.c.bf16 %v343, %v343
  %v397 = vunpack.c.l.b16 %v365
  %v398 = vunpack.c.l.b16 %v366
  %v399 = vunpack.c.l.b16 %v367
  %v400 = vunpack.c.l.b16 %v368
  %v401 = vunpack.c.l.b16 %v369
  %v402 = vunpack.c.l.b16 %v370
  %v403 = vunpack.c.l.b16 %v371
  %v404 = vunpack.c.l.b16 %v372
  %v405 = vunpack.c.l.b16 %v373
  %v406 = vunpack.c.l.b16 %v374
  %v407 = vunpack.c.l.b16 %v375
  %v408 = vunpack.c.l.b16 %v376
  %v409 = vunpack.c.l.b16 %v377
  %v410 = vunpack.c.l.b16 %v378
  %v411 = vunpack.c.l.b16 %v379
  %v412 = vunpack.c.l.b16 %v380
  %v413 = vpack.c.b16 %v398, %v397
  %v414 = vpack.c.b16 %v400, %v399
  %v415 = vpack.c.b16 %v402, %v401
  %v416 = vpack.c.b16 %v404, %v403
  %v417 = vpack.c.b16 %v406, %v405
  %v418 = vpack.c.b16 %v408, %v407
  %v419 = vpack.c.b16 %v410, %v409
  %v420 = vpack.c.b16 %v412, %v411
  %v437 = vunpack.c.l.b16 %v349
  %v438 = vunpack.c.l.b16 %v350
  %v439 = vunpack.c.l.b16 %v351
  %v440 = vunpack.c.l.b16 %v352
  %v441 = vunpack.c.l.b16 %v353
  %v442 = vunpack.c.l.b16 %v354
  %v443 = vunpack.c.l.b16 %v355
  %v444 = vunpack.c.l.b16 %v356
  %v445 = vunpack.c.l.b16 %v357
  %v446 = vunpack.c.l.b16 %v358
  %v447 = vunpack.c.l.b16 %v359
  %v448 = vunpack.c.l.b16 %v360
  %v449 = vunpack.c.l.b16 %v361
  %v450 = vunpack.c.l.b16 %v362
  %v451 = vunpack.c.l.b16 %v363
  %v452 = vunpack.c.l.b16 %v364
  %v453 = vpack.c.b16 %v438, %v437
  %v454 = vpack.c.b16 %v440, %v439
  %v455 = vpack.c.b16 %v442, %v441
  %v456 = vpack.c.b16 %v444, %v443
  %v457 = vpack.c.b16 %v446, %v445
  %v458 = vpack.c.b16 %v448, %v447
  %v459 = vpack.c.b16 %v450, %v449
  %v460 = vpack.c.b16 %v452, %v451
  %461 = vrot.lane.b32.xlu0 %v453, 8
  %v462 = vpop.permute.xlu0 %461
  %463 = vrot.lane.b32.xlu0 %v454, 8
  %v464 = vpop.permute.xlu0 %463
  %465 = vrot.lane.b32.xlu0 %v455, 8
  %v466 = vpop.permute.xlu0 %465
  %467 = vrot.lane.b32.xlu0 %v456, 8
  %v468 = vpop.permute.xlu0 %467
  %469 = vrot.lane.b32.xlu0 %v457, 8
  %v470 = vpop.permute.xlu0 %469
  %471 = vrot.lane.b32.xlu0 %v458, 8
  %v472 = vpop.permute.xlu0 %471
  %473 = vrot.lane.b32.xlu0 %v459, 8
  %v474 = vpop.permute.xlu0 %473
  %475 = vrot.lane.b32.xlu0 %v460, 8
  %v476 = vpop.permute.xlu0 %475
  %vm477 = vcmask 64512
  %v480 = vsel %vm477, %v413, %v462
  %v483 = vsel %vm477, %v414, %v464
  %v486 = vsel %vm477, %v415, %v466
  %v489 = vsel %vm477, %v416, %v468
  %v492 = vsel %vm477, %v417, %v470
  %v495 = vsel %vm477, %v418, %v472
  %v498 = vsel %vm477, %v419, %v474
  %v501 = vsel %vm477, %v420, %v476
  %v502 = vld [vmem:[%s2] sm:$0xf]
  %v503 = vld [vmem:[%s2 + $0x4] sm:$0xf]
  %v504 = vld [vmem:[%s3] sm:$0x1]
  %v506 = vperm.slane %v504, 0
  %v510 = vunpack.c.l.b16 %v502
  %v511 = vunpack.c.l.b16 %v503
  %v512 = vpack.c.b16 %v511, %v510
  %vm514 = vcmask 130048
  %v515 = vsel %vm514, %v480, 0
  %v517 = vsel %vm514, %v483, 0
  %v519 = vsel %vm514, %v486, 0
  %v521 = vsel %vm514, %v489, 0
  %v523 = vsel %vm514, %v492, 0
  %v525 = vsel %vm514, %v495, 0
  %v527 = vsel %vm514, %v498, 0
  %v529 = vsel %vm514, %v501, 0
  %531 = vmatpush.bf16.msra.mxu0 0
  %532 = vmatpush.bf16.msra.mxu0 0
  %533 = vmatpush.bf16.msra.mxu0 0
  %534 = vmatpush.bf16.msra.mxu0 0
  %535 = vmatpush.bf16.msra.mxu0 0
  %536 = vmatpush.bf16.msra.mxu0 0
  %537 = vmatpush.bf16.msra.mxu0 0
  %538 = vmatpush.bf16.msra.mxu0 %v512
  %539 = vmatmul.bf16.gmra.mxu0 %v515
  %v540 = vpop.f32.mrf.mxu0
  %v541 = vadd.f32 %v506, %v540
  %v542 = vpop.f32.mrf.mxu0
  %v543 = vadd.f32 %v506, %v542
  %544 = vmatmul.bf16.gmra.mxu0 %v517
  %v545 = vpop.f32.mrf.mxu0
  %v546 = vadd.f32 %v506, %v545
  %v547 = vpop.f32.mrf.mxu0
  %v548 = vadd.f32 %v506, %v547
  %549 = vmatmul.bf16.gmra.mxu0 %v519
  %v550 = vpop.f32.mrf.mxu0
  %v551 = vadd.f32 %v506, %v550
  %v552 = vpop.f32.mrf.mxu0
  %v553 = vadd.f32 %v506, %v552
  %554 = vmatmul.bf16.gmra.mxu0 %v521
  %v555 = vpop.f32.mrf.mxu0
  %v556 = vadd.f32 %v506, %v555
  %v557 = vpop.f32.mrf.mxu0
  %v558 = vadd.f32 %v506, %v557
  %559 = vmatmul.bf16.gmra.mxu0 %v523
  %v560 = vpop.f32.mrf.mxu0
  %v561 = vadd.f32 %v506, %v560
  %v562 = vpop.f32.mrf.mxu0
  %v563 = vadd.f32 %v506, %v562
  %564 = vmatmul.bf16.gmra.mxu0 %v525
  %v565 = vpop.f32.mrf.mxu0
  %v566 = vadd.f32 %v506, %v565
  %v567 = vpop.f32.mrf.mxu0
  %v568 = vadd.f32 %v506, %v567
  %569 = vmatmul.bf16.gmra.mxu0 %v527
  %v570 = vpop.f32.mrf.mxu0
  %v571 = vadd.f32 %v506, %v570
  %v572 = vpop.f32.mrf.mxu0
  %v573 = vadd.f32 %v506, %v572
  %574 = vmatmul.bf16.gmra.mxu0 %v529
  %v575 = vpop.f32.mrf.mxu0
  %v576 = vadd.f32 %v506, %v575
  %v577 = vpop.f32.mrf.mxu0
  %v578 = vadd.f32 %v506, %v577
  %579 = vdwg.mxu0
  %v580 = vmax.f32 %v541, 0.0
  %v581 = vmax.f32 %v543, 0.0
  %v582 = vmax.f32 %v546, 0.0
  %v583 = vmax.f32 %v548, 0.0
  %v584 = vmax.f32 %v551, 0.0
  %v585 = vmax.f32 %v553, 0.0
  %v586 = vmax.f32 %v556, 0.0
  %v587 = vmax.f32 %v558, 0.0
  %v588 = vmax.f32 %v561, 0.0
  %v589 = vmax.f32 %v563, 0.0
  %v590 = vmax.f32 %v566, 0.0
  %v591 = vmax.f32 %v568, 0.0
  %v592 = vmax.f32 %v571, 0.0
  %v593 = vmax.f32 %v573, 0.0
  %v594 = vmax.f32 %v576, 0.0
  %v595 = vmax.f32 %v578, 0.0
  %v596 = vpack.c.bf16 %v580, %v580
  %v597 = vpack.c.bf16 %v581, %v581
  %v598 = vpack.c.bf16 %v582, %v582
  %v599 = vpack.c.bf16 %v583, %v583
  %v600 = vpack.c.bf16 %v584, %v584
  %v601 = vpack.c.bf16 %v585, %v585
  %v602 = vpack.c.bf16 %v586, %v586
  %v603 = vpack.c.bf16 %v587, %v587
  %v604 = vpack.c.bf16 %v588, %v588
  %v605 = vpack.c.bf16 %v589, %v589
  %v606 = vpack.c.bf16 %v590, %v590
  %v607 = vpack.c.bf16 %v591, %v591
  %v608 = vpack.c.bf16 %v592, %v592
  %v609 = vpack.c.bf16 %v593, %v593
  %v610 = vpack.c.bf16 %v594, %v594
  %v611 = vpack.c.bf16 %v595, %v595
  %vm612 = vcmask 257024
  %613 = vst.msk [vmem:[%s5] sm:$0xf] %vm612, %v596
  %614 = vst.msk [vmem:[%s5 + $0x4] sm:$0xf] %vm612, %v597
  %615 = vst.msk [vmem:[%s5 + $0x8] sm:$0xf] %vm612, %v598
  %616 = vst.msk [vmem:[%s5 + $0xc] sm:$0xf] %vm612, %v599
  %617 = vst.msk [vmem:[%s5 + $0x10] sm:$0xf] %vm612, %v600
  %618 = vst.msk [vmem:[%s5 + $0x14] sm:$0xf] %vm612, %v601
  %619 = vst.msk [vmem:[%s5 + $0x18] sm:$0xf] %vm612, %v602
  %620 = vst.msk [vmem:[%s5 + $0x1c] sm:$0xf] %vm612, %v603
  %621 = vst.msk [vmem:[%s5 + $0x20] sm:$0xf] %vm612, %v604
  %622 = vst.msk [vmem:[%s5 + $0x24] sm:$0xf] %vm612, %v605
  %623 = vst.msk [vmem:[%s5 + $0x28] sm:$0xf] %vm612, %v606
  %624 = vst.msk [vmem:[%s5 + $0x2c] sm:$0xf] %vm612, %v607
  %625 = vst.msk [vmem:[%s5 + $0x30] sm:$0xf] %vm612, %v608
  %626 = vst.msk [vmem:[%s5 + $0x34] sm:$0xf] %vm612, %v609
  %627 = vst.msk [vmem:[%s5 + $0x38] sm:$0xf] %vm612, %v610
  %628 = vst.msk [vmem:[%s5 + $0x3c] sm:$0xf] %vm612, %v611
  %v629 = vld [vmem:[%s4] sm:$0x1]
  %v646 = vunpack.c.l.b16 %v596
  %v647 = vunpack.c.l.b16 %v597
  %v648 = vunpack.c.l.b16 %v598
  %v649 = vunpack.c.l.b16 %v599
  %v650 = vunpack.c.l.b16 %v600
  %v651 = vunpack.c.l.b16 %v601
  %v652 = vunpack.c.l.b16 %v602
  %v653 = vunpack.c.l.b16 %v603
  %v654 = vunpack.c.l.b16 %v604
  %v655 = vunpack.c.l.b16 %v605
  %v656 = vunpack.c.l.b16 %v606
  %v657 = vunpack.c.l.b16 %v607
  %v658 = vunpack.c.l.b16 %v608
  %v659 = vunpack.c.l.b16 %v609
  %v660 = vunpack.c.l.b16 %v610
  %v661 = vunpack.c.l.b16 %v611
  %v662 = vpack.c.b16 %v647, %v646
  %v663 = vpack.c.b16 %v649, %v648
  %v664 = vpack.c.b16 %v651, %v650
  %v665 = vpack.c.b16 %v653, %v652
  %v666 = vpack.c.b16 %v655, %v654
  %v667 = vpack.c.b16 %v657, %v656
  %v668 = vpack.c.b16 %v659, %v658
  %v669 = vpack.c.b16 %v661, %v660
  %678 = vmatpush.bf16.msra.mxu0 %v669
  %679 = vmatpush.bf16.msra.mxu0 %v668
  %680 = vmatpush.bf16.msra.mxu0 %v667
  %681 = vmatpush.bf16.msra.mxu0 %v666
  %682 = vmatpush.bf16.msra.mxu0 %v665
  %683 = vmatpush.bf16.msra.mxu0 %v664
  %684 = vmatpush.bf16.msra.mxu0 %v663
  %685 = vmatpush.bf16.msra.mxu0 %v662
  %686 = vmatmul.bf16.gmra.mxu0 %v629
  %v687 = vpop.f32.mrf.mxu0
  %v688 = vadd.f32 0.0, %v687
  %v689 = vpop.f32.mrf.mxu0
  %690 = vdwg.mxu0
  %vm691 = vcmask 254976
  %692 = vst.msk [vmem:[%s6] sm:$0x3] %vm691, %v688
  // Predicated region
  $region22: #{forward.9} parent=0 // pred_check
    _
  $region23: #{forward.9} parent=0 // pred_check_branch
    %694 = sbr.rel (0) target = $region25
  $region24: #{forward.9} parent=0 // pred_region
    _
  $region25: #{forward.9} parent=0 // pred_fallthru
    _
  // Predicated region
  $region26: #{forward.9} parent=0 // pred_check
    _
  $region27: #{forward.9} parent=0 // pred_check_branch
    %696 = sbr.rel (0) target = $region29
  $region28: #{forward.9} parent=0 // pred_region
    _
  $region29: #{forward.9} parent=0 // pred_fallthru
    _
  // Predicated region
  $region30: #{forward.9} parent=0 // pred_check
    _
  $region31: #{forward.9} parent=0 // pred_check_branch
    %698 = sbr.rel (0) target = $region33
  $region32: #{forward.9} parent=0 // pred_region
    _
  $region33: #{forward.9} parent=0 // pred_fallthru
    _
  // Predicated region
  $region34: #{forward.9} parent=0 // pred_check
    _
  $region35: #{forward.9} parent=0 // pred_check_branch
    %700 = sbr.rel (0) target = $region37
  $region36: #{forward.9} parent=0 // pred_region
    _
  $region37: #{forward.9} parent=0 // pred_fallthru
    _

// kernel: forward.12
$region0: #{forward.12}
  #allocation0 [shape = 'u32[]', space=smem, size = 0x4, offset = 0x4, fixed_abs, tag = 'smem constant byte address 0x4 - core index']
  #allocation1 [shape = 'u32[72,128]{1,0:T(1,128)}', space=vmem, size = 0x9000, scoped, tag = 'internal scratch']
  %s0 = inlined_call_operand.vmem [shape: bf16[128,128], index: 0, kind: input, shape index: {}]
  %s1 = inlined_call_operand.vmem [shape: f32[1,128], index: 1, kind: input, shape index: {}]
  %s2 = inlined_call_operand.vmem [shape: f32[128,2], index: 2, kind: input, shape index: {}]
  %s3 = inlined_call_operand.vmem [shape: f32[128,1], index: 3, kind: output, shape index: {}]
  %s4 = sld [smem:[#allocation0]]
  $region22: #{forward.12} parent=0
    _
  %s6 = ssub.s32 1, %s4
  %s7 = scalar_select 0, %s6, %s4
  // Predicated region
  $region2: #{forward.12} parent=0 // pred_check
    _
  $region3: #{forward.12} parent=0 // pred_check_branch
    %9 = sbr.rel (0) target = $region5
  $region4: #{forward.12} parent=0 // pred_region
    _
  $region5: #{forward.12} parent=0 // pred_fallthru
    _
  // Predicated region
  $region6: #{forward.12} parent=0 // pred_check
    _
  $region7: #{forward.12} parent=0 // pred_check_branch
    %11 = sbr.rel (0) target = $region9
  $region8: #{forward.12} parent=0 // pred_region
    _
  $region9: #{forward.12} parent=0 // pred_fallthru
    _
  // Predicated region
  $region10: #{forward.12} parent=0 // pred_check
    _
  $region11: #{forward.12} parent=0 // pred_check_branch
    %13 = sbr.rel (0) target = $region13
  $region12: #{forward.12} parent=0 // pred_region
    _
  $region13: #{forward.12} parent=0 // pred_fallthru
    _
  %v14 = vld [vmem:[%s0] sm:$0xf]
  %v15 = vld [vmem:[%s0 + $0x4] sm:$0xf]
  %v16 = vld [vmem:[%s0 + $0x8] sm:$0xf]
  %v17 = vld [vmem:[%s0 + $0xc] sm:$0xf]
  %v18 = vld [vmem:[%s0 + $0x10] sm:$0xf]
  %v19 = vld [vmem:[%s0 + $0x14] sm:$0xf]
  %v20 = vld [vmem:[%s0 + $0x18] sm:$0xf]
  %v21 = vld [vmem:[%s0 + $0x1c] sm:$0xf]
  %v22 = vld [vmem:[%s0 + $0x20] sm:$0xf]
  %v23 = vld [vmem:[%s0 + $0x24] sm:$0xf]
  %v24 = vld [vmem:[%s0 + $0x28] sm:$0xf]
  %v25 = vld [vmem:[%s0 + $0x2c] sm:$0xf]
  %v26 = vld [vmem:[%s0 + $0x30] sm:$0xf]
  %v27 = vld [vmem:[%s0 + $0x34] sm:$0xf]
  %v28 = vld [vmem:[%s0 + $0x38] sm:$0xf]
  %v29 = vld [vmem:[%s0 + $0x3c] sm:$0xf]
  %v30 = vunpack.c.l.bf16 %v14
  %v31 = vunpack.c.l.bf16 %v15
  %v32 = vunpack.c.l.bf16 %v16
  %v33 = vunpack.c.l.bf16 %v17
  %v34 = vunpack.c.l.bf16 %v18
  %v35 = vunpack.c.l.bf16 %v19
  %v36 = vunpack.c.l.bf16 %v20
  %v37 = vunpack.c.l.bf16 %v21
  %v38 = vunpack.c.l.bf16 %v22
  %v39 = vunpack.c.l.bf16 %v23
  %v40 = vunpack.c.l.bf16 %v24
  %v41 = vunpack.c.l.bf16 %v25
  %v42 = vunpack.c.l.bf16 %v26
  %v43 = vunpack.c.l.bf16 %v27
  %v44 = vunpack.c.l.bf16 %v28
  %v45 = vunpack.c.l.bf16 %v29
  %vm46 = vcmp.ne.f32.partialorder %v30, 0.0
  %vm47 = vcmp.ne.f32.partialorder %v31, 0.0
  %vm48 = vcmp.ne.f32.partialorder %v32, 0.0
  %vm49 = vcmp.ne.f32.partialorder %v33, 0.0
  %vm50 = vcmp.ne.f32.partialorder %v34, 0.0
  %vm51 = vcmp.ne.f32.partialorder %v35, 0.0
  %vm52 = vcmp.ne.f32.partialorder %v36, 0.0
  %vm53 = vcmp.ne.f32.partialorder %v37, 0.0
  %vm54 = vcmp.ne.f32.partialorder %v38, 0.0
  %vm55 = vcmp.ne.f32.partialorder %v39, 0.0
  %vm56 = vcmp.ne.f32.partialorder %v40, 0.0
  %vm57 = vcmp.ne.f32.partialorder %v41, 0.0
  %vm58 = vcmp.ne.f32.partialorder %v42, 0.0
  %vm59 = vcmp.ne.f32.partialorder %v43, 0.0
  %vm60 = vcmp.ne.f32.partialorder %v44, 0.0
  %vm61 = vcmp.ne.f32.partialorder %v45, 0.0
  %v62 = vsel %vm46, 1.0, 0.0
  %v63 = vsel %vm47, 1.0, 0.0
  %v64 = vsel %vm48, 1.0, 0.0
  %v65 = vsel %vm49, 1.0, 0.0
  %v66 = vsel %vm50, 1.0, 0.0
  %v67 = vsel %vm51, 1.0, 0.0
  %v68 = vsel %vm52, 1.0, 0.0
  %v69 = vsel %vm53, 1.0, 0.0
  %v70 = vsel %vm54, 1.0, 0.0
  %v71 = vsel %vm55, 1.0, 0.0
  %v72 = vsel %vm56, 1.0, 0.0
  %v73 = vsel %vm57, 1.0, 0.0
  %v74 = vsel %vm58, 1.0, 0.0
  %v75 = vsel %vm59, 1.0, 0.0
  %v76 = vsel %vm60, 1.0, 0.0
  %v77 = vsel %vm61, 1.0, 0.0
  %78 = vadd.xlane.f32.xlu0 %v62
  %v79 = vpop.xlane.xlu0 %78
  %80 = vadd.xlane.f32.xlu0 %v63
  %v81 = vpop.xlane.xlu0 %80
  %82 = vadd.xlane.f32.xlu0 %v64
  %v83 = vpop.xlane.xlu0 %82
  %84 = vadd.xlane.f32.xlu0 %v65
  %v85 = vpop.xlane.xlu0 %84
  %86 = vadd.xlane.f32.xlu0 %v66
  %v87 = vpop.xlane.xlu0 %86
  %88 = vadd.xlane.f32.xlu0 %v67
  %v89 = vpop.xlane.xlu0 %88
  %90 = vadd.xlane.f32.xlu0 %v68
  %v91 = vpop.xlane.xlu0 %90
  %92 = vadd.xlane.f32.xlu0 %v69
  %v93 = vpop.xlane.xlu0 %92
  %94 = vadd.xlane.f32.xlu0 %v70
  %v95 = vpop.xlane.xlu0 %94
  %96 = vadd.xlane.f32.xlu0 %v71
  %v97 = vpop.xlane.xlu0 %96
  %98 = vadd.xlane.f32.xlu0 %v72
  %v99 = vpop.xlane.xlu0 %98
  %100 = vadd.xlane.f32.xlu0 %v73
  %v101 = vpop.xlane.xlu0 %100
  %102 = vadd.xlane.f32.xlu0 %v74
  %v103 = vpop.xlane.xlu0 %102
  %104 = vadd.xlane.f32.xlu0 %v75
  %v105 = vpop.xlane.xlu0 %104
  %106 = vadd.xlane.f32.xlu0 %v76
  %v107 = vpop.xlane.xlu0 %106
  %108 = vadd.xlane.f32.xlu0 %v77
  %v109 = vpop.xlane.xlu0 %108
  %v110 = vld [vmem:[%s1] sm:$0x1]
  %v112 = vperm.slane %v110, 0
  %v114 = vsel %vm46, %v112, 0.0
  %v115 = vsel %vm47, %v112, 0.0
  %v116 = vsel %vm48, %v112, 0.0
  %v117 = vsel %vm49, %v112, 0.0
  %v118 = vsel %vm50, %v112, 0.0
  %v119 = vsel %vm51, %v112, 0.0
  %v120 = vsel %vm52, %v112, 0.0
  %v121 = vsel %vm53, %v112, 0.0
  %v122 = vsel %vm54, %v112, 0.0
  %v123 = vsel %vm55, %v112, 0.0
  %v124 = vsel %vm56, %v112, 0.0
  %v125 = vsel %vm57, %v112, 0.0
  %v126 = vsel %vm58, %v112, 0.0
  %v127 = vsel %vm59, %v112, 0.0
  %v128 = vsel %vm60, %v112, 0.0
  %v129 = vsel %vm61, %v112, 0.0
  %130 = vadd.xlane.f32.xlu0 %v114
  %v131 = vpop.xlane.xlu0 %130
  %132 = vadd.xlane.f32.xlu0 %v115
  %v133 = vpop.xlane.xlu0 %132
  %134 = vadd.xlane.f32.xlu0 %v116
  %v135 = vpop.xlane.xlu0 %134
  %136 = vadd.xlane.f32.xlu0 %v117
  %v137 = vpop.xlane.xlu0 %136
  %138 = vadd.xlane.f32.xlu0 %v118
  %v139 = vpop.xlane.xlu0 %138
  %140 = vadd.xlane.f32.xlu0 %v119
  %v141 = vpop.xlane.xlu0 %140
  %142 = vadd.xlane.f32.xlu0 %v120
  %v143 = vpop.xlane.xlu0 %142
  %144 = vadd.xlane.f32.xlu0 %v121
  %v145 = vpop.xlane.xlu0 %144
  %146 = vadd.xlane.f32.xlu0 %v122
  %v147 = vpop.xlane.xlu0 %146
  %148 = vadd.xlane.f32.xlu0 %v123
  %v149 = vpop.xlane.xlu0 %148
  %150 = vadd.xlane.f32.xlu0 %v124
  %v151 = vpop.xlane.xlu0 %150
  %152 = vadd.xlane.f32.xlu0 %v125
  %v153 = vpop.xlane.xlu0 %152
  %154 = vadd.xlane.f32.xlu0 %v126
  %v155 = vpop.xlane.xlu0 %154
  %156 = vadd.xlane.f32.xlu0 %v127
  %v157 = vpop.xlane.xlu0 %156
  %158 = vadd.xlane.f32.xlu0 %v128
  %v159 = vpop.xlane.xlu0 %158
  %160 = vadd.xlane.f32.xlu0 %v129
  %v161 = vpop.xlane.xlu0 %160
  %v162 = vld [vmem:[%s2] sm:$0xff]
  %v163 = vld [vmem:[%s2 + $0x8] sm:$0xff]
  %v164 = vld [vmem:[%s2 + $0x10] sm:$0xff]
  %v165 = vld [vmem:[%s2 + $0x18] sm:$0xff]
  %v166 = vld [vmem:[%s2 + $0x20] sm:$0xff]
  %v167 = vld [vmem:[%s2 + $0x28] sm:$0xff]
  %v168 = vld [vmem:[%s2 + $0x30] sm:$0xff]
  %v169 = vld [vmem:[%s2 + $0x38] sm:$0xff]
  %v170 = vld [vmem:[%s2 + $0x40] sm:$0xff]
  %v171 = vld [vmem:[%s2 + $0x48] sm:$0xff]
  %v172 = vld [vmem:[%s2 + $0x50] sm:$0xff]
  %v173 = vld [vmem:[%s2 + $0x58] sm:$0xff]
  %v174 = vld [vmem:[%s2 + $0x60] sm:$0xff]
  %v175 = vld [vmem:[%s2 + $0x68] sm:$0xff]
  %v176 = vld [vmem:[%s2 + $0x70] sm:$0xff]
  %v177 = vld [vmem:[%s2 + $0x78] sm:$0xff]
  %v178 = vmul.f32 %v79, %v162
  %v179 = vmul.f32 %v81, %v163
  %v180 = vmul.f32 %v83, %v164
  %v181 = vmul.f32 %v85, %v165
  %v182 = vmul.f32 %v87, %v166
  %v183 = vmul.f32 %v89, %v167
  %v184 = vmul.f32 %v91, %v168
  %v185 = vmul.f32 %v93, %v169
  %v186 = vmul.f32 %v95, %v170
  %v187 = vmul.f32 %v97, %v171
  %v188 = vmul.f32 %v99, %v172
  %v189 = vmul.f32 %v101, %v173
  %v190 = vmul.f32 %v103, %v174
  %v191 = vmul.f32 %v105, %v175
  %v192 = vmul.f32 %v107, %v176
  %v193 = vmul.f32 %v109, %v177
  %v194 = vsub.f32 %v131, %v178
  %v195 = vsub.f32 %v133, %v179
  %v196 = vsub.f32 %v135, %v180
  %v197 = vsub.f32 %v137, %v181
  %v198 = vsub.f32 %v139, %v182
  %v199 = vsub.f32 %v141, %v183
  %v200 = vsub.f32 %v143, %v184
  %v201 = vsub.f32 %v145, %v185
  %v202 = vsub.f32 %v147, %v186
  %v203 = vsub.f32 %v149, %v187
  %v204 = vsub.f32 %v151, %v188
  %v205 = vsub.f32 %v153, %v189
  %v206 = vsub.f32 %v155, %v190
  %v207 = vsub.f32 %v157, %v191
  %v208 = vsub.f32 %v159, %v192
  %v209 = vsub.f32 %v161, %v193
  %226 = vrot.lane.b32.xlu0 %v162, 127
  %v227 = vpop.permute.xlu0 %226
  %228 = vrot.lane.b32.xlu0 %v163, 127
  %v229 = vpop.permute.xlu0 %228
  %230 = vrot.lane.b32.xlu0 %v164, 127
  %v231 = vpop.permute.xlu0 %230
  %232 = vrot.lane.b32.xlu0 %v165, 127
  %v233 = vpop.permute.xlu0 %232
  %234 = vrot.lane.b32.xlu0 %v166, 127
  %v235 = vpop.permute.xlu0 %234
  %236 = vrot.lane.b32.xlu0 %v167, 127
  %v237 = vpop.permute.xlu0 %236
  %238 = vrot.lane.b32.xlu0 %v168, 127
  %v239 = vpop.permute.xlu0 %238
  %240 = vrot.lane.b32.xlu0 %v169, 127
  %v241 = vpop.permute.xlu0 %240
  %242 = vrot.lane.b32.xlu0 %v170, 127
  %v243 = vpop.permute.xlu0 %242
  %244 = vrot.lane.b32.xlu0 %v171, 127
  %v245 = vpop.permute.xlu0 %244
  %246 = vrot.lane.b32.xlu0 %v172, 127
  %v247 = vpop.permute.xlu0 %246
  %248 = vrot.lane.b32.xlu0 %v173, 127
  %v249 = vpop.permute.xlu0 %248
  %250 = vrot.lane.b32.xlu0 %v174, 127
  %v251 = vpop.permute.xlu0 %250
  %252 = vrot.lane.b32.xlu0 %v175, 127
  %v253 = vpop.permute.xlu0 %252
  %254 = vrot.lane.b32.xlu0 %v176, 127
  %v255 = vpop.permute.xlu0 %254
  %256 = vrot.lane.b32.xlu0 %v177, 127
  %v257 = vpop.permute.xlu0 %256
  %v274 = vadd.f32 %v194, %v227
  %v275 = vadd.f32 %v195, %v229
  %v276 = vadd.f32 %v196, %v231
  %v277 = vadd.f32 %v197, %v233
  %v278 = vadd.f32 %v198, %v235
  %v279 = vadd.f32 %v199, %v237
  %v280 = vadd.f32 %v200, %v239
  %v281 = vadd.f32 %v201, %v241
  %v282 = vadd.f32 %v202, %v243
  %v283 = vadd.f32 %v203, %v245
  %v284 = vadd.f32 %v204, %v247
  %v285 = vadd.f32 %v205, %v249
  %v286 = vadd.f32 %v206, %v251
  %v287 = vadd.f32 %v207, %v253
  %v288 = vadd.f32 %v208, %v255
  %v289 = vadd.f32 %v209, %v257
  %v290 = vsub.f32 0.0, %v274
  %v291 = vsub.f32 0.0, %v275
  %v292 = vsub.f32 0.0, %v276
  %v293 = vsub.f32 0.0, %v277
  %v294 = vsub.f32 0.0, %v278
  %v295 = vsub.f32 0.0, %v279
  %v296 = vsub.f32 0.0, %v280
  %v297 = vsub.f32 0.0, %v281
  %v298 = vsub.f32 0.0, %v282
  %v299 = vsub.f32 0.0, %v283
  %v300 = vsub.f32 0.0, %v284
  %v301 = vsub.f32 0.0, %v285
  %v302 = vsub.f32 0.0, %v286
  %v303 = vsub.f32 0.0, %v287
  %v304 = vsub.f32 0.0, %v288
  %v305 = vsub.f32 0.0, %v289
  %v306 = vmul.f32 %v290, 1.442695
  %v307 = vpow.pop %v306
  %v308 = vmul.f32 %v291, 1.442695
  %v309 = vpow.pop %v308
  %v310 = vmul.f32 %v292, 1.442695
  %v311 = vpow.pop %v310
  %v312 = vmul.f32 %v293, 1.442695
  %v313 = vpow.pop %v312
  %v314 = vmul.f32 %v294, 1.442695
  %v315 = vpow.pop %v314
  %v316 = vmul.f32 %v295, 1.442695
  %v317 = vpow.pop %v316
  %v318 = vmul.f32 %v296, 1.442695
  %v319 = vpow.pop %v318
  %v320 = vmul.f32 %v297, 1.442695
  %v321 = vpow.pop %v320
  %v322 = vmul.f32 %v298, 1.442695
  %v323 = vpow.pop %v322
  %v324 = vmul.f32 %v299, 1.442695
  %v325 = vpow.pop %v324
  %v326 = vmul.f32 %v300, 1.442695
  %v327 = vpow.pop %v326
  %v328 = vmul.f32 %v301, 1.442695
  %v329 = vpow.pop %v328
  %v330 = vmul.f32 %v302, 1.442695
  %v331 = vpow.pop %v330
  %v332 = vmul.f32 %v303, 1.442695
  %v333 = vpow.pop %v332
  %v334 = vmul.f32 %v304, 1.442695
  %v335 = vpow.pop %v334
  %v336 = vmul.f32 %v305, 1.442695
  %v337 = vpow.pop %v336
  %v338 = vadd.f32 %v307, 1.0
  %v339 = vadd.f32 %v309, 1.0
  %v340 = vadd.f32 %v311, 1.0
  %v341 = vadd.f32 %v313, 1.0
  %v342 = vadd.f32 %v315, 1.0
  %v343 = vadd.f32 %v317, 1.0
  %v344 = vadd.f32 %v319, 1.0
  %v345 = vadd.f32 %v321, 1.0
  %v346 = vadd.f32 %v323, 1.0
  %v347 = vadd.f32 %v325, 1.0
  %v348 = vadd.f32 %v327, 1.0
  %v349 = vadd.f32 %v329, 1.0
  %v350 = vadd.f32 %v331, 1.0
  %v351 = vadd.f32 %v333, 1.0
  %v352 = vadd.f32 %v335, 1.0
  %v353 = vadd.f32 %v337, 1.0
  %v354 = vrcp.pop %v338
  %v355 = vmul.f32 %v338, %v354
  %v356 = vsub.f32 1.0, %v355
  %v357 = vmul.f32 %v354, %v356
  %v358 = vadd.f32 %v354, %v357
  %vm359 = vweird.f32 %v338
  %vm360 = vweird.f32 %v354
  %vm361 = vmor %vm359, %vm360
  %v362 = vsel %vm361, %v354, %v358
  %v363 = vand.u32 2147483647, %v338
  %vm364 = vcmp.eq.f32.partialorder %v363, 8.507059e+37
  %v365 = vand.u32 %v338, 2147483648
  %v366 = vor.u32 1.1754944e-38, %v365
  %v367 = vsel %vm364, %v366, %v362
  %v368 = vmul.f32 1.0, %v367
  %v369 = vrcp.pop %v339
  %v370 = vmul.f32 %v339, %v369
  %v371 = vsub.f32 1.0, %v370
  %v372 = vmul.f32 %v369, %v371
  %v373 = vadd.f32 %v369, %v372
  %vm374 = vweird.f32 %v339
  %vm375 = vweird.f32 %v369
  %vm376 = vmor %vm374, %vm375
  %v377 = vsel %vm376, %v369, %v373
  %v378 = vand.u32 2147483647, %v339
  %vm379 = vcmp.eq.f32.partialorder %v378, 8.507059e+37
  %v380 = vand.u32 %v339, 2147483648
  %v381 = vor.u32 1.1754944e-38, %v380
  %v382 = vsel %vm379, %v381, %v377
  %v383 = vmul.f32 1.0, %v382
  %v384 = vrcp.pop %v340
  %v385 = vmul.f32 %v340, %v384
  %v386 = vsub.f32 1.0, %v385
  %v387 = vmul.f32 %v384, %v386
  %v388 = vadd.f32 %v384, %v387
  %vm389 = vweird.f32 %v340
  %vm390 = vweird.f32 %v384
  %vm391 = vmor %vm389, %vm390
  %v392 = vsel %vm391, %v384, %v388
  %v393 = vand.u32 2147483647, %v340
  %vm394 = vcmp.eq.f32.partialorder %v393, 8.507059e+37
  %v395 = vand.u32 %v340, 2147483648
  %v396 = vor.u32 1.1754944e-38, %v395
  %v397 = vsel %vm394, %v396, %v392
  %v398 = vmul.f32 1.0, %v397
  %v399 = vrcp.pop %v341
  %v400 = vmul.f32 %v341, %v399
  %v401 = vsub.f32 1.0, %v400
  %v402 = vmul.f32 %v399, %v401
  %v403 = vadd.f32 %v399, %v402
  %vm404 = vweird.f32 %v341
  %vm405 = vweird.f32 %v399
  %vm406 = vmor %vm404, %vm405
  %v407 = vsel %vm406, %v399, %v403
  %v408 = vand.u32 2147483647, %v341
  %vm409 = vcmp.eq.f32.partialorder %v408, 8.507059e+37
  %v410 = vand.u32 %v341, 2147483648
  %v411 = vor.u32 1.1754944e-38, %v410
  %v412 = vsel %vm409, %v411, %v407
  %v413 = vmul.f32 1.0, %v412
  %v414 = vrcp.pop %v342
  %v415 = vmul.f32 %v342, %v414
  %v416 = vsub.f32 1.0, %v415
  %v417 = vmul.f32 %v414, %v416
  %v418 = vadd.f32 %v414, %v417
  %vm419 = vweird.f32 %v342
  %vm420 = vweird.f32 %v414
  %vm421 = vmor %vm419, %vm420
  %v422 = vsel %vm421, %v414, %v418
  %v423 = vand.u32 2147483647, %v342
  %vm424 = vcmp.eq.f32.partialorder %v423, 8.507059e+37
  %v425 = vand.u32 %v342, 2147483648
  %v426 = vor.u32 1.1754944e-38, %v425
  %v427 = vsel %vm424, %v426, %v422
  %v428 = vmul.f32 1.0, %v427
  %v429 = vrcp.pop %v343
  %v430 = vmul.f32 %v343, %v429
  %v431 = vsub.f32 1.0, %v430
  %v432 = vmul.f32 %v429, %v431
  %v433 = vadd.f32 %v429, %v432
  %vm434 = vweird.f32 %v343
  %vm435 = vweird.f32 %v429
  %vm436 = vmor %vm434, %vm435
  %v437 = vsel %vm436, %v429, %v433
  %v438 = vand.u32 2147483647, %v343
  %vm439 = vcmp.eq.f32.partialorder %v438, 8.507059e+37
  %v440 = vand.u32 %v343, 2147483648
  %v441 = vor.u32 1.1754944e-38, %v440
  %v442 = vsel %vm439, %v441, %v437
  %v443 = vmul.f32 1.0, %v442
  %v444 = vrcp.pop %v344
  %v445 = vmul.f32 %v344, %v444
  %v446 = vsub.f32 1.0, %v445
  %v447 = vmul.f32 %v444, %v446
  %v448 = vadd.f32 %v444, %v447
  %vm449 = vweird.f32 %v344
  %vm450 = vweird.f32 %v444
  %vm451 = vmor %vm449, %vm450
  %v452 = vsel %vm451, %v444, %v448
  %v453 = vand.u32 2147483647, %v344
  %vm454 = vcmp.eq.f32.partialorder %v453, 8.507059e+37
  %v455 = vand.u32 %v344, 2147483648
  %v456 = vor.u32 1.1754944e-38, %v455
  %v457 = vsel %vm454, %v456, %v452
  %v458 = vmul.f32 1.0, %v457
  %v459 = vrcp.pop %v345
  %v460 = vmul.f32 %v345, %v459
  %v461 = vsub.f32 1.0, %v460
  %v462 = vmul.f32 %v459, %v461
  %v463 = vadd.f32 %v459, %v462
  %vm464 = vweird.f32 %v345
  %vm465 = vweird.f32 %v459
  %vm466 = vmor %vm464, %vm465
  %v467 = vsel %vm466, %v459, %v463
  %v468 = vand.u32 2147483647, %v345
  %vm469 = vcmp.eq.f32.partialorder %v468, 8.507059e+37
  %v470 = vand.u32 %v345, 2147483648
  %v471 = vor.u32 1.1754944e-38, %v470
  %v472 = vsel %vm469, %v471, %v467
  %v473 = vmul.f32 1.0, %v472
  %v474 = vrcp.pop %v346
  %v475 = vmul.f32 %v346, %v474
  %v476 = vsub.f32 1.0, %v475
  %v477 = vmul.f32 %v474, %v476
  %v478 = vadd.f32 %v474, %v477
  %vm479 = vweird.f32 %v346
  %vm480 = vweird.f32 %v474
  %vm481 = vmor %vm479, %vm480
  %v482 = vsel %vm481, %v474, %v478
  %v483 = vand.u32 2147483647, %v346
  %vm484 = vcmp.eq.f32.partialorder %v483, 8.507059e+37
  %v485 = vand.u32 %v346, 2147483648
  %v486 = vor.u32 1.1754944e-38, %v485
  %v487 = vsel %vm484, %v486, %v482
  %v488 = vmul.f32 1.0, %v487
  %v489 = vrcp.pop %v347
  %v490 = vmul.f32 %v347, %v489
  %v491 = vsub.f32 1.0, %v490
  %v492 = vmul.f32 %v489, %v491
  %v493 = vadd.f32 %v489, %v492
  %vm494 = vweird.f32 %v347
  %vm495 = vweird.f32 %v489
  %vm496 = vmor %vm494, %vm495
  %v497 = vsel %vm496, %v489, %v493
  %v498 = vand.u32 2147483647, %v347
  %vm499 = vcmp.eq.f32.partialorder %v498, 8.507059e+37
  %v500 = vand.u32 %v347, 2147483648
  %v501 = vor.u32 1.1754944e-38, %v500
  %v502 = vsel %vm499, %v501, %v497
  %v503 = vmul.f32 1.0, %v502
  %v504 = vrcp.pop %v348
  %v505 = vmul.f32 %v348, %v504
  %v506 = vsub.f32 1.0, %v505
  %v507 = vmul.f32 %v504, %v506
  %v508 = vadd.f32 %v504, %v507
  %vm509 = vweird.f32 %v348
  %vm510 = vweird.f32 %v504
  %vm511 = vmor %vm509, %vm510
  %v512 = vsel %vm511, %v504, %v508
  %v513 = vand.u32 2147483647, %v348
  %vm514 = vcmp.eq.f32.partialorder %v513, 8.507059e+37
  %v515 = vand.u32 %v348, 2147483648
  %v516 = vor.u32 1.1754944e-38, %v515
  %v517 = vsel %vm514, %v516, %v512
  %v518 = vmul.f32 1.0, %v517
  %v519 = vrcp.pop %v349
  %v520 = vmul.f32 %v349, %v519
  %v521 = vsub.f32 1.0, %v520
  %v522 = vmul.f32 %v519, %v521
  %v523 = vadd.f32 %v519, %v522
  %vm524 = vweird.f32 %v349
  %vm525 = vweird.f32 %v519
  %vm526 = vmor %vm524, %vm525
  %v527 = vsel %vm526, %v519, %v523
  %v528 = vand.u32 2147483647, %v349
  %vm529 = vcmp.eq.f32.partialorder %v528, 8.507059e+37
  %v530 = vand.u32 %v349, 2147483648
  %v531 = vor.u32 1.1754944e-38, %v530
  %v532 = vsel %vm529, %v531, %v527
  %v533 = vmul.f32 1.0, %v532
  %v534 = vrcp.pop %v350
  %v535 = vmul.f32 %v350, %v534
  %v536 = vsub.f32 1.0, %v535
  %v537 = vmul.f32 %v534, %v536
  %v538 = vadd.f32 %v534, %v537
  %vm539 = vweird.f32 %v350
  %vm540 = vweird.f32 %v534
  %vm541 = vmor %vm539, %vm540
  %v542 = vsel %vm541, %v534, %v538
  %v543 = vand.u32 2147483647, %v350
  %vm544 = vcmp.eq.f32.partialorder %v543, 8.507059e+37
  %v545 = vand.u32 %v350, 2147483648
  %v546 = vor.u32 1.1754944e-38, %v545
  %v547 = vsel %vm544, %v546, %v542
  %v548 = vmul.f32 1.0, %v547
  %v549 = vrcp.pop %v351
  %v550 = vmul.f32 %v351, %v549
  %v551 = vsub.f32 1.0, %v550
  %v552 = vmul.f32 %v549, %v551
  %v553 = vadd.f32 %v549, %v552
  %vm554 = vweird.f32 %v351
  %vm555 = vweird.f32 %v549
  %vm556 = vmor %vm554, %vm555
  %v557 = vsel %vm556, %v549, %v553
  %v558 = vand.u32 2147483647, %v351
  %vm559 = vcmp.eq.f32.partialorder %v558, 8.507059e+37
  %v560 = vand.u32 %v351, 2147483648
  %v561 = vor.u32 1.1754944e-38, %v560
  %v562 = vsel %vm559, %v561, %v557
  %v563 = vmul.f32 1.0, %v562
  %v564 = vrcp.pop %v352
  %v565 = vmul.f32 %v352, %v564
  %v566 = vsub.f32 1.0, %v565
  %v567 = vmul.f32 %v564, %v566
  %v568 = vadd.f32 %v564, %v567
  %vm569 = vweird.f32 %v352
  %vm570 = vweird.f32 %v564
  %vm571 = vmor %vm569, %vm570
  %v572 = vsel %vm571, %v564, %v568
  %v573 = vand.u32 2147483647, %v352
  %vm574 = vcmp.eq.f32.partialorder %v573, 8.507059e+37
  %v575 = vand.u32 %v352, 2147483648
  %v576 = vor.u32 1.1754944e-38, %v575
  %v577 = vsel %vm574, %v576, %v572
  %v578 = vmul.f32 1.0, %v577
  %v579 = vrcp.pop %v353
  %v580 = vmul.f32 %v353, %v579
  %v581 = vsub.f32 1.0, %v580
  %v582 = vmul.f32 %v579, %v581
  %v583 = vadd.f32 %v579, %v582
  %vm584 = vweird.f32 %v353
  %vm585 = vweird.f32 %v579
  %vm586 = vmor %vm584, %vm585
  %v587 = vsel %vm586, %v579, %v583
  %v588 = vand.u32 2147483647, %v353
  %vm589 = vcmp.eq.f32.partialorder %v588, 8.507059e+37
  %v590 = vand.u32 %v353, 2147483648
  %v591 = vor.u32 1.1754944e-38, %v590
  %v592 = vsel %vm589, %v591, %v587
  %v593 = vmul.f32 1.0, %v592
  %vm594 = vcmask 7168
  %595 = vst.msk [vmem:[%s3] sm:$0xff] %vm594, %v368
  %596 = vst.msk [vmem:[%s3 + $0x8] sm:$0xff] %vm594, %v383
  %597 = vst.msk [vmem:[%s3 + $0x10] sm:$0xff] %vm594, %v398
  %598 = vst.msk [vmem:[%s3 + $0x18] sm:$0xff] %vm594, %v413
  %599 = vst.msk [vmem:[%s3 + $0x20] sm:$0xff] %vm594, %v428
  %600 = vst.msk [vmem:[%s3 + $0x28] sm:$0xff] %vm594, %v443
  %601 = vst.msk [vmem:[%s3 + $0x30] sm:$0xff] %vm594, %v458
  %602 = vst.msk [vmem:[%s3 + $0x38] sm:$0xff] %vm594, %v473
  %603 = vst.msk [vmem:[%s3 + $0x40] sm:$0xff] %vm594, %v488
  %604 = vst.msk [vmem:[%s3 + $0x48] sm:$0xff] %vm594, %v503
  %605 = vst.msk [vmem:[%s3 + $0x50] sm:$0xff] %vm594, %v518
  %606 = vst.msk [vmem:[%s3 + $0x58] sm:$0xff] %vm594, %v533
  %607 = vst.msk [vmem:[%s3 + $0x60] sm:$0xff] %vm594, %v548
  %608 = vst.msk [vmem:[%s3 + $0x68] sm:$0xff] %vm594, %v563
  %609 = vst.msk [vmem:[%s3 + $0x70] sm:$0xff] %vm594, %v578
  %610 = vst.msk [vmem:[%s3 + $0x78] sm:$0xff] %vm594, %v593
  // Predicated region
  $region14: #{forward.12} parent=0 // pred_check
    _
  $region15: #{forward.12} parent=0 // pred_check_branch
    %612 = sbr.rel (0) target = $region17
  $region16: #{forward.12} parent=0 // pred_region
    _
  $region17: #{forward.12} parent=0 // pred_fallthru
    _
  // Predicated region
  $region18: #{forward.12} parent=0 // pred_check
    _
  $region19: #{forward.12} parent=0 // pred_check_branch
    %614 = sbr.rel (0) target = $region21
  $region20: #{forward.12} parent=0 // pred_region
    _
  $region21: #{forward.12} parent=0 // pred_fallthru
    _

// kernel: forward.11
$region0: #{forward.11}
  #allocation0 [shape = 'u32[]', space=smem, size = 0x4, offset = 0x4, fixed_abs, tag = 'smem constant byte address 0x4 - core index']
  #allocation1 [shape = 'u32[72,128]{1,0:T(1,128)}', space=vmem, size = 0x9000, scoped, tag = 'internal scratch']
  #allocation2 [shape = 'f32[1,1]{1,0:T(1,128)S(1)}', space=vmem, size = 0x200, scoped, tag = 'scoped memory for forward.11']
  %s0 = inlined_call_operand.vmem [shape: bf16[128,128], index: 0, kind: input, shape index: {}]
  %s1 = inlined_call_operand.vmem [shape: f32[128,1], index: 1, kind: input, shape index: {}]
  %s2 = inlined_call_operand.vmem [shape: bf16[128,35], index: 2, kind: input, shape index: {}]
  %s3 = inlined_call_operand.vmem [shape: bf16[32,128], index: 3, kind: input, shape index: {}]
  %s4 = inlined_call_operand.vmem [shape: f32[1,32], index: 4, kind: input, shape index: {}]
  %s5 = inlined_call_operand.<no memory space> [shape: f32[1,1], index: 5, kind: input, shape index: {}]
  %s6 = inlined_call_operand.vmem [shape: f32[1,128], index: 6, kind: input, shape index: {}]
  %s7 = inlined_call_operand.vmem [shape: f32[1,35], index: 7, kind: input, shape index: {}]
  %s8 = inlined_call_operand.vmem [shape: bf16[128,128], index: 8, kind: output, shape index: {0}]
  %s9 = inlined_call_operand.vmem [shape: f32[128,35], index: 9, kind: output, shape index: {1}]
  %10 = xla_tuple %s8, %s9
  %s11 = sld [smem:[#allocation0]]
  $region50: #{forward.11} parent=0
    _
  %s13 = ssub.s32 1, %s11
  %s14 = scalar_select 0, %s13, %s11
  %v15 = vstv %s5
  %16 = vst [vmem:[#allocation2] sm:$0x1] %v15
  // Predicated region
  $region2: #{forward.11} parent=0 // pred_check
    _
  $region3: #{forward.11} parent=0 // pred_check_branch
    %18 = sbr.rel (0) target = $region5
  $region4: #{forward.11} parent=0 // pred_region
    _
  $region5: #{forward.11} parent=0 // pred_fallthru
    _
  // Predicated region
  $region6: #{forward.11} parent=0 // pred_check
    _
  $region7: #{forward.11} parent=0 // pred_check_branch
    %20 = sbr.rel (0) target = $region9
  $region8: #{forward.11} parent=0 // pred_region
    _
  $region9: #{forward.11} parent=0 // pred_fallthru
    _
  // Predicated region
  $region10: #{forward.11} parent=0 // pred_check
    _
  $region11: #{forward.11} parent=0 // pred_check_branch
    %22 = sbr.rel (0) target = $region13
  $region12: #{forward.11} parent=0 // pred_region
    _
  $region13: #{forward.11} parent=0 // pred_fallthru
    _
  // Predicated region
  $region14: #{forward.11} parent=0 // pred_check
    _
  $region15: #{forward.11} parent=0 // pred_check_branch
    %24 = sbr.rel (0) target = $region17
  $region16: #{forward.11} parent=0 // pred_region
    _
  $region17: #{forward.11} parent=0 // pred_fallthru
    _
  // Predicated region
  $region18: #{forward.11} parent=0 // pred_check
    _
  $region19: #{forward.11} parent=0 // pred_check_branch
    %26 = sbr.rel (0) target = $region21
  $region20: #{forward.11} parent=0 // pred_region
    _
  $region21: #{forward.11} parent=0 // pred_fallthru
    _
  // Predicated region
  $region22: #{forward.11} parent=0 // pred_check
    _
  $region23: #{forward.11} parent=0 // pred_check_branch
    %28 = sbr.rel (0) target = $region25
  $region24: #{forward.11} parent=0 // pred_region
    _
  $region25: #{forward.11} parent=0 // pred_fallthru
    _
  // Predicated region
  $region26: #{forward.11} parent=0 // pred_check
    _
  $region27: #{forward.11} parent=0 // pred_check_branch
    %30 = sbr.rel (0) target = $region29
  $region28: #{forward.11} parent=0 // pred_region
    _
  $region29: #{forward.11} parent=0 // pred_fallthru
    _
  // Predicated region
  $region30: #{forward.11} parent=0 // pred_check
    _
  $region31: #{forward.11} parent=0 // pred_check_branch
    %32 = sbr.rel (0) target = $region33
  $region32: #{forward.11} parent=0 // pred_region
    _
  $region33: #{forward.11} parent=0 // pred_fallthru
    _
  %v33 = vld [vmem:[%s0] sm:$0xf]
  %v34 = vld [vmem:[%s0 + $0x4] sm:$0xf]
  %v35 = vld [vmem:[%s0 + $0x8] sm:$0xf]
  %v36 = vld [vmem:[%s0 + $0xc] sm:$0xf]
  %v37 = vld [vmem:[%s0 + $0x10] sm:$0xf]
  %v38 = vld [vmem:[%s0 + $0x14] sm:$0xf]
  %v39 = vld [vmem:[%s0 + $0x18] sm:$0xf]
  %v40 = vld [vmem:[%s0 + $0x1c] sm:$0xf]
  %v41 = vld [vmem:[%s0 + $0x20] sm:$0xf]
  %v42 = vld [vmem:[%s0 + $0x24] sm:$0xf]
  %v43 = vld [vmem:[%s0 + $0x28] sm:$0xf]
  %v44 = vld [vmem:[%s0 + $0x2c] sm:$0xf]
  %v45 = vld [vmem:[%s0 + $0x30] sm:$0xf]
  %v46 = vld [vmem:[%s0 + $0x34] sm:$0xf]
  %v47 = vld [vmem:[%s0 + $0x38] sm:$0xf]
  %v48 = vld [vmem:[%s0 + $0x3c] sm:$0xf]
  %v49 = vld [vmem:[%s1] sm:$0xff]
  %v50 = vld [vmem:[%s1 + $0x8] sm:$0xff]
  %v51 = vld [vmem:[%s1 + $0x10] sm:$0xff]
  %v52 = vld [vmem:[%s1 + $0x18] sm:$0xff]
  %v53 = vld [vmem:[%s1 + $0x20] sm:$0xff]
  %v54 = vld [vmem:[%s1 + $0x28] sm:$0xff]
  %v55 = vld [vmem:[%s1 + $0x30] sm:$0xff]
  %v56 = vld [vmem:[%s1 + $0x38] sm:$0xff]
  %v57 = vld [vmem:[%s1 + $0x40] sm:$0xff]
  %v58 = vld [vmem:[%s1 + $0x48] sm:$0xff]
  %v59 = vld [vmem:[%s1 + $0x50] sm:$0xff]
  %v60 = vld [vmem:[%s1 + $0x58] sm:$0xff]
  %v61 = vld [vmem:[%s1 + $0x60] sm:$0xff]
  %v62 = vld [vmem:[%s1 + $0x68] sm:$0xff]
  %v63 = vld [vmem:[%s1 + $0x70] sm:$0xff]
  %v64 = vld [vmem:[%s1 + $0x78] sm:$0xff]
  %v65 = vlaneseq
  %v66 = vand.u32 %v65, 127
  %s67 = smul.u32 0, 128
  %v68 = vlaneseq
  %v69 = vshrl.u32 %v68, 7
  %v70 = vadd.s32 %v69, 8
  %v71 = vadd.s32 %v69, 16
  %v72 = vadd.s32 %v69, 24
  %v73 = vadd.s32 %v69, 32
  %v74 = vadd.s32 %v69, 40
  %v75 = vadd.s32 %v69, 48
  %v76 = vadd.s32 %v69, 56
  %v77 = vadd.s32 %v69, 64
  %v78 = vadd.s32 %v69, 72
  %v79 = vadd.s32 %v69, 80
  %v80 = vadd.s32 %v69, 88
  %v81 = vadd.s32 %v69, 96
  %v82 = vadd.s32 %v69, 104
  %v83 = vadd.s32 %v69, 112
  %v84 = vadd.s32 %v69, 120
  %v85 = vstv %s67
  %v86 = vadd.s32 %v85, %v69
  %v87 = vadd.s32 %v85, %v70
  %v88 = vadd.s32 %v85, %v71
  %v89 = vadd.s32 %v85, %v72
  %v90 = vadd.s32 %v85, %v73
  %v91 = vadd.s32 %v85, %v74
  %v92 = vadd.s32 %v85, %v75
  %v93 = vadd.s32 %v85, %v76
  %v94 = vadd.s32 %v85, %v77
  %v95 = vadd.s32 %v85, %v78
  %v96 = vadd.s32 %v85, %v79
  %v97 = vadd.s32 %v85, %v80
  %v98 = vadd.s32 %v85, %v81
  %v99 = vadd.s32 %v85, %v82
  %v100 = vadd.s32 %v85, %v83
  %v101 = vadd.s32 %v85, %v84
  %v102 = vunpack.c.l.bf16 %v33
  %v103 = vunpack.c.l.bf16 %v34
  %v104 = vunpack.c.l.bf16 %v35
  %v105 = vunpack.c.l.bf16 %v36
  %v106 = vunpack.c.l.bf16 %v37
  %v107 = vunpack.c.l.bf16 %v38
  %v108 = vunpack.c.l.bf16 %v39
  %v109 = vunpack.c.l.bf16 %v40
  %v110 = vunpack.c.l.bf16 %v41
  %v111 = vunpack.c.l.bf16 %v42
  %v112 = vunpack.c.l.bf16 %v43
  %v113 = vunpack.c.l.bf16 %v44
  %v114 = vunpack.c.l.bf16 %v45
  %v115 = vunpack.c.l.bf16 %v46
  %v116 = vunpack.c.l.bf16 %v47
  %v117 = vunpack.c.l.bf16 %v48
  %vm118 = vcmp.ne.f32.partialorder %v102, 0.0
  %vm119 = vcmp.ne.f32.partialorder %v103, 0.0
  %vm120 = vcmp.ne.f32.partialorder %v104, 0.0
  %vm121 = vcmp.ne.f32.partialorder %v105, 0.0
  %vm122 = vcmp.ne.f32.partialorder %v106, 0.0
  %vm123 = vcmp.ne.f32.partialorder %v107, 0.0
  %vm124 = vcmp.ne.f32.partialorder %v108, 0.0
  %vm125 = vcmp.ne.f32.partialorder %v109, 0.0
  %vm126 = vcmp.ne.f32.partialorder %v110, 0.0
  %vm127 = vcmp.ne.f32.partialorder %v111, 0.0
  %vm128 = vcmp.ne.f32.partialorder %v112, 0.0
  %vm129 = vcmp.ne.f32.partialorder %v113, 0.0
  %vm130 = vcmp.ne.f32.partialorder %v114, 0.0
  %vm131 = vcmp.ne.f32.partialorder %v115, 0.0
  %vm132 = vcmp.ne.f32.partialorder %v116, 0.0
  %vm133 = vcmp.ne.f32.partialorder %v117, 0.0
  %vm134 = vcmp.eq.s32.totalorder %v66, %v86
  %vm135 = vcmp.eq.s32.totalorder %v66, %v87
  %vm136 = vcmp.eq.s32.totalorder %v66, %v88
  %vm137 = vcmp.eq.s32.totalorder %v66, %v89
  %vm138 = vcmp.eq.s32.totalorder %v66, %v90
  %vm139 = vcmp.eq.s32.totalorder %v66, %v91
  %vm140 = vcmp.eq.s32.totalorder %v66, %v92
  %vm141 = vcmp.eq.s32.totalorder %v66, %v93
  %vm142 = vcmp.eq.s32.totalorder %v66, %v94
  %vm143 = vcmp.eq.s32.totalorder %v66, %v95
  %vm144 = vcmp.eq.s32.totalorder %v66, %v96
  %vm145 = vcmp.eq.s32.totalorder %v66, %v97
  %vm146 = vcmp.eq.s32.totalorder %v66, %v98
  %vm147 = vcmp.eq.s32.totalorder %v66, %v99
  %vm148 = vcmp.eq.s32.totalorder %v66, %v100
  %vm149 = vcmp.eq.s32.totalorder %v66, %v101
  %vm150 = vcmp.gt.f32.partialorder %v49, 0.0
  %vm151 = vcmp.gt.f32.partialorder %v50, 0.0
  %vm152 = vcmp.gt.f32.partialorder %v51, 0.0
  %vm153 = vcmp.gt.f32.partialorder %v52, 0.0
  %vm154 = vcmp.gt.f32.partialorder %v53, 0.0
  %vm155 = vcmp.gt.f32.partialorder %v54, 0.0
  %vm156 = vcmp.gt.f32.partialorder %v55, 0.0
  %vm157 = vcmp.gt.f32.partialorder %v56, 0.0
  %vm158 = vcmp.gt.f32.partialorder %v57, 0.0
  %vm159 = vcmp.gt.f32.partialorder %v58, 0.0
  %vm160 = vcmp.gt.f32.partialorder %v59, 0.0
  %vm161 = vcmp.gt.f32.partialorder %v60, 0.0
  %vm162 = vcmp.gt.f32.partialorder %v61, 0.0
  %vm163 = vcmp.gt.f32.partialorder %v62, 0.0
  %vm164 = vcmp.gt.f32.partialorder %v63, 0.0
  %vm165 = vcmp.gt.f32.partialorder %v64, 0.0
  %v166 = vsel %vm150, 1, 0
  %v167 = vsel %vm151, 1, 0
  %v168 = vsel %vm152, 1, 0
  %v169 = vsel %vm153, 1, 0
  %v170 = vsel %vm154, 1, 0
  %v171 = vsel %vm155, 1, 0
  %v172 = vsel %vm156, 1, 0
  %v173 = vsel %vm157, 1, 0
  %v174 = vsel %vm158, 1, 0
  %v175 = vsel %vm159, 1, 0
  %v176 = vsel %vm160, 1, 0
  %v177 = vsel %vm161, 1, 0
  %v178 = vsel %vm162, 1, 0
  %v179 = vsel %vm163, 1, 0
  %v180 = vsel %vm164, 1, 0
  %v181 = vsel %vm165, 1, 0
  %182 = vset.pattern.permute.xlu0 0
  %183 = vperm.xlu0 %182, %v166
  %v184 = vpop.permute.xlu0 %183
  %185 = vset.pattern.permute.xlu0 0
  %186 = vperm.xlu0 %185, %v167
  %v187 = vpop.permute.xlu0 %186
  %188 = vset.pattern.permute.xlu0 0
  %189 = vperm.xlu0 %188, %v168
  %v190 = vpop.permute.xlu0 %189
  %191 = vset.pattern.permute.xlu0 0
  %192 = vperm.xlu0 %191, %v169
  %v193 = vpop.permute.xlu0 %192
  %194 = vset.pattern.permute.xlu0 0
  %195 = vperm.xlu0 %194, %v170
  %v196 = vpop.permute.xlu0 %195
  %197 = vset.pattern.permute.xlu0 0
  %198 = vperm.xlu0 %197, %v171
  %v199 = vpop.permute.xlu0 %198
  %200 = vset.pattern.permute.xlu0 0
  %201 = vperm.xlu0 %200, %v172
  %v202 = vpop.permute.xlu0 %201
  %203 = vset.pattern.permute.xlu0 0
  %204 = vperm.xlu0 %203, %v173
  %v205 = vpop.permute.xlu0 %204
  %206 = vset.pattern.permute.xlu0 0
  %207 = vperm.xlu0 %206, %v174
  %v208 = vpop.permute.xlu0 %207
  %209 = vset.pattern.permute.xlu0 0
  %210 = vperm.xlu0 %209, %v175
  %v211 = vpop.permute.xlu0 %210
  %212 = vset.pattern.permute.xlu0 0
  %213 = vperm.xlu0 %212, %v176
  %v214 = vpop.permute.xlu0 %213
  %215 = vset.pattern.permute.xlu0 0
  %216 = vperm.xlu0 %215, %v177
  %v217 = vpop.permute.xlu0 %216
  %218 = vset.pattern.permute.xlu0 0
  %219 = vperm.xlu0 %218, %v178
  %v220 = vpop.permute.xlu0 %219
  %221 = vset.pattern.permute.xlu0 0
  %222 = vperm.xlu0 %221, %v179
  %v223 = vpop.permute.xlu0 %222
  %224 = vset.pattern.permute.xlu0 0
  %225 = vperm.xlu0 %224, %v180
  %v226 = vpop.permute.xlu0 %225
  %227 = vset.pattern.permute.xlu0 0
  %228 = vperm.xlu0 %227, %v181
  %v229 = vpop.permute.xlu0 %228
  %vm230 = vcmp.eq.s32.totalorder %v184, 1
  %vm231 = vcmp.eq.s32.totalorder %v187, 1
  %vm232 = vcmp.eq.s32.totalorder %v190, 1
  %vm233 = vcmp.eq.s32.totalorder %v193, 1
  %vm234 = vcmp.eq.s32.totalorder %v196, 1
  %vm235 = vcmp.eq.s32.totalorder %v199, 1
  %vm236 = vcmp.eq.s32.totalorder %v202, 1
  %vm237 = vcmp.eq.s32.totalorder %v205, 1
  %vm238 = vcmp.eq.s32.totalorder %v208, 1
  %vm239 = vcmp.eq.s32.totalorder %v211, 1
  %vm240 = vcmp.eq.s32.totalorder %v214, 1
  %vm241 = vcmp.eq.s32.totalorder %v217, 1
  %vm242 = vcmp.eq.s32.totalorder %v220, 1
  %vm243 = vcmp.eq.s32.totalorder %v223, 1
  %vm244 = vcmp.eq.s32.totalorder %v226, 1
  %vm245 = vcmp.eq.s32.totalorder %v229, 1
  %vm246 = vmand %vm134, %vm230
  %vm247 = vmand %vm135, %vm231
  %vm248 = vmand %vm136, %vm232
  %vm249 = vmand %vm137, %vm233
  %vm250 = vmand %vm138, %vm234
  %vm251 = vmand %vm139, %vm235
  %vm252 = vmand %vm140, %vm236
  %vm253 = vmand %vm141, %vm237
  %vm254 = vmand %vm142, %vm238
  %vm255 = vmand %vm143, %vm239
  %vm256 = vmand %vm144, %vm240
  %vm257 = vmand %vm145, %vm241
  %vm258 = vmand %vm146, %vm242
  %vm259 = vmand %vm147, %vm243
  %vm260 = vmand %vm148, %vm244
  %vm261 = vmand %vm149, %vm245
  %vm262 = vmor %vm118, %vm246
  %vm263 = vmor %vm119, %vm247
  %vm264 = vmor %vm120, %vm248
  %vm265 = vmor %vm121, %vm249
  %vm266 = vmor %vm122, %vm250
  %vm267 = vmor %vm123, %vm251
  %vm268 = vmor %vm124, %vm252
  %vm269 = vmor %vm125, %vm253
  %vm270 = vmor %vm126, %vm254
  %vm271 = vmor %vm127, %vm255
  %vm272 = vmor %vm128, %vm256
  %vm273 = vmor %vm129, %vm257
  %vm274 = vmor %vm130, %vm258
  %vm275 = vmor %vm131, %vm259
  %vm276 = vmor %vm132, %vm260
  %vm277 = vmor %vm133, %vm261
  %v278 = vsel %vm262, 1.0, 0.0
  %v279 = vsel %vm263, 1.0, 0.0
  %v280 = vsel %vm264, 1.0, 0.0
  %v281 = vsel %vm265, 1.0, 0.0
  %v282 = vsel %vm266, 1.0, 0.0
  %v283 = vsel %vm267, 1.0, 0.0
  %v284 = vsel %vm268, 1.0, 0.0
  %v285 = vsel %vm269, 1.0, 0.0
  %v286 = vsel %vm270, 1.0, 0.0
  %v287 = vsel %vm271, 1.0, 0.0
  %v288 = vsel %vm272, 1.0, 0.0
  %v289 = vsel %vm273, 1.0, 0.0
  %v290 = vsel %vm274, 1.0, 0.0
  %v291 = vsel %vm275, 1.0, 0.0
  %v292 = vsel %vm276, 1.0, 0.0
  %v293 = vsel %vm277, 1.0, 0.0
  %294 = vadd.xlane.f32.xlu0 %v278
  %v295 = vpop.xlane.xlu0 %294
  %296 = vadd.xlane.f32.xlu0 %v279
  %v297 = vpop.xlane.xlu0 %296
  %298 = vadd.xlane.f32.xlu0 %v280
  %v299 = vpop.xlane.xlu0 %298
  %300 = vadd.xlane.f32.xlu0 %v281
  %v301 = vpop.xlane.xlu0 %300
  %302 = vadd.xlane.f32.xlu0 %v282
  %v303 = vpop.xlane.xlu0 %302
  %304 = vadd.xlane.f32.xlu0 %v283
  %v305 = vpop.xlane.xlu0 %304
  %306 = vadd.xlane.f32.xlu0 %v284
  %v307 = vpop.xlane.xlu0 %306
  %308 = vadd.xlane.f32.xlu0 %v285
  %v309 = vpop.xlane.xlu0 %308
  %310 = vadd.xlane.f32.xlu0 %v286
  %v311 = vpop.xlane.xlu0 %310
  %312 = vadd.xlane.f32.xlu0 %v287
  %v313 = vpop.xlane.xlu0 %312
  %314 = vadd.xlane.f32.xlu0 %v288
  %v315 = vpop.xlane.xlu0 %314
  %316 = vadd.xlane.f32.xlu0 %v289
  %v317 = vpop.xlane.xlu0 %316
  %318 = vadd.xlane.f32.xlu0 %v290
  %v319 = vpop.xlane.xlu0 %318
  %320 = vadd.xlane.f32.xlu0 %v291
  %v321 = vpop.xlane.xlu0 %320
  %322 = vadd.xlane.f32.xlu0 %v292
  %v323 = vpop.xlane.xlu0 %322
  %324 = vadd.xlane.f32.xlu0 %v293
  %v325 = vpop.xlane.xlu0 %324
  %vm326 = vcmp.gt.f32.partialorder %v295, 0.0
  %vm327 = vcmp.gt.f32.partialorder %v297, 0.0
  %vm328 = vcmp.gt.f32.partialorder %v299, 0.0
  %vm329 = vcmp.gt.f32.partialorder %v301, 0.0
  %vm330 = vcmp.gt.f32.partialorder %v303, 0.0
  %vm331 = vcmp.gt.f32.partialorder %v305, 0.0
  %vm332 = vcmp.gt.f32.partialorder %v307, 0.0
  %vm333 = vcmp.gt.f32.partialorder %v309, 0.0
  %vm334 = vcmp.gt.f32.partialorder %v311, 0.0
  %vm335 = vcmp.gt.f32.partialorder %v313, 0.0
  %vm336 = vcmp.gt.f32.partialorder %v315, 0.0
  %vm337 = vcmp.gt.f32.partialorder %v317, 0.0
  %vm338 = vcmp.gt.f32.partialorder %v319, 0.0
  %vm339 = vcmp.gt.f32.partialorder %v321, 0.0
  %vm340 = vcmp.gt.f32.partialorder %v323, 0.0
  %vm341 = vcmp.gt.f32.partialorder %v325, 0.0
  %vm342 = vcmp.gt.f32.partialorder %v278, 0.0
  %vm343 = vcmp.gt.f32.partialorder %v279, 0.0
  %vm344 = vcmp.gt.f32.partialorder %v280, 0.0
  %vm345 = vcmp.gt.f32.partialorder %v281, 0.0
  %vm346 = vcmp.gt.f32.partialorder %v282, 0.0
  %vm347 = vcmp.gt.f32.partialorder %v283, 0.0
  %vm348 = vcmp.gt.f32.partialorder %v284, 0.0
  %vm349 = vcmp.gt.f32.partialorder %v285, 0.0
  %vm350 = vcmp.gt.f32.partialorder %v286, 0.0
  %vm351 = vcmp.gt.f32.partialorder %v287, 0.0
  %vm352 = vcmp.gt.f32.partialorder %v288, 0.0
  %vm353 = vcmp.gt.f32.partialorder %v289, 0.0
  %vm354 = vcmp.gt.f32.partialorder %v290, 0.0
  %vm355 = vcmp.gt.f32.partialorder %v291, 0.0
  %vm356 = vcmp.gt.f32.partialorder %v292, 0.0
  %vm357 = vcmp.gt.f32.partialorder %v293, 0.0
  %v358 = vsel %vm342, 0.0, -1e+30
  %v359 = vsel %vm343, 0.0, -1e+30
  %v360 = vsel %vm344, 0.0, -1e+30
  %v361 = vsel %vm345, 0.0, -1e+30
  %v362 = vsel %vm346, 0.0, -1e+30
  %v363 = vsel %vm347, 0.0, -1e+30
  %v364 = vsel %vm348, 0.0, -1e+30
  %v365 = vsel %vm349, 0.0, -1e+30
  %v366 = vsel %vm350, 0.0, -1e+30
  %v367 = vsel %vm351, 0.0, -1e+30
  %v368 = vsel %vm352, 0.0, -1e+30
  %v369 = vsel %vm353, 0.0, -1e+30
  %v370 = vsel %vm354, 0.0, -1e+30
  %v371 = vsel %vm355, 0.0, -1e+30
  %v372 = vsel %vm356, 0.0, -1e+30
  %v373 = vsel %vm357, 0.0, -1e+30
  %v374 = vld [vmem:[%s3] sm:$0x1]
  %v375 = vunpack.c.l.bf16 %v374
  %v376 = vperm.slane %v375, 0
  %v377 = vadd.f32 %v358, %v376
  %v378 = vadd.f32 %v359, %v376
  %v379 = vadd.f32 %v360, %v376
  %v380 = vadd.f32 %v361, %v376
  %v381 = vadd.f32 %v362, %v376
  %v382 = vadd.f32 %v363, %v376
  %v383 = vadd.f32 %v364, %v376
  %v384 = vadd.f32 %v365, %v376
  %v385 = vadd.f32 %v366, %v376
  %v386 = vadd.f32 %v367, %v376
  %v387 = vadd.f32 %v368, %v376
  %v388 = vadd.f32 %v369, %v376
  %v389 = vadd.f32 %v370, %v376
  %v390 = vadd.f32 %v371, %v376
  %v391 = vadd.f32 %v372, %v376
  %v392 = vadd.f32 %v373, %v376
  %393 = vmax.xlane.f32.xlu0 %v377
  %v394 = vpop.xlane.xlu0 %393
  %395 = vmax.xlane.f32.xlu0 %v378
  %v396 = vpop.xlane.xlu0 %395
  %397 = vmax.xlane.f32.xlu0 %v379
  %v398 = vpop.xlane.xlu0 %397
  %399 = vmax.xlane.f32.xlu0 %v380
  %v400 = vpop.xlane.xlu0 %399
  %401 = vmax.xlane.f32.xlu0 %v381
  %v402 = vpop.xlane.xlu0 %401
  %403 = vmax.xlane.f32.xlu0 %v382
  %v404 = vpop.xlane.xlu0 %403
  %405 = vmax.xlane.f32.xlu0 %v383
  %v406 = vpop.xlane.xlu0 %405
  %407 = vmax.xlane.f32.xlu0 %v384
  %v408 = vpop.xlane.xlu0 %407
  %409 = vmax.xlane.f32.xlu0 %v385
  %v410 = vpop.xlane.xlu0 %409
  %411 = vmax.xlane.f32.xlu0 %v386
  %v412 = vpop.xlane.xlu0 %411
  %413 = vmax.xlane.f32.xlu0 %v387
  %v414 = vpop.xlane.xlu0 %413
  %415 = vmax.xlane.f32.xlu0 %v388
  %v416 = vpop.xlane.xlu0 %415
  %417 = vmax.xlane.f32.xlu0 %v389
  %v418 = vpop.xlane.xlu0 %417
  %419 = vmax.xlane.f32.xlu0 %v390
  %v420 = vpop.xlane.xlu0 %419
  %421 = vmax.xlane.f32.xlu0 %v391
  %v422 = vpop.xlane.xlu0 %421
  %423 = vmax.xlane.f32.xlu0 %v392
  %v424 = vpop.xlane.xlu0 %423
  %vm425 = vcmp.eq.s32.totalorder %v66, 0
  %v426 = vsel %vm425, %v394, -1e+30
  %v427 = vsel %vm425, %v396, -1e+30
  %v428 = vsel %vm425, %v398, -1e+30
  %v429 = vsel %vm425, %v400, -1e+30
  %v430 = vsel %vm425, %v402, -1e+30
  %v431 = vsel %vm425, %v404, -1e+30
  %v432 = vsel %vm425, %v406, -1e+30
  %v433 = vsel %vm425, %v408, -1e+30
  %v434 = vsel %vm425, %v410, -1e+30
  %v435 = vsel %vm425, %v412, -1e+30
  %v436 = vsel %vm425, %v414, -1e+30
  %v437 = vsel %vm425, %v416, -1e+30
  %v438 = vsel %vm425, %v418, -1e+30
  %v439 = vsel %vm425, %v420, -1e+30
  %v440 = vsel %vm425, %v422, -1e+30
  %v441 = vsel %vm425, %v424, -1e+30
  %v442 = vperm.slane %v375, 1
  %v443 = vadd.f32 %v358, %v442
  %v444 = vadd.f32 %v359, %v442
  %v445 = vadd.f32 %v360, %v442
  %v446 = vadd.f32 %v361, %v442
  %v447 = vadd.f32 %v362, %v442
  %v448 = vadd.f32 %v363, %v442
  %v449 = vadd.f32 %v364, %v442
  %v450 = vadd.f32 %v365, %v442
  %v451 = vadd.f32 %v366, %v442
  %v452 = vadd.f32 %v367, %v442
  %v453 = vadd.f32 %v368, %v442
  %v454 = vadd.f32 %v369, %v442
  %v455 = vadd.f32 %v370, %v442
  %v456 = vadd.f32 %v371, %v442
  %v457 = vadd.f32 %v372, %v442
  %v458 = vadd.f32 %v373, %v442
  %459 = vmax.xlane.f32.xlu0 %v443
  %v460 = vpop.xlane.xlu0 %459
  %461 = vmax.xlane.f32.xlu0 %v444
  %v462 = vpop.xlane.xlu0 %461
  %463 = vmax.xlane.f32.xlu0 %v445
  %v464 = vpop.xlane.xlu0 %463
  %465 = vmax.xlane.f32.xlu0 %v446
  %v466 = vpop.xlane.xlu0 %465
  %467 = vmax.xlane.f32.xlu0 %v447
  %v468 = vpop.xlane.xlu0 %467
  %469 = vmax.xlane.f32.xlu0 %v448
  %v470 = vpop.xlane.xlu0 %469
  %471 = vmax.xlane.f32.xlu0 %v449
  %v472 = vpop.xlane.xlu0 %471
  %473 = vmax.xlane.f32.xlu0 %v450
  %v474 = vpop.xlane.xlu0 %473
  %475 = vmax.xlane.f32.xlu0 %v451
  %v476 = vpop.xlane.xlu0 %475
  %477 = vmax.xlane.f32.xlu0 %v452
  %v478 = vpop.xlane.xlu0 %477
  %479 = vmax.xlane.f32.xlu0 %v453
  %v480 = vpop.xlane.xlu0 %479
  %481 = vmax.xlane.f32.xlu0 %v454
  %v482 = vpop.xlane.xlu0 %481
  %483 = vmax.xlane.f32.xlu0 %v455
  %v484 = vpop.xlane.xlu0 %483
  %485 = vmax.xlane.f32.xlu0 %v456
  %v486 = vpop.xlane.xlu0 %485
  %487 = vmax.xlane.f32.xlu0 %v457
  %v488 = vpop.xlane.xlu0 %487
  %489 = vmax.xlane.f32.xlu0 %v458
  %v490 = vpop.xlane.xlu0 %489
  %vm491 = vcmp.eq.s32.totalorder %v66, 1
  %v492 = vsel %vm491, %v460, %v426
  %v493 = vsel %vm491, %v462, %v427
  %v494 = vsel %vm491, %v464, %v428
  %v495 = vsel %vm491, %v466, %v429
  %v496 = vsel %vm491, %v468, %v430
  %v497 = vsel %vm491, %v470, %v431
  %v498 = vsel %vm491, %v472, %v432
  %v499 = vsel %vm491, %v474, %v433
  %v500 = vsel %vm491, %v476, %v434
  %v501 = vsel %vm491, %v478, %v435
  %v502 = vsel %vm491, %v480, %v436
  %v503 = vsel %vm491, %v482, %v437
  %v504 = vsel %vm491, %v484, %v438
  %v505 = vsel %vm491, %v486, %v439
  %v506 = vsel %vm491, %v488, %v440
  %v507 = vsel %vm491, %v490, %v441
  %v508 = vld [vmem:[%s3] sm:$0x2]
  %v509 = vunpack.c.l.bf16 %v508
  %v510 = vperm.slane %v509, 2
  %v511 = vadd.f32 %v358, %v510
  %v512 = vadd.f32 %v359, %v510
  %v513 = vadd.f32 %v360, %v510
  %v514 = vadd.f32 %v361, %v510
  %v515 = vadd.f32 %v362, %v510
  %v516 = vadd.f32 %v363, %v510
  %v517 = vadd.f32 %v364, %v510
  %v518 = vadd.f32 %v365, %v510
  %v519 = vadd.f32 %v366, %v510
  %v520 = vadd.f32 %v367, %v510
  %v521 = vadd.f32 %v368, %v510
  %v522 = vadd.f32 %v369, %v510
  %v523 = vadd.f32 %v370, %v510
  %v524 = vadd.f32 %v371, %v510
  %v525 = vadd.f32 %v372, %v510
  %v526 = vadd.f32 %v373, %v510
  %527 = vmax.xlane.f32.xlu0 %v511
  %v528 = vpop.xlane.xlu0 %527
  %529 = vmax.xlane.f32.xlu0 %v512
  %v530 = vpop.xlane.xlu0 %529
  %531 = vmax.xlane.f32.xlu0 %v513
  %v532 = vpop.xlane.xlu0 %531
  %533 = vmax.xlane.f32.xlu0 %v514
  %v534 = vpop.xlane.xlu0 %533
  %535 = vmax.xlane.f32.xlu0 %v515
  %v536 = vpop.xlane.xlu0 %535
  %537 = vmax.xlane.f32.xlu0 %v516
  %v538 = vpop.xlane.xlu0 %537
  %539 = vmax.xlane.f32.xlu0 %v517
  %v540 = vpop.xlane.xlu0 %539
  %541 = vmax.xlane.f32.xlu0 %v518
  %v542 = vpop.xlane.xlu0 %541
  %543 = vmax.xlane.f32.xlu0 %v519
  %v544 = vpop.xlane.xlu0 %543
  %545 = vmax.xlane.f32.xlu0 %v520
  %v546 = vpop.xlane.xlu0 %545
  %547 = vmax.xlane.f32.xlu0 %v521
  %v548 = vpop.xlane.xlu0 %547
  %549 = vmax.xlane.f32.xlu0 %v522
  %v550 = vpop.xlane.xlu0 %549
  %551 = vmax.xlane.f32.xlu0 %v523
  %v552 = vpop.xlane.xlu0 %551
  %553 = vmax.xlane.f32.xlu0 %v524
  %v554 = vpop.xlane.xlu0 %553
  %555 = vmax.xlane.f32.xlu0 %v525
  %v556 = vpop.xlane.xlu0 %555
  %557 = vmax.xlane.f32.xlu0 %v526
  %v558 = vpop.xlane.xlu0 %557
  %vm559 = vcmp.eq.s32.totalorder %v66, 2
  %v560 = vsel %vm559, %v528, %v492
  %v561 = vsel %vm559, %v530, %v493
  %v562 = vsel %vm559, %v532, %v494
  %v563 = vsel %vm559, %v534, %v495
  %v564 = vsel %vm559, %v536, %v496
  %v565 = vsel %vm559, %v538, %v497
  %v566 = vsel %vm559, %v540, %v498
  %v567 = vsel %vm559, %v542, %v499
  %v568 = vsel %vm559, %v544, %v500
  %v569 = vsel %vm559, %v546, %v501
  %v570 = vsel %vm559, %v548, %v502
  %v571 = vsel %vm559, %v550, %v503
  %v572 = vsel %vm559, %v552, %v504
  %v573 = vsel %vm559, %v554, %v505
  %v574 = vsel %vm559, %v556, %v506
  %v575 = vsel %vm559, %v558, %v507
  %v576 = vperm.slane %v509, 3
  %v577 = vadd.f32 %v358, %v576
  %v578 = vadd.f32 %v359, %v576
  %v579 = vadd.f32 %v360, %v576
  %v580 = vadd.f32 %v361, %v576
  %v581 = vadd.f32 %v362, %v576
  %v582 = vadd.f32 %v363, %v576
  %v583 = vadd.f32 %v364, %v576
  %v584 = vadd.f32 %v365, %v576
  %v585 = vadd.f32 %v366, %v576
  %v586 = vadd.f32 %v367, %v576
  %v587 = vadd.f32 %v368, %v576
  %v588 = vadd.f32 %v369, %v576
  %v589 = vadd.f32 %v370, %v576
  %v590 = vadd.f32 %v371, %v576
  %v591 = vadd.f32 %v372, %v576
  %v592 = vadd.f32 %v373, %v576
  %593 = vmax.xlane.f32.xlu0 %v577
  %v594 = vpop.xlane.xlu0 %593
  %595 = vmax.xlane.f32.xlu0 %v578
  %v596 = vpop.xlane.xlu0 %595
  %597 = vmax.xlane.f32.xlu0 %v579
  %v598 = vpop.xlane.xlu0 %597
  %599 = vmax.xlane.f32.xlu0 %v580
  %v600 = vpop.xlane.xlu0 %599
  %601 = vmax.xlane.f32.xlu0 %v581
  %v602 = vpop.xlane.xlu0 %601
  %603 = vmax.xlane.f32.xlu0 %v582
  %v604 = vpop.xlane.xlu0 %603
  %605 = vmax.xlane.f32.xlu0 %v583
  %v606 = vpop.xlane.xlu0 %605
  %607 = vmax.xlane.f32.xlu0 %v584
  %v608 = vpop.xlane.xlu0 %607
  %609 = vmax.xlane.f32.xlu0 %v585
  %v610 = vpop.xlane.xlu0 %609
  %611 = vmax.xlane.f32.xlu0 %v586
  %v612 = vpop.xlane.xlu0 %611
  %613 = vmax.xlane.f32.xlu0 %v587
  %v614 = vpop.xlane.xlu0 %613
  %615 = vmax.xlane.f32.xlu0 %v588
  %v616 = vpop.xlane.xlu0 %615
  %617 = vmax.xlane.f32.xlu0 %v589
  %v618 = vpop.xlane.xlu0 %617
  %619 = vmax.xlane.f32.xlu0 %v590
  %v620 = vpop.xlane.xlu0 %619
  %621 = vmax.xlane.f32.xlu0 %v591
  %v622 = vpop.xlane.xlu0 %621
  %623 = vmax.xlane.f32.xlu0 %v592
  %v624 = vpop.xlane.xlu0 %623
  %vm625 = vcmp.eq.s32.totalorder %v66, 3
  %v626 = vsel %vm625, %v594, %v560
  %v627 = vsel %vm625, %v596, %v561
  %v628 = vsel %vm625, %v598, %v562
  %v629 = vsel %vm625, %v600, %v563
  %v630 = vsel %vm625, %v602, %v564
  %v631 = vsel %vm625, %v604, %v565
  %v632 = vsel %vm625, %v606, %v566
  %v633 = vsel %vm625, %v608, %v567
  %v634 = vsel %vm625, %v610, %v568
  %v635 = vsel %vm625, %v612, %v569
  %v636 = vsel %vm625, %v614, %v570
  %v637 = vsel %vm625, %v616, %v571
  %v638 = vsel %vm625, %v618, %v572
  %v639 = vsel %vm625, %v620, %v573
  %v640 = vsel %vm625, %v622, %v574
  %v641 = vsel %vm625, %v624, %v575
  %v642 = vld [vmem:[%s3] sm:$0x4]
  %v643 = vunpack.c.l.bf16 %v642
  %v644 = vperm.slane %v643, 4
  %v645 = vadd.f32 %v358, %v644
  %v646 = vadd.f32 %v359, %v644
  %v647 = vadd.f32 %v360, %v644
  %v648 = vadd.f32 %v361, %v644
  %v649 = vadd.f32 %v362, %v644
  %v650 = vadd.f32 %v363, %v644
  %v651 = vadd.f32 %v364, %v644
  %v652 = vadd.f32 %v365, %v644
  %v653 = vadd.f32 %v366, %v644
  %v654 = vadd.f32 %v367, %v644
  %v655 = vadd.f32 %v368, %v644
  %v656 = vadd.f32 %v369, %v644
  %v657 = vadd.f32 %v370, %v644
  %v658 = vadd.f32 %v371, %v644
  %v659 = vadd.f32 %v372, %v644
  %v660 = vadd.f32 %v373, %v644
  %661 = vmax.xlane.f32.xlu0 %v645
  %v662 = vpop.xlane.xlu0 %661
  %663 = vmax.xlane.f32.xlu0 %v646
  %v664 = vpop.xlane.xlu0 %663
  %665 = vmax.xlane.f32.xlu0 %v647
  %v666 = vpop.xlane.xlu0 %665
  %667 = vmax.xlane.f32.xlu0 %v648
  %v668 = vpop.xlane.xlu0 %667
  %669 = vmax.xlane.f32.xlu0 %v649
  %v670 = vpop.xlane.xlu0 %669
  %671 = vmax.xlane.f32.xlu0 %v650
  %v672 = vpop.xlane.xlu0 %671
  %673 = vmax.xlane.f32.xlu0 %v651
  %v674 = vpop.xlane.xlu0 %673
  %675 = vmax.xlane.f32.xlu0 %v652
  %v676 = vpop.xlane.xlu0 %675
  %677 = vmax.xlane.f32.xlu0 %v653
  %v678 = vpop.xlane.xlu0 %677
  %679 = vmax.xlane.f32.xlu0 %v654
  %v680 = vpop.xlane.xlu0 %679
  %681 = vmax.xlane.f32.xlu0 %v655
  %v682 = vpop.xlane.xlu0 %681
  %683 = vmax.xlane.f32.xlu0 %v656
  %v684 = vpop.xlane.xlu0 %683
  %685 = vmax.xlane.f32.xlu0 %v657
  %v686 = vpop.xlane.xlu0 %685
  %687 = vmax.xlane.f32.xlu0 %v658
  %v688 = vpop.xlane.xlu0 %687
  %689 = vmax.xlane.f32.xlu0 %v659
  %v690 = vpop.xlane.xlu0 %689
  %691 = vmax.xlane.f32.xlu0 %v660
  %v692 = vpop.xlane.xlu0 %691
  %vm693 = vcmp.eq.s32.totalorder %v66, 4
  %v694 = vsel %vm693, %v662, %v626
  %v695 = vsel %vm693, %v664, %v627
  %v696 = vsel %vm693, %v666, %v628
  %v697 = vsel %vm693, %v668, %v629
  %v698 = vsel %vm693, %v670, %v630
  %v699 = vsel %vm693, %v672, %v631
  %v700 = vsel %vm693, %v674, %v632
  %v701 = vsel %vm693, %v676, %v633
  %v702 = vsel %vm693, %v678, %v634
  %v703 = vsel %vm693, %v680, %v635
  %v704 = vsel %vm693, %v682, %v636
  %v705 = vsel %vm693, %v684, %v637
  %v706 = vsel %vm693, %v686, %v638
  %v707 = vsel %vm693, %v688, %v639
  %v708 = vsel %vm693, %v690, %v640
  %v709 = vsel %vm693, %v692, %v641
  %v710 = vperm.slane %v643, 5
  %v711 = vadd.f32 %v358, %v710
  %v712 = vadd.f32 %v359, %v710
  %v713 = vadd.f32 %v360, %v710
  %v714 = vadd.f32 %v361, %v710
  %v715 = vadd.f32 %v362, %v710
  %v716 = vadd.f32 %v363, %v710
  %v717 = vadd.f32 %v364, %v710
  %v718 = vadd.f32 %v365, %v710
  %v719 = vadd.f32 %v366, %v710
  %v720 = vadd.f32 %v367, %v710
  %v721 = vadd.f32 %v368, %v710
  %v722 = vadd.f32 %v369, %v710
  %v723 = vadd.f32 %v370, %v710
  %v724 = vadd.f32 %v371, %v710
  %v725 = vadd.f32 %v372, %v710
  %v726 = vadd.f32 %v373, %v710
  %727 = vmax.xlane.f32.xlu0 %v711
  %v728 = vpop.xlane.xlu0 %727
  %729 = vmax.xlane.f32.xlu0 %v712
  %v730 = vpop.xlane.xlu0 %729
  %731 = vmax.xlane.f32.xlu0 %v713
  %v732 = vpop.xlane.xlu0 %731
  %733 = vmax.xlane.f32.xlu0 %v714
  %v734 = vpop.xlane.xlu0 %733
  %735 = vmax.xlane.f32.xlu0 %v715
  %v736 = vpop.xlane.xlu0 %735
  %737 = vmax.xlane.f32.xlu0 %v716
  %v738 = vpop.xlane.xlu0 %737
  %739 = vmax.xlane.f32.xlu0 %v717
  %v740 = vpop.xlane.xlu0 %739
  %741 = vmax.xlane.f32.xlu0 %v718
  %v742 = vpop.xlane.xlu0 %741
  %743 = vmax.xlane.f32.xlu0 %v719
  %v744 = vpop.xlane.xlu0 %743
  %745 = vmax.xlane.f32.xlu0 %v720
  %v746 = vpop.xlane.xlu0 %745
  %747 = vmax.xlane.f32.xlu0 %v721
  %v748 = vpop.xlane.xlu0 %747
  %749 = vmax.xlane.f32.xlu0 %v722
  %v750 = vpop.xlane.xlu0 %749
  %751 = vmax.xlane.f32.xlu0 %v723
  %v752 = vpop.xlane.xlu0 %751
  %753 = vmax.xlane.f32.xlu0 %v724
  %v754 = vpop.xlane.xlu0 %753
  %755 = vmax.xlane.f32.xlu0 %v725
  %v756 = vpop.xlane.xlu0 %755
  %757 = vmax.xlane.f32.xlu0 %v726
  %v758 = vpop.xlane.xlu0 %757
  %vm759 = vcmp.eq.s32.totalorder %v66, 5
  %v760 = vsel %vm759, %v728, %v694
  %v761 = vsel %vm759, %v730, %v695
  %v762 = vsel %vm759, %v732, %v696
  %v763 = vsel %vm759, %v734, %v697
  %v764 = vsel %vm759, %v736, %v698
  %v765 = vsel %vm759, %v738, %v699
  %v766 = vsel %vm759, %v740, %v700
  %v767 = vsel %vm759, %v742, %v701
  %v768 = vsel %vm759, %v744, %v702
  %v769 = vsel %vm759, %v746, %v703
  %v770 = vsel %vm759, %v748, %v704
  %v771 = vsel %vm759, %v750, %v705
  %v772 = vsel %vm759, %v752, %v706
  %v773 = vsel %vm759, %v754, %v707
  %v774 = vsel %vm759, %v756, %v708
  %v775 = vsel %vm759, %v758, %v709
  %v776 = vld [vmem:[%s3] sm:$0x8]
  %v777 = vunpack.c.l.bf16 %v776
  %v778 = vperm.slane %v777, 6
  %v779 = vadd.f32 %v358, %v778
  %v780 = vadd.f32 %v359, %v778
  %v781 = vadd.f32 %v360, %v778
  %v782 = vadd.f32 %v361, %v778
  %v783 = vadd.f32 %v362, %v778
  %v784 = vadd.f32 %v363, %v778
  %v785 = vadd.f32 %v364, %v778
  %v786 = vadd.f32 %v365, %v778
  %v787 = vadd.f32 %v366, %v778
  %v788 = vadd.f32 %v367, %v778
  %v789 = vadd.f32 %v368, %v778
  %v790 = vadd.f32 %v369, %v778
  %v791 = vadd.f32 %v370, %v778
  %v792 = vadd.f32 %v371, %v778
  %v793 = vadd.f32 %v372, %v778
  %v794 = vadd.f32 %v373, %v778
  %795 = vmax.xlane.f32.xlu0 %v779
  %v796 = vpop.xlane.xlu0 %795
  %797 = vmax.xlane.f32.xlu0 %v780
  %v798 = vpop.xlane.xlu0 %797
  %799 = vmax.xlane.f32.xlu0 %v781
  %v800 = vpop.xlane.xlu0 %799
  %801 = vmax.xlane.f32.xlu0 %v782
  %v802 = vpop.xlane.xlu0 %801
  %803 = vmax.xlane.f32.xlu0 %v783
  %v804 = vpop.xlane.xlu0 %803
  %805 = vmax.xlane.f32.xlu0 %v784
  %v806 = vpop.xlane.xlu0 %805
  %807 = vmax.xlane.f32.xlu0 %v785
  %v808 = vpop.xlane.xlu0 %807
  %809 = vmax.xlane.f32.xlu0 %v786
  %v810 = vpop.xlane.xlu0 %809
  %811 = vmax.xlane.f32.xlu0 %v787
  %v812 = vpop.xlane.xlu0 %811
  %813 = vmax.xlane.f32.xlu0 %v788
  %v814 = vpop.xlane.xlu0 %813
  %815 = vmax.xlane.f32.xlu0 %v789
  %v816 = vpop.xlane.xlu0 %815
  %817 = vmax.xlane.f32.xlu0 %v790
  %v818 = vpop.xlane.xlu0 %817
  %819 = vmax.xlane.f32.xlu0 %v791
  %v820 = vpop.xlane.xlu0 %819
  %821 = vmax.xlane.f32.xlu0 %v792
  %v822 = vpop.xlane.xlu0 %821
  %823 = vmax.xlane.f32.xlu0 %v793
  %v824 = vpop.xlane.xlu0 %823
  %825 = vmax.xlane.f32.xlu0 %v794
  %v826 = vpop.xlane.xlu0 %825
  %vm827 = vcmp.eq.s32.totalorder %v66, 6
  %v828 = vsel %vm827, %v796, %v760
  %v829 = vsel %vm827, %v798, %v761
  %v830 = vsel %vm827, %v800, %v762
  %v831 = vsel %vm827, %v802, %v763
  %v832 = vsel %vm827, %v804, %v764
  %v833 = vsel %vm827, %v806, %v765
  %v834 = vsel %vm827, %v808, %v766
  %v835 = vsel %vm827, %v810, %v767
  %v836 = vsel %vm827, %v812, %v768
  %v837 = vsel %vm827, %v814, %v769
  %v838 = vsel %vm827, %v816, %v770
  %v839 = vsel %vm827, %v818, %v771
  %v840 = vsel %vm827, %v820, %v772
  %v841 = vsel %vm827, %v822, %v773
  %v842 = vsel %vm827, %v824, %v774
  %v843 = vsel %vm827, %v826, %v775
  %v844 = vperm.slane %v777, 7
  %v845 = vadd.f32 %v358, %v844
  %v846 = vadd.f32 %v359, %v844
  %v847 = vadd.f32 %v360, %v844
  %v848 = vadd.f32 %v361, %v844
  %v849 = vadd.f32 %v362, %v844
  %v850 = vadd.f32 %v363, %v844
  %v851 = vadd.f32 %v364, %v844
  %v852 = vadd.f32 %v365, %v844
  %v853 = vadd.f32 %v366, %v844
  %v854 = vadd.f32 %v367, %v844
  %v855 = vadd.f32 %v368, %v844
  %v856 = vadd.f32 %v369, %v844
  %v857 = vadd.f32 %v370, %v844
  %v858 = vadd.f32 %v371, %v844
  %v859 = vadd.f32 %v372, %v844
  %v860 = vadd.f32 %v373, %v844
  %861 = vmax.xlane.f32.xlu0 %v845
  %v862 = vpop.xlane.xlu0 %861
  %863 = vmax.xlane.f32.xlu0 %v846
  %v864 = vpop.xlane.xlu0 %863
  %865 = vmax.xlane.f32.xlu0 %v847
  %v866 = vpop.xlane.xlu0 %865
  %867 = vmax.xlane.f32.xlu0 %v848
  %v868 = vpop.xlane.xlu0 %867
  %869 = vmax.xlane.f32.xlu0 %v849
  %v870 = vpop.xlane.xlu0 %869
  %871 = vmax.xlane.f32.xlu0 %v850
  %v872 = vpop.xlane.xlu0 %871
  %873 = vmax.xlane.f32.xlu0 %v851
  %v874 = vpop.xlane.xlu0 %873
  %875 = vmax.xlane.f32.xlu0 %v852
  %v876 = vpop.xlane.xlu0 %875
  %877 = vmax.xlane.f32.xlu0 %v853
  %v878 = vpop.xlane.xlu0 %877
  %879 = vmax.xlane.f32.xlu0 %v854
  %v880 = vpop.xlane.xlu0 %879
  %881 = vmax.xlane.f32.xlu0 %v855
  %v882 = vpop.xlane.xlu0 %881
  %883 = vmax.xlane.f32.xlu0 %v856
  %v884 = vpop.xlane.xlu0 %883
  %885 = vmax.xlane.f32.xlu0 %v857
  %v886 = vpop.xlane.xlu0 %885
  %887 = vmax.xlane.f32.xlu0 %v858
  %v888 = vpop.xlane.xlu0 %887
  %889 = vmax.xlane.f32.xlu0 %v859
  %v890 = vpop.xlane.xlu0 %889
  %891 = vmax.xlane.f32.xlu0 %v860
  %v892 = vpop.xlane.xlu0 %891
  %vm893 = vcmp.eq.s32.totalorder %v66, 7
  %v894 = vsel %vm893, %v862, %v828
  %v895 = vsel %vm893, %v864, %v829
  %v896 = vsel %vm893, %v866, %v830
  %v897 = vsel %vm893, %v868, %v831
  %v898 = vsel %vm893, %v870, %v832
  %v899 = vsel %vm893, %v872, %v833
  %v900 = vsel %vm893, %v874, %v834
  %v901 = vsel %vm893, %v876, %v835
  %v902 = vsel %vm893, %v878, %v836
  %v903 = vsel %vm893, %v880, %v837
  %v904 = vsel %vm893, %v882, %v838
  %v905 = vsel %vm893, %v884, %v839
  %v906 = vsel %vm893, %v886, %v840
  %v907 = vsel %vm893, %v888, %v841
  %v908 = vsel %vm893, %v890, %v842
  %v909 = vsel %vm893, %v892, %v843
  %v910 = vld [vmem:[%s3 + $0x4] sm:$0x1]
  %v911 = vunpack.c.l.bf16 %v910
  %v912 = vperm.slane %v911, 0
  %v913 = vadd.f32 %v358, %v912
  %v914 = vadd.f32 %v359, %v912
  %v915 = vadd.f32 %v360, %v912
  %v916 = vadd.f32 %v361, %v912
  %v917 = vadd.f32 %v362, %v912
  %v918 = vadd.f32 %v363, %v912
  %v919 = vadd.f32 %v364, %v912
  %v920 = vadd.f32 %v365, %v912
  %v921 = vadd.f32 %v366, %v912
  %v922 = vadd.f32 %v367, %v912
  %v923 = vadd.f32 %v368, %v912
  %v924 = vadd.f32 %v369, %v912
  %v925 = vadd.f32 %v370, %v912
  %v926 = vadd.f32 %v371, %v912
  %v927 = vadd.f32 %v372, %v912
  %v928 = vadd.f32 %v373, %v912
  %929 = vmax.xlane.f32.xlu0 %v913
  %v930 = vpop.xlane.xlu0 %929
  %931 = vmax.xlane.f32.xlu0 %v914
  %v932 = vpop.xlane.xlu0 %931
  %933 = vmax.xlane.f32.xlu0 %v915
  %v934 = vpop.xlane.xlu0 %933
  %935 = vmax.xlane.f32.xlu0 %v916
  %v936 = vpop.xlane.xlu0 %935
  %937 = vmax.xlane.f32.xlu0 %v917
  %v938 = vpop.xlane.xlu0 %937
  %939 = vmax.xlane.f32.xlu0 %v918
  %v940 = vpop.xlane.xlu0 %939
  %941 = vmax.xlane.f32.xlu0 %v919
  %v942 = vpop.xlane.xlu0 %941
  %943 = vmax.xlane.f32.xlu0 %v920
  %v944 = vpop.xlane.xlu0 %943
  %945 = vmax.xlane.f32.xlu0 %v921
  %v946 = vpop.xlane.xlu0 %945
  %947 = vmax.xlane.f32.xlu0 %v922
  %v948 = vpop.xlane.xlu0 %947
  %949 = vmax.xlane.f32.xlu0 %v923
  %v950 = vpop.xlane.xlu0 %949
  %951 = vmax.xlane.f32.xlu0 %v924
  %v952 = vpop.xlane.xlu0 %951
  %953 = vmax.xlane.f32.xlu0 %v925
  %v954 = vpop.xlane.xlu0 %953
  %955 = vmax.xlane.f32.xlu0 %v926
  %v956 = vpop.xlane.xlu0 %955
  %957 = vmax.xlane.f32.xlu0 %v927
  %v958 = vpop.xlane.xlu0 %957
  %959 = vmax.xlane.f32.xlu0 %v928
  %v960 = vpop.xlane.xlu0 %959
  %vm961 = vcmp.eq.s32.totalorder %v66, 8
  %v962 = vsel %vm961, %v930, %v894
  %v963 = vsel %vm961, %v932, %v895
  %v964 = vsel %vm961, %v934, %v896
  %v965 = vsel %vm961, %v936, %v897
  %v966 = vsel %vm961, %v938, %v898
  %v967 = vsel %vm961, %v940, %v899
  %v968 = vsel %vm961, %v942, %v900
  %v969 = vsel %vm961, %v944, %v901
  %v970 = vsel %vm961, %v946, %v902
  %v971 = vsel %vm961, %v948, %v903
  %v972 = vsel %vm961, %v950, %v904
  %v973 = vsel %vm961, %v952, %v905
  %v974 = vsel %vm961, %v954, %v906
  %v975 = vsel %vm961, %v956, %v907
  %v976 = vsel %vm961, %v958, %v908
  %v977 = vsel %vm961, %v960, %v909
  %v978 = vperm.slane %v911, 1
  %v979 = vadd.f32 %v358, %v978
  %v980 = vadd.f32 %v359, %v978
  %v981 = vadd.f32 %v360, %v978
  %v982 = vadd.f32 %v361, %v978
  %v983 = vadd.f32 %v362, %v978
  %v984 = vadd.f32 %v363, %v978
  %v985 = vadd.f32 %v364, %v978
  %v986 = vadd.f32 %v365, %v978
  %v987 = vadd.f32 %v366, %v978
  %v988 = vadd.f32 %v367, %v978
  %v989 = vadd.f32 %v368, %v978
  %v990 = vadd.f32 %v369, %v978
  %v991 = vadd.f32 %v370, %v978
  %v992 = vadd.f32 %v371, %v978
  %v993 = vadd.f32 %v372, %v978
  %v994 = vadd.f32 %v373, %v978
  %995 = vmax.xlane.f32.xlu0 %v979
  %v996 = vpop.xlane.xlu0 %995
  %997 = vmax.xlane.f32.xlu0 %v980
  %v998 = vpop.xlane.xlu0 %997
  %999 = vmax.xlane.f32.xlu0 %v981
  %v1000 = vpop.xlane.xlu0 %999
  %1001 = vmax.xlane.f32.xlu0 %v982
  %v1002 = vpop.xlane.xlu0 %1001
  %1003 = vmax.xlane.f32.xlu0 %v983
  %v1004 = vpop.xlane.xlu0 %1003
  %1005 = vmax.xlane.f32.xlu0 %v984
  %v1006 = vpop.xlane.xlu0 %1005
  %1007 = vmax.xlane.f32.xlu0 %v985
  %v1008 = vpop.xlane.xlu0 %1007
  %1009 = vmax.xlane.f32.xlu0 %v986
  %v1010 = vpop.xlane.xlu0 %1009
  %1011 = vmax.xlane.f32.xlu0 %v987
  %v1012 = vpop.xlane.xlu0 %1011
  %1013 = vmax.xlane.f32.xlu0 %v988
  %v1014 = vpop.xlane.xlu0 %1013
  %1015 = vmax.xlane.f32.xlu0 %v989
  %v1016 = vpop.xlane.xlu0 %1015
  %1017 = vmax.xlane.f32.xlu0 %v990
  %v1018 = vpop.xlane.xlu0 %1017
  %1019 = vmax.xlane.f32.xlu0 %v991
  %v1020 = vpop.xlane.xlu0 %1019
  %1021 = vmax.xlane.f32.xlu0 %v992
  %v1022 = vpop.xlane.xlu0 %1021
  %1023 = vmax.xlane.f32.xlu0 %v993
  %v1024 = vpop.xlane.xlu0 %1023
  %1025 = vmax.xlane.f32.xlu0 %v994
  %v1026 = vpop.xlane.xlu0 %1025
  %vm1027 = vcmp.eq.s32.totalorder %v66, 9
  %v1028 = vsel %vm1027, %v996, %v962
  %v1029 = vsel %vm1027, %v998, %v963
  %v1030 = vsel %vm1027, %v1000, %v964
  %v1031 = vsel %vm1027, %v1002, %v965
  %v1032 = vsel %vm1027, %v1004, %v966
  %v1033 = vsel %vm1027, %v1006, %v967
  %v1034 = vsel %vm1027, %v1008, %v968
  %v1035 = vsel %vm1027, %v1010, %v969
  %v1036 = vsel %vm1027, %v1012, %v970
  %v1037 = vsel %vm1027, %v1014, %v971
  %v1038 = vsel %vm1027, %v1016, %v972
  %v1039 = vsel %vm1027, %v1018, %v973
  %v1040 = vsel %vm1027, %v1020, %v974
  %v1041 = vsel %vm1027, %v1022, %v975
  %v1042 = vsel %vm1027, %v1024, %v976
  %v1043 = vsel %vm1027, %v1026, %v977
  %v1044 = vld [vmem:[%s3 + $0x4] sm:$0x2]
  %v1045 = vunpack.c.l.bf16 %v1044
  %v1046 = vperm.slane %v1045, 2
  %v1047 = vadd.f32 %v358, %v1046
  %v1048 = vadd.f32 %v359, %v1046
  %v1049 = vadd.f32 %v360, %v1046
  %v1050 = vadd.f32 %v361, %v1046
  %v1051 = vadd.f32 %v362, %v1046
  %v1052 = vadd.f32 %v363, %v1046
  %v1053 = vadd.f32 %v364, %v1046
  %v1054 = vadd.f32 %v365, %v1046
  %v1055 = vadd.f32 %v366, %v1046
  %v1056 = vadd.f32 %v367, %v1046
  %v1057 = vadd.f32 %v368, %v1046
  %v1058 = vadd.f32 %v369, %v1046
  %v1059 = vadd.f32 %v370, %v1046
  %v1060 = vadd.f32 %v371, %v1046
  %v1061 = vadd.f32 %v372, %v1046
  %v1062 = vadd.f32 %v373, %v1046
  %1063 = vmax.xlane.f32.xlu0 %v1047
  %v1064 = vpop.xlane.xlu0 %1063
  %1065 = vmax.xlane.f32.xlu0 %v1048
  %v1066 = vpop.xlane.xlu0 %1065
  %1067 = vmax.xlane.f32.xlu0 %v1049
  %v1068 = vpop.xlane.xlu0 %1067
  %1069 = vmax.xlane.f32.xlu0 %v1050
  %v1070 = vpop.xlane.xlu0 %1069
  %1071 = vmax.xlane.f32.xlu0 %v1051
  %v1072 = vpop.xlane.xlu0 %1071
  %1073 = vmax.xlane.f32.xlu0 %v1052
  %v1074 = vpop.xlane.xlu0 %1073
  %1075 = vmax.xlane.f32.xlu0 %v1053
  %v1076 = vpop.xlane.xlu0 %1075
  %1077 = vmax.xlane.f32.xlu0 %v1054
  %v1078 = vpop.xlane.xlu0 %1077
  %1079 = vmax.xlane.f32.xlu0 %v1055
  %v1080 = vpop.xlane.xlu0 %1079
  %1081 = vmax.xlane.f32.xlu0 %v1056
  %v1082 = vpop.xlane.xlu0 %1081
  %1083 = vmax.xlane.f32.xlu0 %v1057
  %v1084 = vpop.xlane.xlu0 %1083
  %1085 = vmax.xlane.f32.xlu0 %v1058
  %v1086 = vpop.xlane.xlu0 %1085
  %1087 = vmax.xlane.f32.xlu0 %v1059
  %v1088 = vpop.xlane.xlu0 %1087
  %1089 = vmax.xlane.f32.xlu0 %v1060
  %v1090 = vpop.xlane.xlu0 %1089
  %1091 = vmax.xlane.f32.xlu0 %v1061
  %v1092 = vpop.xlane.xlu0 %1091
  %1093 = vmax.xlane.f32.xlu0 %v1062
  %v1094 = vpop.xlane.xlu0 %1093
  %vm1095 = vcmp.eq.s32.totalorder %v66, 10
  %v1096 = vsel %vm1095, %v1064, %v1028
  %v1097 = vsel %vm1095, %v1066, %v1029
  %v1098 = vsel %vm1095, %v1068, %v1030
  %v1099 = vsel %vm1095, %v1070, %v1031
  %v1100 = vsel %vm1095, %v1072, %v1032
  %v1101 = vsel %vm1095, %v1074, %v1033
  %v1102 = vsel %vm1095, %v1076, %v1034
  %v1103 = vsel %vm1095, %v1078, %v1035
  %v1104 = vsel %vm1095, %v1080, %v1036
  %v1105 = vsel %vm1095, %v1082, %v1037
  %v1106 = vsel %vm1095, %v1084, %v1038
  %v1107 = vsel %vm1095, %v1086, %v1039
  %v1108 = vsel %vm1095, %v1088, %v1040
  %v1109 = vsel %vm1095, %v1090, %v1041
  %v1110 = vsel %vm1095, %v1092, %v1042
  %v1111 = vsel %vm1095, %v1094, %v1043
  %v1112 = vperm.slane %v1045, 3
  %v1113 = vadd.f32 %v358, %v1112
  %v1114 = vadd.f32 %v359, %v1112
  %v1115 = vadd.f32 %v360, %v1112
  %v1116 = vadd.f32 %v361, %v1112
  %v1117 = vadd.f32 %v362, %v1112
  %v1118 = vadd.f32 %v363, %v1112
  %v1119 = vadd.f32 %v364, %v1112
  %v1120 = vadd.f32 %v365, %v1112
  %v1121 = vadd.f32 %v366, %v1112
  %v1122 = vadd.f32 %v367, %v1112
  %v1123 = vadd.f32 %v368, %v1112
  %v1124 = vadd.f32 %v369, %v1112
  %v1125 = vadd.f32 %v370, %v1112
  %v1126 = vadd.f32 %v371, %v1112
  %v1127 = vadd.f32 %v372, %v1112
  %v1128 = vadd.f32 %v373, %v1112
  %1129 = vmax.xlane.f32.xlu0 %v1113
  %v1130 = vpop.xlane.xlu0 %1129
  %1131 = vmax.xlane.f32.xlu0 %v1114
  %v1132 = vpop.xlane.xlu0 %1131
  %1133 = vmax.xlane.f32.xlu0 %v1115
  %v1134 = vpop.xlane.xlu0 %1133
  %1135 = vmax.xlane.f32.xlu0 %v1116
  %v1136 = vpop.xlane.xlu0 %1135
  %1137 = vmax.xlane.f32.xlu0 %v1117
  %v1138 = vpop.xlane.xlu0 %1137
  %1139 = vmax.xlane.f32.xlu0 %v1118
  %v1140 = vpop.xlane.xlu0 %1139
  %1141 = vmax.xlane.f32.xlu0 %v1119
  %v1142 = vpop.xlane.xlu0 %1141
  %1143 = vmax.xlane.f32.xlu0 %v1120
  %v1144 = vpop.xlane.xlu0 %1143
  %1145 = vmax.xlane.f32.xlu0 %v1121
  %v1146 = vpop.xlane.xlu0 %1145
  %1147 = vmax.xlane.f32.xlu0 %v1122
  %v1148 = vpop.xlane.xlu0 %1147
  %1149 = vmax.xlane.f32.xlu0 %v1123
  %v1150 = vpop.xlane.xlu0 %1149
  %1151 = vmax.xlane.f32.xlu0 %v1124
  %v1152 = vpop.xlane.xlu0 %1151
  %1153 = vmax.xlane.f32.xlu0 %v1125
  %v1154 = vpop.xlane.xlu0 %1153
  %1155 = vmax.xlane.f32.xlu0 %v1126
  %v1156 = vpop.xlane.xlu0 %1155
  %1157 = vmax.xlane.f32.xlu0 %v1127
  %v1158 = vpop.xlane.xlu0 %1157
  %1159 = vmax.xlane.f32.xlu0 %v1128
  %v1160 = vpop.xlane.xlu0 %1159
  %vm1161 = vcmp.eq.s32.totalorder %v66, 11
  %v1162 = vsel %vm1161, %v1130, %v1096
  %v1163 = vsel %vm1161, %v1132, %v1097
  %v1164 = vsel %vm1161, %v1134, %v1098
  %v1165 = vsel %vm1161, %v1136, %v1099
  %v1166 = vsel %vm1161, %v1138, %v1100
  %v1167 = vsel %vm1161, %v1140, %v1101
  %v1168 = vsel %vm1161, %v1142, %v1102
  %v1169 = vsel %vm1161, %v1144, %v1103
  %v1170 = vsel %vm1161, %v1146, %v1104
  %v1171 = vsel %vm1161, %v1148, %v1105
  %v1172 = vsel %vm1161, %v1150, %v1106
  %v1173 = vsel %vm1161, %v1152, %v1107
  %v1174 = vsel %vm1161, %v1154, %v1108
  %v1175 = vsel %vm1161, %v1156, %v1109
  %v1176 = vsel %vm1161, %v1158, %v1110
  %v1177 = vsel %vm1161, %v1160, %v1111
  %v1178 = vld [vmem:[%s3 + $0x4] sm:$0x4]
  %v1179 = vunpack.c.l.bf16 %v1178
  %v1180 = vperm.slane %v1179, 4
  %v1181 = vadd.f32 %v358, %v1180
  %v1182 = vadd.f32 %v359, %v1180
  %v1183 = vadd.f32 %v360, %v1180
  %v1184 = vadd.f32 %v361, %v1180
  %v1185 = vadd.f32 %v362, %v1180
  %v1186 = vadd.f32 %v363, %v1180
  %v1187 = vadd.f32 %v364, %v1180
  %v1188 = vadd.f32 %v365, %v1180
  %v1189 = vadd.f32 %v366, %v1180
  %v1190 = vadd.f32 %v367, %v1180
  %v1191 = vadd.f32 %v368, %v1180
  %v1192 = vadd.f32 %v369, %v1180
  %v1193 = vadd.f32 %v370, %v1180
  %v1194 = vadd.f32 %v371, %v1180
  %v1195 = vadd.f32 %v372, %v1180
  %v1196 = vadd.f32 %v373, %v1180
  %1197 = vmax.xlane.f32.xlu0 %v1181
  %v1198 = vpop.xlane.xlu0 %1197
  %1199 = vmax.xlane.f32.xlu0 %v1182
  %v1200 = vpop.xlane.xlu0 %1199
  %1201 = vmax.xlane.f32.xlu0 %v1183
  %v1202 = vpop.xlane.xlu0 %1201
  %1203 = vmax.xlane.f32.xlu0 %v1184
  %v1204 = vpop.xlane.xlu0 %1203
  %1205 = vmax.xlane.f32.xlu0 %v1185
  %v1206 = vpop.xlane.xlu0 %1205
  %1207 = vmax.xlane.f32.xlu0 %v1186
  %v1208 = vpop.xlane.xlu0 %1207
  %1209 = vmax.xlane.f32.xlu0 %v1187
  %v1210 = vpop.xlane.xlu0 %1209
  %1211 = vmax.xlane.f32.xlu0 %v1188
  %v1212 = vpop.xlane.xlu0 %1211
  %1213 = vmax.xlane.f32.xlu0 %v1189
  %v1214 = vpop.xlane.xlu0 %1213
  %1215 = vmax.xlane.f32.xlu0 %v1190
  %v1216 = vpop.xlane.xlu0 %1215
  %1217 = vmax.xlane.f32.xlu0 %v1191
  %v1218 = vpop.xlane.xlu0 %1217
  %1219 = vmax.xlane.f32.xlu0 %v1192
  %v1220 = vpop.xlane.xlu0 %1219
  %1221 = vmax.xlane.f32.xlu0 %v1193
  %v1222 = vpop.xlane.xlu0 %1221
  %1223 = vmax.xlane.f32.xlu0 %v1194
  %v1224 = vpop.xlane.xlu0 %1223
  %1225 = vmax.xlane.f32.xlu0 %v1195
  %v1226 = vpop.xlane.xlu0 %1225
  %1227 = vmax.xlane.f32.xlu0 %v1196
  %v1228 = vpop.xlane.xlu0 %1227
  %vm1229 = vcmp.eq.s32.totalorder %v66, 12
  %v1230 = vsel %vm1229, %v1198, %v1162
  %v1231 = vsel %vm1229, %v1200, %v1163
  %v1232 = vsel %vm1229, %v1202, %v1164
  %v1233 = vsel %vm1229, %v1204, %v1165
  %v1234 = vsel %vm1229, %v1206, %v1166
  %v1235 = vsel %vm1229, %v1208, %v1167
  %v1236 = vsel %vm1229, %v1210, %v1168
  %v1237 = vsel %vm1229, %v1212, %v1169
  %v1238 = vsel %vm1229, %v1214, %v1170
  %v1239 = vsel %vm1229, %v1216, %v1171
  %v1240 = vsel %vm1229, %v1218, %v1172
  %v1241 = vsel %vm1229, %v1220, %v1173
  %v1242 = vsel %vm1229, %v1222, %v1174
  %v1243 = vsel %vm1229, %v1224, %v1175
  %v1244 = vsel %vm1229, %v1226, %v1176
  %v1245 = vsel %vm1229, %v1228, %v1177
  %v1246 = vperm.slane %v1179, 5
  %v1247 = vadd.f32 %v358, %v1246
  %v1248 = vadd.f32 %v359, %v1246
  %v1249 = vadd.f32 %v360, %v1246
  %v1250 = vadd.f32 %v361, %v1246
  %v1251 = vadd.f32 %v362, %v1246
  %v1252 = vadd.f32 %v363, %v1246
  %v1253 = vadd.f32 %v364, %v1246
  %v1254 = vadd.f32 %v365, %v1246
  %v1255 = vadd.f32 %v366, %v1246
  %v1256 = vadd.f32 %v367, %v1246
  %v1257 = vadd.f32 %v368, %v1246
  %v1258 = vadd.f32 %v369, %v1246
  %v1259 = vadd.f32 %v370, %v1246
  %v1260 = vadd.f32 %v371, %v1246
  %v1261 = vadd.f32 %v372, %v1246
  %v1262 = vadd.f32 %v373, %v1246
  %1263 = vmax.xlane.f32.xlu0 %v1247
  %v1264 = vpop.xlane.xlu0 %1263
  %1265 = vmax.xlane.f32.xlu0 %v1248
  %v1266 = vpop.xlane.xlu0 %1265
  %1267 = vmax.xlane.f32.xlu0 %v1249
  %v1268 = vpop.xlane.xlu0 %1267
  %1269 = vmax.xlane.f32.xlu0 %v1250
  %v1270 = vpop.xlane.xlu0 %1269
  %1271 = vmax.xlane.f32.xlu0 %v1251
  %v1272 = vpop.xlane.xlu0 %1271
  %1273 = vmax.xlane.f32.xlu0 %v1252
  %v1274 = vpop.xlane.xlu0 %1273
  %1275 = vmax.xlane.f32.xlu0 %v1253
  %v1276 = vpop.xlane.xlu0 %1275
  %1277 = vmax.xlane.f32.xlu0 %v1254
  %v1278 = vpop.xlane.xlu0 %1277
  %1279 = vmax.xlane.f32.xlu0 %v1255
  %v1280 = vpop.xlane.xlu0 %1279
  %1281 = vmax.xlane.f32.xlu0 %v1256
  %v1282 = vpop.xlane.xlu0 %1281
  %1283 = vmax.xlane.f32.xlu0 %v1257
  %v1284 = vpop.xlane.xlu0 %1283
  %1285 = vmax.xlane.f32.xlu0 %v1258
  %v1286 = vpop.xlane.xlu0 %1285
  %1287 = vmax.xlane.f32.xlu0 %v1259
  %v1288 = vpop.xlane.xlu0 %1287
  %1289 = vmax.xlane.f32.xlu0 %v1260
  %v1290 = vpop.xlane.xlu0 %1289
  %1291 = vmax.xlane.f32.xlu0 %v1261
  %v1292 = vpop.xlane.xlu0 %1291
  %1293 = vmax.xlane.f32.xlu0 %v1262
  %v1294 = vpop.xlane.xlu0 %1293
  %vm1295 = vcmp.eq.s32.totalorder %v66, 13
  %v1296 = vsel %vm1295, %v1264, %v1230
  %v1297 = vsel %vm1295, %v1266, %v1231
  %v1298 = vsel %vm1295, %v1268, %v1232
  %v1299 = vsel %vm1295, %v1270, %v1233
  %v1300 = vsel %vm1295, %v1272, %v1234
  %v1301 = vsel %vm1295, %v1274, %v1235
  %v1302 = vsel %vm1295, %v1276, %v1236
  %v1303 = vsel %vm1295, %v1278, %v1237
  %v1304 = vsel %vm1295, %v1280, %v1238
  %v1305 = vsel %vm1295, %v1282, %v1239
  %v1306 = vsel %vm1295, %v1284, %v1240
  %v1307 = vsel %vm1295, %v1286, %v1241
  %v1308 = vsel %vm1295, %v1288, %v1242
  %v1309 = vsel %vm1295, %v1290, %v1243
  %v1310 = vsel %vm1295, %v1292, %v1244
  %v1311 = vsel %vm1295, %v1294, %v1245
  %v1312 = vld [vmem:[%s3 + $0x4] sm:$0x8]
  %v1313 = vunpack.c.l.bf16 %v1312
  %v1314 = vperm.slane %v1313, 6
  %v1315 = vadd.f32 %v358, %v1314
  %v1316 = vadd.f32 %v359, %v1314
  %v1317 = vadd.f32 %v360, %v1314
  %v1318 = vadd.f32 %v361, %v1314
  %v1319 = vadd.f32 %v362, %v1314
  %v1320 = vadd.f32 %v363, %v1314
  %v1321 = vadd.f32 %v364, %v1314
  %v1322 = vadd.f32 %v365, %v1314
  %v1323 = vadd.f32 %v366, %v1314
  %v1324 = vadd.f32 %v367, %v1314
  %v1325 = vadd.f32 %v368, %v1314
  %v1326 = vadd.f32 %v369, %v1314
  %v1327 = vadd.f32 %v370, %v1314
  %v1328 = vadd.f32 %v371, %v1314
  %v1329 = vadd.f32 %v372, %v1314
  %v1330 = vadd.f32 %v373, %v1314
  %1331 = vmax.xlane.f32.xlu0 %v1315
  %v1332 = vpop.xlane.xlu0 %1331
  %1333 = vmax.xlane.f32.xlu0 %v1316
  %v1334 = vpop.xlane.xlu0 %1333
  %1335 = vmax.xlane.f32.xlu0 %v1317
  %v1336 = vpop.xlane.xlu0 %1335
  %1337 = vmax.xlane.f32.xlu0 %v1318
  %v1338 = vpop.xlane.xlu0 %1337
  %1339 = vmax.xlane.f32.xlu0 %v1319
  %v1340 = vpop.xlane.xlu0 %1339
  %1341 = vmax.xlane.f32.xlu0 %v1320
  %v1342 = vpop.xlane.xlu0 %1341
  %1343 = vmax.xlane.f32.xlu0 %v1321
  %v1344 = vpop.xlane.xlu0 %1343
  %1345 = vmax.xlane.f32.xlu0 %v1322
  %v1346 = vpop.xlane.xlu0 %1345
  %1347 = vmax.xlane.f32.xlu0 %v1323
  %v1348 = vpop.xlane.xlu0 %1347
  %1349 = vmax.xlane.f32.xlu0 %v1324
  %v1350 = vpop.xlane.xlu0 %1349
  %1351 = vmax.xlane.f32.xlu0 %v1325
  %v1352 = vpop.xlane.xlu0 %1351
  %1353 = vmax.xlane.f32.xlu0 %v1326
  %v1354 = vpop.xlane.xlu0 %1353
  %1355 = vmax.xlane.f32.xlu0 %v1327
  %v1356 = vpop.xlane.xlu0 %1355
  %1357 = vmax.xlane.f32.xlu0 %v1328
  %v1358 = vpop.xlane.xlu0 %1357
  %1359 = vmax.xlane.f32.xlu0 %v1329
  %v1360 = vpop.xlane.xlu0 %1359
  %1361 = vmax.xlane.f32.xlu0 %v1330
  %v1362 = vpop.xlane.xlu0 %1361
  %vm1363 = vcmp.eq.s32.totalorder %v66, 14
  %v1364 = vsel %vm1363, %v1332, %v1296
  %v1365 = vsel %vm1363, %v1334, %v1297
  %v1366 = vsel %vm1363, %v1336, %v1298
  %v1367 = vsel %vm1363, %v1338, %v1299
  %v1368 = vsel %vm1363, %v1340, %v1300
  %v1369 = vsel %vm1363, %v1342, %v1301
  %v1370 = vsel %vm1363, %v1344, %v1302
  %v1371 = vsel %vm1363, %v1346, %v1303
  %v1372 = vsel %vm1363, %v1348, %v1304
  %v1373 = vsel %vm1363, %v1350, %v1305
  %v1374 = vsel %vm1363, %v1352, %v1306
  %v1375 = vsel %vm1363, %v1354, %v1307
  %v1376 = vsel %vm1363, %v1356, %v1308
  %v1377 = vsel %vm1363, %v1358, %v1309
  %v1378 = vsel %vm1363, %v1360, %v1310
  %v1379 = vsel %vm1363, %v1362, %v1311
  %v1380 = vperm.slane %v1313, 7
  %v1381 = vadd.f32 %v358, %v1380
  %v1382 = vadd.f32 %v359, %v1380
  %v1383 = vadd.f32 %v360, %v1380
  %v1384 = vadd.f32 %v361, %v1380
  %v1385 = vadd.f32 %v362, %v1380
  %v1386 = vadd.f32 %v363, %v1380
  %v1387 = vadd.f32 %v364, %v1380
  %v1388 = vadd.f32 %v365, %v1380
  %v1389 = vadd.f32 %v366, %v1380
  %v1390 = vadd.f32 %v367, %v1380
  %v1391 = vadd.f32 %v368, %v1380
  %v1392 = vadd.f32 %v369, %v1380
  %v1393 = vadd.f32 %v370, %v1380
  %v1394 = vadd.f32 %v371, %v1380
  %v1395 = vadd.f32 %v372, %v1380
  %v1396 = vadd.f32 %v373, %v1380
  %1397 = vmax.xlane.f32.xlu0 %v1381
  %v1398 = vpop.xlane.xlu0 %1397
  %1399 = vmax.xlane.f32.xlu0 %v1382
  %v1400 = vpop.xlane.xlu0 %1399
  %1401 = vmax.xlane.f32.xlu0 %v1383
  %v1402 = vpop.xlane.xlu0 %1401
  %1403 = vmax.xlane.f32.xlu0 %v1384
  %v1404 = vpop.xlane.xlu0 %1403
  %1405 = vmax.xlane.f32.xlu0 %v1385
  %v1406 = vpop.xlane.xlu0 %1405
  %1407 = vmax.xlane.f32.xlu0 %v1386
  %v1408 = vpop.xlane.xlu0 %1407
  %1409 = vmax.xlane.f32.xlu0 %v1387
  %v1410 = vpop.xlane.xlu0 %1409
  %1411 = vmax.xlane.f32.xlu0 %v1388
  %v1412 = vpop.xlane.xlu0 %1411
  %1413 = vmax.xlane.f32.xlu0 %v1389
  %v1414 = vpop.xlane.xlu0 %1413
  %1415 = vmax.xlane.f32.xlu0 %v1390
  %v1416 = vpop.xlane.xlu0 %1415
  %1417 = vmax.xlane.f32.xlu0 %v1391
  %v1418 = vpop.xlane.xlu0 %1417
  %1419 = vmax.xlane.f32.xlu0 %v1392
  %v1420 = vpop.xlane.xlu0 %1419
  %1421 = vmax.xlane.f32.xlu0 %v1393
  %v1422 = vpop.xlane.xlu0 %1421
  %1423 = vmax.xlane.f32.xlu0 %v1394
  %v1424 = vpop.xlane.xlu0 %1423
  %1425 = vmax.xlane.f32.xlu0 %v1395
  %v1426 = vpop.xlane.xlu0 %1425
  %1427 = vmax.xlane.f32.xlu0 %v1396
  %v1428 = vpop.xlane.xlu0 %1427
  %vm1429 = vcmp.eq.s32.totalorder %v66, 15
  %v1430 = vsel %vm1429, %v1398, %v1364
  %v1431 = vsel %vm1429, %v1400, %v1365
  %v1432 = vsel %vm1429, %v1402, %v1366
  %v1433 = vsel %vm1429, %v1404, %v1367
  %v1434 = vsel %vm1429, %v1406, %v1368
  %v1435 = vsel %vm1429, %v1408, %v1369
  %v1436 = vsel %vm1429, %v1410, %v1370
  %v1437 = vsel %vm1429, %v1412, %v1371
  %v1438 = vsel %vm1429, %v1414, %v1372
  %v1439 = vsel %vm1429, %v1416, %v1373
  %v1440 = vsel %vm1429, %v1418, %v1374
  %v1441 = vsel %vm1429, %v1420, %v1375
  %v1442 = vsel %vm1429, %v1422, %v1376
  %v1443 = vsel %vm1429, %v1424, %v1377
  %v1444 = vsel %vm1429, %v1426, %v1378
  %v1445 = vsel %vm1429, %v1428, %v1379
  %v1446 = vld [vmem:[%s3 + $0x8] sm:$0x1]
  %v1447 = vunpack.c.l.bf16 %v1446
  %v1448 = vperm.slane %v1447, 0
  %v1449 = vadd.f32 %v358, %v1448
  %v1450 = vadd.f32 %v359, %v1448
  %v1451 = vadd.f32 %v360, %v1448
  %v1452 = vadd.f32 %v361, %v1448
  %v1453 = vadd.f32 %v362, %v1448
  %v1454 = vadd.f32 %v363, %v1448
  %v1455 = vadd.f32 %v364, %v1448
  %v1456 = vadd.f32 %v365, %v1448
  %v1457 = vadd.f32 %v366, %v1448
  %v1458 = vadd.f32 %v367, %v1448
  %v1459 = vadd.f32 %v368, %v1448
  %v1460 = vadd.f32 %v369, %v1448
  %v1461 = vadd.f32 %v370, %v1448
  %v1462 = vadd.f32 %v371, %v1448
  %v1463 = vadd.f32 %v372, %v1448
  %v1464 = vadd.f32 %v373, %v1448
  %1465 = vmax.xlane.f32.xlu0 %v1449
  %v1466 = vpop.xlane.xlu0 %1465
  %1467 = vmax.xlane.f32.xlu0 %v1450
  %v1468 = vpop.xlane.xlu0 %1467
  %1469 = vmax.xlane.f32.xlu0 %v1451
  %v1470 = vpop.xlane.xlu0 %1469
  %1471 = vmax.xlane.f32.xlu0 %v1452
  %v1472 = vpop.xlane.xlu0 %1471
  %1473 = vmax.xlane.f32.xlu0 %v1453
  %v1474 = vpop.xlane.xlu0 %1473
  %1475 = vmax.xlane.f32.xlu0 %v1454
  %v1476 = vpop.xlane.xlu0 %1475
  %1477 = vmax.xlane.f32.xlu0 %v1455
  %v1478 = vpop.xlane.xlu0 %1477
  %1479 = vmax.xlane.f32.xlu0 %v1456
  %v1480 = vpop.xlane.xlu0 %1479
  %1481 = vmax.xlane.f32.xlu0 %v1457
  %v1482 = vpop.xlane.xlu0 %1481
  %1483 = vmax.xlane.f32.xlu0 %v1458
  %v1484 = vpop.xlane.xlu0 %1483
  %1485 = vmax.xlane.f32.xlu0 %v1459
  %v1486 = vpop.xlane.xlu0 %1485
  %1487 = vmax.xlane.f32.xlu0 %v1460
  %v1488 = vpop.xlane.xlu0 %1487
  %1489 = vmax.xlane.f32.xlu0 %v1461
  %v1490 = vpop.xlane.xlu0 %1489
  %1491 = vmax.xlane.f32.xlu0 %v1462
  %v1492 = vpop.xlane.xlu0 %1491
  %1493 = vmax.xlane.f32.xlu0 %v1463
  %v1494 = vpop.xlane.xlu0 %1493
  %1495 = vmax.xlane.f32.xlu0 %v1464
  %v1496 = vpop.xlane.xlu0 %1495
  %vm1497 = vcmp.eq.s32.totalorder %v66, 16
  %v1498 = vsel %vm1497, %v1466, %v1430
  %v1499 = vsel %vm1497, %v1468, %v1431
  %v1500 = vsel %vm1497, %v1470, %v1432
  %v1501 = vsel %vm1497, %v1472, %v1433
  %v1502 = vsel %vm1497, %v1474, %v1434
  %v1503 = vsel %vm1497, %v1476, %v1435
  %v1504 = vsel %vm1497, %v1478, %v1436
  %v1505 = vsel %vm1497, %v1480, %v1437
  %v1506 = vsel %vm1497, %v1482, %v1438
  %v1507 = vsel %vm1497, %v1484, %v1439
  %v1508 = vsel %vm1497, %v1486, %v1440
  %v1509 = vsel %vm1497, %v1488, %v1441
  %v1510 = vsel %vm1497, %v1490, %v1442
  %v1511 = vsel %vm1497, %v1492, %v1443
  %v1512 = vsel %vm1497, %v1494, %v1444
  %v1513 = vsel %vm1497, %v1496, %v1445
  %v1514 = vperm.slane %v1447, 1
  %v1515 = vadd.f32 %v358, %v1514
  %v1516 = vadd.f32 %v359, %v1514
  %v1517 = vadd.f32 %v360, %v1514
  %v1518 = vadd.f32 %v361, %v1514
  %v1519 = vadd.f32 %v362, %v1514
  %v1520 = vadd.f32 %v363, %v1514
  %v1521 = vadd.f32 %v364, %v1514
  %v1522 = vadd.f32 %v365, %v1514
  %v1523 = vadd.f32 %v366, %v1514
  %v1524 = vadd.f32 %v367, %v1514
  %v1525 = vadd.f32 %v368, %v1514
  %v1526 = vadd.f32 %v369, %v1514
  %v1527 = vadd.f32 %v370, %v1514
  %v1528 = vadd.f32 %v371, %v1514
  %v1529 = vadd.f32 %v372, %v1514
  %v1530 = vadd.f32 %v373, %v1514
  %1531 = vmax.xlane.f32.xlu0 %v1515
  %v1532 = vpop.xlane.xlu0 %1531
  %1533 = vmax.xlane.f32.xlu0 %v1516
  %v1534 = vpop.xlane.xlu0 %1533
  %1535 = vmax.xlane.f32.xlu0 %v1517
  %v1536 = vpop.xlane.xlu0 %1535
  %1537 = vmax.xlane.f32.xlu0 %v1518
  %v1538 = vpop.xlane.xlu0 %1537
  %1539 = vmax.xlane.f32.xlu0 %v1519
  %v1540 = vpop.xlane.xlu0 %1539
  %1541 = vmax.xlane.f32.xlu0 %v1520
  %v1542 = vpop.xlane.xlu0 %1541
  %1543 = vmax.xlane.f32.xlu0 %v1521
  %v1544 = vpop.xlane.xlu0 %1543
  %1545 = vmax.xlane.f32.xlu0 %v1522
  %v1546 = vpop.xlane.xlu0 %1545
  %1547 = vmax.xlane.f32.xlu0 %v1523
  %v1548 = vpop.xlane.xlu0 %1547
  %1549 = vmax.xlane.f32.xlu0 %v1524
  %v1550 = vpop.xlane.xlu0 %1549
  %1551 = vmax.xlane.f32.xlu0 %v1525
  %v1552 = vpop.xlane.xlu0 %1551
  %1553 = vmax.xlane.f32.xlu0 %v1526
  %v1554 = vpop.xlane.xlu0 %1553
  %1555 = vmax.xlane.f32.xlu0 %v1527
  %v1556 = vpop.xlane.xlu0 %1555
  %1557 = vmax.xlane.f32.xlu0 %v1528
  %v1558 = vpop.xlane.xlu0 %1557
  %1559 = vmax.xlane.f32.xlu0 %v1529
  %v1560 = vpop.xlane.xlu0 %1559
  %1561 = vmax.xlane.f32.xlu0 %v1530
  %v1562 = vpop.xlane.xlu0 %1561
  %vm1563 = vcmp.eq.s32.totalorder %v66, 17
  %v1564 = vsel %vm1563, %v1532, %v1498
  %v1565 = vsel %vm1563, %v1534, %v1499
  %v1566 = vsel %vm1563, %v1536, %v1500
  %v1567 = vsel %vm1563, %v1538, %v1501
  %v1568 = vsel %vm1563, %v1540, %v1502
  %v1569 = vsel %vm1563, %v1542, %v1503
  %v1570 = vsel %vm1563, %v1544, %v1504
  %v1571 = vsel %vm1563, %v1546, %v1505
  %v1572 = vsel %vm1563, %v1548, %v1506
  %v1573 = vsel %vm1563, %v1550, %v1507
  %v1574 = vsel %vm1563, %v1552, %v1508
  %v1575 = vsel %vm1563, %v1554, %v1509
  %v1576 = vsel %vm1563, %v1556, %v1510
  %v1577 = vsel %vm1563, %v1558, %v1511
  %v1578 = vsel %vm1563, %v1560, %v1512
  %v1579 = vsel %vm1563, %v1562, %v1513
  %v1580 = vld [vmem:[%s3 + $0x8] sm:$0x2]
  %v1581 = vunpack.c.l.bf16 %v1580
  %v1582 = vperm.slane %v1581, 2
  %v1583 = vadd.f32 %v358, %v1582
  %v1584 = vadd.f32 %v359, %v1582
  %v1585 = vadd.f32 %v360, %v1582
  %v1586 = vadd.f32 %v361, %v1582
  %v1587 = vadd.f32 %v362, %v1582
  %v1588 = vadd.f32 %v363, %v1582
  %v1589 = vadd.f32 %v364, %v1582
  %v1590 = vadd.f32 %v365, %v1582
  %v1591 = vadd.f32 %v366, %v1582
  %v1592 = vadd.f32 %v367, %v1582
  %v1593 = vadd.f32 %v368, %v1582
  %v1594 = vadd.f32 %v369, %v1582
  %v1595 = vadd.f32 %v370, %v1582
  %v1596 = vadd.f32 %v371, %v1582
  %v1597 = vadd.f32 %v372, %v1582
  %v1598 = vadd.f32 %v373, %v1582
  %1599 = vmax.xlane.f32.xlu0 %v1583
  %v1600 = vpop.xlane.xlu0 %1599
  %1601 = vmax.xlane.f32.xlu0 %v1584
  %v1602 = vpop.xlane.xlu0 %1601
  %1603 = vmax.xlane.f32.xlu0 %v1585
  %v1604 = vpop.xlane.xlu0 %1603
  %1605 = vmax.xlane.f32.xlu0 %v1586
  %v1606 = vpop.xlane.xlu0 %1605
  %1607 = vmax.xlane.f32.xlu0 %v1587
  %v1608 = vpop.xlane.xlu0 %1607
  %1609 = vmax.xlane.f32.xlu0 %v1588
  %v1610 = vpop.xlane.xlu0 %1609
  %1611 = vmax.xlane.f32.xlu0 %v1589
  %v1612 = vpop.xlane.xlu0 %1611
  %1613 = vmax.xlane.f32.xlu0 %v1590
  %v1614 = vpop.xlane.xlu0 %1613
  %1615 = vmax.xlane.f32.xlu0 %v1591
  %v1616 = vpop.xlane.xlu0 %1615
  %1617 = vmax.xlane.f32.xlu0 %v1592
  %v1618 = vpop.xlane.xlu0 %1617
  %1619 = vmax.xlane.f32.xlu0 %v1593
  %v1620 = vpop.xlane.xlu0 %1619
  %1621 = vmax.xlane.f32.xlu0 %v1594
  %v1622 = vpop.xlane.xlu0 %1621
  %1623 = vmax.xlane.f32.xlu0 %v1595
  %v1624 = vpop.xlane.xlu0 %1623
  %1625 = vmax.xlane.f32.xlu0 %v1596
  %v1626 = vpop.xlane.xlu0 %1625
  %1627 = vmax.xlane.f32.xlu0 %v1597
  %v1628 = vpop.xlane.xlu0 %1627
  %1629 = vmax.xlane.f32.xlu0 %v1598
  %v1630 = vpop.xlane.xlu0 %1629
  %vm1631 = vcmp.eq.s32.totalorder %v66, 18
  %v1632 = vsel %vm1631, %v1600, %v1564
  %v1633 = vsel %vm1631, %v1602, %v1565
  %v1634 = vsel %vm1631, %v1604, %v1566
  %v1635 = vsel %vm1631, %v1606, %v1567
  %v1636 = vsel %vm1631, %v1608, %v1568
  %v1637 = vsel %vm1631, %v1610, %v1569
  %v1638 = vsel %vm1631, %v1612, %v1570
  %v1639 = vsel %vm1631, %v1614, %v1571
  %v1640 = vsel %vm1631, %v1616, %v1572
  %v1641 = vsel %vm1631, %v1618, %v1573
  %v1642 = vsel %vm1631, %v1620, %v1574
  %v1643 = vsel %vm1631, %v1622, %v1575
  %v1644 = vsel %vm1631, %v1624, %v1576
  %v1645 = vsel %vm1631, %v1626, %v1577
  %v1646 = vsel %vm1631, %v1628, %v1578
  %v1647 = vsel %vm1631, %v1630, %v1579
  %v1648 = vperm.slane %v1581, 3
  %v1649 = vadd.f32 %v358, %v1648
  %v1650 = vadd.f32 %v359, %v1648
  %v1651 = vadd.f32 %v360, %v1648
  %v1652 = vadd.f32 %v361, %v1648
  %v1653 = vadd.f32 %v362, %v1648
  %v1654 = vadd.f32 %v363, %v1648
  %v1655 = vadd.f32 %v364, %v1648
  %v1656 = vadd.f32 %v365, %v1648
  %v1657 = vadd.f32 %v366, %v1648
  %v1658 = vadd.f32 %v367, %v1648
  %v1659 = vadd.f32 %v368, %v1648
  %v1660 = vadd.f32 %v369, %v1648
  %v1661 = vadd.f32 %v370, %v1648
  %v1662 = vadd.f32 %v371, %v1648
  %v1663 = vadd.f32 %v372, %v1648
  %v1664 = vadd.f32 %v373, %v1648
  %1665 = vmax.xlane.f32.xlu0 %v1649
  %v1666 = vpop.xlane.xlu0 %1665
  %1667 = vmax.xlane.f32.xlu0 %v1650
  %v1668 = vpop.xlane.xlu0 %1667
  %1669 = vmax.xlane.f32.xlu0 %v1651
  %v1670 = vpop.xlane.xlu0 %1669
  %1671 = vmax.xlane.f32.xlu0 %v1652
  %v1672 = vpop.xlane.xlu0 %1671
  %1673 = vmax.xlane.f32.xlu0 %v1653
  %v1674 = vpop.xlane.xlu0 %1673
  %1675 = vmax.xlane.f32.xlu0 %v1654
  %v1676 = vpop.xlane.xlu0 %1675
  %1677 = vmax.xlane.f32.xlu0 %v1655
  %v1678 = vpop.xlane.xlu0 %1677
  %1679 = vmax.xlane.f32.xlu0 %v1656
  %v1680 = vpop.xlane.xlu0 %1679
  %1681 = vmax.xlane.f32.xlu0 %v1657
  %v1682 = vpop.xlane.xlu0 %1681
  %1683 = vmax.xlane.f32.xlu0 %v1658
  %v1684 = vpop.xlane.xlu0 %1683
  %1685 = vmax.xlane.f32.xlu0 %v1659
  %v1686 = vpop.xlane.xlu0 %1685
  %1687 = vmax.xlane.f32.xlu0 %v1660
  %v1688 = vpop.xlane.xlu0 %1687
  %1689 = vmax.xlane.f32.xlu0 %v1661
  %v1690 = vpop.xlane.xlu0 %1689
  %1691 = vmax.xlane.f32.xlu0 %v1662
  %v1692 = vpop.xlane.xlu0 %1691
  %1693 = vmax.xlane.f32.xlu0 %v1663
  %v1694 = vpop.xlane.xlu0 %1693
  %1695 = vmax.xlane.f32.xlu0 %v1664
  %v1696 = vpop.xlane.xlu0 %1695
  %vm1697 = vcmp.eq.s32.totalorder %v66, 19
  %v1698 = vsel %vm1697, %v1666, %v1632
  %v1699 = vsel %vm1697, %v1668, %v1633
  %v1700 = vsel %vm1697, %v1670, %v1634
  %v1701 = vsel %vm1697, %v1672, %v1635
  %v1702 = vsel %vm1697, %v1674, %v1636
  %v1703 = vsel %vm1697, %v1676, %v1637
  %v1704 = vsel %vm1697, %v1678, %v1638
  %v1705 = vsel %vm1697, %v1680, %v1639
  %v1706 = vsel %vm1697, %v1682, %v1640
  %v1707 = vsel %vm1697, %v1684, %v1641
  %v1708 = vsel %vm1697, %v1686, %v1642
  %v1709 = vsel %vm1697, %v1688, %v1643
  %v1710 = vsel %vm1697, %v1690, %v1644
  %v1711 = vsel %vm1697, %v1692, %v1645
  %v1712 = vsel %vm1697, %v1694, %v1646
  %v1713 = vsel %vm1697, %v1696, %v1647
  %v1714 = vld [vmem:[%s3 + $0x8] sm:$0x4]
  %v1715 = vunpack.c.l.bf16 %v1714
  %v1716 = vperm.slane %v1715, 4
  %v1717 = vadd.f32 %v358, %v1716
  %v1718 = vadd.f32 %v359, %v1716
  %v1719 = vadd.f32 %v360, %v1716
  %v1720 = vadd.f32 %v361, %v1716
  %v1721 = vadd.f32 %v362, %v1716
  %v1722 = vadd.f32 %v363, %v1716
  %v1723 = vadd.f32 %v364, %v1716
  %v1724 = vadd.f32 %v365, %v1716
  %v1725 = vadd.f32 %v366, %v1716
  %v1726 = vadd.f32 %v367, %v1716
  %v1727 = vadd.f32 %v368, %v1716
  %v1728 = vadd.f32 %v369, %v1716
  %v1729 = vadd.f32 %v370, %v1716
  %v1730 = vadd.f32 %v371, %v1716
  %v1731 = vadd.f32 %v372, %v1716
  %v1732 = vadd.f32 %v373, %v1716
  %1733 = vmax.xlane.f32.xlu0 %v1717
  %v1734 = vpop.xlane.xlu0 %1733
  %1735 = vmax.xlane.f32.xlu0 %v1718
  %v1736 = vpop.xlane.xlu0 %1735
  %1737 = vmax.xlane.f32.xlu0 %v1719
  %v1738 = vpop.xlane.xlu0 %1737
  %1739 = vmax.xlane.f32.xlu0 %v1720
  %v1740 = vpop.xlane.xlu0 %1739
  %1741 = vmax.xlane.f32.xlu0 %v1721
  %v1742 = vpop.xlane.xlu0 %1741
  %1743 = vmax.xlane.f32.xlu0 %v1722
  %v1744 = vpop.xlane.xlu0 %1743
  %1745 = vmax.xlane.f32.xlu0 %v1723
  %v1746 = vpop.xlane.xlu0 %1745
  %1747 = vmax.xlane.f32.xlu0 %v1724
  %v1748 = vpop.xlane.xlu0 %1747
  %1749 = vmax.xlane.f32.xlu0 %v1725
  %v1750 = vpop.xlane.xlu0 %1749
  %1751 = vmax.xlane.f32.xlu0 %v1726
  %v1752 = vpop.xlane.xlu0 %1751
  %1753 = vmax.xlane.f32.xlu0 %v1727
  %v1754 = vpop.xlane.xlu0 %1753
  %1755 = vmax.xlane.f32.xlu0 %v1728
  %v1756 = vpop.xlane.xlu0 %1755
  %1757 = vmax.xlane.f32.xlu0 %v1729
  %v1758 = vpop.xlane.xlu0 %1757
  %1759 = vmax.xlane.f32.xlu0 %v1730
  %v1760 = vpop.xlane.xlu0 %1759
  %1761 = vmax.xlane.f32.xlu0 %v1731
  %v1762 = vpop.xlane.xlu0 %1761
  %1763 = vmax.xlane.f32.xlu0 %v1732
  %v1764 = vpop.xlane.xlu0 %1763
  %vm1765 = vcmp.eq.s32.totalorder %v66, 20
  %v1766 = vsel %vm1765, %v1734, %v1698
  %v1767 = vsel %vm1765, %v1736, %v1699
  %v1768 = vsel %vm1765, %v1738, %v1700
  %v1769 = vsel %vm1765, %v1740, %v1701
  %v1770 = vsel %vm1765, %v1742, %v1702
  %v1771 = vsel %vm1765, %v1744, %v1703
  %v1772 = vsel %vm1765, %v1746, %v1704
  %v1773 = vsel %vm1765, %v1748, %v1705
  %v1774 = vsel %vm1765, %v1750, %v1706
  %v1775 = vsel %vm1765, %v1752, %v1707
  %v1776 = vsel %vm1765, %v1754, %v1708
  %v1777 = vsel %vm1765, %v1756, %v1709
  %v1778 = vsel %vm1765, %v1758, %v1710
  %v1779 = vsel %vm1765, %v1760, %v1711
  %v1780 = vsel %vm1765, %v1762, %v1712
  %v1781 = vsel %vm1765, %v1764, %v1713
  %v1782 = vperm.slane %v1715, 5
  %v1783 = vadd.f32 %v358, %v1782
  %v1784 = vadd.f32 %v359, %v1782
  %v1785 = vadd.f32 %v360, %v1782
  %v1786 = vadd.f32 %v361, %v1782
  %v1787 = vadd.f32 %v362, %v1782
  %v1788 = vadd.f32 %v363, %v1782
  %v1789 = vadd.f32 %v364, %v1782
  %v1790 = vadd.f32 %v365, %v1782
  %v1791 = vadd.f32 %v366, %v1782
  %v1792 = vadd.f32 %v367, %v1782
  %v1793 = vadd.f32 %v368, %v1782
  %v1794 = vadd.f32 %v369, %v1782
  %v1795 = vadd.f32 %v370, %v1782
  %v1796 = vadd.f32 %v371, %v1782
  %v1797 = vadd.f32 %v372, %v1782
  %v1798 = vadd.f32 %v373, %v1782
  %1799 = vmax.xlane.f32.xlu0 %v1783
  %v1800 = vpop.xlane.xlu0 %1799
  %1801 = vmax.xlane.f32.xlu0 %v1784
  %v1802 = vpop.xlane.xlu0 %1801
  %1803 = vmax.xlane.f32.xlu0 %v1785
  %v1804 = vpop.xlane.xlu0 %1803
  %1805 = vmax.xlane.f32.xlu0 %v1786
  %v1806 = vpop.xlane.xlu0 %1805
  %1807 = vmax.xlane.f32.xlu0 %v1787
  %v1808 = vpop.xlane.xlu0 %1807
  %1809 = vmax.xlane.f32.xlu0 %v1788
  %v1810 = vpop.xlane.xlu0 %1809
  %1811 = vmax.xlane.f32.xlu0 %v1789
  %v1812 = vpop.xlane.xlu0 %1811
  %1813 = vmax.xlane.f32.xlu0 %v1790
  %v1814 = vpop.xlane.xlu0 %1813
  %1815 = vmax.xlane.f32.xlu0 %v1791
  %v1816 = vpop.xlane.xlu0 %1815
  %1817 = vmax.xlane.f32.xlu0 %v1792
  %v1818 = vpop.xlane.xlu0 %1817
  %1819 = vmax.xlane.f32.xlu0 %v1793
  %v1820 = vpop.xlane.xlu0 %1819
  %1821 = vmax.xlane.f32.xlu0 %v1794
  %v1822 = vpop.xlane.xlu0 %1821
  %1823 = vmax.xlane.f32.xlu0 %v1795
  %v1824 = vpop.xlane.xlu0 %1823
  %1825 = vmax.xlane.f32.xlu0 %v1796
  %v1826 = vpop.xlane.xlu0 %1825
  %1827 = vmax.xlane.f32.xlu0 %v1797
  %v1828 = vpop.xlane.xlu0 %1827
  %1829 = vmax.xlane.f32.xlu0 %v1798
  %v1830 = vpop.xlane.xlu0 %1829
  %vm1831 = vcmp.eq.s32.totalorder %v66, 21
  %v1832 = vsel %vm1831, %v1800, %v1766
  %v1833 = vsel %vm1831, %v1802, %v1767
  %v1834 = vsel %vm1831, %v1804, %v1768
  %v1835 = vsel %vm1831, %v1806, %v1769
  %v1836 = vsel %vm1831, %v1808, %v1770
  %v1837 = vsel %vm1831, %v1810, %v1771
  %v1838 = vsel %vm1831, %v1812, %v1772
  %v1839 = vsel %vm1831, %v1814, %v1773
  %v1840 = vsel %vm1831, %v1816, %v1774
  %v1841 = vsel %vm1831, %v1818, %v1775
  %v1842 = vsel %vm1831, %v1820, %v1776
  %v1843 = vsel %vm1831, %v1822, %v1777
  %v1844 = vsel %vm1831, %v1824, %v1778
  %v1845 = vsel %vm1831, %v1826, %v1779
  %v1846 = vsel %vm1831, %v1828, %v1780
  %v1847 = vsel %vm1831, %v1830, %v1781
  %v1848 = vld [vmem:[%s3 + $0x8] sm:$0x8]
  %v1849 = vunpack.c.l.bf16 %v1848
  %v1850 = vperm.slane %v1849, 6
  %v1851 = vadd.f32 %v358, %v1850
  %v1852 = vadd.f32 %v359, %v1850
  %v1853 = vadd.f32 %v360, %v1850
  %v1854 = vadd.f32 %v361, %v1850
  %v1855 = vadd.f32 %v362, %v1850
  %v1856 = vadd.f32 %v363, %v1850
  %v1857 = vadd.f32 %v364, %v1850
  %v1858 = vadd.f32 %v365, %v1850
  %v1859 = vadd.f32 %v366, %v1850
  %v1860 = vadd.f32 %v367, %v1850
  %v1861 = vadd.f32 %v368, %v1850
  %v1862 = vadd.f32 %v369, %v1850
  %v1863 = vadd.f32 %v370, %v1850
  %v1864 = vadd.f32 %v371, %v1850
  %v1865 = vadd.f32 %v372, %v1850
  %v1866 = vadd.f32 %v373, %v1850
  %1867 = vmax.xlane.f32.xlu0 %v1851
  %v1868 = vpop.xlane.xlu0 %1867
  %1869 = vmax.xlane.f32.xlu0 %v1852
  %v1870 = vpop.xlane.xlu0 %1869
  %1871 = vmax.xlane.f32.xlu0 %v1853
  %v1872 = vpop.xlane.xlu0 %1871
  %1873 = vmax.xlane.f32.xlu0 %v1854
  %v1874 = vpop.xlane.xlu0 %1873
  %1875 = vmax.xlane.f32.xlu0 %v1855
  %v1876 = vpop.xlane.xlu0 %1875
  %1877 = vmax.xlane.f32.xlu0 %v1856
  %v1878 = vpop.xlane.xlu0 %1877
  %1879 = vmax.xlane.f32.xlu0 %v1857
  %v1880 = vpop.xlane.xlu0 %1879
  %1881 = vmax.xlane.f32.xlu0 %v1858
  %v1882 = vpop.xlane.xlu0 %1881
  %1883 = vmax.xlane.f32.xlu0 %v1859
  %v1884 = vpop.xlane.xlu0 %1883
  %1885 = vmax.xlane.f32.xlu0 %v1860
  %v1886 = vpop.xlane.xlu0 %1885
  %1887 = vmax.xlane.f32.xlu0 %v1861
  %v1888 = vpop.xlane.xlu0 %1887
  %1889 = vmax.xlane.f32.xlu0 %v1862
  %v1890 = vpop.xlane.xlu0 %1889
  %1891 = vmax.xlane.f32.xlu0 %v1863
  %v1892 = vpop.xlane.xlu0 %1891
  %1893 = vmax.xlane.f32.xlu0 %v1864
  %v1894 = vpop.xlane.xlu0 %1893
  %1895 = vmax.xlane.f32.xlu0 %v1865
  %v1896 = vpop.xlane.xlu0 %1895
  %1897 = vmax.xlane.f32.xlu0 %v1866
  %v1898 = vpop.xlane.xlu0 %1897
  %vm1899 = vcmp.eq.s32.totalorder %v66, 22
  %v1900 = vsel %vm1899, %v1868, %v1832
  %v1901 = vsel %vm1899, %v1870, %v1833
  %v1902 = vsel %vm1899, %v1872, %v1834
  %v1903 = vsel %vm1899, %v1874, %v1835
  %v1904 = vsel %vm1899, %v1876, %v1836
  %v1905 = vsel %vm1899, %v1878, %v1837
  %v1906 = vsel %vm1899, %v1880, %v1838
  %v1907 = vsel %vm1899, %v1882, %v1839
  %v1908 = vsel %vm1899, %v1884, %v1840
  %v1909 = vsel %vm1899, %v1886, %v1841
  %v1910 = vsel %vm1899, %v1888, %v1842
  %v1911 = vsel %vm1899, %v1890, %v1843
  %v1912 = vsel %vm1899, %v1892, %v1844
  %v1913 = vsel %vm1899, %v1894, %v1845
  %v1914 = vsel %vm1899, %v1896, %v1846
  %v1915 = vsel %vm1899, %v1898, %v1847
  %v1916 = vperm.slane %v1849, 7
  %v1917 = vadd.f32 %v358, %v1916
  %v1918 = vadd.f32 %v359, %v1916
  %v1919 = vadd.f32 %v360, %v1916
  %v1920 = vadd.f32 %v361, %v1916
  %v1921 = vadd.f32 %v362, %v1916
  %v1922 = vadd.f32 %v363, %v1916
  %v1923 = vadd.f32 %v364, %v1916
  %v1924 = vadd.f32 %v365, %v1916
  %v1925 = vadd.f32 %v366, %v1916
  %v1926 = vadd.f32 %v367, %v1916
  %v1927 = vadd.f32 %v368, %v1916
  %v1928 = vadd.f32 %v369, %v1916
  %v1929 = vadd.f32 %v370, %v1916
  %v1930 = vadd.f32 %v371, %v1916
  %v1931 = vadd.f32 %v372, %v1916
  %v1932 = vadd.f32 %v373, %v1916
  %1933 = vmax.xlane.f32.xlu0 %v1917
  %v1934 = vpop.xlane.xlu0 %1933
  %1935 = vmax.xlane.f32.xlu0 %v1918
  %v1936 = vpop.xlane.xlu0 %1935
  %1937 = vmax.xlane.f32.xlu0 %v1919
  %v1938 = vpop.xlane.xlu0 %1937
  %1939 = vmax.xlane.f32.xlu0 %v1920
  %v1940 = vpop.xlane.xlu0 %1939
  %1941 = vmax.xlane.f32.xlu0 %v1921
  %v1942 = vpop.xlane.xlu0 %1941
  %1943 = vmax.xlane.f32.xlu0 %v1922
  %v1944 = vpop.xlane.xlu0 %1943
  %1945 = vmax.xlane.f32.xlu0 %v1923
  %v1946 = vpop.xlane.xlu0 %1945
  %1947 = vmax.xlane.f32.xlu0 %v1924
  %v1948 = vpop.xlane.xlu0 %1947
  %1949 = vmax.xlane.f32.xlu0 %v1925
  %v1950 = vpop.xlane.xlu0 %1949
  %1951 = vmax.xlane.f32.xlu0 %v1926
  %v1952 = vpop.xlane.xlu0 %1951
  %1953 = vmax.xlane.f32.xlu0 %v1927
  %v1954 = vpop.xlane.xlu0 %1953
  %1955 = vmax.xlane.f32.xlu0 %v1928
  %v1956 = vpop.xlane.xlu0 %1955
  %1957 = vmax.xlane.f32.xlu0 %v1929
  %v1958 = vpop.xlane.xlu0 %1957
  %1959 = vmax.xlane.f32.xlu0 %v1930
  %v1960 = vpop.xlane.xlu0 %1959
  %1961 = vmax.xlane.f32.xlu0 %v1931
  %v1962 = vpop.xlane.xlu0 %1961
  %1963 = vmax.xlane.f32.xlu0 %v1932
  %v1964 = vpop.xlane.xlu0 %1963
  %vm1965 = vcmp.eq.s32.totalorder %v66, 23
  %v1966 = vsel %vm1965, %v1934, %v1900
  %v1967 = vsel %vm1965, %v1936, %v1901
  %v1968 = vsel %vm1965, %v1938, %v1902
  %v1969 = vsel %vm1965, %v1940, %v1903
  %v1970 = vsel %vm1965, %v1942, %v1904
  %v1971 = vsel %vm1965, %v1944, %v1905
  %v1972 = vsel %vm1965, %v1946, %v1906
  %v1973 = vsel %vm1965, %v1948, %v1907
  %v1974 = vsel %vm1965, %v1950, %v1908
  %v1975 = vsel %vm1965, %v1952, %v1909
  %v1976 = vsel %vm1965, %v1954, %v1910
  %v1977 = vsel %vm1965, %v1956, %v1911
  %v1978 = vsel %vm1965, %v1958, %v1912
  %v1979 = vsel %vm1965, %v1960, %v1913
  %v1980 = vsel %vm1965, %v1962, %v1914
  %v1981 = vsel %vm1965, %v1964, %v1915
  %v1982 = vld [vmem:[%s3 + $0xc] sm:$0x1]
  %v1983 = vunpack.c.l.bf16 %v1982
  %v1984 = vperm.slane %v1983, 0
  %v1985 = vadd.f32 %v358, %v1984
  %v1986 = vadd.f32 %v359, %v1984
  %v1987 = vadd.f32 %v360, %v1984
  %v1988 = vadd.f32 %v361, %v1984
  %v1989 = vadd.f32 %v362, %v1984
  %v1990 = vadd.f32 %v363, %v1984
  %v1991 = vadd.f32 %v364, %v1984
  %v1992 = vadd.f32 %v365, %v1984
  %v1993 = vadd.f32 %v366, %v1984
  %v1994 = vadd.f32 %v367, %v1984
  %v1995 = vadd.f32 %v368, %v1984
  %v1996 = vadd.f32 %v369, %v1984
  %v1997 = vadd.f32 %v370, %v1984
  %v1998 = vadd.f32 %v371, %v1984
  %v1999 = vadd.f32 %v372, %v1984
  %v2000 = vadd.f32 %v373, %v1984
  %2001 = vmax.xlane.f32.xlu0 %v1985
  %v2002 = vpop.xlane.xlu0 %2001
  %2003 = vmax.xlane.f32.xlu0 %v1986
  %v2004 = vpop.xlane.xlu0 %2003
  %2005 = vmax.xlane.f32.xlu0 %v1987
  %v2006 = vpop.xlane.xlu0 %2005
  %2007 = vmax.xlane.f32.xlu0 %v1988
  %v2008 = vpop.xlane.xlu0 %2007
  %2009 = vmax.xlane.f32.xlu0 %v1989
  %v2010 = vpop.xlane.xlu0 %2009
  %2011 = vmax.xlane.f32.xlu0 %v1990
  %v2012 = vpop.xlane.xlu0 %2011
  %2013 = vmax.xlane.f32.xlu0 %v1991
  %v2014 = vpop.xlane.xlu0 %2013
  %2015 = vmax.xlane.f32.xlu0 %v1992
  %v2016 = vpop.xlane.xlu0 %2015
  %2017 = vmax.xlane.f32.xlu0 %v1993
  %v2018 = vpop.xlane.xlu0 %2017
  %2019 = vmax.xlane.f32.xlu0 %v1994
  %v2020 = vpop.xlane.xlu0 %2019
  %2021 = vmax.xlane.f32.xlu0 %v1995
  %v2022 = vpop.xlane.xlu0 %2021
  %2023 = vmax.xlane.f32.xlu0 %v1996
  %v2024 = vpop.xlane.xlu0 %2023
  %2025 = vmax.xlane.f32.xlu0 %v1997
  %v2026 = vpop.xlane.xlu0 %2025
  %2027 = vmax.xlane.f32.xlu0 %v1998
  %v2028 = vpop.xlane.xlu0 %2027
  %2029 = vmax.xlane.f32.xlu0 %v1999
  %v2030 = vpop.xlane.xlu0 %2029
  %2031 = vmax.xlane.f32.xlu0 %v2000
  %v2032 = vpop.xlane.xlu0 %2031
  %vm2033 = vcmp.eq.s32.totalorder %v66, 24
  %v2034 = vsel %vm2033, %v2002, %v1966
  %v2035 = vsel %vm2033, %v2004, %v1967
  %v2036 = vsel %vm2033, %v2006, %v1968
  %v2037 = vsel %vm2033, %v2008, %v1969
  %v2038 = vsel %vm2033, %v2010, %v1970
  %v2039 = vsel %vm2033, %v2012, %v1971
  %v2040 = vsel %vm2033, %v2014, %v1972
  %v2041 = vsel %vm2033, %v2016, %v1973
  %v2042 = vsel %vm2033, %v2018, %v1974
  %v2043 = vsel %vm2033, %v2020, %v1975
  %v2044 = vsel %vm2033, %v2022, %v1976
  %v2045 = vsel %vm2033, %v2024, %v1977
  %v2046 = vsel %vm2033, %v2026, %v1978
  %v2047 = vsel %vm2033, %v2028, %v1979
  %v2048 = vsel %vm2033, %v2030, %v1980
  %v2049 = vsel %vm2033, %v2032, %v1981
  %v2050 = vperm.slane %v1983, 1
  %v2051 = vadd.f32 %v358, %v2050
  %v2052 = vadd.f32 %v359, %v2050
  %v2053 = vadd.f32 %v360, %v2050
  %v2054 = vadd.f32 %v361, %v2050
  %v2055 = vadd.f32 %v362, %v2050
  %v2056 = vadd.f32 %v363, %v2050
  %v2057 = vadd.f32 %v364, %v2050
  %v2058 = vadd.f32 %v365, %v2050
  %v2059 = vadd.f32 %v366, %v2050
  %v2060 = vadd.f32 %v367, %v2050
  %v2061 = vadd.f32 %v368, %v2050
  %v2062 = vadd.f32 %v369, %v2050
  %v2063 = vadd.f32 %v370, %v2050
  %v2064 = vadd.f32 %v371, %v2050
  %v2065 = vadd.f32 %v372, %v2050
  %v2066 = vadd.f32 %v373, %v2050
  %2067 = vmax.xlane.f32.xlu0 %v2051
  %v2068 = vpop.xlane.xlu0 %2067
  %2069 = vmax.xlane.f32.xlu0 %v2052
  %v2070 = vpop.xlane.xlu0 %2069
  %2071 = vmax.xlane.f32.xlu0 %v2053
  %v2072 = vpop.xlane.xlu0 %2071
  %2073 = vmax.xlane.f32.xlu0 %v2054
  %v2074 = vpop.xlane.xlu0 %2073
  %2075 = vmax.xlane.f32.xlu0 %v2055
  %v2076 = vpop.xlane.xlu0 %2075
  %2077 = vmax.xlane.f32.xlu0 %v2056
  %v2078 = vpop.xlane.xlu0 %2077
  %2079 = vmax.xlane.f32.xlu0 %v2057
  %v2080 = vpop.xlane.xlu0 %2079
  %2081 = vmax.xlane.f32.xlu0 %v2058
  %v2082 = vpop.xlane.xlu0 %2081
  %2083 = vmax.xlane.f32.xlu0 %v2059
  %v2084 = vpop.xlane.xlu0 %2083
  %2085 = vmax.xlane.f32.xlu0 %v2060
  %v2086 = vpop.xlane.xlu0 %2085
  %2087 = vmax.xlane.f32.xlu0 %v2061
  %v2088 = vpop.xlane.xlu0 %2087
  %2089 = vmax.xlane.f32.xlu0 %v2062
  %v2090 = vpop.xlane.xlu0 %2089
  %2091 = vmax.xlane.f32.xlu0 %v2063
  %v2092 = vpop.xlane.xlu0 %2091
  %2093 = vmax.xlane.f32.xlu0 %v2064
  %v2094 = vpop.xlane.xlu0 %2093
  %2095 = vmax.xlane.f32.xlu0 %v2065
  %v2096 = vpop.xlane.xlu0 %2095
  %2097 = vmax.xlane.f32.xlu0 %v2066
  %v2098 = vpop.xlane.xlu0 %2097
  %vm2099 = vcmp.eq.s32.totalorder %v66, 25
  %v2100 = vsel %vm2099, %v2068, %v2034
  %v2101 = vsel %vm2099, %v2070, %v2035
  %v2102 = vsel %vm2099, %v2072, %v2036
  %v2103 = vsel %vm2099, %v2074, %v2037
  %v2104 = vsel %vm2099, %v2076, %v2038
  %v2105 = vsel %vm2099, %v2078, %v2039
  %v2106 = vsel %vm2099, %v2080, %v2040
  %v2107 = vsel %vm2099, %v2082, %v2041
  %v2108 = vsel %vm2099, %v2084, %v2042
  %v2109 = vsel %vm2099, %v2086, %v2043
  %v2110 = vsel %vm2099, %v2088, %v2044
  %v2111 = vsel %vm2099, %v2090, %v2045
  %v2112 = vsel %vm2099, %v2092, %v2046
  %v2113 = vsel %vm2099, %v2094, %v2047
  %v2114 = vsel %vm2099, %v2096, %v2048
  %v2115 = vsel %vm2099, %v2098, %v2049
  %v2116 = vld [vmem:[%s3 + $0xc] sm:$0x2]
  %v2117 = vunpack.c.l.bf16 %v2116
  %v2118 = vperm.slane %v2117, 2
  %v2119 = vadd.f32 %v358, %v2118
  %v2120 = vadd.f32 %v359, %v2118
  %v2121 = vadd.f32 %v360, %v2118
  %v2122 = vadd.f32 %v361, %v2118
  %v2123 = vadd.f32 %v362, %v2118
  %v2124 = vadd.f32 %v363, %v2118
  %v2125 = vadd.f32 %v364, %v2118
  %v2126 = vadd.f32 %v365, %v2118
  %v2127 = vadd.f32 %v366, %v2118
  %v2128 = vadd.f32 %v367, %v2118
  %v2129 = vadd.f32 %v368, %v2118
  %v2130 = vadd.f32 %v369, %v2118
  %v2131 = vadd.f32 %v370, %v2118
  %v2132 = vadd.f32 %v371, %v2118
  %v2133 = vadd.f32 %v372, %v2118
  %v2134 = vadd.f32 %v373, %v2118
  %2135 = vmax.xlane.f32.xlu0 %v2119
  %v2136 = vpop.xlane.xlu0 %2135
  %2137 = vmax.xlane.f32.xlu0 %v2120
  %v2138 = vpop.xlane.xlu0 %2137
  %2139 = vmax.xlane.f32.xlu0 %v2121
  %v2140 = vpop.xlane.xlu0 %2139
  %2141 = vmax.xlane.f32.xlu0 %v2122
  %v2142 = vpop.xlane.xlu0 %2141
  %2143 = vmax.xlane.f32.xlu0 %v2123
  %v2144 = vpop.xlane.xlu0 %2143
  %2145 = vmax.xlane.f32.xlu0 %v2124
  %v2146 = vpop.xlane.xlu0 %2145
  %2147 = vmax.xlane.f32.xlu0 %v2125
  %v2148 = vpop.xlane.xlu0 %2147
  %2149 = vmax.xlane.f32.xlu0 %v2126
  %v2150 = vpop.xlane.xlu0 %2149
  %2151 = vmax.xlane.f32.xlu0 %v2127
  %v2152 = vpop.xlane.xlu0 %2151
  %2153 = vmax.xlane.f32.xlu0 %v2128
  %v2154 = vpop.xlane.xlu0 %2153
  %2155 = vmax.xlane.f32.xlu0 %v2129
  %v2156 = vpop.xlane.xlu0 %2155
  %2157 = vmax.xlane.f32.xlu0 %v2130
  %v2158 = vpop.xlane.xlu0 %2157
  %2159 = vmax.xlane.f32.xlu0 %v2131
  %v2160 = vpop.xlane.xlu0 %2159
  %2161 = vmax.xlane.f32.xlu0 %v2132
  %v2162 = vpop.xlane.xlu0 %2161
  %2163 = vmax.xlane.f32.xlu0 %v2133
  %v2164 = vpop.xlane.xlu0 %2163
  %2165 = vmax.xlane.f32.xlu0 %v2134
  %v2166 = vpop.xlane.xlu0 %2165
  %vm2167 = vcmp.eq.s32.totalorder %v66, 26
  %v2168 = vsel %vm2167, %v2136, %v2100
  %v2169 = vsel %vm2167, %v2138, %v2101
  %v2170 = vsel %vm2167, %v2140, %v2102
  %v2171 = vsel %vm2167, %v2142, %v2103
  %v2172 = vsel %vm2167, %v2144, %v2104
  %v2173 = vsel %vm2167, %v2146, %v2105
  %v2174 = vsel %vm2167, %v2148, %v2106
  %v2175 = vsel %vm2167, %v2150, %v2107
  %v2176 = vsel %vm2167, %v2152, %v2108
  %v2177 = vsel %vm2167, %v2154, %v2109
  %v2178 = vsel %vm2167, %v2156, %v2110
  %v2179 = vsel %vm2167, %v2158, %v2111
  %v2180 = vsel %vm2167, %v2160, %v2112
  %v2181 = vsel %vm2167, %v2162, %v2113
  %v2182 = vsel %vm2167, %v2164, %v2114
  %v2183 = vsel %vm2167, %v2166, %v2115
  %v2184 = vperm.slane %v2117, 3
  %v2185 = vadd.f32 %v358, %v2184
  %v2186 = vadd.f32 %v359, %v2184
  %v2187 = vadd.f32 %v360, %v2184
  %v2188 = vadd.f32 %v361, %v2184
  %v2189 = vadd.f32 %v362, %v2184
  %v2190 = vadd.f32 %v363, %v2184
  %v2191 = vadd.f32 %v364, %v2184
  %v2192 = vadd.f32 %v365, %v2184
  %v2193 = vadd.f32 %v366, %v2184
  %v2194 = vadd.f32 %v367, %v2184
  %v2195 = vadd.f32 %v368, %v2184
  %v2196 = vadd.f32 %v369, %v2184
  %v2197 = vadd.f32 %v370, %v2184
  %v2198 = vadd.f32 %v371, %v2184
  %v2199 = vadd.f32 %v372, %v2184
  %v2200 = vadd.f32 %v373, %v2184
  %2201 = vmax.xlane.f32.xlu0 %v2185
  %v2202 = vpop.xlane.xlu0 %2201
  %2203 = vmax.xlane.f32.xlu0 %v2186
  %v2204 = vpop.xlane.xlu0 %2203
  %2205 = vmax.xlane.f32.xlu0 %v2187
  %v2206 = vpop.xlane.xlu0 %2205
  %2207 = vmax.xlane.f32.xlu0 %v2188
  %v2208 = vpop.xlane.xlu0 %2207
  %2209 = vmax.xlane.f32.xlu0 %v2189
  %v2210 = vpop.xlane.xlu0 %2209
  %2211 = vmax.xlane.f32.xlu0 %v2190
  %v2212 = vpop.xlane.xlu0 %2211
  %2213 = vmax.xlane.f32.xlu0 %v2191
  %v2214 = vpop.xlane.xlu0 %2213
  %2215 = vmax.xlane.f32.xlu0 %v2192
  %v2216 = vpop.xlane.xlu0 %2215
  %2217 = vmax.xlane.f32.xlu0 %v2193
  %v2218 = vpop.xlane.xlu0 %2217
  %2219 = vmax.xlane.f32.xlu0 %v2194
  %v2220 = vpop.xlane.xlu0 %2219
  %2221 = vmax.xlane.f32.xlu0 %v2195
  %v2222 = vpop.xlane.xlu0 %2221
  %2223 = vmax.xlane.f32.xlu0 %v2196
  %v2224 = vpop.xlane.xlu0 %2223
  %2225 = vmax.xlane.f32.xlu0 %v2197
  %v2226 = vpop.xlane.xlu0 %2225
  %2227 = vmax.xlane.f32.xlu0 %v2198
  %v2228 = vpop.xlane.xlu0 %2227
  %2229 = vmax.xlane.f32.xlu0 %v2199
  %v2230 = vpop.xlane.xlu0 %2229
  %2231 = vmax.xlane.f32.xlu0 %v2200
  %v2232 = vpop.xlane.xlu0 %2231
  %vm2233 = vcmp.eq.s32.totalorder %v66, 27
  %v2234 = vsel %vm2233, %v2202, %v2168
  %v2235 = vsel %vm2233, %v2204, %v2169
  %v2236 = vsel %vm2233, %v2206, %v2170
  %v2237 = vsel %vm2233, %v2208, %v2171
  %v2238 = vsel %vm2233, %v2210, %v2172
  %v2239 = vsel %vm2233, %v2212, %v2173
  %v2240 = vsel %vm2233, %v2214, %v2174
  %v2241 = vsel %vm2233, %v2216, %v2175
  %v2242 = vsel %vm2233, %v2218, %v2176
  %v2243 = vsel %vm2233, %v2220, %v2177
  %v2244 = vsel %vm2233, %v2222, %v2178
  %v2245 = vsel %vm2233, %v2224, %v2179
  %v2246 = vsel %vm2233, %v2226, %v2180
  %v2247 = vsel %vm2233, %v2228, %v2181
  %v2248 = vsel %vm2233, %v2230, %v2182
  %v2249 = vsel %vm2233, %v2232, %v2183
  %v2250 = vld [vmem:[%s3 + $0xc] sm:$0x4]
  %v2251 = vunpack.c.l.bf16 %v2250
  %v2252 = vperm.slane %v2251, 4
  %v2253 = vadd.f32 %v358, %v2252
  %v2254 = vadd.f32 %v359, %v2252
  %v2255 = vadd.f32 %v360, %v2252
  %v2256 = vadd.f32 %v361, %v2252
  %v2257 = vadd.f32 %v362, %v2252
  %v2258 = vadd.f32 %v363, %v2252
  %v2259 = vadd.f32 %v364, %v2252
  %v2260 = vadd.f32 %v365, %v2252
  %v2261 = vadd.f32 %v366, %v2252
  %v2262 = vadd.f32 %v367, %v2252
  %v2263 = vadd.f32 %v368, %v2252
  %v2264 = vadd.f32 %v369, %v2252
  %v2265 = vadd.f32 %v370, %v2252
  %v2266 = vadd.f32 %v371, %v2252
  %v2267 = vadd.f32 %v372, %v2252
  %v2268 = vadd.f32 %v373, %v2252
  %2269 = vmax.xlane.f32.xlu0 %v2253
  %v2270 = vpop.xlane.xlu0 %2269
  %2271 = vmax.xlane.f32.xlu0 %v2254
  %v2272 = vpop.xlane.xlu0 %2271
  %2273 = vmax.xlane.f32.xlu0 %v2255
  %v2274 = vpop.xlane.xlu0 %2273
  %2275 = vmax.xlane.f32.xlu0 %v2256
  %v2276 = vpop.xlane.xlu0 %2275
  %2277 = vmax.xlane.f32.xlu0 %v2257
  %v2278 = vpop.xlane.xlu0 %2277
  %2279 = vmax.xlane.f32.xlu0 %v2258
  %v2280 = vpop.xlane.xlu0 %2279
  %2281 = vmax.xlane.f32.xlu0 %v2259
  %v2282 = vpop.xlane.xlu0 %2281
  %2283 = vmax.xlane.f32.xlu0 %v2260
  %v2284 = vpop.xlane.xlu0 %2283
  %2285 = vmax.xlane.f32.xlu0 %v2261
  %v2286 = vpop.xlane.xlu0 %2285
  %2287 = vmax.xlane.f32.xlu0 %v2262
  %v2288 = vpop.xlane.xlu0 %2287
  %2289 = vmax.xlane.f32.xlu0 %v2263
  %v2290 = vpop.xlane.xlu0 %2289
  %2291 = vmax.xlane.f32.xlu0 %v2264
  %v2292 = vpop.xlane.xlu0 %2291
  %2293 = vmax.xlane.f32.xlu0 %v2265
  %v2294 = vpop.xlane.xlu0 %2293
  %2295 = vmax.xlane.f32.xlu0 %v2266
  %v2296 = vpop.xlane.xlu0 %2295
  %2297 = vmax.xlane.f32.xlu0 %v2267
  %v2298 = vpop.xlane.xlu0 %2297
  %2299 = vmax.xlane.f32.xlu0 %v2268
  %v2300 = vpop.xlane.xlu0 %2299
  %vm2301 = vcmp.eq.s32.totalorder %v66, 28
  %v2302 = vsel %vm2301, %v2270, %v2234
  %v2303 = vsel %vm2301, %v2272, %v2235
  %v2304 = vsel %vm2301, %v2274, %v2236
  %v2305 = vsel %vm2301, %v2276, %v2237
  %v2306 = vsel %vm2301, %v2278, %v2238
  %v2307 = vsel %vm2301, %v2280, %v2239
  %v2308 = vsel %vm2301, %v2282, %v2240
  %v2309 = vsel %vm2301, %v2284, %v2241
  %v2310 = vsel %vm2301, %v2286, %v2242
  %v2311 = vsel %vm2301, %v2288, %v2243
  %v2312 = vsel %vm2301, %v2290, %v2244
  %v2313 = vsel %vm2301, %v2292, %v2245
  %v2314 = vsel %vm2301, %v2294, %v2246
  %v2315 = vsel %vm2301, %v2296, %v2247
  %v2316 = vsel %vm2301, %v2298, %v2248
  %v2317 = vsel %vm2301, %v2300, %v2249
  %v2318 = vperm.slane %v2251, 5
  %v2319 = vadd.f32 %v358, %v2318
  %v2320 = vadd.f32 %v359, %v2318
  %v2321 = vadd.f32 %v360, %v2318
  %v2322 = vadd.f32 %v361, %v2318
  %v2323 = vadd.f32 %v362, %v2318
  %v2324 = vadd.f32 %v363, %v2318
  %v2325 = vadd.f32 %v364, %v2318
  %v2326 = vadd.f32 %v365, %v2318
  %v2327 = vadd.f32 %v366, %v2318
  %v2328 = vadd.f32 %v367, %v2318
  %v2329 = vadd.f32 %v368, %v2318
  %v2330 = vadd.f32 %v369, %v2318
  %v2331 = vadd.f32 %v370, %v2318
  %v2332 = vadd.f32 %v371, %v2318
  %v2333 = vadd.f32 %v372, %v2318
  %v2334 = vadd.f32 %v373, %v2318
  %2335 = vmax.xlane.f32.xlu0 %v2319
  %v2336 = vpop.xlane.xlu0 %2335
  %2337 = vmax.xlane.f32.xlu0 %v2320
  %v2338 = vpop.xlane.xlu0 %2337
  %2339 = vmax.xlane.f32.xlu0 %v2321
  %v2340 = vpop.xlane.xlu0 %2339
  %2341 = vmax.xlane.f32.xlu0 %v2322
  %v2342 = vpop.xlane.xlu0 %2341
  %2343 = vmax.xlane.f32.xlu0 %v2323
  %v2344 = vpop.xlane.xlu0 %2343
  %2345 = vmax.xlane.f32.xlu0 %v2324
  %v2346 = vpop.xlane.xlu0 %2345
  %2347 = vmax.xlane.f32.xlu0 %v2325
  %v2348 = vpop.xlane.xlu0 %2347
  %2349 = vmax.xlane.f32.xlu0 %v2326
  %v2350 = vpop.xlane.xlu0 %2349
  %2351 = vmax.xlane.f32.xlu0 %v2327
  %v2352 = vpop.xlane.xlu0 %2351
  %2353 = vmax.xlane.f32.xlu0 %v2328
  %v2354 = vpop.xlane.xlu0 %2353
  %2355 = vmax.xlane.f32.xlu0 %v2329
  %v2356 = vpop.xlane.xlu0 %2355
  %2357 = vmax.xlane.f32.xlu0 %v2330
  %v2358 = vpop.xlane.xlu0 %2357
  %2359 = vmax.xlane.f32.xlu0 %v2331
  %v2360 = vpop.xlane.xlu0 %2359
  %2361 = vmax.xlane.f32.xlu0 %v2332
  %v2362 = vpop.xlane.xlu0 %2361
  %2363 = vmax.xlane.f32.xlu0 %v2333
  %v2364 = vpop.xlane.xlu0 %2363
  %2365 = vmax.xlane.f32.xlu0 %v2334
  %v2366 = vpop.xlane.xlu0 %2365
  %vm2367 = vcmp.eq.s32.totalorder %v66, 29
  %v2368 = vsel %vm2367, %v2336, %v2302
  %v2369 = vsel %vm2367, %v2338, %v2303
  %v2370 = vsel %vm2367, %v2340, %v2304
  %v2371 = vsel %vm2367, %v2342, %v2305
  %v2372 = vsel %vm2367, %v2344, %v2306
  %v2373 = vsel %vm2367, %v2346, %v2307
  %v2374 = vsel %vm2367, %v2348, %v2308
  %v2375 = vsel %vm2367, %v2350, %v2309
  %v2376 = vsel %vm2367, %v2352, %v2310
  %v2377 = vsel %vm2367, %v2354, %v2311
  %v2378 = vsel %vm2367, %v2356, %v2312
  %v2379 = vsel %vm2367, %v2358, %v2313
  %v2380 = vsel %vm2367, %v2360, %v2314
  %v2381 = vsel %vm2367, %v2362, %v2315
  %v2382 = vsel %vm2367, %v2364, %v2316
  %v2383 = vsel %vm2367, %v2366, %v2317
  %v2384 = vld [vmem:[%s3 + $0xc] sm:$0x8]
  %v2385 = vunpack.c.l.bf16 %v2384
  %v2386 = vperm.slane %v2385, 6
  %v2387 = vadd.f32 %v358, %v2386
  %v2388 = vadd.f32 %v359, %v2386
  %v2389 = vadd.f32 %v360, %v2386
  %v2390 = vadd.f32 %v361, %v2386
  %v2391 = vadd.f32 %v362, %v2386
  %v2392 = vadd.f32 %v363, %v2386
  %v2393 = vadd.f32 %v364, %v2386
  %v2394 = vadd.f32 %v365, %v2386
  %v2395 = vadd.f32 %v366, %v2386
  %v2396 = vadd.f32 %v367, %v2386
  %v2397 = vadd.f32 %v368, %v2386
  %v2398 = vadd.f32 %v369, %v2386
  %v2399 = vadd.f32 %v370, %v2386
  %v2400 = vadd.f32 %v371, %v2386
  %v2401 = vadd.f32 %v372, %v2386
  %v2402 = vadd.f32 %v373, %v2386
  %2403 = vmax.xlane.f32.xlu0 %v2387
  %v2404 = vpop.xlane.xlu0 %2403
  %2405 = vmax.xlane.f32.xlu0 %v2388
  %v2406 = vpop.xlane.xlu0 %2405
  %2407 = vmax.xlane.f32.xlu0 %v2389
  %v2408 = vpop.xlane.xlu0 %2407
  %2409 = vmax.xlane.f32.xlu0 %v2390
  %v2410 = vpop.xlane.xlu0 %2409
  %2411 = vmax.xlane.f32.xlu0 %v2391
  %v2412 = vpop.xlane.xlu0 %2411
  %2413 = vmax.xlane.f32.xlu0 %v2392
  %v2414 = vpop.xlane.xlu0 %2413
  %2415 = vmax.xlane.f32.xlu0 %v2393
  %v2416 = vpop.xlane.xlu0 %2415
  %2417 = vmax.xlane.f32.xlu0 %v2394
  %v2418 = vpop.xlane.xlu0 %2417
  %2419 = vmax.xlane.f32.xlu0 %v2395
  %v2420 = vpop.xlane.xlu0 %2419
  %2421 = vmax.xlane.f32.xlu0 %v2396
  %v2422 = vpop.xlane.xlu0 %2421
  %2423 = vmax.xlane.f32.xlu0 %v2397
  %v2424 = vpop.xlane.xlu0 %2423
  %2425 = vmax.xlane.f32.xlu0 %v2398
  %v2426 = vpop.xlane.xlu0 %2425
  %2427 = vmax.xlane.f32.xlu0 %v2399
  %v2428 = vpop.xlane.xlu0 %2427
  %2429 = vmax.xlane.f32.xlu0 %v2400
  %v2430 = vpop.xlane.xlu0 %2429
  %2431 = vmax.xlane.f32.xlu0 %v2401
  %v2432 = vpop.xlane.xlu0 %2431
  %2433 = vmax.xlane.f32.xlu0 %v2402
  %v2434 = vpop.xlane.xlu0 %2433
  %vm2435 = vcmp.eq.s32.totalorder %v66, 30
  %v2436 = vsel %vm2435, %v2404, %v2368
  %v2437 = vsel %vm2435, %v2406, %v2369
  %v2438 = vsel %vm2435, %v2408, %v2370
  %v2439 = vsel %vm2435, %v2410, %v2371
  %v2440 = vsel %vm2435, %v2412, %v2372
  %v2441 = vsel %vm2435, %v2414, %v2373
  %v2442 = vsel %vm2435, %v2416, %v2374
  %v2443 = vsel %vm2435, %v2418, %v2375
  %v2444 = vsel %vm2435, %v2420, %v2376
  %v2445 = vsel %vm2435, %v2422, %v2377
  %v2446 = vsel %vm2435, %v2424, %v2378
  %v2447 = vsel %vm2435, %v2426, %v2379
  %v2448 = vsel %vm2435, %v2428, %v2380
  %v2449 = vsel %vm2435, %v2430, %v2381
  %v2450 = vsel %vm2435, %v2432, %v2382
  %v2451 = vsel %vm2435, %v2434, %v2383
  %v2452 = vperm.slane %v2385, 7
  %v2453 = vadd.f32 %v358, %v2452
  %v2454 = vadd.f32 %v359, %v2452
  %v2455 = vadd.f32 %v360, %v2452
  %v2456 = vadd.f32 %v361, %v2452
  %v2457 = vadd.f32 %v362, %v2452
  %v2458 = vadd.f32 %v363, %v2452
  %v2459 = vadd.f32 %v364, %v2452
  %v2460 = vadd.f32 %v365, %v2452
  %v2461 = vadd.f32 %v366, %v2452
  %v2462 = vadd.f32 %v367, %v2452
  %v2463 = vadd.f32 %v368, %v2452
  %v2464 = vadd.f32 %v369, %v2452
  %v2465 = vadd.f32 %v370, %v2452
  %v2466 = vadd.f32 %v371, %v2452
  %v2467 = vadd.f32 %v372, %v2452
  %v2468 = vadd.f32 %v373, %v2452
  %2469 = vmax.xlane.f32.xlu0 %v2453
  %v2470 = vpop.xlane.xlu0 %2469
  %2471 = vmax.xlane.f32.xlu0 %v2454
  %v2472 = vpop.xlane.xlu0 %2471
  %2473 = vmax.xlane.f32.xlu0 %v2455
  %v2474 = vpop.xlane.xlu0 %2473
  %2475 = vmax.xlane.f32.xlu0 %v2456
  %v2476 = vpop.xlane.xlu0 %2475
  %2477 = vmax.xlane.f32.xlu0 %v2457
  %v2478 = vpop.xlane.xlu0 %2477
  %2479 = vmax.xlane.f32.xlu0 %v2458
  %v2480 = vpop.xlane.xlu0 %2479
  %2481 = vmax.xlane.f32.xlu0 %v2459
  %v2482 = vpop.xlane.xlu0 %2481
  %2483 = vmax.xlane.f32.xlu0 %v2460
  %v2484 = vpop.xlane.xlu0 %2483
  %2485 = vmax.xlane.f32.xlu0 %v2461
  %v2486 = vpop.xlane.xlu0 %2485
  %2487 = vmax.xlane.f32.xlu0 %v2462
  %v2488 = vpop.xlane.xlu0 %2487
  %2489 = vmax.xlane.f32.xlu0 %v2463
  %v2490 = vpop.xlane.xlu0 %2489
  %2491 = vmax.xlane.f32.xlu0 %v2464
  %v2492 = vpop.xlane.xlu0 %2491
  %2493 = vmax.xlane.f32.xlu0 %v2465
  %v2494 = vpop.xlane.xlu0 %2493
  %2495 = vmax.xlane.f32.xlu0 %v2466
  %v2496 = vpop.xlane.xlu0 %2495
  %2497 = vmax.xlane.f32.xlu0 %v2467
  %v2498 = vpop.xlane.xlu0 %2497
  %2499 = vmax.xlane.f32.xlu0 %v2468
  %v2500 = vpop.xlane.xlu0 %2499
  %vm2501 = vcmp.eq.s32.totalorder %v66, 31
  %v2502 = vsel %vm2501, %v2470, %v2436
  %v2503 = vsel %vm2501, %v2472, %v2437
  %v2504 = vsel %vm2501, %v2474, %v2438
  %v2505 = vsel %vm2501, %v2476, %v2439
  %v2506 = vsel %vm2501, %v2478, %v2440
  %v2507 = vsel %vm2501, %v2480, %v2441
  %v2508 = vsel %vm2501, %v2482, %v2442
  %v2509 = vsel %vm2501, %v2484, %v2443
  %v2510 = vsel %vm2501, %v2486, %v2444
  %v2511 = vsel %vm2501, %v2488, %v2445
  %v2512 = vsel %vm2501, %v2490, %v2446
  %v2513 = vsel %vm2501, %v2492, %v2447
  %v2514 = vsel %vm2501, %v2494, %v2448
  %v2515 = vsel %vm2501, %v2496, %v2449
  %v2516 = vsel %vm2501, %v2498, %v2450
  %v2517 = vsel %vm2501, %v2500, %v2451
  %v2518 = vsel %vm326, 1, 0
  %v2519 = vsel %vm327, 1, 0
  %v2520 = vsel %vm328, 1, 0
  %v2521 = vsel %vm329, 1, 0
  %v2522 = vsel %vm330, 1, 0
  %v2523 = vsel %vm331, 1, 0
  %v2524 = vsel %vm332, 1, 0
  %v2525 = vsel %vm333, 1, 0
  %v2526 = vsel %vm334, 1, 0
  %v2527 = vsel %vm335, 1, 0
  %v2528 = vsel %vm336, 1, 0
  %v2529 = vsel %vm337, 1, 0
  %v2530 = vsel %vm338, 1, 0
  %v2531 = vsel %vm339, 1, 0
  %v2532 = vsel %vm340, 1, 0
  %v2533 = vsel %vm341, 1, 0
  %vm2534 = vcmp.eq.s32.totalorder %v2518, 1
  %vm2535 = vcmp.eq.s32.totalorder %v2519, 1
  %vm2536 = vcmp.eq.s32.totalorder %v2520, 1
  %vm2537 = vcmp.eq.s32.totalorder %v2521, 1
  %vm2538 = vcmp.eq.s32.totalorder %v2522, 1
  %vm2539 = vcmp.eq.s32.totalorder %v2523, 1
  %vm2540 = vcmp.eq.s32.totalorder %v2524, 1
  %vm2541 = vcmp.eq.s32.totalorder %v2525, 1
  %vm2542 = vcmp.eq.s32.totalorder %v2526, 1
  %vm2543 = vcmp.eq.s32.totalorder %v2527, 1
  %vm2544 = vcmp.eq.s32.totalorder %v2528, 1
  %vm2545 = vcmp.eq.s32.totalorder %v2529, 1
  %vm2546 = vcmp.eq.s32.totalorder %v2530, 1
  %vm2547 = vcmp.eq.s32.totalorder %v2531, 1
  %vm2548 = vcmp.eq.s32.totalorder %v2532, 1
  %vm2549 = vcmp.eq.s32.totalorder %v2533, 1
  %v2550 = vsel %vm2534, %v2502, 0.0
  %v2551 = vsel %vm2535, %v2503, 0.0
  %v2552 = vsel %vm2536, %v2504, 0.0
  %v2553 = vsel %vm2537, %v2505, 0.0
  %v2554 = vsel %vm2538, %v2506, 0.0
  %v2555 = vsel %vm2539, %v2507, 0.0
  %v2556 = vsel %vm2540, %v2508, 0.0
  %v2557 = vsel %vm2541, %v2509, 0.0
  %v2558 = vsel %vm2542, %v2510, 0.0
  %v2559 = vsel %vm2543, %v2511, 0.0
  %v2560 = vsel %vm2544, %v2512, 0.0
  %v2561 = vsel %vm2545, %v2513, 0.0
  %v2562 = vsel %vm2546, %v2514, 0.0
  %v2563 = vsel %vm2547, %v2515, 0.0
  %v2564 = vsel %vm2548, %v2516, 0.0
  %v2565 = vsel %vm2549, %v2517, 0.0
  %v2566 = vld [vmem:[%s4] sm:$0x1]
  %v2568 = vperm.slane %v2566, 0
  %v2570 = vmul.f32 %v2550, %v2568
  %v2571 = vmul.f32 %v2551, %v2568
  %v2572 = vmul.f32 %v2552, %v2568
  %v2573 = vmul.f32 %v2553, %v2568
  %v2574 = vmul.f32 %v2554, %v2568
  %v2575 = vmul.f32 %v2555, %v2568
  %v2576 = vmul.f32 %v2556, %v2568
  %v2577 = vmul.f32 %v2557, %v2568
  %v2578 = vmul.f32 %v2558, %v2568
  %v2579 = vmul.f32 %v2559, %v2568
  %v2580 = vmul.f32 %v2560, %v2568
  %v2581 = vmul.f32 %v2561, %v2568
  %v2582 = vmul.f32 %v2562, %v2568
  %v2583 = vmul.f32 %v2563, %v2568
  %v2584 = vmul.f32 %v2564, %v2568
  %v2585 = vmul.f32 %v2565, %v2568
  %vm2586 = vcmask 261120
  %v2587 = vsel %vm2586, %v2570, 0.0
  %2588 = vadd.xlane.f32.xlu0 %v2587
  %v2589 = vpop.xlane.xlu0 %2588
  %v2590 = vsel %vm2586, %v2571, 0.0
  %2591 = vadd.xlane.f32.xlu0 %v2590
  %v2592 = vpop.xlane.xlu0 %2591
  %v2593 = vsel %vm2586, %v2572, 0.0
  %2594 = vadd.xlane.f32.xlu0 %v2593
  %v2595 = vpop.xlane.xlu0 %2594
  %v2596 = vsel %vm2586, %v2573, 0.0
  %2597 = vadd.xlane.f32.xlu0 %v2596
  %v2598 = vpop.xlane.xlu0 %2597
  %v2599 = vsel %vm2586, %v2574, 0.0
  %2600 = vadd.xlane.f32.xlu0 %v2599
  %v2601 = vpop.xlane.xlu0 %2600
  %v2602 = vsel %vm2586, %v2575, 0.0
  %2603 = vadd.xlane.f32.xlu0 %v2602
  %v2604 = vpop.xlane.xlu0 %2603
  %v2605 = vsel %vm2586, %v2576, 0.0
  %2606 = vadd.xlane.f32.xlu0 %v2605
  %v2607 = vpop.xlane.xlu0 %2606
  %v2608 = vsel %vm2586, %v2577, 0.0
  %2609 = vadd.xlane.f32.xlu0 %v2608
  %v2610 = vpop.xlane.xlu0 %2609
  %v2611 = vsel %vm2586, %v2578, 0.0
  %2612 = vadd.xlane.f32.xlu0 %v2611
  %v2613 = vpop.xlane.xlu0 %2612
  %v2614 = vsel %vm2586, %v2579, 0.0
  %2615 = vadd.xlane.f32.xlu0 %v2614
  %v2616 = vpop.xlane.xlu0 %2615
  %v2617 = vsel %vm2586, %v2580, 0.0
  %2618 = vadd.xlane.f32.xlu0 %v2617
  %v2619 = vpop.xlane.xlu0 %2618
  %v2620 = vsel %vm2586, %v2581, 0.0
  %2621 = vadd.xlane.f32.xlu0 %v2620
  %v2622 = vpop.xlane.xlu0 %2621
  %v2623 = vsel %vm2586, %v2582, 0.0
  %2624 = vadd.xlane.f32.xlu0 %v2623
  %v2625 = vpop.xlane.xlu0 %2624
  %v2626 = vsel %vm2586, %v2583, 0.0
  %2627 = vadd.xlane.f32.xlu0 %v2626
  %v2628 = vpop.xlane.xlu0 %2627
  %v2629 = vsel %vm2586, %v2584, 0.0
  %2630 = vadd.xlane.f32.xlu0 %v2629
  %v2631 = vpop.xlane.xlu0 %2630
  %v2632 = vsel %vm2586, %v2585, 0.0
  %2633 = vadd.xlane.f32.xlu0 %v2632
  %v2634 = vpop.xlane.xlu0 %2633
  %v2635 = vld [vmem:[#allocation2] sm:$0x1]
  %v2637 = vperm.slane %v2635, 0
  %v2639 = vadd.f32 %v2589, %v2637
  %v2640 = vadd.f32 %v2592, %v2637
  %v2641 = vadd.f32 %v2595, %v2637
  %v2642 = vadd.f32 %v2598, %v2637
  %v2643 = vadd.f32 %v2601, %v2637
  %v2644 = vadd.f32 %v2604, %v2637
  %v2645 = vadd.f32 %v2607, %v2637
  %v2646 = vadd.f32 %v2610, %v2637
  %v2647 = vadd.f32 %v2613, %v2637
  %v2648 = vadd.f32 %v2616, %v2637
  %v2649 = vadd.f32 %v2619, %v2637
  %v2650 = vadd.f32 %v2622, %v2637
  %v2651 = vadd.f32 %v2625, %v2637
  %v2652 = vadd.f32 %v2628, %v2637
  %v2653 = vadd.f32 %v2631, %v2637
  %v2654 = vadd.f32 %v2634, %v2637
  %v2655 = vld [vmem:[%s6] sm:$0x1]
  %2657 = vset.pattern.permute.xlu0 0
  %2658 = vperm.xlu0 %2657, %v2639
  %v2659 = vpop.permute.xlu0 %2658
  %2662 = vset.pattern.permute.xlu0 0
  %2663 = vperm.xlu0 %2662, %v2640
  %v2664 = vpop.permute.xlu0 %2663
  %2667 = vset.pattern.permute.xlu0 0
  %2668 = vperm.xlu0 %2667, %v2641
  %v2669 = vpop.permute.xlu0 %2668
  %2672 = vset.pattern.permute.xlu0 0
  %2673 = vperm.xlu0 %2672, %v2642
  %v2674 = vpop.permute.xlu0 %2673
  %2677 = vset.pattern.permute.xlu0 0
  %2678 = vperm.xlu0 %2677, %v2643
  %v2679 = vpop.permute.xlu0 %2678
  %2682 = vset.pattern.permute.xlu0 0
  %2683 = vperm.xlu0 %2682, %v2644
  %v2684 = vpop.permute.xlu0 %2683
  %2687 = vset.pattern.permute.xlu0 0
  %2688 = vperm.xlu0 %2687, %v2645
  %v2689 = vpop.permute.xlu0 %2688
  %2692 = vset.pattern.permute.xlu0 0
  %2693 = vperm.xlu0 %2692, %v2646
  %v2694 = vpop.permute.xlu0 %2693
  %2697 = vset.pattern.permute.xlu0 0
  %2698 = vperm.xlu0 %2697, %v2647
  %v2699 = vpop.permute.xlu0 %2698
  %2702 = vset.pattern.permute.xlu0 0
  %2703 = vperm.xlu0 %2702, %v2648
  %v2704 = vpop.permute.xlu0 %2703
  %2707 = vset.pattern.permute.xlu0 0
  %2708 = vperm.xlu0 %2707, %v2649
  %v2709 = vpop.permute.xlu0 %2708
  %2712 = vset.pattern.permute.xlu0 0
  %2713 = vperm.xlu0 %2712, %v2650
  %v2714 = vpop.permute.xlu0 %2713
  %2717 = vset.pattern.permute.xlu0 0
  %2718 = vperm.xlu0 %2717, %v2651
  %v2719 = vpop.permute.xlu0 %2718
  %2722 = vset.pattern.permute.xlu0 0
  %2723 = vperm.xlu0 %2722, %v2652
  %v2724 = vpop.permute.xlu0 %2723
  %2727 = vset.pattern.permute.xlu0 0
  %2728 = vperm.xlu0 %2727, %v2653
  %v2729 = vpop.permute.xlu0 %2728
  %2732 = vset.pattern.permute.xlu0 0
  %2733 = vperm.xlu0 %2732, %v2654
  %v2734 = vpop.permute.xlu0 %2733
  %v2737 = vperm.slane %v2655, 0
  %v2739 = vadd.f32 %v2659, %v2737
  %v2740 = vadd.f32 %v2664, %v2737
  %v2741 = vadd.f32 %v2669, %v2737
  %v2742 = vadd.f32 %v2674, %v2737
  %v2743 = vadd.f32 %v2679, %v2737
  %v2744 = vadd.f32 %v2684, %v2737
  %v2745 = vadd.f32 %v2689, %v2737
  %v2746 = vadd.f32 %v2694, %v2737
  %v2747 = vadd.f32 %v2699, %v2737
  %v2748 = vadd.f32 %v2704, %v2737
  %v2749 = vadd.f32 %v2709, %v2737
  %v2750 = vadd.f32 %v2714, %v2737
  %v2751 = vadd.f32 %v2719, %v2737
  %v2752 = vadd.f32 %v2724, %v2737
  %v2753 = vadd.f32 %v2729, %v2737
  %v2754 = vadd.f32 %v2734, %v2737
  %vm2755 = vcmp.gt.f32.partialorder %v2739, 0.0
  %vm2756 = vcmp.gt.f32.partialorder %v2740, 0.0
  %vm2757 = vcmp.gt.f32.partialorder %v2741, 0.0
  %vm2758 = vcmp.gt.f32.partialorder %v2742, 0.0
  %vm2759 = vcmp.gt.f32.partialorder %v2743, 0.0
  %vm2760 = vcmp.gt.f32.partialorder %v2744, 0.0
  %vm2761 = vcmp.gt.f32.partialorder %v2745, 0.0
  %vm2762 = vcmp.gt.f32.partialorder %v2746, 0.0
  %vm2763 = vcmp.gt.f32.partialorder %v2747, 0.0
  %vm2764 = vcmp.gt.f32.partialorder %v2748, 0.0
  %vm2765 = vcmp.gt.f32.partialorder %v2749, 0.0
  %vm2766 = vcmp.gt.f32.partialorder %v2750, 0.0
  %vm2767 = vcmp.gt.f32.partialorder %v2751, 0.0
  %vm2768 = vcmp.gt.f32.partialorder %v2752, 0.0
  %vm2769 = vcmp.gt.f32.partialorder %v2753, 0.0
  %vm2770 = vcmp.gt.f32.partialorder %v2754, 0.0
  %v2771 = vmul.f32 %v2739, 0.2
  %v2772 = vmul.f32 %v2740, 0.2
  %v2773 = vmul.f32 %v2741, 0.2
  %v2774 = vmul.f32 %v2742, 0.2
  %v2775 = vmul.f32 %v2743, 0.2
  %v2776 = vmul.f32 %v2744, 0.2
  %v2777 = vmul.f32 %v2745, 0.2
  %v2778 = vmul.f32 %v2746, 0.2
  %v2779 = vmul.f32 %v2747, 0.2
  %v2780 = vmul.f32 %v2748, 0.2
  %v2781 = vmul.f32 %v2749, 0.2
  %v2782 = vmul.f32 %v2750, 0.2
  %v2783 = vmul.f32 %v2751, 0.2
  %v2784 = vmul.f32 %v2752, 0.2
  %v2785 = vmul.f32 %v2753, 0.2
  %v2786 = vmul.f32 %v2754, 0.2
  %v2787 = vsel %vm2755, %v2739, %v2771
  %v2788 = vsel %vm2756, %v2740, %v2772
  %v2789 = vsel %vm2757, %v2741, %v2773
  %v2790 = vsel %vm2758, %v2742, %v2774
  %v2791 = vsel %vm2759, %v2743, %v2775
  %v2792 = vsel %vm2760, %v2744, %v2776
  %v2793 = vsel %vm2761, %v2745, %v2777
  %v2794 = vsel %vm2762, %v2746, %v2778
  %v2795 = vsel %vm2763, %v2747, %v2779
  %v2796 = vsel %vm2764, %v2748, %v2780
  %v2797 = vsel %vm2765, %v2749, %v2781
  %v2798 = vsel %vm2766, %v2750, %v2782
  %v2799 = vsel %vm2767, %v2751, %v2783
  %v2800 = vsel %vm2768, %v2752, %v2784
  %v2801 = vsel %vm2769, %v2753, %v2785
  %v2802 = vsel %vm2770, %v2754, %v2786
  %v2803 = vsel %vm342, %v2787, -1e+30
  %v2804 = vsel %vm343, %v2788, -1e+30
  %v2805 = vsel %vm344, %v2789, -1e+30
  %v2806 = vsel %vm345, %v2790, -1e+30
  %v2807 = vsel %vm346, %v2791, -1e+30
  %v2808 = vsel %vm347, %v2792, -1e+30
  %v2809 = vsel %vm348, %v2793, -1e+30
  %v2810 = vsel %vm349, %v2794, -1e+30
  %v2811 = vsel %vm350, %v2795, -1e+30
  %v2812 = vsel %vm351, %v2796, -1e+30
  %v2813 = vsel %vm352, %v2797, -1e+30
  %v2814 = vsel %vm353, %v2798, -1e+30
  %v2815 = vsel %vm354, %v2799, -1e+30
  %v2816 = vsel %vm355, %v2800, -1e+30
  %v2817 = vsel %vm356, %v2801, -1e+30
  %v2818 = vsel %vm357, %v2802, -1e+30
  %2819 = vmax.xlane.f32.xlu0 %v2803
  %v2820 = vpop.xlane.xlu0 %2819
  %2821 = vmax.xlane.f32.xlu0 %v2804
  %v2822 = vpop.xlane.xlu0 %2821
  %2823 = vmax.xlane.f32.xlu0 %v2805
  %v2824 = vpop.xlane.xlu0 %2823
  %2825 = vmax.xlane.f32.xlu0 %v2806
  %v2826 = vpop.xlane.xlu0 %2825
  %2827 = vmax.xlane.f32.xlu0 %v2807
  %v2828 = vpop.xlane.xlu0 %2827
  %2829 = vmax.xlane.f32.xlu0 %v2808
  %v2830 = vpop.xlane.xlu0 %2829
  %2831 = vmax.xlane.f32.xlu0 %v2809
  %v2832 = vpop.xlane.xlu0 %2831
  %2833 = vmax.xlane.f32.xlu0 %v2810
  %v2834 = vpop.xlane.xlu0 %2833
  %2835 = vmax.xlane.f32.xlu0 %v2811
  %v2836 = vpop.xlane.xlu0 %2835
  %2837 = vmax.xlane.f32.xlu0 %v2812
  %v2838 = vpop.xlane.xlu0 %2837
  %2839 = vmax.xlane.f32.xlu0 %v2813
  %v2840 = vpop.xlane.xlu0 %2839
  %2841 = vmax.xlane.f32.xlu0 %v2814
  %v2842 = vpop.xlane.xlu0 %2841
  %2843 = vmax.xlane.f32.xlu0 %v2815
  %v2844 = vpop.xlane.xlu0 %2843
  %2845 = vmax.xlane.f32.xlu0 %v2816
  %v2846 = vpop.xlane.xlu0 %2845
  %2847 = vmax.xlane.f32.xlu0 %v2817
  %v2848 = vpop.xlane.xlu0 %2847
  %2849 = vmax.xlane.f32.xlu0 %v2818
  %v2850 = vpop.xlane.xlu0 %2849
  %v2851 = vsel %vm326, %v2820, 0.0
  %v2852 = vsel %vm327, %v2822, 0.0
  %v2853 = vsel %vm328, %v2824, 0.0
  %v2854 = vsel %vm329, %v2826, 0.0
  %v2855 = vsel %vm330, %v2828, 0.0
  %v2856 = vsel %vm331, %v2830, 0.0
  %v2857 = vsel %vm332, %v2832, 0.0
  %v2858 = vsel %vm333, %v2834, 0.0
  %v2859 = vsel %vm334, %v2836, 0.0
  %v2860 = vsel %vm335, %v2838, 0.0
  %v2861 = vsel %vm336, %v2840, 0.0
  %v2862 = vsel %vm337, %v2842, 0.0
  %v2863 = vsel %vm338, %v2844, 0.0
  %v2864 = vsel %vm339, %v2846, 0.0
  %v2865 = vsel %vm340, %v2848, 0.0
  %v2866 = vsel %vm341, %v2850, 0.0
  %v2867 = vsub.f32 %v2803, %v2851
  %v2868 = vsub.f32 %v2804, %v2852
  %v2869 = vsub.f32 %v2805, %v2853
  %v2870 = vsub.f32 %v2806, %v2854
  %v2871 = vsub.f32 %v2807, %v2855
  %v2872 = vsub.f32 %v2808, %v2856
  %v2873 = vsub.f32 %v2809, %v2857
  %v2874 = vsub.f32 %v2810, %v2858
  %v2875 = vsub.f32 %v2811, %v2859
  %v2876 = vsub.f32 %v2812, %v2860
  %v2877 = vsub.f32 %v2813, %v2861
  %v2878 = vsub.f32 %v2814, %v2862
  %v2879 = vsub.f32 %v2815, %v2863
  %v2880 = vsub.f32 %v2816, %v2864
  %v2881 = vsub.f32 %v2817, %v2865
  %v2882 = vsub.f32 %v2818, %v2866
  %v2883 = vmul.f32 %v2867, 1.442695
  %v2884 = vpow.pop %v2883
  %v2885 = vmul.f32 %v2868, 1.442695
  %v2886 = vpow.pop %v2885
  %v2887 = vmul.f32 %v2869, 1.442695
  %v2888 = vpow.pop %v2887
  %v2889 = vmul.f32 %v2870, 1.442695
  %v2890 = vpow.pop %v2889
  %v2891 = vmul.f32 %v2871, 1.442695
  %v2892 = vpow.pop %v2891
  %v2893 = vmul.f32 %v2872, 1.442695
  %v2894 = vpow.pop %v2893
  %v2895 = vmul.f32 %v2873, 1.442695
  %v2896 = vpow.pop %v2895
  %v2897 = vmul.f32 %v2874, 1.442695
  %v2898 = vpow.pop %v2897
  %v2899 = vmul.f32 %v2875, 1.442695
  %v2900 = vpow.pop %v2899
  %v2901 = vmul.f32 %v2876, 1.442695
  %v2902 = vpow.pop %v2901
  %v2903 = vmul.f32 %v2877, 1.442695
  %v2904 = vpow.pop %v2903
  %v2905 = vmul.f32 %v2878, 1.442695
  %v2906 = vpow.pop %v2905
  %v2907 = vmul.f32 %v2879, 1.442695
  %v2908 = vpow.pop %v2907
  %v2909 = vmul.f32 %v2880, 1.442695
  %v2910 = vpow.pop %v2909
  %v2911 = vmul.f32 %v2881, 1.442695
  %v2912 = vpow.pop %v2911
  %v2913 = vmul.f32 %v2882, 1.442695
  %v2914 = vpow.pop %v2913
  %v2915 = vmul.f32 %v2884, %v278
  %v2916 = vmul.f32 %v2886, %v279
  %v2917 = vmul.f32 %v2888, %v280
  %v2918 = vmul.f32 %v2890, %v281
  %v2919 = vmul.f32 %v2892, %v282
  %v2920 = vmul.f32 %v2894, %v283
  %v2921 = vmul.f32 %v2896, %v284
  %v2922 = vmul.f32 %v2898, %v285
  %v2923 = vmul.f32 %v2900, %v286
  %v2924 = vmul.f32 %v2902, %v287
  %v2925 = vmul.f32 %v2904, %v288
  %v2926 = vmul.f32 %v2906, %v289
  %v2927 = vmul.f32 %v2908, %v290
  %v2928 = vmul.f32 %v2910, %v291
  %v2929 = vmul.f32 %v2912, %v292
  %v2930 = vmul.f32 %v2914, %v293
  %2931 = vadd.xlane.f32.xlu0 %v2915
  %v2932 = vpop.xlane.xlu0 %2931
  %2933 = vadd.xlane.f32.xlu0 %v2916
  %v2934 = vpop.xlane.xlu0 %2933
  %2935 = vadd.xlane.f32.xlu0 %v2917
  %v2936 = vpop.xlane.xlu0 %2935
  %2937 = vadd.xlane.f32.xlu0 %v2918
  %v2938 = vpop.xlane.xlu0 %2937
  %2939 = vadd.xlane.f32.xlu0 %v2919
  %v2940 = vpop.xlane.xlu0 %2939
  %2941 = vadd.xlane.f32.xlu0 %v2920
  %v2942 = vpop.xlane.xlu0 %2941
  %2943 = vadd.xlane.f32.xlu0 %v2921
  %v2944 = vpop.xlane.xlu0 %2943
  %2945 = vadd.xlane.f32.xlu0 %v2922
  %v2946 = vpop.xlane.xlu0 %2945
  %2947 = vadd.xlane.f32.xlu0 %v2923
  %v2948 = vpop.xlane.xlu0 %2947
  %2949 = vadd.xlane.f32.xlu0 %v2924
  %v2950 = vpop.xlane.xlu0 %2949
  %2951 = vadd.xlane.f32.xlu0 %v2925
  %v2952 = vpop.xlane.xlu0 %2951
  %2953 = vadd.xlane.f32.xlu0 %v2926
  %v2954 = vpop.xlane.xlu0 %2953
  %2955 = vadd.xlane.f32.xlu0 %v2927
  %v2956 = vpop.xlane.xlu0 %2955
  %2957 = vadd.xlane.f32.xlu0 %v2928
  %v2958 = vpop.xlane.xlu0 %2957
  %2959 = vadd.xlane.f32.xlu0 %v2929
  %v2960 = vpop.xlane.xlu0 %2959
  %2961 = vadd.xlane.f32.xlu0 %v2930
  %v2962 = vpop.xlane.xlu0 %2961
  %v2963 = vmax.f32 %v2932, 1e-20
  %v2964 = vmax.f32 %v2934, 1e-20
  %v2965 = vmax.f32 %v2936, 1e-20
  %v2966 = vmax.f32 %v2938, 1e-20
  %v2967 = vmax.f32 %v2940, 1e-20
  %v2968 = vmax.f32 %v2942, 1e-20
  %v2969 = vmax.f32 %v2944, 1e-20
  %v2970 = vmax.f32 %v2946, 1e-20
  %v2971 = vmax.f32 %v2948, 1e-20
  %v2972 = vmax.f32 %v2950, 1e-20
  %v2973 = vmax.f32 %v2952, 1e-20
  %v2974 = vmax.f32 %v2954, 1e-20
  %v2975 = vmax.f32 %v2956, 1e-20
  %v2976 = vmax.f32 %v2958, 1e-20
  %v2977 = vmax.f32 %v2960, 1e-20
  %v2978 = vmax.f32 %v2962, 1e-20
  %v2979 = vrcp.pop %v2963
  %v2980 = vrcp.pop %v2964
  %v2981 = vrcp.pop %v2965
  %v2982 = vrcp.pop %v2966
  %v2983 = vrcp.pop %v2967
  %v2984 = vrcp.pop %v2968
  %v2985 = vrcp.pop %v2969
  %v2986 = vrcp.pop %v2970
  %v2987 = vrcp.pop %v2971
  %v2988 = vrcp.pop %v2972
  %v2989 = vrcp.pop %v2973
  %v2990 = vrcp.pop %v2974
  %v2991 = vrcp.pop %v2975
  %v2992 = vrcp.pop %v2976
  %v2993 = vrcp.pop %v2977
  %v2994 = vrcp.pop %v2978
  %v2995 = vmul.f32 %v2915, %v2979
  %v2996 = vmul.f32 %v2916, %v2980
  %v2997 = vmul.f32 %v2917, %v2981
  %v2998 = vmul.f32 %v2918, %v2982
  %v2999 = vmul.f32 %v2919, %v2983
  %v3000 = vmul.f32 %v2920, %v2984
  %v3001 = vmul.f32 %v2921, %v2985
  %v3002 = vmul.f32 %v2922, %v2986
  %v3003 = vmul.f32 %v2923, %v2987
  %v3004 = vmul.f32 %v2924, %v2988
  %v3005 = vmul.f32 %v2925, %v2989
  %v3006 = vmul.f32 %v2926, %v2990
  %v3007 = vmul.f32 %v2927, %v2991
  %v3008 = vmul.f32 %v2928, %v2992
  %v3009 = vmul.f32 %v2929, %v2993
  %v3010 = vmul.f32 %v2930, %v2994
  %v3011 = vpack.c.bf16 %v2995, %v2995
  %v3012 = vpack.c.bf16 %v2996, %v2996
  %v3013 = vpack.c.bf16 %v2997, %v2997
  %v3014 = vpack.c.bf16 %v2998, %v2998
  %v3015 = vpack.c.bf16 %v2999, %v2999
  %v3016 = vpack.c.bf16 %v3000, %v3000
  %v3017 = vpack.c.bf16 %v3001, %v3001
  %v3018 = vpack.c.bf16 %v3002, %v3002
  %v3019 = vpack.c.bf16 %v3003, %v3003
  %v3020 = vpack.c.bf16 %v3004, %v3004
  %v3021 = vpack.c.bf16 %v3005, %v3005
  %v3022 = vpack.c.bf16 %v3006, %v3006
  %v3023 = vpack.c.bf16 %v3007, %v3007
  %v3024 = vpack.c.bf16 %v3008, %v3008
  %v3025 = vpack.c.bf16 %v3009, %v3009
  %v3026 = vpack.c.bf16 %v3010, %v3010
  %3027 = vst [vmem:[%s8] sm:$0xf] %v3011
  %3028 = vst [vmem:[%s8 + $0x4] sm:$0xf] %v3012
  %3029 = vst [vmem:[%s8 + $0x8] sm:$0xf] %v3013
  %3030 = vst [vmem:[%s8 + $0xc] sm:$0xf] %v3014
  %3031 = vst [vmem:[%s8 + $0x10] sm:$0xf] %v3015
  %3032 = vst [vmem:[%s8 + $0x14] sm:$0xf] %v3016
  %3033 = vst [vmem:[%s8 + $0x18] sm:$0xf] %v3017
  %3034 = vst [vmem:[%s8 + $0x1c] sm:$0xf] %v3018
  %3035 = vst [vmem:[%s8 + $0x20] sm:$0xf] %v3019
  %3036 = vst [vmem:[%s8 + $0x24] sm:$0xf] %v3020
  %3037 = vst [vmem:[%s8 + $0x28] sm:$0xf] %v3021
  %3038 = vst [vmem:[%s8 + $0x2c] sm:$0xf] %v3022
  %3039 = vst [vmem:[%s8 + $0x30] sm:$0xf] %v3023
  %3040 = vst [vmem:[%s8 + $0x34] sm:$0xf] %v3024
  %3041 = vst [vmem:[%s8 + $0x38] sm:$0xf] %v3025
  %3042 = vst [vmem:[%s8 + $0x3c] sm:$0xf] %v3026
  %v3043 = vld [vmem:[%s2] sm:$0xf]
  %v3044 = vld [vmem:[%s2 + $0x4] sm:$0xf]
  %v3045 = vld [vmem:[%s2 + $0x8] sm:$0xf]
  %v3046 = vld [vmem:[%s2 + $0xc] sm:$0xf]
  %v3047 = vld [vmem:[%s2 + $0x10] sm:$0xf]
  %v3048 = vld [vmem:[%s2 + $0x14] sm:$0xf]
  %v3049 = vld [vmem:[%s2 + $0x18] sm:$0xf]
  %v3050 = vld [vmem:[%s2 + $0x1c] sm:$0xf]
  %v3051 = vld [vmem:[%s2 + $0x20] sm:$0xf]
  %v3052 = vld [vmem:[%s2 + $0x24] sm:$0xf]
  %v3053 = vld [vmem:[%s2 + $0x28] sm:$0xf]
  %v3054 = vld [vmem:[%s2 + $0x2c] sm:$0xf]
  %v3055 = vld [vmem:[%s2 + $0x30] sm:$0xf]
  %v3056 = vld [vmem:[%s2 + $0x34] sm:$0xf]
  %v3057 = vld [vmem:[%s2 + $0x38] sm:$0xf]
  %v3058 = vld [vmem:[%s2 + $0x3c] sm:$0xf]
  %v3059 = vld [vmem:[%s7] sm:$0x1]
  %v3061 = vperm.slane %v3059, 0
  %v3079 = vunpack.c.l.b16 %v3011
  %v3080 = vunpack.c.l.b16 %v3012
  %v3081 = vunpack.c.l.b16 %v3013
  %v3082 = vunpack.c.l.b16 %v3014
  %v3083 = vunpack.c.l.b16 %v3015
  %v3084 = vunpack.c.l.b16 %v3016
  %v3085 = vunpack.c.l.b16 %v3017
  %v3086 = vunpack.c.l.b16 %v3018
  %v3087 = vunpack.c.l.b16 %v3019
  %v3088 = vunpack.c.l.b16 %v3020
  %v3089 = vunpack.c.l.b16 %v3021
  %v3090 = vunpack.c.l.b16 %v3022
  %v3091 = vunpack.c.l.b16 %v3023
  %v3092 = vunpack.c.l.b16 %v3024
  %v3093 = vunpack.c.l.b16 %v3025
  %v3094 = vunpack.c.l.b16 %v3026
  %v3095 = vpack.c.b16 %v3080, %v3079
  %v3096 = vpack.c.b16 %v3082, %v3081
  %v3097 = vpack.c.b16 %v3084, %v3083
  %v3098 = vpack.c.b16 %v3086, %v3085
  %v3099 = vpack.c.b16 %v3088, %v3087
  %v3100 = vpack.c.b16 %v3090, %v3089
  %v3101 = vpack.c.b16 %v3092, %v3091
  %v3102 = vpack.c.b16 %v3094, %v3093
  %v3127 = vunpack.c.l.b16 %v3043
  %v3128 = vunpack.c.l.b16 %v3044
  %v3129 = vunpack.c.l.b16 %v3045
  %v3130 = vunpack.c.l.b16 %v3046
  %v3131 = vunpack.c.l.b16 %v3047
  %v3132 = vunpack.c.l.b16 %v3048
  %v3133 = vunpack.c.l.b16 %v3049
  %v3134 = vunpack.c.l.b16 %v3050
  %v3135 = vunpack.c.l.b16 %v3051
  %v3136 = vunpack.c.l.b16 %v3052
  %v3137 = vunpack.c.l.b16 %v3053
  %v3138 = vunpack.c.l.b16 %v3054
  %v3139 = vunpack.c.l.b16 %v3055
  %v3140 = vunpack.c.l.b16 %v3056
  %v3141 = vunpack.c.l.b16 %v3057
  %v3142 = vunpack.c.l.b16 %v3058
  %v3143 = vpack.c.b16 %v3128, %v3127
  %v3144 = vpack.c.b16 %v3130, %v3129
  %v3145 = vpack.c.b16 %v3132, %v3131
  %v3146 = vpack.c.b16 %v3134, %v3133
  %v3147 = vpack.c.b16 %v3136, %v3135
  %v3148 = vpack.c.b16 %v3138, %v3137
  %v3149 = vpack.c.b16 %v3140, %v3139
  %v3150 = vpack.c.b16 %v3142, %v3141
  %3159 = vmatpush.bf16.msra.mxu0 %v3150
  %3160 = vmatpush.bf16.msra.mxu0 %v3149
  %3161 = vmatpush.bf16.msra.mxu0 %v3148
  %3162 = vmatpush.bf16.msra.mxu0 %v3147
  %3163 = vmatpush.bf16.msra.mxu0 %v3146
  %3164 = vmatpush.bf16.msra.mxu0 %v3145
  %3165 = vmatpush.bf16.msra.mxu0 %v3144
  %3166 = vmatpush.bf16.msra.mxu0 %v3143
  %3167 = vmatmul.bf16.gmra.mxu0 %v3095
  %v3168 = vpop.f32.mrf.mxu0
  %v3169 = vadd.f32 %v3061, %v3168
  %v3170 = vpop.f32.mrf.mxu0
  %v3171 = vadd.f32 %v3061, %v3170
  %3172 = vmatmul.bf16.gmra.mxu0 %v3096
  %v3173 = vpop.f32.mrf.mxu0
  %v3174 = vadd.f32 %v3061, %v3173
  %v3175 = vpop.f32.mrf.mxu0
  %v3176 = vadd.f32 %v3061, %v3175
  %3177 = vmatmul.bf16.gmra.mxu0 %v3097
  %v3178 = vpop.f32.mrf.mxu0
  %v3179 = vadd.f32 %v3061, %v3178
  %v3180 = vpop.f32.mrf.mxu0
  %v3181 = vadd.f32 %v3061, %v3180
  %3182 = vmatmul.bf16.gmra.mxu0 %v3098
  %v3183 = vpop.f32.mrf.mxu0
  %v3184 = vadd.f32 %v3061, %v3183
  %v3185 = vpop.f32.mrf.mxu0
  %v3186 = vadd.f32 %v3061, %v3185
  %3187 = vmatmul.bf16.gmra.mxu0 %v3099
  %v3188 = vpop.f32.mrf.mxu0
  %v3189 = vadd.f32 %v3061, %v3188
  %v3190 = vpop.f32.mrf.mxu0
  %v3191 = vadd.f32 %v3061, %v3190
  %3192 = vmatmul.bf16.gmra.mxu0 %v3100
  %v3193 = vpop.f32.mrf.mxu0
  %v3194 = vadd.f32 %v3061, %v3193
  %v3195 = vpop.f32.mrf.mxu0
  %v3196 = vadd.f32 %v3061, %v3195
  %3197 = vmatmul.bf16.gmra.mxu0 %v3101
  %v3198 = vpop.f32.mrf.mxu0
  %v3199 = vadd.f32 %v3061, %v3198
  %v3200 = vpop.f32.mrf.mxu0
  %v3201 = vadd.f32 %v3061, %v3200
  %3202 = vmatmul.bf16.gmra.mxu0 %v3102
  %v3203 = vpop.f32.mrf.mxu0
  %v3204 = vadd.f32 %v3061, %v3203
  %v3205 = vpop.f32.mrf.mxu0
  %v3206 = vadd.f32 %v3061, %v3205
  %3207 = vdwg.mxu0
  %vm3208 = vcmask 285696
  %3209 = vst.msk [vmem:[%s9] sm:$0xff] %vm3208, %v3169
  %3210 = vst.msk [vmem:[%s9 + $0x8] sm:$0xff] %vm3208, %v3171
  %3211 = vst.msk [vmem:[%s9 + $0x10] sm:$0xff] %vm3208, %v3174
  %3212 = vst.msk [vmem:[%s9 + $0x18] sm:$0xff] %vm3208, %v3176
  %3213 = vst.msk [vmem:[%s9 + $0x20] sm:$0xff] %vm3208, %v3179
  %3214 = vst.msk [vmem:[%s9 + $0x28] sm:$0xff] %vm3208, %v3181
  %3215 = vst.msk [vmem:[%s9 + $0x30] sm:$0xff] %vm3208, %v3184
  %3216 = vst.msk [vmem:[%s9 + $0x38] sm:$0xff] %vm3208, %v3186
  %3217 = vst.msk [vmem:[%s9 + $0x40] sm:$0xff] %vm3208, %v3189
  %3218 = vst.msk [vmem:[%s9 + $0x48] sm:$0xff] %vm3208, %v3191
  %3219 = vst.msk [vmem:[%s9 + $0x50] sm:$0xff] %vm3208, %v3194
  %3220 = vst.msk [vmem:[%s9 + $0x58] sm:$0xff] %vm3208, %v3196
  %3221 = vst.msk [vmem:[%s9 + $0x60] sm:$0xff] %vm3208, %v3199
  %3222 = vst.msk [vmem:[%s9 + $0x68] sm:$0xff] %vm3208, %v3201
  %3223 = vst.msk [vmem:[%s9 + $0x70] sm:$0xff] %vm3208, %v3204
  %3224 = vst.msk [vmem:[%s9 + $0x78] sm:$0xff] %vm3208, %v3206
  // Predicated region
  $region34: #{forward.11} parent=0 // pred_check
    _
  $region35: #{forward.11} parent=0 // pred_check_branch
    %3226 = sbr.rel (0) target = $region37
  $region36: #{forward.11} parent=0 // pred_region
    _
  $region37: #{forward.11} parent=0 // pred_fallthru
    _
  // Predicated region
  $region38: #{forward.11} parent=0 // pred_check
    _
  $region39: #{forward.11} parent=0 // pred_check_branch
    %3228 = sbr.rel (0) target = $region41
  $region40: #{forward.11} parent=0 // pred_region
    _
  $region41: #{forward.11} parent=0 // pred_fallthru
    _
  // Predicated region
  $region42: #{forward.11} parent=0 // pred_check
    _
  $region43: #{forward.11} parent=0 // pred_check_branch
    %3230 = sbr.rel (0) target = $region45
  $region44: #{forward.11} parent=0 // pred_region
    _
  $region45: #{forward.11} parent=0 // pred_fallthru
    _
  // Predicated region
  $region46: #{forward.11} parent=0 // pred_check
    _
  $region47: #{forward.11} parent=0 // pred_check_branch
    %3232 = sbr.rel (0) target = $region49
  $region48: #{forward.11} parent=0 // pred_region
    _
  $region49: #{forward.11} parent=0 // pred_fallthru
    _

// kernel: forward.14
$region0: #{forward.14}
  #allocation0 [shape = 'u32[]', space=smem, size = 0x4, offset = 0x4, fixed_abs, tag = 'smem constant byte address 0x4 - core index']
  #allocation1 [shape = 'u32[72,128]{1,0:T(1,128)}', space=vmem, size = 0x9000, scoped, tag = 'internal scratch']
  #allocation2 [shape = 'f32[128,128]{1,0:T(8,128)}', space=vmem, size = 0x10000, scoped, tag = 'scratch operand']
  %s0 = inlined_call_operand.vmem [shape: bf16[128,128], index: 0, kind: input, shape index: {}]
  %s1 = inlined_call_operand.vmem [shape: bf16[128,128], index: 1, kind: input, shape index: {}]
  %s2 = inlined_call_operand.vmem [shape: bf16[128,1], index: 2, kind: input, shape index: {}]
  %s3 = inlined_call_operand.vmem [shape: bf16[128,128], index: 3, kind: output, shape index: {}]
  %s4 = sld [smem:[#allocation0]]
  $region30: #{forward.14} parent=0
    _
  %s6 = ssub.s32 1, %s4
  %s7 = scalar_select 0, %s6, %s4
  // Predicated region
  $region2: #{forward.14} parent=0 // pred_check
    _
  $region3: #{forward.14} parent=0 // pred_check_branch
    %9 = sbr.rel (0) target = $region5
  $region4: #{forward.14} parent=0 // pred_region
    _
  $region5: #{forward.14} parent=0 // pred_fallthru
    _
  // Predicated region
  $region6: #{forward.14} parent=0 // pred_check
    _
  $region7: #{forward.14} parent=0 // pred_check_branch
    %11 = sbr.rel (0) target = $region9
  $region8: #{forward.14} parent=0 // pred_region
    _
  $region9: #{forward.14} parent=0 // pred_fallthru
    _
  // Predicated region
  $region10: #{forward.14} parent=0 // pred_check
    _
  $region11: #{forward.14} parent=0 // pred_check_branch
    %13 = sbr.rel (0) target = $region13
  $region12: #{forward.14} parent=0 // pred_region
    _
  $region13: #{forward.14} parent=0 // pred_fallthru
    _
  %p14 = scmp.eq.s32.totalorder 0, 0
  // Predicated region
  $region14: #{forward.14} parent=0 // pred_check
    %p15 = pneg %p14
  $region15: #{forward.14} parent=0 // pred_check_branch
    %17 = sbr.rel (%p15) target = $region17
  $region16: #{forward.14} parent=0 // pred_region
    %18 = vst [vmem:[#allocation2] sm:$0xff] 0.0
    %19 = vst [vmem:[#allocation2 + $0x8] sm:$0xff] 0.0
    %20 = vst [vmem:[#allocation2 + $0x10] sm:$0xff] 0.0
    %21 = vst [vmem:[#allocation2 + $0x18] sm:$0xff] 0.0
    %22 = vst [vmem:[#allocation2 + $0x20] sm:$0xff] 0.0
    %23 = vst [vmem:[#allocation2 + $0x28] sm:$0xff] 0.0
    %24 = vst [vmem:[#allocation2 + $0x30] sm:$0xff] 0.0
    %25 = vst [vmem:[#allocation2 + $0x38] sm:$0xff] 0.0
    %26 = vst [vmem:[#allocation2 + $0x40] sm:$0xff] 0.0
    %27 = vst [vmem:[#allocation2 + $0x48] sm:$0xff] 0.0
    %28 = vst [vmem:[#allocation2 + $0x50] sm:$0xff] 0.0
    %29 = vst [vmem:[#allocation2 + $0x58] sm:$0xff] 0.0
    %30 = vst [vmem:[#allocation2 + $0x60] sm:$0xff] 0.0
    %31 = vst [vmem:[#allocation2 + $0x68] sm:$0xff] 0.0
    %32 = vst [vmem:[#allocation2 + $0x70] sm:$0xff] 0.0
    %33 = vst [vmem:[#allocation2 + $0x78] sm:$0xff] 0.0
  $region17: #{forward.14} parent=0 // pred_fallthru
    _
  %v34 = vld [vmem:[%s1] sm:$0xf]
  %v35 = vld [vmem:[%s1 + $0x4] sm:$0xf]
  %v36 = vld [vmem:[%s1 + $0x8] sm:$0xf]
  %v37 = vld [vmem:[%s1 + $0xc] sm:$0xf]
  %v38 = vld [vmem:[%s1 + $0x10] sm:$0xf]
  %v39 = vld [vmem:[%s1 + $0x14] sm:$0xf]
  %v40 = vld [vmem:[%s1 + $0x18] sm:$0xf]
  %v41 = vld [vmem:[%s1 + $0x1c] sm:$0xf]
  %v42 = vld [vmem:[%s1 + $0x20] sm:$0xf]
  %v43 = vld [vmem:[%s1 + $0x24] sm:$0xf]
  %v44 = vld [vmem:[%s1 + $0x28] sm:$0xf]
  %v45 = vld [vmem:[%s1 + $0x2c] sm:$0xf]
  %v46 = vld [vmem:[%s1 + $0x30] sm:$0xf]
  %v47 = vld [vmem:[%s1 + $0x34] sm:$0xf]
  %v48 = vld [vmem:[%s1 + $0x38] sm:$0xf]
  %v49 = vld [vmem:[%s1 + $0x3c] sm:$0xf]
  %v50 = vld [vmem:[%s2] sm:$0xf]
  %v51 = vld [vmem:[%s2 + $0x4] sm:$0xf]
  %v52 = vld [vmem:[%s2 + $0x8] sm:$0xf]
  %v53 = vld [vmem:[%s2 + $0xc] sm:$0xf]
  %v54 = vld [vmem:[%s2 + $0x10] sm:$0xf]
  %v55 = vld [vmem:[%s2 + $0x14] sm:$0xf]
  %v56 = vld [vmem:[%s2 + $0x18] sm:$0xf]
  %v57 = vld [vmem:[%s2 + $0x1c] sm:$0xf]
  %v58 = vld [vmem:[%s2 + $0x20] sm:$0xf]
  %v59 = vld [vmem:[%s2 + $0x24] sm:$0xf]
  %v60 = vld [vmem:[%s2 + $0x28] sm:$0xf]
  %v61 = vld [vmem:[%s2 + $0x2c] sm:$0xf]
  %v62 = vld [vmem:[%s2 + $0x30] sm:$0xf]
  %v63 = vld [vmem:[%s2 + $0x34] sm:$0xf]
  %v64 = vld [vmem:[%s2 + $0x38] sm:$0xf]
  %v65 = vld [vmem:[%s2 + $0x3c] sm:$0xf]
  %67 = vset.pattern.permute.xlu0 0
  %68 = vperm.xlu0 %67, %v50
  %v69 = vpop.permute.xlu0 %68
  %v72 = vunpack.c.l.s4 839922192
  %v73 = vunpack.c.0.s8 %v72
  %v74 = vperm.slane %v69, %v73
  %76 = vset.pattern.permute.xlu0 0
  %77 = vperm.xlu0 %76, %v51
  %v78 = vpop.permute.xlu0 %77
  %v81 = vunpack.c.l.s4 839922192
  %v82 = vunpack.c.0.s8 %v81
  %v83 = vperm.slane %v78, %v82
  %85 = vset.pattern.permute.xlu0 0
  %86 = vperm.xlu0 %85, %v52
  %v87 = vpop.permute.xlu0 %86
  %v90 = vunpack.c.l.s4 839922192
  %v91 = vunpack.c.0.s8 %v90
  %v92 = vperm.slane %v87, %v91
  %94 = vset.pattern.permute.xlu0 0
  %95 = vperm.xlu0 %94, %v53
  %v96 = vpop.permute.xlu0 %95
  %v99 = vunpack.c.l.s4 839922192
  %v100 = vunpack.c.0.s8 %v99
  %v101 = vperm.slane %v96, %v100
  %103 = vset.pattern.permute.xlu0 0
  %104 = vperm.xlu0 %103, %v54
  %v105 = vpop.permute.xlu0 %104
  %v108 = vunpack.c.l.s4 839922192
  %v109 = vunpack.c.0.s8 %v108
  %v110 = vperm.slane %v105, %v109
  %112 = vset.pattern.permute.xlu0 0
  %113 = vperm.xlu0 %112, %v55
  %v114 = vpop.permute.xlu0 %113
  %v117 = vunpack.c.l.s4 839922192
  %v118 = vunpack.c.0.s8 %v117
  %v119 = vperm.slane %v114, %v118
  %121 = vset.pattern.permute.xlu0 0
  %122 = vperm.xlu0 %121, %v56
  %v123 = vpop.permute.xlu0 %122
  %v126 = vunpack.c.l.s4 839922192
  %v127 = vunpack.c.0.s8 %v126
  %v128 = vperm.slane %v123, %v127
  %130 = vset.pattern.permute.xlu0 0
  %131 = vperm.xlu0 %130, %v57
  %v132 = vpop.permute.xlu0 %131
  %v135 = vunpack.c.l.s4 839922192
  %v136 = vunpack.c.0.s8 %v135
  %v137 = vperm.slane %v132, %v136
  %139 = vset.pattern.permute.xlu0 0
  %140 = vperm.xlu0 %139, %v58
  %v141 = vpop.permute.xlu0 %140
  %v144 = vunpack.c.l.s4 839922192
  %v145 = vunpack.c.0.s8 %v144
  %v146 = vperm.slane %v141, %v145
  %148 = vset.pattern.permute.xlu0 0
  %149 = vperm.xlu0 %148, %v59
  %v150 = vpop.permute.xlu0 %149
  %v153 = vunpack.c.l.s4 839922192
  %v154 = vunpack.c.0.s8 %v153
  %v155 = vperm.slane %v150, %v154
  %157 = vset.pattern.permute.xlu0 0
  %158 = vperm.xlu0 %157, %v60
  %v159 = vpop.permute.xlu0 %158
  %v162 = vunpack.c.l.s4 839922192
  %v163 = vunpack.c.0.s8 %v162
  %v164 = vperm.slane %v159, %v163
  %166 = vset.pattern.permute.xlu0 0
  %167 = vperm.xlu0 %166, %v61
  %v168 = vpop.permute.xlu0 %167
  %v171 = vunpack.c.l.s4 839922192
  %v172 = vunpack.c.0.s8 %v171
  %v173 = vperm.slane %v168, %v172
  %175 = vset.pattern.permute.xlu0 0
  %176 = vperm.xlu0 %175, %v62
  %v177 = vpop.permute.xlu0 %176
  %v180 = vunpack.c.l.s4 839922192
  %v181 = vunpack.c.0.s8 %v180
  %v182 = vperm.slane %v177, %v181
  %184 = vset.pattern.permute.xlu0 0
  %185 = vperm.xlu0 %184, %v63
  %v186 = vpop.permute.xlu0 %185
  %v189 = vunpack.c.l.s4 839922192
  %v190 = vunpack.c.0.s8 %v189
  %v191 = vperm.slane %v186, %v190
  %193 = vset.pattern.permute.xlu0 0
  %194 = vperm.xlu0 %193, %v64
  %v195 = vpop.permute.xlu0 %194
  %v198 = vunpack.c.l.s4 839922192
  %v199 = vunpack.c.0.s8 %v198
  %v200 = vperm.slane %v195, %v199
  %202 = vset.pattern.permute.xlu0 0
  %203 = vperm.xlu0 %202, %v65
  %v204 = vpop.permute.xlu0 %203
  %v207 = vunpack.c.l.s4 839922192
  %v208 = vunpack.c.0.s8 %v207
  %v209 = vperm.slane %v204, %v208
  %v210 = vunpack.c.l.bf16 %v34
  %v211 = vunpack.c.l.bf16 %v35
  %v212 = vunpack.c.l.bf16 %v36
  %v213 = vunpack.c.l.bf16 %v37
  %v214 = vunpack.c.l.bf16 %v38
  %v215 = vunpack.c.l.bf16 %v39
  %v216 = vunpack.c.l.bf16 %v40
  %v217 = vunpack.c.l.bf16 %v41
  %v218 = vunpack.c.l.bf16 %v42
  %v219 = vunpack.c.l.bf16 %v43
  %v220 = vunpack.c.l.bf16 %v44
  %v221 = vunpack.c.l.bf16 %v45
  %v222 = vunpack.c.l.bf16 %v46
  %v223 = vunpack.c.l.bf16 %v47
  %v224 = vunpack.c.l.bf16 %v48
  %v225 = vunpack.c.l.bf16 %v49
  %v226 = vunpack.c.l.bf16 %v74
  %v227 = vunpack.c.l.bf16 %v83
  %v228 = vunpack.c.l.bf16 %v92
  %v229 = vunpack.c.l.bf16 %v101
  %v230 = vunpack.c.l.bf16 %v110
  %v231 = vunpack.c.l.bf16 %v119
  %v232 = vunpack.c.l.bf16 %v128
  %v233 = vunpack.c.l.bf16 %v137
  %v234 = vunpack.c.l.bf16 %v146
  %v235 = vunpack.c.l.bf16 %v155
  %v236 = vunpack.c.l.bf16 %v164
  %v237 = vunpack.c.l.bf16 %v173
  %v238 = vunpack.c.l.bf16 %v182
  %v239 = vunpack.c.l.bf16 %v191
  %v240 = vunpack.c.l.bf16 %v200
  %v241 = vunpack.c.l.bf16 %v209
  %v242 = vmul.f32 %v210, %v226
  %v243 = vmul.f32 %v211, %v227
  %v244 = vmul.f32 %v212, %v228
  %v245 = vmul.f32 %v213, %v229
  %v246 = vmul.f32 %v214, %v230
  %v247 = vmul.f32 %v215, %v231
  %v248 = vmul.f32 %v216, %v232
  %v249 = vmul.f32 %v217, %v233
  %v250 = vmul.f32 %v218, %v234
  %v251 = vmul.f32 %v219, %v235
  %v252 = vmul.f32 %v220, %v236
  %v253 = vmul.f32 %v221, %v237
  %v254 = vmul.f32 %v222, %v238
  %v255 = vmul.f32 %v223, %v239
  %v256 = vmul.f32 %v224, %v240
  %v257 = vmul.f32 %v225, %v241
  %v258 = vpack.c.bf16 %v243, %v242
  %v259 = vpack.c.bf16 %v245, %v244
  %v260 = vpack.c.bf16 %v247, %v246
  %v261 = vpack.c.bf16 %v249, %v248
  %v262 = vpack.c.bf16 %v251, %v250
  %v263 = vpack.c.bf16 %v253, %v252
  %v264 = vpack.c.bf16 %v255, %v254
  %v265 = vpack.c.bf16 %v257, %v256
  %v266 = vld [vmem:[#allocation2] sm:$0xff]
  %v267 = vld [vmem:[#allocation2 + $0x8] sm:$0xff]
  %v268 = vld [vmem:[#allocation2 + $0x10] sm:$0xff]
  %v269 = vld [vmem:[#allocation2 + $0x18] sm:$0xff]
  %v270 = vld [vmem:[#allocation2 + $0x20] sm:$0xff]
  %v271 = vld [vmem:[#allocation2 + $0x28] sm:$0xff]
  %v272 = vld [vmem:[#allocation2 + $0x30] sm:$0xff]
  %v273 = vld [vmem:[#allocation2 + $0x38] sm:$0xff]
  %v274 = vld [vmem:[#allocation2 + $0x40] sm:$0xff]
  %v275 = vld [vmem:[#allocation2 + $0x48] sm:$0xff]
  %v276 = vld [vmem:[#allocation2 + $0x50] sm:$0xff]
  %v277 = vld [vmem:[#allocation2 + $0x58] sm:$0xff]
  %v278 = vld [vmem:[#allocation2 + $0x60] sm:$0xff]
  %v279 = vld [vmem:[#allocation2 + $0x68] sm:$0xff]
  %v280 = vld [vmem:[#allocation2 + $0x70] sm:$0xff]
  %v281 = vld [vmem:[#allocation2 + $0x78] sm:$0xff]
  %v282 = vld [vmem:[%s0] sm:$0xf]
  %v283 = vld [vmem:[%s0 + $0x4] sm:$0xf]
  %v284 = vld [vmem:[%s0 + $0x8] sm:$0xf]
  %v285 = vld [vmem:[%s0 + $0xc] sm:$0xf]
  %v286 = vld [vmem:[%s0 + $0x10] sm:$0xf]
  %v287 = vld [vmem:[%s0 + $0x14] sm:$0xf]
  %v288 = vld [vmem:[%s0 + $0x18] sm:$0xf]
  %v289 = vld [vmem:[%s0 + $0x1c] sm:$0xf]
  %v290 = vld [vmem:[%s0 + $0x20] sm:$0xf]
  %v291 = vld [vmem:[%s0 + $0x24] sm:$0xf]
  %v292 = vld [vmem:[%s0 + $0x28] sm:$0xf]
  %v293 = vld [vmem:[%s0 + $0x2c] sm:$0xf]
  %v294 = vld [vmem:[%s0 + $0x30] sm:$0xf]
  %v295 = vld [vmem:[%s0 + $0x34] sm:$0xf]
  %v296 = vld [vmem:[%s0 + $0x38] sm:$0xf]
  %v297 = vld [vmem:[%s0 + $0x3c] sm:$0xf]
  %v314 = vunpack.c.l.b16 %v282
  %v315 = vunpack.c.l.b16 %v283
  %v316 = vunpack.c.l.b16 %v284
  %v317 = vunpack.c.l.b16 %v285
  %v318 = vunpack.c.l.b16 %v286
  %v319 = vunpack.c.l.b16 %v287
  %v320 = vunpack.c.l.b16 %v288
  %v321 = vunpack.c.l.b16 %v289
  %v322 = vunpack.c.l.b16 %v290
  %v323 = vunpack.c.l.b16 %v291
  %v324 = vunpack.c.l.b16 %v292
  %v325 = vunpack.c.l.b16 %v293
  %v326 = vunpack.c.l.b16 %v294
  %v327 = vunpack.c.l.b16 %v295
  %v328 = vunpack.c.l.b16 %v296
  %v329 = vunpack.c.l.b16 %v297
  %v330 = vpack.c.b16 %v315, %v314
  %v331 = vpack.c.b16 %v317, %v316
  %v332 = vpack.c.b16 %v319, %v318
  %v333 = vpack.c.b16 %v321, %v320
  %v334 = vpack.c.b16 %v323, %v322
  %v335 = vpack.c.b16 %v325, %v324
  %v336 = vpack.c.b16 %v327, %v326
  %v337 = vpack.c.b16 %v329, %v328
  %346 = vmatpush.bf16.xpose.msra.mxu0 %v265
  %347 = vmatpush.bf16.xpose.msra.mxu0 %v264
  %348 = vmatpush.bf16.xpose.msra.mxu0 %v263
  %349 = vmatpush.bf16.xpose.msra.mxu0 %v262
  %350 = vmatpush.bf16.xpose.msra.mxu0 %v261
  %351 = vmatpush.bf16.xpose.msra.mxu0 %v260
  %352 = vmatpush.bf16.xpose.msra.mxu0 %v259
  %353 = vmatpush.bf16.xpose.msra.mxu0 %v258
  %354 = vmatmul.bf16.gmra.mxu0 %v330
  %v355 = vpop.f32.mrf.mxu0
  %v356 = vadd.f32 0.0, %v355
  %v357 = vpop.f32.mrf.mxu0
  %v358 = vadd.f32 0.0, %v357
  %359 = vmatmul.bf16.gmra.mxu0 %v331
  %v360 = vpop.f32.mrf.mxu0
  %v361 = vadd.f32 0.0, %v360
  %v362 = vpop.f32.mrf.mxu0
  %v363 = vadd.f32 0.0, %v362
  %364 = vmatmul.bf16.gmra.mxu0 %v332
  %v365 = vpop.f32.mrf.mxu0
  %v366 = vadd.f32 0.0, %v365
  %v367 = vpop.f32.mrf.mxu0
  %v368 = vadd.f32 0.0, %v367
  %369 = vmatmul.bf16.gmra.mxu0 %v333
  %v370 = vpop.f32.mrf.mxu0
  %v371 = vadd.f32 0.0, %v370
  %v372 = vpop.f32.mrf.mxu0
  %v373 = vadd.f32 0.0, %v372
  %374 = vmatmul.bf16.gmra.mxu0 %v334
  %v375 = vpop.f32.mrf.mxu0
  %v376 = vadd.f32 0.0, %v375
  %v377 = vpop.f32.mrf.mxu0
  %v378 = vadd.f32 0.0, %v377
  %379 = vmatmul.bf16.gmra.mxu0 %v335
  %v380 = vpop.f32.mrf.mxu0
  %v381 = vadd.f32 0.0, %v380
  %v382 = vpop.f32.mrf.mxu0
  %v383 = vadd.f32 0.0, %v382
  %384 = vmatmul.bf16.gmra.mxu0 %v336
  %v385 = vpop.f32.mrf.mxu0
  %v386 = vadd.f32 0.0, %v385
  %v387 = vpop.f32.mrf.mxu0
  %v388 = vadd.f32 0.0, %v387
  %389 = vmatmul.bf16.gmra.mxu0 %v337
  %v390 = vpop.f32.mrf.mxu0
  %v391 = vadd.f32 0.0, %v390
  %v392 = vpop.f32.mrf.mxu0
  %v393 = vadd.f32 0.0, %v392
  %394 = vdwg.mxu0
  %v395 = vadd.f32 %v266, %v356
  %v396 = vadd.f32 %v267, %v358
  %v397 = vadd.f32 %v268, %v361
  %v398 = vadd.f32 %v269, %v363
  %v399 = vadd.f32 %v270, %v366
  %v400 = vadd.f32 %v271, %v368
  %v401 = vadd.f32 %v272, %v371
  %v402 = vadd.f32 %v273, %v373
  %v403 = vadd.f32 %v274, %v376
  %v404 = vadd.f32 %v275, %v378
  %v405 = vadd.f32 %v276, %v381
  %v406 = vadd.f32 %v277, %v383
  %v407 = vadd.f32 %v278, %v386
  %v408 = vadd.f32 %v279, %v388
  %v409 = vadd.f32 %v280, %v391
  %v410 = vadd.f32 %v281, %v393
  %411 = vst [vmem:[#allocation2] sm:$0xff] %v395
  %412 = vst [vmem:[#allocation2 + $0x8] sm:$0xff] %v396
  %413 = vst [vmem:[#allocation2 + $0x10] sm:$0xff] %v397
  %414 = vst [vmem:[#allocation2 + $0x18] sm:$0xff] %v398
  %415 = vst [vmem:[#allocation2 + $0x20] sm:$0xff] %v399
  %416 = vst [vmem:[#allocation2 + $0x28] sm:$0xff] %v400
  %417 = vst [vmem:[#allocation2 + $0x30] sm:$0xff] %v401
  %418 = vst [vmem:[#allocation2 + $0x38] sm:$0xff] %v402
  %419 = vst [vmem:[#allocation2 + $0x40] sm:$0xff] %v403
  %420 = vst [vmem:[#allocation2 + $0x48] sm:$0xff] %v404
  %421 = vst [vmem:[#allocation2 + $0x50] sm:$0xff] %v405
  %422 = vst [vmem:[#allocation2 + $0x58] sm:$0xff] %v406
  %423 = vst [vmem:[#allocation2 + $0x60] sm:$0xff] %v407
  %424 = vst [vmem:[#allocation2 + $0x68] sm:$0xff] %v408
  %425 = vst [vmem:[#allocation2 + $0x70] sm:$0xff] %v409
  %426 = vst [vmem:[#allocation2 + $0x78] sm:$0xff] %v410
  // Predicated region
  $region18: #{forward.14} parent=0 // pred_check
    %p427 = pneg %p14
  $region19: #{forward.14} parent=0 // pred_check_branch
    %429 = sbr.rel (%p427) target = $region21
  $region20: #{forward.14} parent=0 // pred_region
    %s430 = smul.u32 0, 128
    %v431 = vlaneseq
    %v432 = vshrl.u32 %v431, 7
    %v433 = vadd.s32 %v432, 8
    %v434 = vadd.s32 %v432, 16
    %v435 = vadd.s32 %v432, 24
    %v436 = vadd.s32 %v432, 32
    %v437 = vadd.s32 %v432, 40
    %v438 = vadd.s32 %v432, 48
    %v439 = vadd.s32 %v432, 56
    %v440 = vadd.s32 %v432, 64
    %v441 = vadd.s32 %v432, 72
    %v442 = vadd.s32 %v432, 80
    %v443 = vadd.s32 %v432, 88
    %v444 = vadd.s32 %v432, 96
    %v445 = vadd.s32 %v432, 104
    %v446 = vadd.s32 %v432, 112
    %v447 = vadd.s32 %v432, 120
    %v448 = vstv %s430
    %v449 = vadd.s32 %v448, %v432
    %v450 = vadd.s32 %v448, %v433
    %v451 = vadd.s32 %v448, %v434
    %v452 = vadd.s32 %v448, %v435
    %v453 = vadd.s32 %v448, %v436
    %v454 = vadd.s32 %v448, %v437
    %v455 = vadd.s32 %v448, %v438
    %v456 = vadd.s32 %v448, %v439
    %v457 = vadd.s32 %v448, %v440
    %v458 = vadd.s32 %v448, %v441
    %v459 = vadd.s32 %v448, %v442
    %v460 = vadd.s32 %v448, %v443
    %v461 = vadd.s32 %v448, %v444
    %v462 = vadd.s32 %v448, %v445
    %v463 = vadd.s32 %v448, %v446
    %v464 = vadd.s32 %v448, %v447
    %s465 = smul.u32 0, 128
    %v466 = vlaneseq
    %v467 = vand.u32 %v466, 127
    %v468 = vstv %s465
    %v469 = vadd.s32 %v468, %v467
    %vm470 = vcmp.eq.s32.totalorder %v449, %v469
    %vm471 = vcmp.eq.s32.totalorder %v450, %v469
    %vm472 = vcmp.eq.s32.totalorder %v451, %v469
    %vm473 = vcmp.eq.s32.totalorder %v452, %v469
    %vm474 = vcmp.eq.s32.totalorder %v453, %v469
    %vm475 = vcmp.eq.s32.totalorder %v454, %v469
    %vm476 = vcmp.eq.s32.totalorder %v455, %v469
    %vm477 = vcmp.eq.s32.totalorder %v456, %v469
    %vm478 = vcmp.eq.s32.totalorder %v457, %v469
    %vm479 = vcmp.eq.s32.totalorder %v458, %v469
    %vm480 = vcmp.eq.s32.totalorder %v459, %v469
    %vm481 = vcmp.eq.s32.totalorder %v460, %v469
    %vm482 = vcmp.eq.s32.totalorder %v461, %v469
    %vm483 = vcmp.eq.s32.totalorder %v462, %v469
    %vm484 = vcmp.eq.s32.totalorder %v463, %v469
    %vm485 = vcmp.eq.s32.totalorder %v464, %v469
    %v486 = vld [vmem:[#allocation2] sm:$0xff]
    %v487 = vld [vmem:[#allocation2 + $0x8] sm:$0xff]
    %v488 = vld [vmem:[#allocation2 + $0x10] sm:$0xff]
    %v489 = vld [vmem:[#allocation2 + $0x18] sm:$0xff]
    %v490 = vld [vmem:[#allocation2 + $0x20] sm:$0xff]
    %v491 = vld [vmem:[#allocation2 + $0x28] sm:$0xff]
    %v492 = vld [vmem:[#allocation2 + $0x30] sm:$0xff]
    %v493 = vld [vmem:[#allocation2 + $0x38] sm:$0xff]
    %v494 = vld [vmem:[#allocation2 + $0x40] sm:$0xff]
    %v495 = vld [vmem:[#allocation2 + $0x48] sm:$0xff]
    %v496 = vld [vmem:[#allocation2 + $0x50] sm:$0xff]
    %v497 = vld [vmem:[#allocation2 + $0x58] sm:$0xff]
    %v498 = vld [vmem:[#allocation2 + $0x60] sm:$0xff]
    %v499 = vld [vmem:[#allocation2 + $0x68] sm:$0xff]
    %v500 = vld [vmem:[#allocation2 + $0x70] sm:$0xff]
    %v501 = vld [vmem:[#allocation2 + $0x78] sm:$0xff]
    %v502 = vsel %vm470, 0.0, %v486
    %v503 = vsel %vm471, 0.0, %v487
    %v504 = vsel %vm472, 0.0, %v488
    %v505 = vsel %vm473, 0.0, %v489
    %v506 = vsel %vm474, 0.0, %v490
    %v507 = vsel %vm475, 0.0, %v491
    %v508 = vsel %vm476, 0.0, %v492
    %v509 = vsel %vm477, 0.0, %v493
    %v510 = vsel %vm478, 0.0, %v494
    %v511 = vsel %vm479, 0.0, %v495
    %v512 = vsel %vm480, 0.0, %v496
    %v513 = vsel %vm481, 0.0, %v497
    %v514 = vsel %vm482, 0.0, %v498
    %v515 = vsel %vm483, 0.0, %v499
    %v516 = vsel %vm484, 0.0, %v500
    %v517 = vsel %vm485, 0.0, %v501
    %v518 = vpack.c.bf16 %v502, %v502
    %v519 = vpack.c.bf16 %v503, %v503
    %v520 = vpack.c.bf16 %v504, %v504
    %v521 = vpack.c.bf16 %v505, %v505
    %v522 = vpack.c.bf16 %v506, %v506
    %v523 = vpack.c.bf16 %v507, %v507
    %v524 = vpack.c.bf16 %v508, %v508
    %v525 = vpack.c.bf16 %v509, %v509
    %v526 = vpack.c.bf16 %v510, %v510
    %v527 = vpack.c.bf16 %v511, %v511
    %v528 = vpack.c.bf16 %v512, %v512
    %v529 = vpack.c.bf16 %v513, %v513
    %v530 = vpack.c.bf16 %v514, %v514
    %v531 = vpack.c.bf16 %v515, %v515
    %v532 = vpack.c.bf16 %v516, %v516
    %v533 = vpack.c.bf16 %v517, %v517
    %534 = vst [vmem:[%s3] sm:$0xf] %v518
    %535 = vst [vmem:[%s3 + $0x4] sm:$0xf] %v519
    %536 = vst [vmem:[%s3 + $0x8] sm:$0xf] %v520
    %537 = vst [vmem:[%s3 + $0xc] sm:$0xf] %v521
    %538 = vst [vmem:[%s3 + $0x10] sm:$0xf] %v522
    %539 = vst [vmem:[%s3 + $0x14] sm:$0xf] %v523
    %540 = vst [vmem:[%s3 + $0x18] sm:$0xf] %v524
    %541 = vst [vmem:[%s3 + $0x1c] sm:$0xf] %v525
    %542 = vst [vmem:[%s3 + $0x20] sm:$0xf] %v526
    %543 = vst [vmem:[%s3 + $0x24] sm:$0xf] %v527
    %544 = vst [vmem:[%s3 + $0x28] sm:$0xf] %v528
    %545 = vst [vmem:[%s3 + $0x2c] sm:$0xf] %v529
    %546 = vst [vmem:[%s3 + $0x30] sm:$0xf] %v530
    %547 = vst [vmem:[%s3 + $0x34] sm:$0xf] %v531
    %548 = vst [vmem:[%s3 + $0x38] sm:$0xf] %v532
    %549 = vst [vmem:[%s3 + $0x3c] sm:$0xf] %v533
  $region21: #{forward.14} parent=0 // pred_fallthru
    _
  // Predicated region
  $region22: #{forward.14} parent=0 // pred_check
    _
  $region23: #{forward.14} parent=0 // pred_check_branch
    %551 = sbr.rel (0) target = $region25
  $region24: #{forward.14} parent=0 // pred_region
    _
  $region25: #{forward.14} parent=0 // pred_fallthru
    _
  // Predicated region
  $region26: #{forward.14} parent=0 // pred_check
    _
  $region27: #{forward.14} parent=0 // pred_check_branch
    %553 = sbr.rel (0) target = $region29
  $region28: #{forward.14} parent=0 // pred_region
    _
  $region29: #{forward.14} parent=0 // pred_fallthru
    _

// kernel: forward.13
$region0: #{forward.13}
  #allocation0 [shape = 'u32[]', space=smem, size = 0x4, offset = 0x4, fixed_abs, tag = 'smem constant byte address 0x4 - core index']
  #allocation1 [shape = 'u32[72,128]{1,0:T(1,128)}', space=vmem, size = 0x9000, scoped, tag = 'internal scratch']
  #allocation2 [shape = 'f32[128,128]{1,0:T(8,128)}', space=vmem, size = 0x10000, scoped, tag = 'scratch operand']
  %s0 = inlined_call_operand.vmem [shape: bf16[128,128], index: 0, kind: input, shape index: {}]
  %s1 = inlined_call_operand.vmem [shape: bf16[128,1], index: 1, kind: input, shape index: {}]
  %s2 = inlined_call_operand.vmem [shape: bf16[128,128], index: 2, kind: input, shape index: {}]
  %s3 = inlined_call_operand.vmem [shape: f32[128,1], index: 3, kind: input, shape index: {}]
  %s4 = inlined_call_operand.vmem [shape: bf16[128,128], index: 4, kind: output, shape index: {}]
  %s5 = sld [smem:[#allocation0]]
  $region34: #{forward.13} parent=0
    _
  %s7 = ssub.s32 1, %s5
  %s8 = scalar_select 0, %s7, %s5
  // Predicated region
  $region2: #{forward.13} parent=0 // pred_check
    _
  $region3: #{forward.13} parent=0 // pred_check_branch
    %10 = sbr.rel (0) target = $region5
  $region4: #{forward.13} parent=0 // pred_region
    _
  $region5: #{forward.13} parent=0 // pred_fallthru
    _
  // Predicated region
  $region6: #{forward.13} parent=0 // pred_check
    _
  $region7: #{forward.13} parent=0 // pred_check_branch
    %12 = sbr.rel (0) target = $region9
  $region8: #{forward.13} parent=0 // pred_region
    _
  $region9: #{forward.13} parent=0 // pred_fallthru
    _
  // Predicated region
  $region10: #{forward.13} parent=0 // pred_check
    _
  $region11: #{forward.13} parent=0 // pred_check_branch
    %14 = sbr.rel (0) target = $region13
  $region12: #{forward.13} parent=0 // pred_region
    _
  $region13: #{forward.13} parent=0 // pred_fallthru
    _
  // Predicated region
  $region14: #{forward.13} parent=0 // pred_check
    _
  $region15: #{forward.13} parent=0 // pred_check_branch
    %16 = sbr.rel (0) target = $region17
  $region16: #{forward.13} parent=0 // pred_region
    _
  $region17: #{forward.13} parent=0 // pred_fallthru
    _
  %p18 = scmp.eq.s32.totalorder 0, 0
  // Predicated region
  $region18: #{forward.13} parent=0 // pred_check
    %p19 = pneg %p18
  $region19: #{forward.13} parent=0 // pred_check_branch
    %21 = sbr.rel (%p19) target = $region21
  $region20: #{forward.13} parent=0 // pred_region
    %22 = vst [vmem:[#allocation2] sm:$0xff] 0.0
    %23 = vst [vmem:[#allocation2 + $0x8] sm:$0xff] 0.0
    %24 = vst [vmem:[#allocation2 + $0x10] sm:$0xff] 0.0
    %25 = vst [vmem:[#allocation2 + $0x18] sm:$0xff] 0.0
    %26 = vst [vmem:[#allocation2 + $0x20] sm:$0xff] 0.0
    %27 = vst [vmem:[#allocation2 + $0x28] sm:$0xff] 0.0
    %28 = vst [vmem:[#allocation2 + $0x30] sm:$0xff] 0.0
    %29 = vst [vmem:[#allocation2 + $0x38] sm:$0xff] 0.0
    %30 = vst [vmem:[#allocation2 + $0x40] sm:$0xff] 0.0
    %31 = vst [vmem:[#allocation2 + $0x48] sm:$0xff] 0.0
    %32 = vst [vmem:[#allocation2 + $0x50] sm:$0xff] 0.0
    %33 = vst [vmem:[#allocation2 + $0x58] sm:$0xff] 0.0
    %34 = vst [vmem:[#allocation2 + $0x60] sm:$0xff] 0.0
    %35 = vst [vmem:[#allocation2 + $0x68] sm:$0xff] 0.0
    %36 = vst [vmem:[#allocation2 + $0x70] sm:$0xff] 0.0
    %37 = vst [vmem:[#allocation2 + $0x78] sm:$0xff] 0.0
  $region21: #{forward.13} parent=0 // pred_fallthru
    _
  %v38 = vld [vmem:[%s2] sm:$0xf]
  %v39 = vld [vmem:[%s2 + $0x4] sm:$0xf]
  %v40 = vld [vmem:[%s2 + $0x8] sm:$0xf]
  %v41 = vld [vmem:[%s2 + $0xc] sm:$0xf]
  %v42 = vld [vmem:[%s2 + $0x10] sm:$0xf]
  %v43 = vld [vmem:[%s2 + $0x14] sm:$0xf]
  %v44 = vld [vmem:[%s2 + $0x18] sm:$0xf]
  %v45 = vld [vmem:[%s2 + $0x1c] sm:$0xf]
  %v46 = vld [vmem:[%s2 + $0x20] sm:$0xf]
  %v47 = vld [vmem:[%s2 + $0x24] sm:$0xf]
  %v48 = vld [vmem:[%s2 + $0x28] sm:$0xf]
  %v49 = vld [vmem:[%s2 + $0x2c] sm:$0xf]
  %v50 = vld [vmem:[%s2 + $0x30] sm:$0xf]
  %v51 = vld [vmem:[%s2 + $0x34] sm:$0xf]
  %v52 = vld [vmem:[%s2 + $0x38] sm:$0xf]
  %v53 = vld [vmem:[%s2 + $0x3c] sm:$0xf]
  %v54 = vld [vmem:[%s3] sm:$0xff]
  %v55 = vld [vmem:[%s3 + $0x8] sm:$0xff]
  %v56 = vld [vmem:[%s3 + $0x10] sm:$0xff]
  %v57 = vld [vmem:[%s3 + $0x18] sm:$0xff]
  %v58 = vld [vmem:[%s3 + $0x20] sm:$0xff]
  %v59 = vld [vmem:[%s3 + $0x28] sm:$0xff]
  %v60 = vld [vmem:[%s3 + $0x30] sm:$0xff]
  %v61 = vld [vmem:[%s3 + $0x38] sm:$0xff]
  %v62 = vld [vmem:[%s3 + $0x40] sm:$0xff]
  %v63 = vld [vmem:[%s3 + $0x48] sm:$0xff]
  %v64 = vld [vmem:[%s3 + $0x50] sm:$0xff]
  %v65 = vld [vmem:[%s3 + $0x58] sm:$0xff]
  %v66 = vld [vmem:[%s3 + $0x60] sm:$0xff]
  %v67 = vld [vmem:[%s3 + $0x68] sm:$0xff]
  %v68 = vld [vmem:[%s3 + $0x70] sm:$0xff]
  %v69 = vld [vmem:[%s3 + $0x78] sm:$0xff]
  %v70 = vlaneseq
  %v71 = vand.u32 %v70, 127
  %s72 = smul.u32 0, 128
  %v73 = vlaneseq
  %v74 = vshrl.u32 %v73, 7
  %v75 = vadd.s32 %v74, 8
  %v76 = vadd.s32 %v74, 16
  %v77 = vadd.s32 %v74, 24
  %v78 = vadd.s32 %v74, 32
  %v79 = vadd.s32 %v74, 40
  %v80 = vadd.s32 %v74, 48
  %v81 = vadd.s32 %v74, 56
  %v82 = vadd.s32 %v74, 64
  %v83 = vadd.s32 %v74, 72
  %v84 = vadd.s32 %v74, 80
  %v85 = vadd.s32 %v74, 88
  %v86 = vadd.s32 %v74, 96
  %v87 = vadd.s32 %v74, 104
  %v88 = vadd.s32 %v74, 112
  %v89 = vadd.s32 %v74, 120
  %v90 = vstv %s72
  %v91 = vadd.s32 %v90, %v74
  %v92 = vadd.s32 %v90, %v75
  %v93 = vadd.s32 %v90, %v76
  %v94 = vadd.s32 %v90, %v77
  %v95 = vadd.s32 %v90, %v78
  %v96 = vadd.s32 %v90, %v79
  %v97 = vadd.s32 %v90, %v80
  %v98 = vadd.s32 %v90, %v81
  %v99 = vadd.s32 %v90, %v82
  %v100 = vadd.s32 %v90, %v83
  %v101 = vadd.s32 %v90, %v84
  %v102 = vadd.s32 %v90, %v85
  %v103 = vadd.s32 %v90, %v86
  %v104 = vadd.s32 %v90, %v87
  %v105 = vadd.s32 %v90, %v88
  %v106 = vadd.s32 %v90, %v89
  %vm107 = vcmp.eq.s32.totalorder %v71, %v91
  %vm108 = vcmp.eq.s32.totalorder %v71, %v92
  %vm109 = vcmp.eq.s32.totalorder %v71, %v93
  %vm110 = vcmp.eq.s32.totalorder %v71, %v94
  %vm111 = vcmp.eq.s32.totalorder %v71, %v95
  %vm112 = vcmp.eq.s32.totalorder %v71, %v96
  %vm113 = vcmp.eq.s32.totalorder %v71, %v97
  %vm114 = vcmp.eq.s32.totalorder %v71, %v98
  %vm115 = vcmp.eq.s32.totalorder %v71, %v99
  %vm116 = vcmp.eq.s32.totalorder %v71, %v100
  %vm117 = vcmp.eq.s32.totalorder %v71, %v101
  %vm118 = vcmp.eq.s32.totalorder %v71, %v102
  %vm119 = vcmp.eq.s32.totalorder %v71, %v103
  %vm120 = vcmp.eq.s32.totalorder %v71, %v104
  %vm121 = vcmp.eq.s32.totalorder %v71, %v105
  %vm122 = vcmp.eq.s32.totalorder %v71, %v106
  %vm123 = vcmp.gt.f32.partialorder %v54, 0.0
  %vm124 = vcmp.gt.f32.partialorder %v55, 0.0
  %vm125 = vcmp.gt.f32.partialorder %v56, 0.0
  %vm126 = vcmp.gt.f32.partialorder %v57, 0.0
  %vm127 = vcmp.gt.f32.partialorder %v58, 0.0
  %vm128 = vcmp.gt.f32.partialorder %v59, 0.0
  %vm129 = vcmp.gt.f32.partialorder %v60, 0.0
  %vm130 = vcmp.gt.f32.partialorder %v61, 0.0
  %vm131 = vcmp.gt.f32.partialorder %v62, 0.0
  %vm132 = vcmp.gt.f32.partialorder %v63, 0.0
  %vm133 = vcmp.gt.f32.partialorder %v64, 0.0
  %vm134 = vcmp.gt.f32.partialorder %v65, 0.0
  %vm135 = vcmp.gt.f32.partialorder %v66, 0.0
  %vm136 = vcmp.gt.f32.partialorder %v67, 0.0
  %vm137 = vcmp.gt.f32.partialorder %v68, 0.0
  %vm138 = vcmp.gt.f32.partialorder %v69, 0.0
  %v139 = vsel %vm123, 1, 0
  %v140 = vsel %vm124, 1, 0
  %v141 = vsel %vm125, 1, 0
  %v142 = vsel %vm126, 1, 0
  %v143 = vsel %vm127, 1, 0
  %v144 = vsel %vm128, 1, 0
  %v145 = vsel %vm129, 1, 0
  %v146 = vsel %vm130, 1, 0
  %v147 = vsel %vm131, 1, 0
  %v148 = vsel %vm132, 1, 0
  %v149 = vsel %vm133, 1, 0
  %v150 = vsel %vm134, 1, 0
  %v151 = vsel %vm135, 1, 0
  %v152 = vsel %vm136, 1, 0
  %v153 = vsel %vm137, 1, 0
  %v154 = vsel %vm138, 1, 0
  %155 = vset.pattern.permute.xlu0 0
  %156 = vperm.xlu0 %155, %v139
  %v157 = vpop.permute.xlu0 %156
  %158 = vset.pattern.permute.xlu0 0
  %159 = vperm.xlu0 %158, %v140
  %v160 = vpop.permute.xlu0 %159
  %161 = vset.pattern.permute.xlu0 0
  %162 = vperm.xlu0 %161, %v141
  %v163 = vpop.permute.xlu0 %162
  %164 = vset.pattern.permute.xlu0 0
  %165 = vperm.xlu0 %164, %v142
  %v166 = vpop.permute.xlu0 %165
  %167 = vset.pattern.permute.xlu0 0
  %168 = vperm.xlu0 %167, %v143
  %v169 = vpop.permute.xlu0 %168
  %170 = vset.pattern.permute.xlu0 0
  %171 = vperm.xlu0 %170, %v144
  %v172 = vpop.permute.xlu0 %171
  %173 = vset.pattern.permute.xlu0 0
  %174 = vperm.xlu0 %173, %v145
  %v175 = vpop.permute.xlu0 %174
  %176 = vset.pattern.permute.xlu0 0
  %177 = vperm.xlu0 %176, %v146
  %v178 = vpop.permute.xlu0 %177
  %179 = vset.pattern.permute.xlu0 0
  %180 = vperm.xlu0 %179, %v147
  %v181 = vpop.permute.xlu0 %180
  %182 = vset.pattern.permute.xlu0 0
  %183 = vperm.xlu0 %182, %v148
  %v184 = vpop.permute.xlu0 %183
  %185 = vset.pattern.permute.xlu0 0
  %186 = vperm.xlu0 %185, %v149
  %v187 = vpop.permute.xlu0 %186
  %188 = vset.pattern.permute.xlu0 0
  %189 = vperm.xlu0 %188, %v150
  %v190 = vpop.permute.xlu0 %189
  %191 = vset.pattern.permute.xlu0 0
  %192 = vperm.xlu0 %191, %v151
  %v193 = vpop.permute.xlu0 %192
  %194 = vset.pattern.permute.xlu0 0
  %195 = vperm.xlu0 %194, %v152
  %v196 = vpop.permute.xlu0 %195
  %197 = vset.pattern.permute.xlu0 0
  %198 = vperm.xlu0 %197, %v153
  %v199 = vpop.permute.xlu0 %198
  %200 = vset.pattern.permute.xlu0 0
  %201 = vperm.xlu0 %200, %v154
  %v202 = vpop.permute.xlu0 %201
  %vm203 = vcmp.eq.s32.totalorder %v157, 1
  %vm204 = vcmp.eq.s32.totalorder %v160, 1
  %vm205 = vcmp.eq.s32.totalorder %v163, 1
  %vm206 = vcmp.eq.s32.totalorder %v166, 1
  %vm207 = vcmp.eq.s32.totalorder %v169, 1
  %vm208 = vcmp.eq.s32.totalorder %v172, 1
  %vm209 = vcmp.eq.s32.totalorder %v175, 1
  %vm210 = vcmp.eq.s32.totalorder %v178, 1
  %vm211 = vcmp.eq.s32.totalorder %v181, 1
  %vm212 = vcmp.eq.s32.totalorder %v184, 1
  %vm213 = vcmp.eq.s32.totalorder %v187, 1
  %vm214 = vcmp.eq.s32.totalorder %v190, 1
  %vm215 = vcmp.eq.s32.totalorder %v193, 1
  %vm216 = vcmp.eq.s32.totalorder %v196, 1
  %vm217 = vcmp.eq.s32.totalorder %v199, 1
  %vm218 = vcmp.eq.s32.totalorder %v202, 1
  %vm219 = vmand %vm107, %vm203
  %vm220 = vmand %vm108, %vm204
  %vm221 = vmand %vm109, %vm205
  %vm222 = vmand %vm110, %vm206
  %vm223 = vmand %vm111, %vm207
  %vm224 = vmand %vm112, %vm208
  %vm225 = vmand %vm113, %vm209
  %vm226 = vmand %vm114, %vm210
  %vm227 = vmand %vm115, %vm211
  %vm228 = vmand %vm116, %vm212
  %vm229 = vmand %vm117, %vm213
  %vm230 = vmand %vm118, %vm214
  %vm231 = vmand %vm119, %vm215
  %vm232 = vmand %vm120, %vm216
  %vm233 = vmand %vm121, %vm217
  %vm234 = vmand %vm122, %vm218
  %v235 = vunpack.c.l.bf16 %v38
  %v236 = vunpack.c.l.bf16 %v39
  %v237 = vunpack.c.l.bf16 %v40
  %v238 = vunpack.c.l.bf16 %v41
  %v239 = vunpack.c.l.bf16 %v42
  %v240 = vunpack.c.l.bf16 %v43
  %v241 = vunpack.c.l.bf16 %v44
  %v242 = vunpack.c.l.bf16 %v45
  %v243 = vunpack.c.l.bf16 %v46
  %v244 = vunpack.c.l.bf16 %v47
  %v245 = vunpack.c.l.bf16 %v48
  %v246 = vunpack.c.l.bf16 %v49
  %v247 = vunpack.c.l.bf16 %v50
  %v248 = vunpack.c.l.bf16 %v51
  %v249 = vunpack.c.l.bf16 %v52
  %v250 = vunpack.c.l.bf16 %v53
  %vm251 = vcmp.eq.f32.partialorder %v235, 0.0
  %vm252 = vcmp.eq.f32.partialorder %v236, 0.0
  %vm253 = vcmp.eq.f32.partialorder %v237, 0.0
  %vm254 = vcmp.eq.f32.partialorder %v238, 0.0
  %vm255 = vcmp.eq.f32.partialorder %v239, 0.0
  %vm256 = vcmp.eq.f32.partialorder %v240, 0.0
  %vm257 = vcmp.eq.f32.partialorder %v241, 0.0
  %vm258 = vcmp.eq.f32.partialorder %v242, 0.0
  %vm259 = vcmp.eq.f32.partialorder %v243, 0.0
  %vm260 = vcmp.eq.f32.partialorder %v244, 0.0
  %vm261 = vcmp.eq.f32.partialorder %v245, 0.0
  %vm262 = vcmp.eq.f32.partialorder %v246, 0.0
  %vm263 = vcmp.eq.f32.partialorder %v247, 0.0
  %vm264 = vcmp.eq.f32.partialorder %v248, 0.0
  %vm265 = vcmp.eq.f32.partialorder %v249, 0.0
  %vm266 = vcmp.eq.f32.partialorder %v250, 0.0
  %vm267 = vmand %vm219, %vm251
  %vm268 = vmand %vm220, %vm252
  %vm269 = vmand %vm221, %vm253
  %vm270 = vmand %vm222, %vm254
  %vm271 = vmand %vm223, %vm255
  %vm272 = vmand %vm224, %vm256
  %vm273 = vmand %vm225, %vm257
  %vm274 = vmand %vm226, %vm258
  %vm275 = vmand %vm227, %vm259
  %vm276 = vmand %vm228, %vm260
  %vm277 = vmand %vm229, %vm261
  %vm278 = vmand %vm230, %vm262
  %vm279 = vmand %vm231, %vm263
  %vm280 = vmand %vm232, %vm264
  %vm281 = vmand %vm233, %vm265
  %vm282 = vmand %vm234, %vm266
  %vm283 = vmpackc.low %vm267, %vm267
  %vm284 = vmpackc.low %vm268, %vm268
  %vm285 = vmpackc.low %vm269, %vm269
  %vm286 = vmpackc.low %vm270, %vm270
  %vm287 = vmpackc.low %vm271, %vm271
  %vm288 = vmpackc.low %vm272, %vm272
  %vm289 = vmpackc.low %vm273, %vm273
  %vm290 = vmpackc.low %vm274, %vm274
  %vm291 = vmpackc.low %vm275, %vm275
  %vm292 = vmpackc.low %vm276, %vm276
  %vm293 = vmpackc.low %vm277, %vm277
  %vm294 = vmpackc.low %vm278, %vm278
  %vm295 = vmpackc.low %vm279, %vm279
  %vm296 = vmpackc.low %vm280, %vm280
  %vm297 = vmpackc.low %vm281, %vm281
  %vm298 = vmpackc.low %vm282, %vm282
  %v299 = vsel %vm283, 1065369472, %v38
  %v300 = vsel %vm284, 1065369472, %v39
  %v301 = vsel %vm285, 1065369472, %v40
  %v302 = vsel %vm286, 1065369472, %v41
  %v303 = vsel %vm287, 1065369472, %v42
  %v304 = vsel %vm288, 1065369472, %v43
  %v305 = vsel %vm289, 1065369472, %v44
  %v306 = vsel %vm290, 1065369472, %v45
  %v307 = vsel %vm291, 1065369472, %v46
  %v308 = vsel %vm292, 1065369472, %v47
  %v309 = vsel %vm293, 1065369472, %v48
  %v310 = vsel %vm294, 1065369472, %v49
  %v311 = vsel %vm295, 1065369472, %v50
  %v312 = vsel %vm296, 1065369472, %v51
  %v313 = vsel %vm297, 1065369472, %v52
  %v314 = vsel %vm298, 1065369472, %v53
  %v315 = vld [vmem:[%s0] sm:$0xf]
  %v316 = vld [vmem:[%s0 + $0x4] sm:$0xf]
  %v317 = vld [vmem:[%s0 + $0x8] sm:$0xf]
  %v318 = vld [vmem:[%s0 + $0xc] sm:$0xf]
  %v319 = vld [vmem:[%s0 + $0x10] sm:$0xf]
  %v320 = vld [vmem:[%s0 + $0x14] sm:$0xf]
  %v321 = vld [vmem:[%s0 + $0x18] sm:$0xf]
  %v322 = vld [vmem:[%s0 + $0x1c] sm:$0xf]
  %v323 = vld [vmem:[%s0 + $0x20] sm:$0xf]
  %v324 = vld [vmem:[%s0 + $0x24] sm:$0xf]
  %v325 = vld [vmem:[%s0 + $0x28] sm:$0xf]
  %v326 = vld [vmem:[%s0 + $0x2c] sm:$0xf]
  %v327 = vld [vmem:[%s0 + $0x30] sm:$0xf]
  %v328 = vld [vmem:[%s0 + $0x34] sm:$0xf]
  %v329 = vld [vmem:[%s0 + $0x38] sm:$0xf]
  %v330 = vld [vmem:[%s0 + $0x3c] sm:$0xf]
  %v331 = vld [vmem:[%s1] sm:$0xf]
  %v332 = vld [vmem:[%s1 + $0x4] sm:$0xf]
  %v333 = vld [vmem:[%s1 + $0x8] sm:$0xf]
  %v334 = vld [vmem:[%s1 + $0xc] sm:$0xf]
  %v335 = vld [vmem:[%s1 + $0x10] sm:$0xf]
  %v336 = vld [vmem:[%s1 + $0x14] sm:$0xf]
  %v337 = vld [vmem:[%s1 + $0x18] sm:$0xf]
  %v338 = vld [vmem:[%s1 + $0x1c] sm:$0xf]
  %v339 = vld [vmem:[%s1 + $0x20] sm:$0xf]
  %v340 = vld [vmem:[%s1 + $0x24] sm:$0xf]
  %v341 = vld [vmem:[%s1 + $0x28] sm:$0xf]
  %v342 = vld [vmem:[%s1 + $0x2c] sm:$0xf]
  %v343 = vld [vmem:[%s1 + $0x30] sm:$0xf]
  %v344 = vld [vmem:[%s1 + $0x34] sm:$0xf]
  %v345 = vld [vmem:[%s1 + $0x38] sm:$0xf]
  %v346 = vld [vmem:[%s1 + $0x3c] sm:$0xf]
  %348 = vset.pattern.permute.xlu0 0
  %349 = vperm.xlu0 %348, %v331
  %v350 = vpop.permute.xlu0 %349
  %v353 = vunpack.c.l.s4 839922192
  %v354 = vunpack.c.0.s8 %v353
  %v355 = vperm.slane %v350, %v354
  %357 = vset.pattern.permute.xlu0 0
  %358 = vperm.xlu0 %357, %v332
  %v359 = vpop.permute.xlu0 %358
  %v362 = vunpack.c.l.s4 839922192
  %v363 = vunpack.c.0.s8 %v362
  %v364 = vperm.slane %v359, %v363
  %366 = vset.pattern.permute.xlu0 0
  %367 = vperm.xlu0 %366, %v333
  %v368 = vpop.permute.xlu0 %367
  %v371 = vunpack.c.l.s4 839922192
  %v372 = vunpack.c.0.s8 %v371
  %v373 = vperm.slane %v368, %v372
  %375 = vset.pattern.permute.xlu0 0
  %376 = vperm.xlu0 %375, %v334
  %v377 = vpop.permute.xlu0 %376
  %v380 = vunpack.c.l.s4 839922192
  %v381 = vunpack.c.0.s8 %v380
  %v382 = vperm.slane %v377, %v381
  %384 = vset.pattern.permute.xlu0 0
  %385 = vperm.xlu0 %384, %v335
  %v386 = vpop.permute.xlu0 %385
  %v389 = vunpack.c.l.s4 839922192
  %v390 = vunpack.c.0.s8 %v389
  %v391 = vperm.slane %v386, %v390
  %393 = vset.pattern.permute.xlu0 0
  %394 = vperm.xlu0 %393, %v336
  %v395 = vpop.permute.xlu0 %394
  %v398 = vunpack.c.l.s4 839922192
  %v399 = vunpack.c.0.s8 %v398
  %v400 = vperm.slane %v395, %v399
  %402 = vset.pattern.permute.xlu0 0
  %403 = vperm.xlu0 %402, %v337
  %v404 = vpop.permute.xlu0 %403
  %v407 = vunpack.c.l.s4 839922192
  %v408 = vunpack.c.0.s8 %v407
  %v409 = vperm.slane %v404, %v408
  %411 = vset.pattern.permute.xlu0 0
  %412 = vperm.xlu0 %411, %v338
  %v413 = vpop.permute.xlu0 %412
  %v416 = vunpack.c.l.s4 839922192
  %v417 = vunpack.c.0.s8 %v416
  %v418 = vperm.slane %v413, %v417
  %420 = vset.pattern.permute.xlu0 0
  %421 = vperm.xlu0 %420, %v339
  %v422 = vpop.permute.xlu0 %421
  %v425 = vunpack.c.l.s4 839922192
  %v426 = vunpack.c.0.s8 %v425
  %v427 = vperm.slane %v422, %v426
  %429 = vset.pattern.permute.xlu0 0
  %430 = vperm.xlu0 %429, %v340
  %v431 = vpop.permute.xlu0 %430
  %v434 = vunpack.c.l.s4 839922192
  %v435 = vunpack.c.0.s8 %v434
  %v436 = vperm.slane %v431, %v435
  %438 = vset.pattern.permute.xlu0 0
  %439 = vperm.xlu0 %438, %v341
  %v440 = vpop.permute.xlu0 %439
  %v443 = vunpack.c.l.s4 839922192
  %v444 = vunpack.c.0.s8 %v443
  %v445 = vperm.slane %v440, %v444
  %447 = vset.pattern.permute.xlu0 0
  %448 = vperm.xlu0 %447, %v342
  %v449 = vpop.permute.xlu0 %448
  %v452 = vunpack.c.l.s4 839922192
  %v453 = vunpack.c.0.s8 %v452
  %v454 = vperm.slane %v449, %v453
  %456 = vset.pattern.permute.xlu0 0
  %457 = vperm.xlu0 %456, %v343
  %v458 = vpop.permute.xlu0 %457
  %v461 = vunpack.c.l.s4 839922192
  %v462 = vunpack.c.0.s8 %v461
  %v463 = vperm.slane %v458, %v462
  %465 = vset.pattern.permute.xlu0 0
  %466 = vperm.xlu0 %465, %v344
  %v467 = vpop.permute.xlu0 %466
  %v470 = vunpack.c.l.s4 839922192
  %v471 = vunpack.c.0.s8 %v470
  %v472 = vperm.slane %v467, %v471
  %474 = vset.pattern.permute.xlu0 0
  %475 = vperm.xlu0 %474, %v345
  %v476 = vpop.permute.xlu0 %475
  %v479 = vunpack.c.l.s4 839922192
  %v480 = vunpack.c.0.s8 %v479
  %v481 = vperm.slane %v476, %v480
  %483 = vset.pattern.permute.xlu0 0
  %484 = vperm.xlu0 %483, %v346
  %v485 = vpop.permute.xlu0 %484
  %v488 = vunpack.c.l.s4 839922192
  %v489 = vunpack.c.0.s8 %v488
  %v490 = vperm.slane %v485, %v489
  %v491 = vunpack.c.l.bf16 %v315
  %v492 = vunpack.c.l.bf16 %v316
  %v493 = vunpack.c.l.bf16 %v317
  %v494 = vunpack.c.l.bf16 %v318
  %v495 = vunpack.c.l.bf16 %v319
  %v496 = vunpack.c.l.bf16 %v320
  %v497 = vunpack.c.l.bf16 %v321
  %v498 = vunpack.c.l.bf16 %v322
  %v499 = vunpack.c.l.bf16 %v323
  %v500 = vunpack.c.l.bf16 %v324
  %v501 = vunpack.c.l.bf16 %v325
  %v502 = vunpack.c.l.bf16 %v326
  %v503 = vunpack.c.l.bf16 %v327
  %v504 = vunpack.c.l.bf16 %v328
  %v505 = vunpack.c.l.bf16 %v329
  %v506 = vunpack.c.l.bf16 %v330
  %v507 = vunpack.c.l.bf16 %v355
  %v508 = vunpack.c.l.bf16 %v364
  %v509 = vunpack.c.l.bf16 %v373
  %v510 = vunpack.c.l.bf16 %v382
  %v511 = vunpack.c.l.bf16 %v391
  %v512 = vunpack.c.l.bf16 %v400
  %v513 = vunpack.c.l.bf16 %v409
  %v514 = vunpack.c.l.bf16 %v418
  %v515 = vunpack.c.l.bf16 %v427
  %v516 = vunpack.c.l.bf16 %v436
  %v517 = vunpack.c.l.bf16 %v445
  %v518 = vunpack.c.l.bf16 %v454
  %v519 = vunpack.c.l.bf16 %v463
  %v520 = vunpack.c.l.bf16 %v472
  %v521 = vunpack.c.l.bf16 %v481
  %v522 = vunpack.c.l.bf16 %v490
  %v523 = vmul.f32 %v491, %v507
  %v524 = vmul.f32 %v492, %v508
  %v525 = vmul.f32 %v493, %v509
  %v526 = vmul.f32 %v494, %v510
  %v527 = vmul.f32 %v495, %v511
  %v528 = vmul.f32 %v496, %v512
  %v529 = vmul.f32 %v497, %v513
  %v530 = vmul.f32 %v498, %v514
  %v531 = vmul.f32 %v499, %v515
  %v532 = vmul.f32 %v500, %v516
  %v533 = vmul.f32 %v501, %v517
  %v534 = vmul.f32 %v502, %v518
  %v535 = vmul.f32 %v503, %v519
  %v536 = vmul.f32 %v504, %v520
  %v537 = vmul.f32 %v505, %v521
  %v538 = vmul.f32 %v506, %v522
  %v539 = vpack.c.bf16 %v524, %v523
  %v540 = vpack.c.bf16 %v526, %v525
  %v541 = vpack.c.bf16 %v528, %v527
  %v542 = vpack.c.bf16 %v530, %v529
  %v543 = vpack.c.bf16 %v532, %v531
  %v544 = vpack.c.bf16 %v534, %v533
  %v545 = vpack.c.bf16 %v536, %v535
  %v546 = vpack.c.bf16 %v538, %v537
  %v547 = vld [vmem:[#allocation2] sm:$0xff]
  %v548 = vld [vmem:[#allocation2 + $0x8] sm:$0xff]
  %v549 = vld [vmem:[#allocation2 + $0x10] sm:$0xff]
  %v550 = vld [vmem:[#allocation2 + $0x18] sm:$0xff]
  %v551 = vld [vmem:[#allocation2 + $0x20] sm:$0xff]
  %v552 = vld [vmem:[#allocation2 + $0x28] sm:$0xff]
  %v553 = vld [vmem:[#allocation2 + $0x30] sm:$0xff]
  %v554 = vld [vmem:[#allocation2 + $0x38] sm:$0xff]
  %v555 = vld [vmem:[#allocation2 + $0x40] sm:$0xff]
  %v556 = vld [vmem:[#allocation2 + $0x48] sm:$0xff]
  %v557 = vld [vmem:[#allocation2 + $0x50] sm:$0xff]
  %v558 = vld [vmem:[#allocation2 + $0x58] sm:$0xff]
  %v559 = vld [vmem:[#allocation2 + $0x60] sm:$0xff]
  %v560 = vld [vmem:[#allocation2 + $0x68] sm:$0xff]
  %v561 = vld [vmem:[#allocation2 + $0x70] sm:$0xff]
  %v562 = vld [vmem:[#allocation2 + $0x78] sm:$0xff]
  %v579 = vunpack.c.l.b16 %v299
  %v580 = vunpack.c.l.b16 %v300
  %v581 = vunpack.c.l.b16 %v301
  %v582 = vunpack.c.l.b16 %v302
  %v583 = vunpack.c.l.b16 %v303
  %v584 = vunpack.c.l.b16 %v304
  %v585 = vunpack.c.l.b16 %v305
  %v586 = vunpack.c.l.b16 %v306
  %v587 = vunpack.c.l.b16 %v307
  %v588 = vunpack.c.l.b16 %v308
  %v589 = vunpack.c.l.b16 %v309
  %v590 = vunpack.c.l.b16 %v310
  %v591 = vunpack.c.l.b16 %v311
  %v592 = vunpack.c.l.b16 %v312
  %v593 = vunpack.c.l.b16 %v313
  %v594 = vunpack.c.l.b16 %v314
  %v595 = vpack.c.b16 %v580, %v579
  %v596 = vpack.c.b16 %v582, %v581
  %v597 = vpack.c.b16 %v584, %v583
  %v598 = vpack.c.b16 %v586, %v585
  %v599 = vpack.c.b16 %v588, %v587
  %v600 = vpack.c.b16 %v590, %v589
  %v601 = vpack.c.b16 %v592, %v591
  %v602 = vpack.c.b16 %v594, %v593
  %611 = vmatpush.bf16.msra.mxu0 %v602
  %612 = vmatpush.bf16.msra.mxu0 %v601
  %613 = vmatpush.bf16.msra.mxu0 %v600
  %614 = vmatpush.bf16.msra.mxu0 %v599
  %615 = vmatpush.bf16.msra.mxu0 %v598
  %616 = vmatpush.bf16.msra.mxu0 %v597
  %617 = vmatpush.bf16.msra.mxu0 %v596
  %618 = vmatpush.bf16.msra.mxu0 %v595
  %619 = vmatmul.bf16.gmra.mxu0 %v539
  %v620 = vpop.f32.mrf.mxu0
  %v621 = vadd.f32 0.0, %v620
  %v622 = vpop.f32.mrf.mxu0
  %v623 = vadd.f32 0.0, %v622
  %624 = vmatmul.bf16.gmra.mxu0 %v540
  %v625 = vpop.f32.mrf.mxu0
  %v626 = vadd.f32 0.0, %v625
  %v627 = vpop.f32.mrf.mxu0
  %v628 = vadd.f32 0.0, %v627
  %629 = vmatmul.bf16.gmra.mxu0 %v541
  %v630 = vpop.f32.mrf.mxu0
  %v631 = vadd.f32 0.0, %v630
  %v632 = vpop.f32.mrf.mxu0
  %v633 = vadd.f32 0.0, %v632
  %634 = vmatmul.bf16.gmra.mxu0 %v542
  %v635 = vpop.f32.mrf.mxu0
  %v636 = vadd.f32 0.0, %v635
  %v637 = vpop.f32.mrf.mxu0
  %v638 = vadd.f32 0.0, %v637
  %639 = vmatmul.bf16.gmra.mxu0 %v543
  %v640 = vpop.f32.mrf.mxu0
  %v641 = vadd.f32 0.0, %v640
  %v642 = vpop.f32.mrf.mxu0
  %v643 = vadd.f32 0.0, %v642
  %644 = vmatmul.bf16.gmra.mxu0 %v544
  %v645 = vpop.f32.mrf.mxu0
  %v646 = vadd.f32 0.0, %v645
  %v647 = vpop.f32.mrf.mxu0
  %v648 = vadd.f32 0.0, %v647
  %649 = vmatmul.bf16.gmra.mxu0 %v545
  %v650 = vpop.f32.mrf.mxu0
  %v651 = vadd.f32 0.0, %v650
  %v652 = vpop.f32.mrf.mxu0
  %v653 = vadd.f32 0.0, %v652
  %654 = vmatmul.bf16.gmra.mxu0 %v546
  %v655 = vpop.f32.mrf.mxu0
  %v656 = vadd.f32 0.0, %v655
  %v657 = vpop.f32.mrf.mxu0
  %v658 = vadd.f32 0.0, %v657
  %659 = vdwg.mxu0
  %v660 = vadd.f32 %v547, %v621
  %v661 = vadd.f32 %v548, %v623
  %v662 = vadd.f32 %v549, %v626
  %v663 = vadd.f32 %v550, %v628
  %v664 = vadd.f32 %v551, %v631
  %v665 = vadd.f32 %v552, %v633
  %v666 = vadd.f32 %v553, %v636
  %v667 = vadd.f32 %v554, %v638
  %v668 = vadd.f32 %v555, %v641
  %v669 = vadd.f32 %v556, %v643
  %v670 = vadd.f32 %v557, %v646
  %v671 = vadd.f32 %v558, %v648
  %v672 = vadd.f32 %v559, %v651
  %v673 = vadd.f32 %v560, %v653
  %v674 = vadd.f32 %v561, %v656
  %v675 = vadd.f32 %v562, %v658
  %676 = vst [vmem:[#allocation2] sm:$0xff] %v660
  %677 = vst [vmem:[#allocation2 + $0x8] sm:$0xff] %v661
  %678 = vst [vmem:[#allocation2 + $0x10] sm:$0xff] %v662
  %679 = vst [vmem:[#allocation2 + $0x18] sm:$0xff] %v663
  %680 = vst [vmem:[#allocation2 + $0x20] sm:$0xff] %v664
  %681 = vst [vmem:[#allocation2 + $0x28] sm:$0xff] %v665
  %682 = vst [vmem:[#allocation2 + $0x30] sm:$0xff] %v666
  %683 = vst [vmem:[#allocation2 + $0x38] sm:$0xff] %v667
  %684 = vst [vmem:[#allocation2 + $0x40] sm:$0xff] %v668
  %685 = vst [vmem:[#allocation2 + $0x48] sm:$0xff] %v669
  %686 = vst [vmem:[#allocation2 + $0x50] sm:$0xff] %v670
  %687 = vst [vmem:[#allocation2 + $0x58] sm:$0xff] %v671
  %688 = vst [vmem:[#allocation2 + $0x60] sm:$0xff] %v672
  %689 = vst [vmem:[#allocation2 + $0x68] sm:$0xff] %v673
  %690 = vst [vmem:[#allocation2 + $0x70] sm:$0xff] %v674
  %691 = vst [vmem:[#allocation2 + $0x78] sm:$0xff] %v675
  // Predicated region
  $region22: #{forward.13} parent=0 // pred_check
    %p692 = pneg %p18
  $region23: #{forward.13} parent=0 // pred_check_branch
    %694 = sbr.rel (%p692) target = $region25
  $region24: #{forward.13} parent=0 // pred_region
    %v695 = vld [vmem:[#allocation2] sm:$0xff]
    %v696 = vld [vmem:[#allocation2 + $0x8] sm:$0xff]
    %v697 = vld [vmem:[#allocation2 + $0x10] sm:$0xff]
    %v698 = vld [vmem:[#allocation2 + $0x18] sm:$0xff]
    %v699 = vld [vmem:[#allocation2 + $0x20] sm:$0xff]
    %v700 = vld [vmem:[#allocation2 + $0x28] sm:$0xff]
    %v701 = vld [vmem:[#allocation2 + $0x30] sm:$0xff]
    %v702 = vld [vmem:[#allocation2 + $0x38] sm:$0xff]
    %v703 = vld [vmem:[#allocation2 + $0x40] sm:$0xff]
    %v704 = vld [vmem:[#allocation2 + $0x48] sm:$0xff]
    %v705 = vld [vmem:[#allocation2 + $0x50] sm:$0xff]
    %v706 = vld [vmem:[#allocation2 + $0x58] sm:$0xff]
    %v707 = vld [vmem:[#allocation2 + $0x60] sm:$0xff]
    %v708 = vld [vmem:[#allocation2 + $0x68] sm:$0xff]
    %v709 = vld [vmem:[#allocation2 + $0x70] sm:$0xff]
    %v710 = vld [vmem:[#allocation2 + $0x78] sm:$0xff]
    %v711 = vpack.c.bf16 %v695, %v695
    %v712 = vpack.c.bf16 %v696, %v696
    %v713 = vpack.c.bf16 %v697, %v697
    %v714 = vpack.c.bf16 %v698, %v698
    %v715 = vpack.c.bf16 %v699, %v699
    %v716 = vpack.c.bf16 %v700, %v700
    %v717 = vpack.c.bf16 %v701, %v701
    %v718 = vpack.c.bf16 %v702, %v702
    %v719 = vpack.c.bf16 %v703, %v703
    %v720 = vpack.c.bf16 %v704, %v704
    %v721 = vpack.c.bf16 %v705, %v705
    %v722 = vpack.c.bf16 %v706, %v706
    %v723 = vpack.c.bf16 %v707, %v707
    %v724 = vpack.c.bf16 %v708, %v708
    %v725 = vpack.c.bf16 %v709, %v709
    %v726 = vpack.c.bf16 %v710, %v710
    %727 = vst [vmem:[%s4] sm:$0xf] %v711
    %728 = vst [vmem:[%s4 + $0x4] sm:$0xf] %v712
    %729 = vst [vmem:[%s4 + $0x8] sm:$0xf] %v713
    %730 = vst [vmem:[%s4 + $0xc] sm:$0xf] %v714
    %731 = vst [vmem:[%s4 + $0x10] sm:$0xf] %v715
    %732 = vst [vmem:[%s4 + $0x14] sm:$0xf] %v716
    %733 = vst [vmem:[%s4 + $0x18] sm:$0xf] %v717
    %734 = vst [vmem:[%s4 + $0x1c] sm:$0xf] %v718
    %735 = vst [vmem:[%s4 + $0x20] sm:$0xf] %v719
    %736 = vst [vmem:[%s4 + $0x24] sm:$0xf] %v720
    %737 = vst [vmem:[%s4 + $0x28] sm:$0xf] %v721
    %738 = vst [vmem:[%s4 + $0x2c] sm:$0xf] %v722
    %739 = vst [vmem:[%s4 + $0x30] sm:$0xf] %v723
    %740 = vst [vmem:[%s4 + $0x34] sm:$0xf] %v724
    %741 = vst [vmem:[%s4 + $0x38] sm:$0xf] %v725
    %742 = vst [vmem:[%s4 + $0x3c] sm:$0xf] %v726
  $region25: #{forward.13} parent=0 // pred_fallthru
    _
  // Predicated region
  $region26: #{forward.13} parent=0 // pred_check
    _
  $region27: #{forward.13} parent=0 // pred_check_branch
    %744 = sbr.rel (0) target = $region29
  $region28: #{forward.13} parent=0 // pred_region
    _
  $region29: #{forward.13} parent=0 // pred_fallthru
    _
  // Predicated region
  $region30: #{forward.13} parent=0 // pred_check
    _
  $region31: #{forward.13} parent=0 // pred_check_branch
    %746 = sbr.rel (0) target = $region33
  $region32: #{forward.13} parent=0 // pred_region
    _
  $region33: #{forward.13} parent=0 // pred_fallthru
    _

// kernel: forward.16
$region0: #{forward.16}
  #allocation0 [shape = 'u32[]', space=smem, size = 0x4, offset = 0x4, fixed_abs, tag = 'smem constant byte address 0x4 - core index']
  #allocation1 [shape = 'u32[72,128]{1,0:T(1,128)}', space=vmem, size = 0x9000, scoped, tag = 'internal scratch']
  %s0 = inlined_call_operand.vmem [shape: bf16[128,128], index: 0, kind: input, shape index: {}]
  %s1 = inlined_call_operand.vmem [shape: bf16[128,32], index: 1, kind: input, shape index: {}]
  %s2 = inlined_call_operand.vmem [shape: bf16[64,32], index: 2, kind: input, shape index: {}]
  %s3 = inlined_call_operand.vmem [shape: f32[1,32], index: 3, kind: input, shape index: {}]
  %s4 = inlined_call_operand.vmem [shape: bf16[2,128], index: 4, kind: input, shape index: {}]
  %s5 = inlined_call_operand.hbm [shape: bf16[128,32], index: 5, kind: output, shape index: {0}]
  %s6 = inlined_call_operand.vmem [shape: f32[1,2,32], index: 6, kind: output, shape index: {1}]
  %7 = xla_tuple %s5, %s6
  %s8 = sld [smem:[#allocation0]]
  $region38: #{forward.16} parent=0
    _
  %s10 = ssub.s32 1, %s8
  %s11 = scalar_select 0, %s10, %s8
  $region1: #{forward.16} parent=0
    #allocation2 [shape = 'u8[32768]{0}', space=vmem, size = 0x8000, scoped, tag = 'output window, operand 0, single buffered']
    #allocation3 [shape = 's32[1]{0}', space=sflag, size = 0x4, scoped, tag = 'scoped memory for forward.16']
    %12 = vsyncpa [#allocation3], 0
    // Predicated region
    $region2: #{forward.16} parent=1 // pred_check
      _
    $region3: #{forward.16} parent=1 // pred_check_branch
      %14 = sbr.rel (0) target = $region5
    $region4: #{forward.16} parent=1 // pred_region
      _
    $region5: #{forward.16} parent=1 // pred_fallthru
      _
    // Predicated region
    $region6: #{forward.16} parent=1 // pred_check
      _
    $region7: #{forward.16} parent=1 // pred_check_branch
      %16 = sbr.rel (0) target = $region9
    $region8: #{forward.16} parent=1 // pred_region
      _
    $region9: #{forward.16} parent=1 // pred_fallthru
      _
    // Predicated region
    $region10: #{forward.16} parent=1 // pred_check
      _
    $region11: #{forward.16} parent=1 // pred_check_branch
      %18 = sbr.rel (0) target = $region13
    $region12: #{forward.16} parent=1 // pred_region
      _
    $region13: #{forward.16} parent=1 // pred_fallthru
      _
    // Predicated region
    $region14: #{forward.16} parent=1 // pred_check
      _
    $region15: #{forward.16} parent=1 // pred_check_branch
      %20 = sbr.rel (0) target = $region17
    $region16: #{forward.16} parent=1 // pred_region
      _
    $region17: #{forward.16} parent=1 // pred_fallthru
      _
    // Predicated region
    $region18: #{forward.16} parent=1 // pred_check
      _
    $region19: #{forward.16} parent=1 // pred_check_branch
      %22 = sbr.rel (0) target = $region21
    $region20: #{forward.16} parent=1 // pred_region
      _
    $region21: #{forward.16} parent=1 // pred_fallthru
      _
    %v24 = vld [vmem:[%s0] sm:$0xf]
    %v25 = vld [vmem:[%s0 + $0x4] sm:$0xf]
    %v26 = vld [vmem:[%s0 + $0x8] sm:$0xf]
    %v27 = vld [vmem:[%s0 + $0xc] sm:$0xf]
    %v28 = vld [vmem:[%s0 + $0x10] sm:$0xf]
    %v29 = vld [vmem:[%s0 + $0x14] sm:$0xf]
    %v30 = vld [vmem:[%s0 + $0x18] sm:$0xf]
    %v31 = vld [vmem:[%s0 + $0x1c] sm:$0xf]
    %v32 = vld [vmem:[%s0 + $0x20] sm:$0xf]
    %v33 = vld [vmem:[%s0 + $0x24] sm:$0xf]
    %v34 = vld [vmem:[%s0 + $0x28] sm:$0xf]
    %v35 = vld [vmem:[%s0 + $0x2c] sm:$0xf]
    %v36 = vld [vmem:[%s0 + $0x30] sm:$0xf]
    %v37 = vld [vmem:[%s0 + $0x34] sm:$0xf]
    %v38 = vld [vmem:[%s0 + $0x38] sm:$0xf]
    %v39 = vld [vmem:[%s0 + $0x3c] sm:$0xf]
    %v40 = vunpack.c.l.bf16 %v24
    %v41 = vunpack.c.l.bf16 %v25
    %v42 = vunpack.c.l.bf16 %v26
    %v43 = vunpack.c.l.bf16 %v27
    %v44 = vunpack.c.l.bf16 %v28
    %v45 = vunpack.c.l.bf16 %v29
    %v46 = vunpack.c.l.bf16 %v30
    %v47 = vunpack.c.l.bf16 %v31
    %v48 = vunpack.c.l.bf16 %v32
    %v49 = vunpack.c.l.bf16 %v33
    %v50 = vunpack.c.l.bf16 %v34
    %v51 = vunpack.c.l.bf16 %v35
    %v52 = vunpack.c.l.bf16 %v36
    %v53 = vunpack.c.l.bf16 %v37
    %v54 = vunpack.c.l.bf16 %v38
    %v55 = vunpack.c.l.bf16 %v39
    %vm56 = vcmp.ne.f32.partialorder %v40, 0.0
    %vm57 = vcmp.ne.f32.partialorder %v41, 0.0
    %vm58 = vcmp.ne.f32.partialorder %v42, 0.0
    %vm59 = vcmp.ne.f32.partialorder %v43, 0.0
    %vm60 = vcmp.ne.f32.partialorder %v44, 0.0
    %vm61 = vcmp.ne.f32.partialorder %v45, 0.0
    %vm62 = vcmp.ne.f32.partialorder %v46, 0.0
    %vm63 = vcmp.ne.f32.partialorder %v47, 0.0
    %vm64 = vcmp.ne.f32.partialorder %v48, 0.0
    %vm65 = vcmp.ne.f32.partialorder %v49, 0.0
    %vm66 = vcmp.ne.f32.partialorder %v50, 0.0
    %vm67 = vcmp.ne.f32.partialorder %v51, 0.0
    %vm68 = vcmp.ne.f32.partialorder %v52, 0.0
    %vm69 = vcmp.ne.f32.partialorder %v53, 0.0
    %vm70 = vcmp.ne.f32.partialorder %v54, 0.0
    %vm71 = vcmp.ne.f32.partialorder %v55, 0.0
    %v72 = vsel %vm56, 1, 0
    %v73 = vsel %vm57, 1, 0
    %v74 = vsel %vm58, 1, 0
    %v75 = vsel %vm59, 1, 0
    %v76 = vsel %vm60, 1, 0
    %v77 = vsel %vm61, 1, 0
    %v78 = vsel %vm62, 1, 0
    %v79 = vsel %vm63, 1, 0
    %v80 = vsel %vm64, 1, 0
    %v81 = vsel %vm65, 1, 0
    %v82 = vsel %vm66, 1, 0
    %v83 = vsel %vm67, 1, 0
    %v84 = vsel %vm68, 1, 0
    %v85 = vsel %vm69, 1, 0
    %v86 = vsel %vm70, 1, 0
    %v87 = vsel %vm71, 1, 0
    %v88 = vcvt.s32.f32 %v72
    %v89 = vcvt.s32.f32 %v73
    %v90 = vcvt.s32.f32 %v74
    %v91 = vcvt.s32.f32 %v75
    %v92 = vcvt.s32.f32 %v76
    %v93 = vcvt.s32.f32 %v77
    %v94 = vcvt.s32.f32 %v78
    %v95 = vcvt.s32.f32 %v79
    %v96 = vcvt.s32.f32 %v80
    %v97 = vcvt.s32.f32 %v81
    %v98 = vcvt.s32.f32 %v82
    %v99 = vcvt.s32.f32 %v83
    %v100 = vcvt.s32.f32 %v84
    %v101 = vcvt.s32.f32 %v85
    %v102 = vcvt.s32.f32 %v86
    %v103 = vcvt.s32.f32 %v87
    %104 = vadd.xlane.f32.xlu0 %v88
    %v105 = vpop.xlane.xlu0 %104
    %106 = vadd.xlane.f32.xlu0 %v89
    %v107 = vpop.xlane.xlu0 %106
    %108 = vadd.xlane.f32.xlu0 %v90
    %v109 = vpop.xlane.xlu0 %108
    %110 = vadd.xlane.f32.xlu0 %v91
    %v111 = vpop.xlane.xlu0 %110
    %112 = vadd.xlane.f32.xlu0 %v92
    %v113 = vpop.xlane.xlu0 %112
    %114 = vadd.xlane.f32.xlu0 %v93
    %v115 = vpop.xlane.xlu0 %114
    %116 = vadd.xlane.f32.xlu0 %v94
    %v117 = vpop.xlane.xlu0 %116
    %118 = vadd.xlane.f32.xlu0 %v95
    %v119 = vpop.xlane.xlu0 %118
    %120 = vadd.xlane.f32.xlu0 %v96
    %v121 = vpop.xlane.xlu0 %120
    %122 = vadd.xlane.f32.xlu0 %v97
    %v123 = vpop.xlane.xlu0 %122
    %124 = vadd.xlane.f32.xlu0 %v98
    %v125 = vpop.xlane.xlu0 %124
    %126 = vadd.xlane.f32.xlu0 %v99
    %v127 = vpop.xlane.xlu0 %126
    %128 = vadd.xlane.f32.xlu0 %v100
    %v129 = vpop.xlane.xlu0 %128
    %130 = vadd.xlane.f32.xlu0 %v101
    %v131 = vpop.xlane.xlu0 %130
    %132 = vadd.xlane.f32.xlu0 %v102
    %v133 = vpop.xlane.xlu0 %132
    %134 = vadd.xlane.f32.xlu0 %v103
    %v135 = vpop.xlane.xlu0 %134
    %v136 = vmax.f32 %v105, 1.0
    %v137 = vmax.f32 %v107, 1.0
    %v138 = vmax.f32 %v109, 1.0
    %v139 = vmax.f32 %v111, 1.0
    %v140 = vmax.f32 %v113, 1.0
    %v141 = vmax.f32 %v115, 1.0
    %v142 = vmax.f32 %v117, 1.0
    %v143 = vmax.f32 %v119, 1.0
    %v144 = vmax.f32 %v121, 1.0
    %v145 = vmax.f32 %v123, 1.0
    %v146 = vmax.f32 %v125, 1.0
    %v147 = vmax.f32 %v127, 1.0
    %v148 = vmax.f32 %v129, 1.0
    %v149 = vmax.f32 %v131, 1.0
    %v150 = vmax.f32 %v133, 1.0
    %v151 = vmax.f32 %v135, 1.0
    %v152 = vrcp.pop %v136
    %v153 = vrcp.pop %v137
    %v154 = vrcp.pop %v138
    %v155 = vrcp.pop %v139
    %v156 = vrcp.pop %v140
    %v157 = vrcp.pop %v141
    %v158 = vrcp.pop %v142
    %v159 = vrcp.pop %v143
    %v160 = vrcp.pop %v144
    %v161 = vrcp.pop %v145
    %v162 = vrcp.pop %v146
    %v163 = vrcp.pop %v147
    %v164 = vrcp.pop %v148
    %v165 = vrcp.pop %v149
    %v166 = vrcp.pop %v150
    %v167 = vrcp.pop %v151
    %v168 = vld [vmem:[%s1] sm:$0xf]
    %v169 = vld [vmem:[%s1 + $0x4] sm:$0xf]
    %v170 = vld [vmem:[%s1 + $0x8] sm:$0xf]
    %v171 = vld [vmem:[%s1 + $0xc] sm:$0xf]
    %v172 = vld [vmem:[%s1 + $0x10] sm:$0xf]
    %v173 = vld [vmem:[%s1 + $0x14] sm:$0xf]
    %v174 = vld [vmem:[%s1 + $0x18] sm:$0xf]
    %v175 = vld [vmem:[%s1 + $0x1c] sm:$0xf]
    %v176 = vld [vmem:[%s1 + $0x20] sm:$0xf]
    %v177 = vld [vmem:[%s1 + $0x24] sm:$0xf]
    %v178 = vld [vmem:[%s1 + $0x28] sm:$0xf]
    %v179 = vld [vmem:[%s1 + $0x2c] sm:$0xf]
    %v180 = vld [vmem:[%s1 + $0x30] sm:$0xf]
    %v181 = vld [vmem:[%s1 + $0x34] sm:$0xf]
    %v182 = vld [vmem:[%s1 + $0x38] sm:$0xf]
    %v183 = vld [vmem:[%s1 + $0x3c] sm:$0xf]
    %v200 = vunpack.c.l.b16 %v24
    %v201 = vunpack.c.l.b16 %v25
    %v202 = vunpack.c.l.b16 %v26
    %v203 = vunpack.c.l.b16 %v27
    %v204 = vunpack.c.l.b16 %v28
    %v205 = vunpack.c.l.b16 %v29
    %v206 = vunpack.c.l.b16 %v30
    %v207 = vunpack.c.l.b16 %v31
    %v208 = vunpack.c.l.b16 %v32
    %v209 = vunpack.c.l.b16 %v33
    %v210 = vunpack.c.l.b16 %v34
    %v211 = vunpack.c.l.b16 %v35
    %v212 = vunpack.c.l.b16 %v36
    %v213 = vunpack.c.l.b16 %v37
    %v214 = vunpack.c.l.b16 %v38
    %v215 = vunpack.c.l.b16 %v39
    %v216 = vpack.c.b16 %v201, %v200
    %v217 = vpack.c.b16 %v203, %v202
    %v218 = vpack.c.b16 %v205, %v204
    %v219 = vpack.c.b16 %v207, %v206
    %v220 = vpack.c.b16 %v209, %v208
    %v221 = vpack.c.b16 %v211, %v210
    %v222 = vpack.c.b16 %v213, %v212
    %v223 = vpack.c.b16 %v215, %v214
    %v248 = vunpack.c.l.b16 %v168
    %v249 = vunpack.c.l.b16 %v169
    %v250 = vunpack.c.l.b16 %v170
    %v251 = vunpack.c.l.b16 %v171
    %v252 = vunpack.c.l.b16 %v172
    %v253 = vunpack.c.l.b16 %v173
    %v254 = vunpack.c.l.b16 %v174
    %v255 = vunpack.c.l.b16 %v175
    %v256 = vunpack.c.l.b16 %v176
    %v257 = vunpack.c.l.b16 %v177
    %v258 = vunpack.c.l.b16 %v178
    %v259 = vunpack.c.l.b16 %v179
    %v260 = vunpack.c.l.b16 %v180
    %v261 = vunpack.c.l.b16 %v181
    %v262 = vunpack.c.l.b16 %v182
    %v263 = vunpack.c.l.b16 %v183
    %v264 = vpack.c.b16 %v249, %v248
    %v265 = vpack.c.b16 %v251, %v250
    %v266 = vpack.c.b16 %v253, %v252
    %v267 = vpack.c.b16 %v255, %v254
    %v268 = vpack.c.b16 %v257, %v256
    %v269 = vpack.c.b16 %v259, %v258
    %v270 = vpack.c.b16 %v261, %v260
    %v271 = vpack.c.b16 %v263, %v262
    %280 = vmatpush.bf16.msra.mxu0 %v271
    %281 = vmatpush.bf16.msra.mxu0 %v270
    %282 = vmatpush.bf16.msra.mxu0 %v269
    %283 = vmatpush.bf16.msra.mxu0 %v268
    %284 = vmatpush.bf16.msra.mxu0 %v267
    %285 = vmatpush.bf16.msra.mxu0 %v266
    %286 = vmatpush.bf16.msra.mxu0 %v265
    %287 = vmatpush.bf16.msra.mxu0 %v264
    %288 = vmatmul.bf16.gmra.mxu0 %v216
    %v289 = vpop.f32.mrf.mxu0
    %v290 = vadd.f32 0.0, %v289
    %v291 = vpop.f32.mrf.mxu0
    %v292 = vadd.f32 0.0, %v291
    %293 = vmatmul.bf16.gmra.mxu0 %v217
    %v294 = vpop.f32.mrf.mxu0
    %v295 = vadd.f32 0.0, %v294
    %v296 = vpop.f32.mrf.mxu0
    %v297 = vadd.f32 0.0, %v296
    %298 = vmatmul.bf16.gmra.mxu0 %v218
    %v299 = vpop.f32.mrf.mxu0
    %v300 = vadd.f32 0.0, %v299
    %v301 = vpop.f32.mrf.mxu0
    %v302 = vadd.f32 0.0, %v301
    %303 = vmatmul.bf16.gmra.mxu0 %v219
    %v304 = vpop.f32.mrf.mxu0
    %v305 = vadd.f32 0.0, %v304
    %v306 = vpop.f32.mrf.mxu0
    %v307 = vadd.f32 0.0, %v306
    %308 = vmatmul.bf16.gmra.mxu0 %v220
    %v309 = vpop.f32.mrf.mxu0
    %v310 = vadd.f32 0.0, %v309
    %v311 = vpop.f32.mrf.mxu0
    %v312 = vadd.f32 0.0, %v311
    %313 = vmatmul.bf16.gmra.mxu0 %v221
    %v314 = vpop.f32.mrf.mxu0
    %v315 = vadd.f32 0.0, %v314
    %v316 = vpop.f32.mrf.mxu0
    %v317 = vadd.f32 0.0, %v316
    %318 = vmatmul.bf16.gmra.mxu0 %v222
    %v319 = vpop.f32.mrf.mxu0
    %v320 = vadd.f32 0.0, %v319
    %v321 = vpop.f32.mrf.mxu0
    %v322 = vadd.f32 0.0, %v321
    %323 = vmatmul.bf16.gmra.mxu0 %v223
    %v324 = vpop.f32.mrf.mxu0
    %v325 = vadd.f32 0.0, %v324
    %v326 = vpop.f32.mrf.mxu0
    %v327 = vadd.f32 0.0, %v326
    %328 = vdwg.mxu0
    %v329 = vmul.f32 %v290, %v152
    %v330 = vmul.f32 %v292, %v153
    %v331 = vmul.f32 %v295, %v154
    %v332 = vmul.f32 %v297, %v155
    %v333 = vmul.f32 %v300, %v156
    %v334 = vmul.f32 %v302, %v157
    %v335 = vmul.f32 %v305, %v158
    %v336 = vmul.f32 %v307, %v159
    %v337 = vmul.f32 %v310, %v160
    %v338 = vmul.f32 %v312, %v161
    %v339 = vmul.f32 %v315, %v162
    %v340 = vmul.f32 %v317, %v163
    %v341 = vmul.f32 %v320, %v164
    %v342 = vmul.f32 %v322, %v165
    %v343 = vmul.f32 %v325, %v166
    %v344 = vmul.f32 %v327, %v167
    %s345 = smul.u32 0, 128
    %s346 = sshra.s32 %s345, 3
    %s347 = sand.u32 %s345, 7
    %s348 = smul.addr %s346, 4
    %s349 = scalar_lea.vmem %s1, %s348
    %v350 = vld [vmem:[%s349] sm:$0xf]
    %v351 = vld [vmem:[%s349 + $0x4] sm:$0xf]
    %v352 = vld [vmem:[%s349 + $0x8] sm:$0xf]
    %v353 = vld [vmem:[%s349 + $0xc] sm:$0xf]
    %v354 = vld [vmem:[%s349 + $0x10] sm:$0xf]
    %v355 = vld [vmem:[%s349 + $0x14] sm:$0xf]
    %v356 = vld [vmem:[%s349 + $0x18] sm:$0xf]
    %v357 = vld [vmem:[%s349 + $0x1c] sm:$0xf]
    %v358 = vld [vmem:[%s349 + $0x20] sm:$0xf]
    %v359 = vld [vmem:[%s349 + $0x24] sm:$0xf]
    %v360 = vld [vmem:[%s349 + $0x28] sm:$0xf]
    %v361 = vld [vmem:[%s349 + $0x2c] sm:$0xf]
    %v362 = vld [vmem:[%s349 + $0x30] sm:$0xf]
    %v363 = vld [vmem:[%s349 + $0x34] sm:$0xf]
    %v364 = vld [vmem:[%s349 + $0x38] sm:$0xf]
    %v365 = vld [vmem:[%s349 + $0x3c] sm:$0xf]
    %v366 = vpack.c.bf16 %v329, %v329
    %v367 = vpack.c.bf16 %v330, %v330
    %v368 = vpack.c.bf16 %v331, %v331
    %v369 = vpack.c.bf16 %v332, %v332
    %v370 = vpack.c.bf16 %v333, %v333
    %v371 = vpack.c.bf16 %v334, %v334
    %v372 = vpack.c.bf16 %v335, %v335
    %v373 = vpack.c.bf16 %v336, %v336
    %v374 = vpack.c.bf16 %v337, %v337
    %v375 = vpack.c.bf16 %v338, %v338
    %v376 = vpack.c.bf16 %v339, %v339
    %v377 = vpack.c.bf16 %v340, %v340
    %v378 = vpack.c.bf16 %v341, %v341
    %v379 = vpack.c.bf16 %v342, %v342
    %v380 = vpack.c.bf16 %v343, %v343
    %v381 = vpack.c.bf16 %v344, %v344
    %v398 = vunpack.c.l.b16 %v366
    %v399 = vunpack.c.l.b16 %v367
    %v400 = vunpack.c.l.b16 %v368
    %v401 = vunpack.c.l.b16 %v369
    %v402 = vunpack.c.l.b16 %v370
    %v403 = vunpack.c.l.b16 %v371
    %v404 = vunpack.c.l.b16 %v372
    %v405 = vunpack.c.l.b16 %v373
    %v406 = vunpack.c.l.b16 %v374
    %v407 = vunpack.c.l.b16 %v375
    %v408 = vunpack.c.l.b16 %v376
    %v409 = vunpack.c.l.b16 %v377
    %v410 = vunpack.c.l.b16 %v378
    %v411 = vunpack.c.l.b16 %v379
    %v412 = vunpack.c.l.b16 %v380
    %v413 = vunpack.c.l.b16 %v381
    %v414 = vpack.c.b16 %v399, %v398
    %v415 = vpack.c.b16 %v401, %v400
    %v416 = vpack.c.b16 %v403, %v402
    %v417 = vpack.c.b16 %v405, %v404
    %v418 = vpack.c.b16 %v407, %v406
    %v419 = vpack.c.b16 %v409, %v408
    %v420 = vpack.c.b16 %v411, %v410
    %v421 = vpack.c.b16 %v413, %v412
    %v438 = vunpack.c.l.b16 %v350
    %v439 = vunpack.c.l.b16 %v351
    %v440 = vunpack.c.l.b16 %v352
    %v441 = vunpack.c.l.b16 %v353
    %v442 = vunpack.c.l.b16 %v354
    %v443 = vunpack.c.l.b16 %v355
    %v444 = vunpack.c.l.b16 %v356
    %v445 = vunpack.c.l.b16 %v357
    %v446 = vunpack.c.l.b16 %v358
    %v447 = vunpack.c.l.b16 %v359
    %v448 = vunpack.c.l.b16 %v360
    %v449 = vunpack.c.l.b16 %v361
    %v450 = vunpack.c.l.b16 %v362
    %v451 = vunpack.c.l.b16 %v363
    %v452 = vunpack.c.l.b16 %v364
    %v453 = vunpack.c.l.b16 %v365
    %v454 = vpack.c.b16 %v439, %v438
    %v455 = vpack.c.b16 %v441, %v440
    %v456 = vpack.c.b16 %v443, %v442
    %v457 = vpack.c.b16 %v445, %v444
    %v458 = vpack.c.b16 %v447, %v446
    %v459 = vpack.c.b16 %v449, %v448
    %v460 = vpack.c.b16 %v451, %v450
    %v461 = vpack.c.b16 %v453, %v452
    %462 = vrot.lane.b32.xlu0 %v454, 32
    %v463 = vpop.permute.xlu0 %462
    %464 = vrot.lane.b32.xlu0 %v455, 32
    %v465 = vpop.permute.xlu0 %464
    %466 = vrot.lane.b32.xlu0 %v456, 32
    %v467 = vpop.permute.xlu0 %466
    %468 = vrot.lane.b32.xlu0 %v457, 32
    %v469 = vpop.permute.xlu0 %468
    %470 = vrot.lane.b32.xlu0 %v458, 32
    %v471 = vpop.permute.xlu0 %470
    %472 = vrot.lane.b32.xlu0 %v459, 32
    %v473 = vpop.permute.xlu0 %472
    %474 = vrot.lane.b32.xlu0 %v460, 32
    %v475 = vpop.permute.xlu0 %474
    %476 = vrot.lane.b32.xlu0 %v461, 32
    %v477 = vpop.permute.xlu0 %476
    %vm478 = vcmask 261120
    %v481 = vsel %vm478, %v414, %v463
    %v484 = vsel %vm478, %v415, %v465
    %v487 = vsel %vm478, %v416, %v467
    %v490 = vsel %vm478, %v417, %v469
    %v493 = vsel %vm478, %v418, %v471
    %v496 = vsel %vm478, %v419, %v473
    %v499 = vsel %vm478, %v420, %v475
    %v502 = vsel %vm478, %v421, %v477
    %v503 = vld [vmem:[%s2] sm:$0xf]
    %v504 = vld [vmem:[%s2 + $0x4] sm:$0xf]
    %v505 = vld [vmem:[%s2 + $0x8] sm:$0xf]
    %v506 = vld [vmem:[%s2 + $0xc] sm:$0xf]
    %v507 = vld [vmem:[%s2 + $0x10] sm:$0xf]
    %v508 = vld [vmem:[%s2 + $0x14] sm:$0xf]
    %v509 = vld [vmem:[%s2 + $0x18] sm:$0xf]
    %v510 = vld [vmem:[%s2 + $0x1c] sm:$0xf]
    %v511 = vld [vmem:[%s3] sm:$0x1]
    %v513 = vperm.slane %v511, 0
    %v523 = vunpack.c.l.b16 %v503
    %v524 = vunpack.c.l.b16 %v504
    %v525 = vunpack.c.l.b16 %v505
    %v526 = vunpack.c.l.b16 %v506
    %v527 = vunpack.c.l.b16 %v507
    %v528 = vunpack.c.l.b16 %v508
    %v529 = vunpack.c.l.b16 %v509
    %v530 = vunpack.c.l.b16 %v510
    %v531 = vpack.c.b16 %v524, %v523
    %v532 = vpack.c.b16 %v526, %v525
    %v533 = vpack.c.b16 %v528, %v527
    %v534 = vpack.c.b16 %v530, %v529
    %vm539 = vcmask 523264
    %v540 = vsel %vm539, %v481, 0
    %v542 = vsel %vm539, %v484, 0
    %v544 = vsel %vm539, %v487, 0
    %v546 = vsel %vm539, %v490, 0
    %v548 = vsel %vm539, %v493, 0
    %v550 = vsel %vm539, %v496, 0
    %v552 = vsel %vm539, %v499, 0
    %v554 = vsel %vm539, %v502, 0
    %556 = vmatpush.bf16.msra.mxu0 0
    %557 = vmatpush.bf16.msra.mxu0 0
    %558 = vmatpush.bf16.msra.mxu0 0
    %559 = vmatpush.bf16.msra.mxu0 0
    %560 = vmatpush.bf16.msra.mxu0 %v534
    %561 = vmatpush.bf16.msra.mxu0 %v533
    %562 = vmatpush.bf16.msra.mxu0 %v532
    %563 = vmatpush.bf16.msra.mxu0 %v531
    %564 = vmatmul.bf16.gmra.mxu0 %v540
    %v565 = vpop.f32.mrf.mxu0
    %v566 = vadd.f32 %v513, %v565
    %v567 = vpop.f32.mrf.mxu0
    %v568 = vadd.f32 %v513, %v567
    %569 = vmatmul.bf16.gmra.mxu0 %v542
    %v570 = vpop.f32.mrf.mxu0
    %v571 = vadd.f32 %v513, %v570
    %v572 = vpop.f32.mrf.mxu0
    %v573 = vadd.f32 %v513, %v572
    %574 = vmatmul.bf16.gmra.mxu0 %v544
    %v575 = vpop.f32.mrf.mxu0
    %v576 = vadd.f32 %v513, %v575
    %v577 = vpop.f32.mrf.mxu0
    %v578 = vadd.f32 %v513, %v577
    %579 = vmatmul.bf16.gmra.mxu0 %v546
    %v580 = vpop.f32.mrf.mxu0
    %v581 = vadd.f32 %v513, %v580
    %v582 = vpop.f32.mrf.mxu0
    %v583 = vadd.f32 %v513, %v582
    %584 = vmatmul.bf16.gmra.mxu0 %v548
    %v585 = vpop.f32.mrf.mxu0
    %v586 = vadd.f32 %v513, %v585
    %v587 = vpop.f32.mrf.mxu0
    %v588 = vadd.f32 %v513, %v587
    %589 = vmatmul.bf16.gmra.mxu0 %v550
    %v590 = vpop.f32.mrf.mxu0
    %v591 = vadd.f32 %v513, %v590
    %v592 = vpop.f32.mrf.mxu0
    %v593 = vadd.f32 %v513, %v592
    %594 = vmatmul.bf16.gmra.mxu0 %v552
    %v595 = vpop.f32.mrf.mxu0
    %v596 = vadd.f32 %v513, %v595
    %v597 = vpop.f32.mrf.mxu0
    %v598 = vadd.f32 %v513, %v597
    %599 = vmatmul.bf16.gmra.mxu0 %v554
    %v600 = vpop.f32.mrf.mxu0
    %v601 = vadd.f32 %v513, %v600
    %v602 = vpop.f32.mrf.mxu0
    %v603 = vadd.f32 %v513, %v602
    %604 = vdwg.mxu0
    %v605 = vmax.f32 %v566, 0.0
    %v606 = vmax.f32 %v568, 0.0
    %v607 = vmax.f32 %v571, 0.0
    %v608 = vmax.f32 %v573, 0.0
    %v609 = vmax.f32 %v576, 0.0
    %v610 = vmax.f32 %v578, 0.0
    %v611 = vmax.f32 %v581, 0.0
    %v612 = vmax.f32 %v583, 0.0
    %v613 = vmax.f32 %v586, 0.0
    %v614 = vmax.f32 %v588, 0.0
    %v615 = vmax.f32 %v591, 0.0
    %v616 = vmax.f32 %v593, 0.0
    %v617 = vmax.f32 %v596, 0.0
    %v618 = vmax.f32 %v598, 0.0
    %v619 = vmax.f32 %v601, 0.0
    %v620 = vmax.f32 %v603, 0.0
    %v621 = vpack.c.bf16 %v605, %v605
    %v622 = vpack.c.bf16 %v606, %v606
    %v623 = vpack.c.bf16 %v607, %v607
    %v624 = vpack.c.bf16 %v608, %v608
    %v625 = vpack.c.bf16 %v609, %v609
    %v626 = vpack.c.bf16 %v610, %v610
    %v627 = vpack.c.bf16 %v611, %v611
    %v628 = vpack.c.bf16 %v612, %v612
    %v629 = vpack.c.bf16 %v613, %v613
    %v630 = vpack.c.bf16 %v614, %v614
    %v631 = vpack.c.bf16 %v615, %v615
    %v632 = vpack.c.bf16 %v616, %v616
    %v633 = vpack.c.bf16 %v617, %v617
    %v634 = vpack.c.bf16 %v618, %v618
    %v635 = vpack.c.bf16 %v619, %v619
    %v636 = vpack.c.bf16 %v620, %v620
    %vm637 = vcmask 257024
    %638 = vst.msk [vmem:[#allocation2] sm:$0xf] %vm637, %v621
    %639 = vst.msk [vmem:[#allocation2 + $0x4] sm:$0xf] %vm637, %v622
    %640 = vst.msk [vmem:[#allocation2 + $0x8] sm:$0xf] %vm637, %v623
    %641 = vst.msk [vmem:[#allocation2 + $0xc] sm:$0xf] %vm637, %v624
    %642 = vst.msk [vmem:[#allocation2 + $0x10] sm:$0xf] %vm637, %v625
    %643 = vst.msk [vmem:[#allocation2 + $0x14] sm:$0xf] %vm637, %v626
    %644 = vst.msk [vmem:[#allocation2 + $0x18] sm:$0xf] %vm637, %v627
    %645 = vst.msk [vmem:[#allocation2 + $0x1c] sm:$0xf] %vm637, %v628
    %646 = vst.msk [vmem:[#allocation2 + $0x20] sm:$0xf] %vm637, %v629
    %647 = vst.msk [vmem:[#allocation2 + $0x24] sm:$0xf] %vm637, %v630
    %648 = vst.msk [vmem:[#allocation2 + $0x28] sm:$0xf] %vm637, %v631
    %649 = vst.msk [vmem:[#allocation2 + $0x2c] sm:$0xf] %vm637, %v632
    %650 = vst.msk [vmem:[#allocation2 + $0x30] sm:$0xf] %vm637, %v633
    %651 = vst.msk [vmem:[#allocation2 + $0x34] sm:$0xf] %vm637, %v634
    %652 = vst.msk [vmem:[#allocation2 + $0x38] sm:$0xf] %vm637, %v635
    %653 = vst.msk [vmem:[#allocation2 + $0x3c] sm:$0xf] %vm637, %v636
    %v654 = vld [vmem:[%s4] sm:$0x1]
    %v671 = vunpack.c.l.b16 %v621
    %v672 = vunpack.c.l.b16 %v622
    %v673 = vunpack.c.l.b16 %v623
    %v674 = vunpack.c.l.b16 %v624
    %v675 = vunpack.c.l.b16 %v625
    %v676 = vunpack.c.l.b16 %v626
    %v677 = vunpack.c.l.b16 %v627
    %v678 = vunpack.c.l.b16 %v628
    %v679 = vunpack.c.l.b16 %v629
    %v680 = vunpack.c.l.b16 %v630
    %v681 = vunpack.c.l.b16 %v631
    %v682 = vunpack.c.l.b16 %v632
    %v683 = vunpack.c.l.b16 %v633
    %v684 = vunpack.c.l.b16 %v634
    %v685 = vunpack.c.l.b16 %v635
    %v686 = vunpack.c.l.b16 %v636
    %v687 = vpack.c.b16 %v672, %v671
    %v688 = vpack.c.b16 %v674, %v673
    %v689 = vpack.c.b16 %v676, %v675
    %v690 = vpack.c.b16 %v678, %v677
    %v691 = vpack.c.b16 %v680, %v679
    %v692 = vpack.c.b16 %v682, %v681
    %v693 = vpack.c.b16 %v684, %v683
    %v694 = vpack.c.b16 %v686, %v685
    %703 = vmatpush.bf16.msra.mxu0 %v694
    %704 = vmatpush.bf16.msra.mxu0 %v693
    %705 = vmatpush.bf16.msra.mxu0 %v692
    %706 = vmatpush.bf16.msra.mxu0 %v691
    %707 = vmatpush.bf16.msra.mxu0 %v690
    %708 = vmatpush.bf16.msra.mxu0 %v689
    %709 = vmatpush.bf16.msra.mxu0 %v688
    %710 = vmatpush.bf16.msra.mxu0 %v687
    %711 = vmatmul.bf16.gmra.mxu0 %v654
    %v712 = vpop.f32.mrf.mxu0
    %v713 = vadd.f32 0.0, %v712
    %v714 = vpop.f32.mrf.mxu0
    %715 = vdwg.mxu0
    %vm716 = vcmask 254976
    %717 = vst.msk [vmem:[%s6] sm:$0x3] %vm716, %v713
    // Predicated region
    $region22: #{forward.16} parent=1 // pred_check
      _
    $region23: #{forward.16} parent=1 // pred_check_branch
      %719 = sbr.rel (0) target = $region25
    $region24: #{forward.16} parent=1 // pred_region
      %721 = vsyncadd [#allocation3], 0
      %s722 = sshll.u32 [#allocation2], 4
      %s723 = int_to_ptr.vmem [resolvable:$true] %s722
      %s724 = sshll.u32 %s5, 4
      %s725 = int_to_ptr.hbm [resolvable:$true] %s724
      %730 = dma.vmem_to_hbm [thread:$0]  %s723, 1024, %s725, [#allocation3], 64, 64, 4
    $region25: #{forward.16} parent=1 // pred_fallthru
      _
    // Predicated region
    $region26: #{forward.16} parent=1 // pred_check
      _
    $region27: #{forward.16} parent=1 // pred_check_branch
      %732 = sbr.rel (0) target = $region29
    $region28: #{forward.16} parent=1 // pred_region
      _
    $region29: #{forward.16} parent=1 // pred_fallthru
      _
    // Predicated region
    $region30: #{forward.16} parent=1 // pred_check
      _
    $region31: #{forward.16} parent=1 // pred_check_branch
      %734 = sbr.rel (0) target = $region33
    $region32: #{forward.16} parent=1 // pred_region
      %736 = dma.done [#allocation3], 1024
    $region33: #{forward.16} parent=1 // pred_fallthru
      _
    // Predicated region
    $region34: #{forward.16} parent=1 // pred_check
      _
    $region35: #{forward.16} parent=1 // pred_check_branch
      %738 = sbr.rel (0) target = $region37
    $region36: #{forward.16} parent=1 // pred_region
      _
    $region37: #{forward.16} parent=1 // pred_fallthru
      _
    %739 = vsyncpa [#allocation3], 1

// kernel: forward.17
$region0: #{forward.17}
  #allocation0 [shape = 'u32[]', space=smem, size = 0x4, offset = 0x4, fixed_abs, tag = 'smem constant byte address 0x4 - core index']
  #allocation1 [shape = 'u32[72,128]{1,0:T(1,128)}', space=vmem, size = 0x9000, scoped, tag = 'internal scratch']
  %s0 = inlined_call_operand.vmem [shape: f32[2,128], index: 0, kind: input, shape index: {}]
  %s1 = inlined_call_operand.vmem [shape: f32[128,32], index: 1, kind: input, shape index: {}]
  %s2 = inlined_call_operand.vmem [shape: f32[1,32], index: 2, kind: input, shape index: {}]
  %s3 = inlined_call_operand.vmem [shape: f32[32,5], index: 3, kind: input, shape index: {}]
  %s4 = inlined_call_operand.vmem [shape: f32[1,5], index: 4, kind: input, shape index: {}]
  %s5 = inlined_call_operand.hbm [shape: f32[2,5], index: 5, kind: output, shape index: {}]
  %s6 = sld [smem:[#allocation0]]
  $region30: #{forward.17} parent=0
    _
  %s8 = ssub.s32 1, %s6
  %s9 = scalar_select 0, %s8, %s6
  $region1: #{forward.17} parent=0
    #allocation2 [shape = 'u8[1024]{0}', space=vmem, size = 0x400, scoped, tag = 'output window, operand 0, single buffered']
    #allocation3 [shape = 's32[1]{0}', space=sflag, size = 0x4, scoped, tag = 'scoped memory for forward.17']
    %10 = vsyncpa [#allocation3], 0
    // Predicated region
    $region2: #{forward.17} parent=1 // pred_check
      _
    $region3: #{forward.17} parent=1 // pred_check_branch
      %12 = sbr.rel (0) target = $region5
    $region4: #{forward.17} parent=1 // pred_region
      _
    $region5: #{forward.17} parent=1 // pred_fallthru
      _
    // Predicated region
    $region6: #{forward.17} parent=1 // pred_check
      _
    $region7: #{forward.17} parent=1 // pred_check_branch
      %14 = sbr.rel (0) target = $region9
    $region8: #{forward.17} parent=1 // pred_region
      _
    $region9: #{forward.17} parent=1 // pred_fallthru
      _
    // Predicated region
    $region10: #{forward.17} parent=1 // pred_check
      _
    $region11: #{forward.17} parent=1 // pred_check_branch
      %16 = sbr.rel (0) target = $region13
    $region12: #{forward.17} parent=1 // pred_region
      _
    $region13: #{forward.17} parent=1 // pred_fallthru
      _
    // Predicated region
    $region14: #{forward.17} parent=1 // pred_check
      _
    $region15: #{forward.17} parent=1 // pred_check_branch
      %18 = sbr.rel (0) target = $region17
    $region16: #{forward.17} parent=1 // pred_region
      _
    $region17: #{forward.17} parent=1 // pred_fallthru
      _
    // Predicated region
    $region18: #{forward.17} parent=1 // pred_check
      _
    $region19: #{forward.17} parent=1 // pred_check_branch
      %20 = sbr.rel (0) target = $region21
    $region20: #{forward.17} parent=1 // pred_region
      _
    $region21: #{forward.17} parent=1 // pred_fallthru
      _
    %v22 = vld [vmem:[%s0] sm:$0x3]
    %v23 = vpack.c.bf16 %v22, %v22
    %v24 = vld [vmem:[%s1] sm:$0xff]
    %v25 = vld [vmem:[%s1 + $0x8] sm:$0xff]
    %v26 = vld [vmem:[%s1 + $0x10] sm:$0xff]
    %v27 = vld [vmem:[%s1 + $0x18] sm:$0xff]
    %v28 = vld [vmem:[%s1 + $0x20] sm:$0xff]
    %v29 = vld [vmem:[%s1 + $0x28] sm:$0xff]
    %v30 = vld [vmem:[%s1 + $0x30] sm:$0xff]
    %v31 = vld [vmem:[%s1 + $0x38] sm:$0xff]
    %v32 = vld [vmem:[%s1 + $0x40] sm:$0xff]
    %v33 = vld [vmem:[%s1 + $0x48] sm:$0xff]
    %v34 = vld [vmem:[%s1 + $0x50] sm:$0xff]
    %v35 = vld [vmem:[%s1 + $0x58] sm:$0xff]
    %v36 = vld [vmem:[%s1 + $0x60] sm:$0xff]
    %v37 = vld [vmem:[%s1 + $0x68] sm:$0xff]
    %v38 = vld [vmem:[%s1 + $0x70] sm:$0xff]
    %v39 = vld [vmem:[%s1 + $0x78] sm:$0xff]
    %v40 = vpack.c.bf16 %v25, %v24
    %v41 = vpack.c.bf16 %v27, %v26
    %v42 = vpack.c.bf16 %v29, %v28
    %v43 = vpack.c.bf16 %v31, %v30
    %v44 = vpack.c.bf16 %v33, %v32
    %v45 = vpack.c.bf16 %v35, %v34
    %v46 = vpack.c.bf16 %v37, %v36
    %v47 = vpack.c.bf16 %v39, %v38
    %v48 = vld [vmem:[%s2] sm:$0x1]
    %v50 = vperm.slane %v48, 0
    %52 = vmatpush.bf16.msra.mxu0 %v47
    %53 = vmatpush.bf16.msra.mxu0 %v46
    %54 = vmatpush.bf16.msra.mxu0 %v45
    %55 = vmatpush.bf16.msra.mxu0 %v44
    %56 = vmatpush.bf16.msra.mxu0 %v43
    %57 = vmatpush.bf16.msra.mxu0 %v42
    %58 = vmatpush.bf16.msra.mxu0 %v41
    %59 = vmatpush.bf16.msra.mxu0 %v40
    %60 = vmatmul.bf16.gmra.mxu0 %v23
    %v61 = vpop.f32.mrf.mxu0
    %v62 = vadd.f32 %v50, %v61
    %v63 = vpop.f32.mrf.mxu0
    %64 = vdwg.mxu0
    %v65 = vmax.f32 %v62, 0.0
    %v66 = vpack.c.bf16 %v65, %v65
    %v67 = vld [vmem:[%s3] sm:$0xff]
    %v68 = vld [vmem:[%s3 + $0x8] sm:$0xff]
    %v69 = vld [vmem:[%s3 + $0x10] sm:$0xff]
    %v70 = vld [vmem:[%s3 + $0x18] sm:$0xff]
    %v71 = vpack.c.bf16 %v68, %v67
    %v72 = vpack.c.bf16 %v70, %v69
    %v73 = vld [vmem:[%s4] sm:$0x1]
    %v75 = vperm.slane %v73, 0
    %vm77 = vcmask 261120
    %v79 = vsel %vm77, %v66, 0
    %81 = vmatpush.bf16.msra.mxu0 0
    %82 = vmatpush.bf16.msra.mxu0 0
    %83 = vmatpush.bf16.msra.mxu0 0
    %84 = vmatpush.bf16.msra.mxu0 0
    %85 = vmatpush.bf16.msra.mxu0 0
    %86 = vmatpush.bf16.msra.mxu0 0
    %87 = vmatpush.bf16.msra.mxu0 %v72
    %88 = vmatpush.bf16.msra.mxu0 %v71
    %89 = vmatmul.bf16.gmra.mxu0 %v79
    %v90 = vpop.f32.mrf.mxu0
    %v91 = vadd.f32 %v75, %v90
    %v92 = vpop.f32.mrf.mxu0
    %93 = vdwg.mxu0
    %vm94 = vcmask 33792
    %v95 = vsel %vm94, %v91, -inf
    %96 = vmax.xlane.f32.xlu0 %v95
    %v97 = vpop.xlane.xlu0 %96
    %v98 = vsub.f32 %v91, %v97
    %v99 = vmul.f32 %v98, 1.442695
    %v100 = vpow.pop %v99
    %v101 = vsel %vm94, %v100, 0.0
    %102 = vadd.xlane.f32.xlu0 %v101
    %v103 = vpop.xlane.xlu0 %102
    %v104 = vlog2.pop %v103
    %v105 = vmul.f32 %v104, 0.6931472
    %v106 = vsub.f32 %v98, %v105
    %107 = vst.msk [vmem:[#allocation2] sm:$0x3] %vm94, %v106
    // Predicated region
    $region22: #{forward.17} parent=1 // pred_check
      _
    $region23: #{forward.17} parent=1 // pred_check_branch
      %109 = sbr.rel (0) target = $region25
    $region24: #{forward.17} parent=1 // pred_region
      %111 = vsyncadd [#allocation3], 0
      %s113 = sshll.u32 [#allocation2], 4
      %s114 = int_to_ptr.vmem [resolvable:$true] %s113
      %s115 = sshll.u32 %s5, 4
      %s116 = int_to_ptr.hbm [resolvable:$true] %s115
      %118 = dma.vmem_to_hbm [thread:$0]  %s114, 32, %s116, [#allocation3]
    $region25: #{forward.17} parent=1 // pred_fallthru
      _
    // Predicated region
    $region26: #{forward.17} parent=1 // pred_check
      _
    $region27: #{forward.17} parent=1 // pred_check_branch
      %120 = sbr.rel (0) target = $region29
    $region28: #{forward.17} parent=1 // pred_region
      %122 = dma.done [#allocation3], 32
    $region29: #{forward.17} parent=1 // pred_fallthru
      _
    %123 = vsyncpa [#allocation3], 1

</llo_original>
